<compile_context>
chip_gen: v7x
topology: tpu7x:2x2x1
jax: 0.10.0
libtpu: 0.0.40
codegen_flags: <defaults>
</compile_context>

<pallas_src>
import numpy as np
import jax
import jax.numpy as jnp
from jax.experimental import pallas as pl
from jax.experimental.pallas import tpu as pltpu

NUM_GROUPS = 32
EPS = 1e-5


def _round_up(v, m):
    return (v + m - 1) // m * m


def _group_avg_matrix(c, groups, hw):
    """(C,C) matrix s.t. (per-channel spatial sums) @ A = per-channel group mean."""
    cpg = c // groups
    m = np.zeros((c, groups), np.float32)
    for ch in range(c):
        m[ch, ch // cpg] = 1.0
    return jnp.asarray((m @ m.T) / float(cpg * hw))


def _make_kernel(H, W, C_in, C_out, has_residual):
    HW = H * W

    def body(x_ref, a1_ref, g1_ref, bt1_ref, w1_ref, b1_ref,
             a2_ref, g2_ref, bt2_ref, w2_ref, b2_ref,
             wr_ref, br_ref,
             out_ref, pad1_ref, col1_ref, pad2_ref, col2_ref):

        def gn_silu(h2, a_ref, gamma, beta):
            # GroupNorm(32), biased variance (PyTorch semantics), fused with SiLU.
            # Statistics kept in f32 end-to-end.
            s = jnp.sum(h2, axis=0, keepdims=True)           # (1, C) spatial sums
            sq = jnp.sum(h2 * h2, axis=0, keepdims=True)     # (1, C) spatial sum sq
            mean = jnp.dot(s, a_ref[...], precision=jax.lax.Precision.HIGHEST,
                           preferred_element_type=jnp.float32)
            ex2 = jnp.dot(sq, a_ref[...], precision=jax.lax.Precision.HIGHEST,
                          preferred_element_type=jnp.float32)
            inv = jax.lax.rsqrt(ex2 - mean * mean + EPS)
            y = (h2 - mean) * inv * gamma + beta
            return y * jax.nn.sigmoid(y)                     # SiLU

        def conv3x3(h2, pad_ref, col_ref, w_ref, bias, c):
            Wp = pad_ref.shape[1]
            # Zero only the 1-element halo border; the interior is fully overwritten.
            pad_ref[0:1, :, :] = jnp.zeros((1, Wp, c), jnp.float32)
            pad_ref[H + 1:H + 2, :, :] = jnp.zeros((1, Wp, c), jnp.float32)
            pad_ref[:, 0:1, :] = jnp.zeros((H + 2, 1, c), jnp.float32)
            pad_ref[:, W + 1:W + 2, :] = jnp.zeros((H + 2, 1, c), jnp.float32)
            pad_ref[1:H + 1, 1:W + 1, :] = h2.reshape(H, W, c)
            # im2col: 9 shifted tap copies (bf16) -> one big MXU matmul, K = 9*c.
            for kh in range(3):
                for kw in range(3):
                    t = (3 * kh + kw) * c
                    col_ref[:, t:t + c] = (
                        pad_ref[kh:kh + H, kw:kw + W, :]
                        .reshape(HW, c).astype(jnp.bfloat16))
            return jnp.dot(col_ref[...], w_ref[...],
                           preferred_element_type=jnp.float32) + bias

        x2 = x_ref[0].reshape(HW, C_in)                      # (HW, C_in) f32
        h = gn_silu(x2, a1_ref, g1_ref[...], bt1_ref[...])
        h = conv3x3(h, pad1_ref, col1_ref, w1_ref, b1_ref[...], C_in)
        h = gn_silu(h, a2_ref, g2_ref[...], bt2_ref[...])
        h = conv3x3(h, pad2_ref, col2_ref, w2_ref, b2_ref[...], C_out)

        if has_residual:
            res = jnp.dot(x2.astype(jnp.bfloat16), wr_ref[...],
                          preferred_element_type=jnp.float32) + br_ref[...]
        else:
            res = x2        # identity skip (C_in == C_out), exact, no matmul emitted

        out_ref[0] = (h + res).reshape(H, W, C_out)

    if has_residual:
        return body

    def kernel_no_res(x_ref, a1_ref, g1_ref, bt1_ref, w1_ref, b1_ref,
                      a2_ref, g2_ref, bt2_ref, w2_ref, b2_ref,
                      out_ref, pad1_ref, col1_ref, pad2_ref, col2_ref):
        body(x_ref, a1_ref, g1_ref, bt1_ref, w1_ref, b1_ref,
             a2_ref, g2_ref, bt2_ref, w2_ref, b2_ref,
             None, None,
             out_ref, pad1_ref, col1_ref, pad2_ref, col2_ref)

    return kernel_no_res


def vae_residual_block(x_nchw, params):
    N, C_in, H, W = x_nchw.shape
    C_out = params["w2"].shape[0]
    has_residual = params.get("wr") is not None
    HW = H * W
    Wp = _round_up(W + 2, 8)

    x = jnp.transpose(x_nchw, (0, 2, 3, 1)).astype(jnp.float32)   # NCHW -> NHWC

    a1 = _group_avg_matrix(C_in, NUM_GROUPS, HW)
    a2 = _group_avg_matrix(C_out, NUM_GROUPS, HW)

    # PyTorch OIHW -> (kh, kw, I, O) -> im2col layout (9*I, O), bf16 for the MXU.
    w1 = jnp.transpose(params["w1"], (2, 3, 1, 0)).reshape(9 * C_in, C_out).astype(jnp.bfloat16)
    w2 = jnp.transpose(params["w2"], (2, 3, 1, 0)).reshape(9 * C_out, C_out).astype(jnp.bfloat16)

    g1 = params["gn1_g"].reshape(1, C_in).astype(jnp.float32)
    bt1 = params["gn1_b"].reshape(1, C_in).astype(jnp.float32)
    g2 = params["gn2_g"].reshape(1, C_out).astype(jnp.float32)
    bt2 = params["gn2_b"].reshape(1, C_out).astype(jnp.float32)
    b1 = params["b1"].reshape(1, C_out).astype(jnp.float32)
    b2 = params["b2"].reshape(1, C_out).astype(jnp.float32)

    def full(shape):
        return pl.BlockSpec(shape, lambda n, _k=len(shape): (0,) * _k)

    in_specs = [
        pl.BlockSpec((1, H, W, C_in), lambda n: (n, 0, 0, 0)),   # x (per-batch block)
        full((C_in, C_in)),                                       # group-avg matrix 1
        full((1, C_in)), full((1, C_in)),                         # gn1 gamma / beta
        full((9 * C_in, C_out)), full((1, C_out)),                # conv1 im2col w / b
        full((C_out, C_out)),                                     # group-avg matrix 2
        full((1, C_out)), full((1, C_out)),                       # gn2 gamma / beta
        full((9 * C_out, C_out)), full((1, C_out)),               # conv2 im2col w / b
    ]
    inputs = [x, a1, g1, bt1, w1, b1, a2, g2, bt2, w2, b2]

    if has_residual:
        wr = jnp.transpose(params["wr"][:, :, 0, 0], (1, 0)).astype(jnp.bfloat16)  # (C_in, C_out)
        br = params["br"].reshape(1, C_out).astype(jnp.float32)
        in_specs += [full((C_in, C_out)), full((1, C_out))]
        inputs += [wr, br]

    scratch_shapes = [
        pltpu.VMEM((H + 2, Wp, C_in), jnp.float32),    # conv1 halo-pad buffer (f32 stats path)
        pltpu.VMEM((HW, 9 * C_in), jnp.bfloat16),      # conv1 im2col slab (bf16 MXU operand)
        pltpu.VMEM((H + 2, Wp, C_out), jnp.float32),   # conv2 halo-pad buffer
        pltpu.VMEM((HW, 9 * C_out), jnp.bfloat16),     # conv2 im2col slab
    ]

    # Explicit VMEM budget from the real footprint (with headroom), clamped.
    est = 0
    est += 2 * HW * (C_in + C_out) * 4                           # double-buffered x / out blocks
    est += 2 * (9 * C_in + 9 * C_out + C_in) * C_out * 2         # bf16 weights (double-buffered)
    est += 2 * (C_in * C_in + C_out * C_out + 4 * (C_in + C_out)) * 4
    est += (H + 2) * Wp * (C_in + C_out) * 4                     # pad scratch (f32)
    est += HW * 9 * (C_in + C_out) * 2                           # im2col scratch (bf16)
    est += 6 * HW * max(C_in, C_out) * 4                         # live f32 working values
    vmem_limit = int(min(120 * 1024 * 1024, max(32 * 1024 * 1024, 2 * est)))

    kernel = _make_kernel(H, W, C_in, C_out, has_residual)

    grid_spec = pltpu.PrefetchScalarGridSpec(
        num_scalar_prefetch=0,
        grid=(N,),
        in_specs=in_specs,
        out_specs=pl.BlockSpec((1, H, W, C_out), lambda n: (n, 0, 0, 0)),
        scratch_shapes=scratch_shapes,
    )

    out_nhwc = pl.pallas_call(
        kernel,
        out_shape=jax.ShapeDtypeStruct((N, H, W, C_out), jnp.float32),
        grid_spec=grid_spec,
        compiler_params=pltpu.CompilerParams(
            dimension_semantics=("parallel",),
            vmem_limit_bytes=vmem_limit),
    )(*inputs)

    return jnp.transpose(out_nhwc, (0, 3, 1, 2))   # NHWC -> NCHW


# ---------------- pure-JAX reference (PyTorch semantics) ----------------
def ref_forward(x, params, groups=NUM_GROUPS, eps=EPS):
    def gn(h, gamma, beta):
        N, C, H, W = h.shape
        hg = h.reshape(N, groups, C // groups, H, W)
        mean = hg.mean(axis=(2, 3, 4), keepdims=True)
        var = ((hg - mean) ** 2).mean(axis=(2, 3, 4), keepdims=True)
        hn = ((hg - mean) / jnp.sqrt(var + eps)).reshape(N, C, H, W)
        return hn * gamma.reshape(1, -1, 1, 1) + beta.reshape(1, -1, 1, 1)

    def silu(h):
        return h * jax.nn.sigmoid(h)

    def conv(h, w, b, pad):
        y = jax.lax.conv_general_dilated(
            h, w, window_strides=(1, 1), padding=[(pad, pad), (pad, pad)],
            dimension_numbers=("NCHW", "OIHW", "NCHW"))
        return y + b.reshape(1, -1, 1, 1)

    h = conv(silu(gn(x, params["gn1_g"], params["gn1_b"])), params["w1"], params["b1"], 1)
    h = conv(silu(gn(h, params["gn2_g"], params["gn2_b"])), params["w2"], params["b2"], 1)
    if params.get("wr") is not None:
        res = conv(x, params["wr"], params["br"], 0)
    else:
        res = x
    return h + res


def _make_params(key, C_in, C_out, identity_skip):
    ks = jax.random.split(key, 10)
    p = {
        "gn1_g": 1.0 + 0.1 * jax.random.normal(ks[0], (C_in,), jnp.float32),
        "gn1_b": 0.1 * jax.random.normal(ks[1], (C_in,), jnp.float32),
        "w1": 0.05 * jax.random.normal(ks[2], (C_out, C_in, 3, 3), jnp.float32),
        "b1": 0.05 * jax.random.normal(ks[3], (C_out,), jnp.float32),
        "gn2_g": 1.0 + 0.1 * jax.random.normal(ks[4], (C_out,), jnp.float32),
        "gn2_b": 0.1 * jax.random.normal(ks[5], (C_out,), jnp.float32),
        "w2": 0.05 * jax.random.normal(ks[6], (C_out, C_out, 3, 3), jnp.float32),
        "b2": 0.05 * jax.random.normal(ks[7], (C_out,), jnp.float32),
    }
    if identity_skip:
        p["wr"] = None
        p["br"] = None
    else:
        p["wr"] = 0.1 * jax.random.normal(ks[8], (C_out, C_in, 1, 1), jnp.float32)
        p["br"] = 0.05 * jax.random.normal(ks[9], (C_out,), jnp.float32)
    return p


if __name__ == "__main__":
    key = jax.random.PRNGKey(0)
    k1, k2, k3, k4 = jax.random.split(key, 4)

    # Config A: in_channels != out_channels (1x1 projection residual).
    # GroupNorm(32, C) needs channels % 32 == 0 -> smallest valid: 32 -> 64.
    N, C_in, C_out, H, W = 2, 32, 64, 16, 16
    x_a = jax.random.normal(k1, (N, C_in, H, W), jnp.float32)
    p_a = _make_params(k2, C_in, C_out, identity_skip=False)
    out_a = jax.block_until_ready(vae_residual_block(x_a, p_a))
    ref_a = jax.block_until_ready(ref_forward(x_a, p_a))
    assert out_a.shape == (N, C_out, H, W), out_a.shape
    err_a = float(jnp.max(jnp.abs(out_a - ref_a)))
    if err_a > 5e-2:   # bf16 MXU path vs f32 reference
        raise AssertionError(f"config A mismatch, max abs err = {err_a}")

    # Config B: in_channels == out_channels (identity residual -> no residual matmul).
    C = 64
    x_b = jax.random.normal(k3, (1, C, H, W), jnp.float32)
    p_b = _make_params(k4, C, C, identity_skip=True)
    out_b = jax.block_until_ready(vae_residual_block(x_b, p_b))
    ref_b = jax.block_until_ready(ref_forward(x_b, p_b))
    assert out_b.shape == (1, C, H, W), out_b.shape
    err_b = float(jnp.max(jnp.abs(out_b - ref_b)))
    if err_b > 5e-2:
        raise AssertionError(f"config B mismatch, max abs err = {err_b}")

    print("KERNEL_OK")
</pallas_src>

<mosaic_0001>
module attributes {stable_mosaic.version = 11 : i64} {
  func.func @body(%arg0: i32, %arg1: memref<1x16x16x32xf32, #tpu.memory_space<vmem>>, %arg2: memref<32x32xf32, #tpu.memory_space<vmem>>, %arg3: memref<1x32xf32, #tpu.memory_space<vmem>>, %arg4: memref<1x32xf32, #tpu.memory_space<vmem>>, %arg5: memref<288x64xbf16, #tpu.memory_space<vmem>>, %arg6: memref<1x64xf32, #tpu.memory_space<vmem>>, %arg7: memref<64x64xf32, #tpu.memory_space<vmem>>, %arg8: memref<1x64xf32, #tpu.memory_space<vmem>>, %arg9: memref<1x64xf32, #tpu.memory_space<vmem>>, %arg10: memref<576x64xbf16, #tpu.memory_space<vmem>>, %arg11: memref<1x64xf32, #tpu.memory_space<vmem>>, %arg12: memref<32x64xbf16, #tpu.memory_space<vmem>>, %arg13: memref<1x64xf32, #tpu.memory_space<vmem>>, %arg14: memref<1x16x16x64xf32, #tpu.memory_space<vmem>>, %arg15: memref<18x24x32xf32, #tpu.memory_space<vmem>>, %arg16: memref<256x288xbf16, #tpu.memory_space<vmem>>, %arg17: memref<18x24x64xf32, #tpu.memory_space<vmem>>, %arg18: memref<256x576xbf16, #tpu.memory_space<vmem>>) attributes {dimension_semantics = [#tpu.dimension_semantics<parallel>], iteration_bounds = array<i64: 2>, scalar_prefetch = 0 : i64, scratch_operands = 4 : i64, tpu.core_type = #tpu.core_type<tc>, window_params = [{transform_indices = @transform_0, window_bounds = array<i64: 1, 16, 16, 32>}, {pipeline_mode = #tpu.pipeline_mode<synchronous>, transform_indices = @transform_1, window_bounds = array<i64: 32, 32>}, {pipeline_mode = #tpu.pipeline_mode<synchronous>, transform_indices = @transform_2, window_bounds = array<i64: 1, 32>}, {pipeline_mode = #tpu.pipeline_mode<synchronous>, transform_indices = @transform_3, window_bounds = array<i64: 1, 32>}, {pipeline_mode = #tpu.pipeline_mode<synchronous>, transform_indices = @transform_4, window_bounds = array<i64: 288, 64>}, {pipeline_mode = #tpu.pipeline_mode<synchronous>, transform_indices = @transform_5, window_bounds = array<i64: 1, 64>}, {pipeline_mode = #tpu.pipeline_mode<synchronous>, transform_indices = @transform_6, window_bounds = array<i64: 64, 64>}, {pipeline_mode = #tpu.pipeline_mode<synchronous>, transform_indices = @transform_7, window_bounds = array<i64: 1, 64>}, {pipeline_mode = #tpu.pipeline_mode<synchronous>, transform_indices = @transform_8, window_bounds = array<i64: 1, 64>}, {pipeline_mode = #tpu.pipeline_mode<synchronous>, transform_indices = @transform_9, window_bounds = array<i64: 576, 64>}, {pipeline_mode = #tpu.pipeline_mode<synchronous>, transform_indices = @transform_10, window_bounds = array<i64: 1, 64>}, {pipeline_mode = #tpu.pipeline_mode<synchronous>, transform_indices = @transform_11, window_bounds = array<i64: 32, 64>}, {pipeline_mode = #tpu.pipeline_mode<synchronous>, transform_indices = @transform_12, window_bounds = array<i64: 1, 64>}, {transform_indices = @transform_13, window_bounds = array<i64: 1, 16, 16, 64>}]} {
    %c0 = arith.constant 0 : index
    %c0_0 = arith.constant 0 : index
    %c0_1 = arith.constant 0 : index
    %c0_2 = arith.constant 0 : index
    %0 = vector.load %arg1[%c0, %c0_0, %c0_1, %c0_2] : memref<1x16x16x32xf32, #tpu.memory_space<vmem>>, vector<1x16x16x32xf32>
    %1 = vector.shape_cast %0 : vector<1x16x16x32xf32> to vector<16x16x32xf32>
    %2 = vector.shape_cast %1 : vector<16x16x32xf32> to vector<256x32xf32>
    %c0_3 = arith.constant 0 : index
    %c0_4 = arith.constant 0 : index
    %3 = vector.load %arg3[%c0_3, %c0_4] : memref<1x32xf32, #tpu.memory_space<vmem>>, vector<1x32xf32>
    %c0_5 = arith.constant 0 : index
    %c0_6 = arith.constant 0 : index
    %4 = vector.load %arg4[%c0_5, %c0_6] : memref<1x32xf32, #tpu.memory_space<vmem>>, vector<1x32xf32>
    %cst = arith.constant dense<0.000000e+00> : vector<32xf32>
    %5 = vector.multi_reduction <add>, %2, %cst [0] : vector<256x32xf32> to vector<32xf32>
    %6 = vector.shape_cast %5 : vector<32xf32> to vector<1x32xf32>
    %7 = arith.mulf %2, %2 : vector<256x32xf32>
    %cst_7 = arith.constant dense<0.000000e+00> : vector<32xf32>
    %8 = vector.multi_reduction <add>, %7, %cst_7 [0] : vector<256x32xf32> to vector<32xf32>
    %9 = vector.shape_cast %8 : vector<32xf32> to vector<1x32xf32>
    %c0_8 = arith.constant 0 : index
    %c0_9 = arith.constant 0 : index
    %10 = vector.load %arg2[%c0_8, %c0_9] : memref<32x32xf32, #tpu.memory_space<vmem>>, vector<32x32xf32>
    %cst_10 = arith.constant dense<0.000000e+00> : vector<1x32xf32>
    %11 = tpu.matmul %6, %10, %cst_10 {dimension_numbers = #tpu.dot_dimension_numbers<[1], [0], [0], [1], [0, 0, 1, 1], [], []>, precision = #tpu.contract_precision<fp32>} : vector<1x32xf32>, vector<32x32xf32>, vector<1x32xf32> -> vector<1x32xf32>
    %c0_11 = arith.constant 0 : index
    %c0_12 = arith.constant 0 : index
    %12 = vector.load %arg2[%c0_11, %c0_12] : memref<32x32xf32, #tpu.memory_space<vmem>>, vector<32x32xf32>
    %cst_13 = arith.constant dense<0.000000e+00> : vector<1x32xf32>
    %13 = tpu.matmul %9, %12, %cst_13 {dimension_numbers = #tpu.dot_dimension_numbers<[1], [0], [0], [1], [0, 0, 1, 1], [], []>, precision = #tpu.contract_precision<fp32>} : vector<1x32xf32>, vector<32x32xf32>, vector<1x32xf32> -> vector<1x32xf32>
    %14 = arith.mulf %11, %11 : vector<1x32xf32>
    %15 = arith.subf %13, %14 : vector<1x32xf32>
    %cst_14 = arith.constant 9.99999974E-6 : f32
    %16 = vector.broadcast %cst_14 : f32 to vector<1x32xf32>
    %17 = arith.addf %15, %16 : vector<1x32xf32>
    %18 = math.rsqrt %17 : vector<1x32xf32>
    %19 = vector.broadcast %11 : vector<1x32xf32> to vector<256x32xf32>
    %20 = arith.subf %2, %19 : vector<256x32xf32>
    %21 = vector.broadcast %18 : vector<1x32xf32> to vector<256x32xf32>
    %22 = arith.mulf %20, %21 : vector<256x32xf32>
    %23 = vector.broadcast %3 : vector<1x32xf32> to vector<256x32xf32>
    %24 = arith.mulf %22, %23 : vector<256x32xf32>
    %25 = vector.broadcast %4 : vector<1x32xf32> to vector<256x32xf32>
    %26 = arith.addf %24, %25 : vector<256x32xf32>
    %27 = arith.negf %26 : vector<256x32xf32>
    %28 = math.exp %27 : vector<256x32xf32>
    %cst_15 = arith.constant 1.000000e+00 : f32
    %29 = vector.broadcast %cst_15 : f32 to vector<256x32xf32>
    %30 = arith.addf %29, %28 : vector<256x32xf32>
    %31 = arith.divf %29, %30 : vector<256x32xf32>
    %32 = arith.mulf %26, %31 : vector<256x32xf32>
    %c0_16 = arith.constant 0 : index
    %c0_17 = arith.constant 0 : index
    %33 = vector.load %arg6[%c0_16, %c0_17] : memref<1x64xf32, #tpu.memory_space<vmem>>, vector<1x64xf32>
    %cst_18 = arith.constant 0.000000e+00 : f32
    %34 = vector.broadcast %cst_18 : f32 to vector<1x24x32xf32>
    %c0_19 = arith.constant 0 : index
    %c0_20 = arith.constant 0 : index
    %c0_21 = arith.constant 0 : index
    %35 = vector.load %arg15[%c0_19, %c0_20, %c0_21] : memref<18x24x32xf32, #tpu.memory_space<vmem>>, vector<1x24x32xf32>
    tpu.vector_store %arg15[%c0_19, %c0_20, %c0_21], %34 {strides = array<i32>} : memref<18x24x32xf32, #tpu.memory_space<vmem>>, vector<1x24x32xf32>,
    %cst_22 = arith.constant 0.000000e+00 : f32
    %36 = vector.broadcast %cst_22 : f32 to vector<1x24x32xf32>
    %c17 = arith.constant 17 : index
    %c0_23 = arith.constant 0 : index
    %c0_24 = arith.constant 0 : index
    %37 = vector.load %arg15[%c17, %c0_23, %c0_24] : memref<18x24x32xf32, #tpu.memory_space<vmem>>, vector<1x24x32xf32>
    tpu.vector_store %arg15[%c17, %c0_23, %c0_24], %36 {strides = array<i32>} : memref<18x24x32xf32, #tpu.memory_space<vmem>>, vector<1x24x32xf32>,
    %cst_25 = arith.constant 0.000000e+00 : f32
    %38 = vector.broadcast %cst_25 : f32 to vector<18x1x32xf32>
    %c0_26 = arith.constant 0 : index
    %c0_27 = arith.constant 0 : index
    %c0_28 = arith.constant 0 : index
    %39 = vector.load %arg15[%c0_26, %c0_27, %c0_28] : memref<18x24x32xf32, #tpu.memory_space<vmem>>, vector<18x1x32xf32>
    tpu.vector_store %arg15[%c0_26, %c0_27, %c0_28], %38 {strides = array<i32>} : memref<18x24x32xf32, #tpu.memory_space<vmem>>, vector<18x1x32xf32>,
    %cst_29 = arith.constant 0.000000e+00 : f32
    %40 = vector.broadcast %cst_29 : f32 to vector<18x1x32xf32>
    %c0_30 = arith.constant 0 : index
    %c17_31 = arith.constant 17 : index
    %c0_32 = arith.constant 0 : index
    %41 = vector.load %arg15[%c0_30, %c17_31, %c0_32] : memref<18x24x32xf32, #tpu.memory_space<vmem>>, vector<18x1x32xf32>
    tpu.vector_store %arg15[%c0_30, %c17_31, %c0_32], %40 {strides = array<i32>} : memref<18x24x32xf32, #tpu.memory_space<vmem>>, vector<18x1x32xf32>,
    %42 = vector.shape_cast %32 : vector<256x32xf32> to vector<16x16x32xf32>
    %c1 = arith.constant 1 : index
    %c1_33 = arith.constant 1 : index
    %c0_34 = arith.constant 0 : index
    %43 = vector.load %arg15[%c1, %c1_33, %c0_34] : memref<18x24x32xf32, #tpu.memory_space<vmem>>, vector<16x16x32xf32>
    tpu.vector_store %arg15[%c1, %c1_33, %c0_34], %42 {strides = array<i32>} : memref<18x24x32xf32, #tpu.memory_space<vmem>>, vector<16x16x32xf32>,
    %c0_35 = arith.constant 0 : index
    %c0_36 = arith.constant 0 : index
    %c0_37 = arith.constant 0 : index
    %44 = vector.load %arg15[%c0_35, %c0_36, %c0_37] : memref<18x24x32xf32, #tpu.memory_space<vmem>>, vector<16x16x32xf32>
    %45 = vector.shape_cast %44 : vector<16x16x32xf32> to vector<256x32xf32>
    %46 = arith.truncf %45 : vector<256x32xf32> to vector<256x32xbf16>
    %c0_38 = arith.constant 0 : index
    %c0_39 = arith.constant 0 : index
    %47 = vector.load %arg16[%c0_38, %c0_39] : memref<256x288xbf16, #tpu.memory_space<vmem>>, vector<256x32xbf16>
    tpu.vector_store %arg16[%c0_38, %c0_39], %46 {strides = array<i32>} : memref<256x288xbf16, #tpu.memory_space<vmem>>, vector<256x32xbf16>,
    %c0_40 = arith.constant 0 : index
    %c1_41 = arith.constant 1 : index
    %c0_42 = arith.constant 0 : index
    %48 = vector.load %arg15[%c0_40, %c1_41, %c0_42] : memref<18x24x32xf32, #tpu.memory_space<vmem>>, vector<16x16x32xf32>
    %49 = vector.shape_cast %48 : vector<16x16x32xf32> to vector<256x32xf32>
    %50 = arith.truncf %49 : vector<256x32xf32> to vector<256x32xbf16>
    %c0_43 = arith.constant 0 : index
    %c32 = arith.constant 32 : index
    %51 = vector.load %arg16[%c0_43, %c32] : memref<256x288xbf16, #tpu.memory_space<vmem>>, vector<256x32xbf16>
    tpu.vector_store %arg16[%c0_43, %c32], %50 {strides = array<i32>} : memref<256x288xbf16, #tpu.memory_space<vmem>>, vector<256x32xbf16>,
    %c0_44 = arith.constant 0 : index
    %c2 = arith.constant 2 : index
    %c0_45 = arith.constant 0 : index
    %52 = vector.load %arg15[%c0_44, %c2, %c0_45] : memref<18x24x32xf32, #tpu.memory_space<vmem>>, vector<16x16x32xf32>
    %53 = vector.shape_cast %52 : vector<16x16x32xf32> to vector<256x32xf32>
    %54 = arith.truncf %53 : vector<256x32xf32> to vector<256x32xbf16>
    %c0_46 = arith.constant 0 : index
    %c64 = arith.constant 64 : index
    %55 = vector.load %arg16[%c0_46, %c64] : memref<256x288xbf16, #tpu.memory_space<vmem>>, vector<256x32xbf16>
    tpu.vector_store %arg16[%c0_46, %c64], %54 {strides = array<i32>} : memref<256x288xbf16, #tpu.memory_space<vmem>>, vector<256x32xbf16>,
    %c1_47 = arith.constant 1 : index
    %c0_48 = arith.constant 0 : index
    %c0_49 = arith.constant 0 : index
    %56 = vector.load %arg15[%c1_47, %c0_48, %c0_49] : memref<18x24x32xf32, #tpu.memory_space<vmem>>, vector<16x16x32xf32>
    %57 = vector.shape_cast %56 : vector<16x16x32xf32> to vector<256x32xf32>
    %58 = arith.truncf %57 : vector<256x32xf32> to vector<256x32xbf16>
    %c0_50 = arith.constant 0 : index
    %c96 = arith.constant 96 : index
    %59 = vector.load %arg16[%c0_50, %c96] : memref<256x288xbf16, #tpu.memory_space<vmem>>, vector<256x32xbf16>
    tpu.vector_store %arg16[%c0_50, %c96], %58 {strides = array<i32>} : memref<256x288xbf16, #tpu.memory_space<vmem>>, vector<256x32xbf16>,
    %c1_51 = arith.constant 1 : index
    %c1_52 = arith.constant 1 : index
    %c0_53 = arith.constant 0 : index
    %60 = vector.load %arg15[%c1_51, %c1_52, %c0_53] : memref<18x24x32xf32, #tpu.memory_space<vmem>>, vector<16x16x32xf32>
    %61 = vector.shape_cast %60 : vector<16x16x32xf32> to vector<256x32xf32>
    %62 = arith.truncf %61 : vector<256x32xf32> to vector<256x32xbf16>
    %c0_54 = arith.constant 0 : index
    %c128 = arith.constant 128 : index
    %63 = vector.load %arg16[%c0_54, %c128] : memref<256x288xbf16, #tpu.memory_space<vmem>>, vector<256x32xbf16>
    tpu.vector_store %arg16[%c0_54, %c128], %62 {strides = array<i32>} : memref<256x288xbf16, #tpu.memory_space<vmem>>, vector<256x32xbf16>,
    %c1_55 = arith.constant 1 : index
    %c2_56 = arith.constant 2 : index
    %c0_57 = arith.constant 0 : index
    %64 = vector.load %arg15[%c1_55, %c2_56, %c0_57] : memref<18x24x32xf32, #tpu.memory_space<vmem>>, vector<16x16x32xf32>
    %65 = vector.shape_cast %64 : vector<16x16x32xf32> to vector<256x32xf32>
    %66 = arith.truncf %65 : vector<256x32xf32> to vector<256x32xbf16>
    %c0_58 = arith.constant 0 : index
    %c160 = arith.constant 160 : index
    %67 = vector.load %arg16[%c0_58, %c160] : memref<256x288xbf16, #tpu.memory_space<vmem>>, vector<256x32xbf16>
    tpu.vector_store %arg16[%c0_58, %c160], %66 {strides = array<i32>} : memref<256x288xbf16, #tpu.memory_space<vmem>>, vector<256x32xbf16>,
    %c2_59 = arith.constant 2 : index
    %c0_60 = arith.constant 0 : index
    %c0_61 = arith.constant 0 : index
    %68 = vector.load %arg15[%c2_59, %c0_60, %c0_61] : memref<18x24x32xf32, #tpu.memory_space<vmem>>, vector<16x16x32xf32>
    %69 = vector.shape_cast %68 : vector<16x16x32xf32> to vector<256x32xf32>
    %70 = arith.truncf %69 : vector<256x32xf32> to vector<256x32xbf16>
    %c0_62 = arith.constant 0 : index
    %c192 = arith.constant 192 : index
    %71 = vector.load %arg16[%c0_62, %c192] : memref<256x288xbf16, #tpu.memory_space<vmem>>, vector<256x32xbf16>
    tpu.vector_store %arg16[%c0_62, %c192], %70 {strides = array<i32>} : memref<256x288xbf16, #tpu.memory_space<vmem>>, vector<256x32xbf16>,
    %c2_63 = arith.constant 2 : index
    %c1_64 = arith.constant 1 : index
    %c0_65 = arith.constant 0 : index
    %72 = vector.load %arg15[%c2_63, %c1_64, %c0_65] : memref<18x24x32xf32, #tpu.memory_space<vmem>>, vector<16x16x32xf32>
    %73 = vector.shape_cast %72 : vector<16x16x32xf32> to vector<256x32xf32>
    %74 = arith.truncf %73 : vector<256x32xf32> to vector<256x32xbf16>
    %c0_66 = arith.constant 0 : index
    %c224 = arith.constant 224 : index
    %75 = vector.load %arg16[%c0_66, %c224] : memref<256x288xbf16, #tpu.memory_space<vmem>>, vector<256x32xbf16>
    tpu.vector_store %arg16[%c0_66, %c224], %74 {strides = array<i32>} : memref<256x288xbf16, #tpu.memory_space<vmem>>, vector<256x32xbf16>,
    %c2_67 = arith.constant 2 : index
    %c2_68 = arith.constant 2 : index
    %c0_69 = arith.constant 0 : index
    %76 = vector.load %arg15[%c2_67, %c2_68, %c0_69] : memref<18x24x32xf32, #tpu.memory_space<vmem>>, vector<16x16x32xf32>
    %77 = vector.shape_cast %76 : vector<16x16x32xf32> to vector<256x32xf32>
    %78 = arith.truncf %77 : vector<256x32xf32> to vector<256x32xbf16>
    %c0_70 = arith.constant 0 : index
    %c256 = arith.constant 256 : index
    %79 = vector.load %arg16[%c0_70, %c256] : memref<256x288xbf16, #tpu.memory_space<vmem>>, vector<256x32xbf16>
    tpu.vector_store %arg16[%c0_70, %c256], %78 {strides = array<i32>} : memref<256x288xbf16, #tpu.memory_space<vmem>>, vector<256x32xbf16>,
    %c0_71 = arith.constant 0 : index
    %c0_72 = arith.constant 0 : index
    %80 = vector.load %arg16[%c0_71, %c0_72] : memref<256x288xbf16, #tpu.memory_space<vmem>>, vector<256x288xbf16>
    %c0_73 = arith.constant 0 : index
    %c0_74 = arith.constant 0 : index
    %81 = vector.load %arg5[%c0_73, %c0_74] : memref<288x64xbf16, #tpu.memory_space<vmem>>, vector<288x64xbf16>
    %cst_75 = arith.constant dense<0.000000e+00> : vector<256x64xf32>
    %82 = tpu.matmul %80, %81, %cst_75 {dimension_numbers = #tpu.dot_dimension_numbers<[1], [0], [0], [1], [0, 0, 1, 1], [], []>} : vector<256x288xbf16>, vector<288x64xbf16>, vector<256x64xf32> -> vector<256x64xf32>
    %83 = vector.broadcast %33 : vector<1x64xf32> to vector<256x64xf32>
    %84 = arith.addf %82, %83 : vector<256x64xf32>
    %c0_76 = arith.constant 0 : index
    %c0_77 = arith.constant 0 : index
    %85 = vector.load %arg8[%c0_76, %c0_77] : memref<1x64xf32, #tpu.memory_space<vmem>>, vector<1x64xf32>
    %c0_78 = arith.constant 0 : index
    %c0_79 = arith.constant 0 : index
    %86 = vector.load %arg9[%c0_78, %c0_79] : memref<1x64xf32, #tpu.memory_space<vmem>>, vector<1x64xf32>
    %cst_80 = arith.constant dense<0.000000e+00> : vector<64xf32>
    %87 = vector.multi_reduction <add>, %84, %cst_80 [0] : vector<256x64xf32> to vector<64xf32>
    %88 = vector.shape_cast %87 : vector<64xf32> to vector<1x64xf32>
    %89 = arith.mulf %84, %84 : vector<256x64xf32>
    %cst_81 = arith.constant dense<0.000000e+00> : vector<64xf32>
    %90 = vector.multi_reduction <add>, %89, %cst_81 [0] : vector<256x64xf32> to vector<64xf32>
    %91 = vector.shape_cast %90 : vector<64xf32> to vector<1x64xf32>
    %c0_82 = arith.constant 0 : index
    %c0_83 = arith.constant 0 : index
    %92 = vector.load %arg7[%c0_82, %c0_83] : memref<64x64xf32, #tpu.memory_space<vmem>>, vector<64x64xf32>
    %cst_84 = arith.constant dense<0.000000e+00> : vector<1x64xf32>
    %93 = tpu.matmul %88, %92, %cst_84 {dimension_numbers = #tpu.dot_dimension_numbers<[1], [0], [0], [1], [0, 0, 1, 1], [], []>, precision = #tpu.contract_precision<fp32>} : vector<1x64xf32>, vector<64x64xf32>, vector<1x64xf32> -> vector<1x64xf32>
    %c0_85 = arith.constant 0 : index
    %c0_86 = arith.constant 0 : index
    %94 = vector.load %arg7[%c0_85, %c0_86] : memref<64x64xf32, #tpu.memory_space<vmem>>, vector<64x64xf32>
    %cst_87 = arith.constant dense<0.000000e+00> : vector<1x64xf32>
    %95 = tpu.matmul %91, %94, %cst_87 {dimension_numbers = #tpu.dot_dimension_numbers<[1], [0], [0], [1], [0, 0, 1, 1], [], []>, precision = #tpu.contract_precision<fp32>} : vector<1x64xf32>, vector<64x64xf32>, vector<1x64xf32> -> vector<1x64xf32>
    %96 = arith.mulf %93, %93 : vector<1x64xf32>
    %97 = arith.subf %95, %96 : vector<1x64xf32>
    %cst_88 = arith.constant 9.99999974E-6 : f32
    %98 = vector.broadcast %cst_88 : f32 to vector<1x64xf32>
    %99 = arith.addf %97, %98 : vector<1x64xf32>
    %100 = math.rsqrt %99 : vector<1x64xf32>
    %101 = vector.broadcast %93 : vector<1x64xf32> to vector<256x64xf32>
    %102 = arith.subf %84, %101 : vector<256x64xf32>
    %103 = vector.broadcast %100 : vector<1x64xf32> to vector<256x64xf32>
    %104 = arith.mulf %102, %103 : vector<256x64xf32>
    %105 = vector.broadcast %85 : vector<1x64xf32> to vector<256x64xf32>
    %106 = arith.mulf %104, %105 : vector<256x64xf32>
    %107 = vector.broadcast %86 : vector<1x64xf32> to vector<256x64xf32>
    %108 = arith.addf %106, %107 : vector<256x64xf32>
    %109 = arith.negf %108 : vector<256x64xf32>
    %110 = math.exp %109 : vector<256x64xf32>
    %cst_89 = arith.constant 1.000000e+00 : f32
    %111 = vector.broadcast %cst_89 : f32 to vector<256x64xf32>
    %112 = arith.addf %111, %110 : vector<256x64xf32>
    %113 = arith.divf %111, %112 : vector<256x64xf32>
    %114 = arith.mulf %108, %113 : vector<256x64xf32>
    %c0_90 = arith.constant 0 : index
    %c0_91 = arith.constant 0 : index
    %115 = vector.load %arg11[%c0_90, %c0_91] : memref<1x64xf32, #tpu.memory_space<vmem>>, vector<1x64xf32>
    %cst_92 = arith.constant 0.000000e+00 : f32
    %116 = vector.broadcast %cst_92 : f32 to vector<1x24x64xf32>
    %c0_93 = arith.constant 0 : index
    %c0_94 = arith.constant 0 : index
    %c0_95 = arith.constant 0 : index
    %117 = vector.load %arg17[%c0_93, %c0_94, %c0_95] : memref<18x24x64xf32, #tpu.memory_space<vmem>>, vector<1x24x64xf32>
    tpu.vector_store %arg17[%c0_93, %c0_94, %c0_95], %116 {strides = array<i32>} : memref<18x24x64xf32, #tpu.memory_space<vmem>>, vector<1x24x64xf32>,
    %cst_96 = arith.constant 0.000000e+00 : f32
    %118 = vector.broadcast %cst_96 : f32 to vector<1x24x64xf32>
    %c17_97 = arith.constant 17 : index
    %c0_98 = arith.constant 0 : index
    %c0_99 = arith.constant 0 : index
    %119 = vector.load %arg17[%c17_97, %c0_98, %c0_99] : memref<18x24x64xf32, #tpu.memory_space<vmem>>, vector<1x24x64xf32>
    tpu.vector_store %arg17[%c17_97, %c0_98, %c0_99], %118 {strides = array<i32>} : memref<18x24x64xf32, #tpu.memory_space<vmem>>, vector<1x24x64xf32>,
    %cst_100 = arith.constant 0.000000e+00 : f32
    %120 = vector.broadcast %cst_100 : f32 to vector<18x1x64xf32>
    %c0_101 = arith.constant 0 : index
    %c0_102 = arith.constant 0 : index
    %c0_103 = arith.constant 0 : index
    %121 = vector.load %arg17[%c0_101, %c0_102, %c0_103] : memref<18x24x64xf32, #tpu.memory_space<vmem>>, vector<18x1x64xf32>
    tpu.vector_store %arg17[%c0_101, %c0_102, %c0_103], %120 {strides = array<i32>} : memref<18x24x64xf32, #tpu.memory_space<vmem>>, vector<18x1x64xf32>,
    %cst_104 = arith.constant 0.000000e+00 : f32
    %122 = vector.broadcast %cst_104 : f32 to vector<18x1x64xf32>
    %c0_105 = arith.constant 0 : index
    %c17_106 = arith.constant 17 : index
    %c0_107 = arith.constant 0 : index
    %123 = vector.load %arg17[%c0_105, %c17_106, %c0_107] : memref<18x24x64xf32, #tpu.memory_space<vmem>>, vector<18x1x64xf32>
    tpu.vector_store %arg17[%c0_105, %c17_106, %c0_107], %122 {strides = array<i32>} : memref<18x24x64xf32, #tpu.memory_space<vmem>>, vector<18x1x64xf32>,
    %124 = vector.shape_cast %114 : vector<256x64xf32> to vector<16x16x64xf32>
    %c1_108 = arith.constant 1 : index
    %c1_109 = arith.constant 1 : index
    %c0_110 = arith.constant 0 : index
    %125 = vector.load %arg17[%c1_108, %c1_109, %c0_110] : memref<18x24x64xf32, #tpu.memory_space<vmem>>, vector<16x16x64xf32>
    tpu.vector_store %arg17[%c1_108, %c1_109, %c0_110], %124 {strides = array<i32>} : memref<18x24x64xf32, #tpu.memory_space<vmem>>, vector<16x16x64xf32>,
    %c0_111 = arith.constant 0 : index
    %c0_112 = arith.constant 0 : index
    %c0_113 = arith.constant 0 : index
    %126 = vector.load %arg17[%c0_111, %c0_112, %c0_113] : memref<18x24x64xf32, #tpu.memory_space<vmem>>, vector<16x16x64xf32>
    %127 = vector.shape_cast %126 : vector<16x16x64xf32> to vector<256x64xf32>
    %128 = arith.truncf %127 : vector<256x64xf32> to vector<256x64xbf16>
    %c0_114 = arith.constant 0 : index
    %c0_115 = arith.constant 0 : index
    %129 = vector.load %arg18[%c0_114, %c0_115] : memref<256x576xbf16, #tpu.memory_space<vmem>>, vector<256x64xbf16>
    tpu.vector_store %arg18[%c0_114, %c0_115], %128 {strides = array<i32>} : memref<256x576xbf16, #tpu.memory_space<vmem>>, vector<256x64xbf16>,
    %c0_116 = arith.constant 0 : index
    %c1_117 = arith.constant 1 : index
    %c0_118 = arith.constant 0 : index
    %130 = vector.load %arg17[%c0_116, %c1_117, %c0_118] : memref<18x24x64xf32, #tpu.memory_space<vmem>>, vector<16x16x64xf32>
    %131 = vector.shape_cast %130 : vector<16x16x64xf32> to vector<256x64xf32>
    %132 = arith.truncf %131 : vector<256x64xf32> to vector<256x64xbf16>
    %c0_119 = arith.constant 0 : index
    %c64_120 = arith.constant 64 : index
    %133 = vector.load %arg18[%c0_119, %c64_120] : memref<256x576xbf16, #tpu.memory_space<vmem>>, vector<256x64xbf16>
    tpu.vector_store %arg18[%c0_119, %c64_120], %132 {strides = array<i32>} : memref<256x576xbf16, #tpu.memory_space<vmem>>, vector<256x64xbf16>,
    %c0_121 = arith.constant 0 : index
    %c2_122 = arith.constant 2 : index
    %c0_123 = arith.constant 0 : index
    %134 = vector.load %arg17[%c0_121, %c2_122, %c0_123] : memref<18x24x64xf32, #tpu.memory_space<vmem>>, vector<16x16x64xf32>
    %135 = vector.shape_cast %134 : vector<16x16x64xf32> to vector<256x64xf32>
    %136 = arith.truncf %135 : vector<256x64xf32> to vector<256x64xbf16>
    %c0_124 = arith.constant 0 : index
    %c128_125 = arith.constant 128 : index
    %137 = vector.load %arg18[%c0_124, %c128_125] : memref<256x576xbf16, #tpu.memory_space<vmem>>, vector<256x64xbf16>
    tpu.vector_store %arg18[%c0_124, %c128_125], %136 {strides = array<i32>} : memref<256x576xbf16, #tpu.memory_space<vmem>>, vector<256x64xbf16>,
    %c1_126 = arith.constant 1 : index
    %c0_127 = arith.constant 0 : index
    %c0_128 = arith.constant 0 : index
    %138 = vector.load %arg17[%c1_126, %c0_127, %c0_128] : memref<18x24x64xf32, #tpu.memory_space<vmem>>, vector<16x16x64xf32>
    %139 = vector.shape_cast %138 : vector<16x16x64xf32> to vector<256x64xf32>
    %140 = arith.truncf %139 : vector<256x64xf32> to vector<256x64xbf16>
    %c0_129 = arith.constant 0 : index
    %c192_130 = arith.constant 192 : index
    %141 = vector.load %arg18[%c0_129, %c192_130] : memref<256x576xbf16, #tpu.memory_space<vmem>>, vector<256x64xbf16>
    tpu.vector_store %arg18[%c0_129, %c192_130], %140 {strides = array<i32>} : memref<256x576xbf16, #tpu.memory_space<vmem>>, vector<256x64xbf16>,
    %c1_131 = arith.constant 1 : index
    %c1_132 = arith.constant 1 : index
    %c0_133 = arith.constant 0 : index
    %142 = vector.load %arg17[%c1_131, %c1_132, %c0_133] : memref<18x24x64xf32, #tpu.memory_space<vmem>>, vector<16x16x64xf32>
    %143 = vector.shape_cast %142 : vector<16x16x64xf32> to vector<256x64xf32>
    %144 = arith.truncf %143 : vector<256x64xf32> to vector<256x64xbf16>
    %c0_134 = arith.constant 0 : index
    %c256_135 = arith.constant 256 : index
    %145 = vector.load %arg18[%c0_134, %c256_135] : memref<256x576xbf16, #tpu.memory_space<vmem>>, vector<256x64xbf16>
    tpu.vector_store %arg18[%c0_134, %c256_135], %144 {strides = array<i32>} : memref<256x576xbf16, #tpu.memory_space<vmem>>, vector<256x64xbf16>,
    %c1_136 = arith.constant 1 : index
    %c2_137 = arith.constant 2 : index
    %c0_138 = arith.constant 0 : index
    %146 = vector.load %arg17[%c1_136, %c2_137, %c0_138] : memref<18x24x64xf32, #tpu.memory_space<vmem>>, vector<16x16x64xf32>
    %147 = vector.shape_cast %146 : vector<16x16x64xf32> to vector<256x64xf32>
    %148 = arith.truncf %147 : vector<256x64xf32> to vector<256x64xbf16>
    %c0_139 = arith.constant 0 : index
    %c320 = arith.constant 320 : index
    %149 = vector.load %arg18[%c0_139, %c320] : memref<256x576xbf16, #tpu.memory_space<vmem>>, vector<256x64xbf16>
    tpu.vector_store %arg18[%c0_139, %c320], %148 {strides = array<i32>} : memref<256x576xbf16, #tpu.memory_space<vmem>>, vector<256x64xbf16>,
    %c2_140 = arith.constant 2 : index
    %c0_141 = arith.constant 0 : index
    %c0_142 = arith.constant 0 : index
    %150 = vector.load %arg17[%c2_140, %c0_141, %c0_142] : memref<18x24x64xf32, #tpu.memory_space<vmem>>, vector<16x16x64xf32>
    %151 = vector.shape_cast %150 : vector<16x16x64xf32> to vector<256x64xf32>
    %152 = arith.truncf %151 : vector<256x64xf32> to vector<256x64xbf16>
    %c0_143 = arith.constant 0 : index
    %c384 = arith.constant 384 : index
    %153 = vector.load %arg18[%c0_143, %c384] : memref<256x576xbf16, #tpu.memory_space<vmem>>, vector<256x64xbf16>
    tpu.vector_store %arg18[%c0_143, %c384], %152 {strides = array<i32>} : memref<256x576xbf16, #tpu.memory_space<vmem>>, vector<256x64xbf16>,
    %c2_144 = arith.constant 2 : index
    %c1_145 = arith.constant 1 : index
    %c0_146 = arith.constant 0 : index
    %154 = vector.load %arg17[%c2_144, %c1_145, %c0_146] : memref<18x24x64xf32, #tpu.memory_space<vmem>>, vector<16x16x64xf32>
    %155 = vector.shape_cast %154 : vector<16x16x64xf32> to vector<256x64xf32>
    %156 = arith.truncf %155 : vector<256x64xf32> to vector<256x64xbf16>
    %c0_147 = arith.constant 0 : index
    %c448 = arith.constant 448 : index
    %157 = vector.load %arg18[%c0_147, %c448] : memref<256x576xbf16, #tpu.memory_space<vmem>>, vector<256x64xbf16>
    tpu.vector_store %arg18[%c0_147, %c448], %156 {strides = array<i32>} : memref<256x576xbf16, #tpu.memory_space<vmem>>, vector<256x64xbf16>,
    %c2_148 = arith.constant 2 : index
    %c2_149 = arith.constant 2 : index
    %c0_150 = arith.constant 0 : index
    %158 = vector.load %arg17[%c2_148, %c2_149, %c0_150] : memref<18x24x64xf32, #tpu.memory_space<vmem>>, vector<16x16x64xf32>
    %159 = vector.shape_cast %158 : vector<16x16x64xf32> to vector<256x64xf32>
    %160 = arith.truncf %159 : vector<256x64xf32> to vector<256x64xbf16>
    %c0_151 = arith.constant 0 : index
    %c512 = arith.constant 512 : index
    %161 = vector.load %arg18[%c0_151, %c512] : memref<256x576xbf16, #tpu.memory_space<vmem>>, vector<256x64xbf16>
    tpu.vector_store %arg18[%c0_151, %c512], %160 {strides = array<i32>} : memref<256x576xbf16, #tpu.memory_space<vmem>>, vector<256x64xbf16>,
    %c0_152 = arith.constant 0 : index
    %c0_153 = arith.constant 0 : index
    %162 = vector.load %arg18[%c0_152, %c0_153] : memref<256x576xbf16, #tpu.memory_space<vmem>>, vector<256x576xbf16>
    %c0_154 = arith.constant 0 : index
    %c0_155 = arith.constant 0 : index
    %163 = vector.load %arg10[%c0_154, %c0_155] : memref<576x64xbf16, #tpu.memory_space<vmem>>, vector<576x64xbf16>
    %cst_156 = arith.constant dense<0.000000e+00> : vector<256x64xf32>
    %164 = tpu.matmul %162, %163, %cst_156 {dimension_numbers = #tpu.dot_dimension_numbers<[1], [0], [0], [1], [0, 0, 1, 1], [], []>} : vector<256x576xbf16>, vector<576x64xbf16>, vector<256x64xf32> -> vector<256x64xf32>
    %165 = vector.broadcast %115 : vector<1x64xf32> to vector<256x64xf32>
    %166 = arith.addf %164, %165 : vector<256x64xf32>
    %167 = arith.truncf %2 : vector<256x32xf32> to vector<256x32xbf16>
    %c0_157 = arith.constant 0 : index
    %c0_158 = arith.constant 0 : index
    %168 = vector.load %arg12[%c0_157, %c0_158] : memref<32x64xbf16, #tpu.memory_space<vmem>>, vector<32x64xbf16>
    %cst_159 = arith.constant dense<0.000000e+00> : vector<256x64xf32>
    %169 = tpu.matmul %167, %168, %cst_159 {dimension_numbers = #tpu.dot_dimension_numbers<[1], [0], [0], [1], [0, 0, 1, 1], [], []>} : vector<256x32xbf16>, vector<32x64xbf16>, vector<256x64xf32> -> vector<256x64xf32>
    %c0_160 = arith.constant 0 : index
    %c0_161 = arith.constant 0 : index
    %170 = vector.load %arg13[%c0_160, %c0_161] : memref<1x64xf32, #tpu.memory_space<vmem>>, vector<1x64xf32>
    %171 = vector.broadcast %170 : vector<1x64xf32> to vector<256x64xf32>
    %172 = arith.addf %169, %171 : vector<256x64xf32>
    %173 = arith.addf %166, %172 : vector<256x64xf32>
    %174 = vector.shape_cast %173 : vector<256x64xf32> to vector<16x16x64xf32>
    %c0_162 = arith.constant 0 : index
    %c0_163 = arith.constant 0 : index
    %c0_164 = arith.constant 0 : index
    %c0_165 = arith.constant 0 : index
    %175 = vector.load %arg14[%c0_162, %c0_163, %c0_164, %c0_165] : memref<1x16x16x64xf32, #tpu.memory_space<vmem>>, vector<1x16x16x64xf32>
    %176 = vector.shape_cast %175 : vector<1x16x16x64xf32> to vector<16x16x64xf32>
    %177 = vector.shape_cast %174 : vector<16x16x64xf32> to vector<1x16x16x64xf32>
    tpu.vector_store %arg14[%c0_162, %c0_163, %c0_164, %c0_165], %177 {strides = array<i32>} : memref<1x16x16x64xf32, #tpu.memory_space<vmem>>, vector<1x16x16x64xf32>,
    return
  }
  func.func @transform_0(%arg0: i32) -> (i32, i32, i32, i32) {
    %c0_i32 = arith.constant 0 : i32
    %c0_i32_0 = arith.constant 0 : i32
    %c0_i32_1 = arith.constant 0 : i32
    %c0_i32_2 = arith.constant 0 : i32
    return %arg0, %c0_i32, %c0_i32_0, %c0_i32_1 : i32, i32, i32, i32
  }
  func.func @transform_1(%arg0: i32) -> (i32, i32) {
    %c0_i32 = arith.constant 0 : i32
    %c0_i32_0 = arith.constant 0 : i32
    %c0_i32_1 = arith.constant 0 : i32
    return %c0_i32, %c0_i32_0 : i32, i32
  }
  func.func @transform_2(%arg0: i32) -> (i32, i32) {
    %c0_i32 = arith.constant 0 : i32
    %c0_i32_0 = arith.constant 0 : i32
    %c0_i32_1 = arith.constant 0 : i32
    return %c0_i32, %c0_i32_0 : i32, i32
  }
  func.func @transform_3(%arg0: i32) -> (i32, i32) {
    %c0_i32 = arith.constant 0 : i32
    %c0_i32_0 = arith.constant 0 : i32
    %c0_i32_1 = arith.constant 0 : i32
    return %c0_i32, %c0_i32_0 : i32, i32
  }
  func.func @transform_4(%arg0: i32) -> (i32, i32) {
    %c0_i32 = arith.constant 0 : i32
    %c0_i32_0 = arith.constant 0 : i32
    %c0_i32_1 = arith.constant 0 : i32
    return %c0_i32, %c0_i32_0 : i32, i32
  }
  func.func @transform_5(%arg0: i32) -> (i32, i32) {
    %c0_i32 = arith.constant 0 : i32
    %c0_i32_0 = arith.constant 0 : i32
    %c0_i32_1 = arith.constant 0 : i32
    return %c0_i32, %c0_i32_0 : i32, i32
  }
  func.func @transform_6(%arg0: i32) -> (i32, i32) {
    %c0_i32 = arith.constant 0 : i32
    %c0_i32_0 = arith.constant 0 : i32
    %c0_i32_1 = arith.constant 0 : i32
    return %c0_i32, %c0_i32_0 : i32, i32
  }
  func.func @transform_7(%arg0: i32) -> (i32, i32) {
    %c0_i32 = arith.constant 0 : i32
    %c0_i32_0 = arith.constant 0 : i32
    %c0_i32_1 = arith.constant 0 : i32
    return %c0_i32, %c0_i32_0 : i32, i32
  }
  func.func @transform_8(%arg0: i32) -> (i32, i32) {
    %c0_i32 = arith.constant 0 : i32
    %c0_i32_0 = arith.constant 0 : i32
    %c0_i32_1 = arith.constant 0 : i32
    return %c0_i32, %c0_i32_0 : i32, i32
  }
  func.func @transform_9(%arg0: i32) -> (i32, i32) {
    %c0_i32 = arith.constant 0 : i32
    %c0_i32_0 = arith.constant 0 : i32
    %c0_i32_1 = arith.constant 0 : i32
    return %c0_i32, %c0_i32_0 : i32, i32
  }
  func.func @transform_10(%arg0: i32) -> (i32, i32) {
    %c0_i32 = arith.constant 0 : i32
    %c0_i32_0 = arith.constant 0 : i32
    %c0_i32_1 = arith.constant 0 : i32
    return %c0_i32, %c0_i32_0 : i32, i32
  }
  func.func @transform_11(%arg0: i32) -> (i32, i32) {
    %c0_i32 = arith.constant 0 : i32
    %c0_i32_0 = arith.constant 0 : i32
    %c0_i32_1 = arith.constant 0 : i32
    return %c0_i32, %c0_i32_0 : i32, i32
  }
  func.func @transform_12(%arg0: i32) -> (i32, i32) {
    %c0_i32 = arith.constant 0 : i32
    %c0_i32_0 = arith.constant 0 : i32
    %c0_i32_1 = arith.constant 0 : i32
    return %c0_i32, %c0_i32_0 : i32, i32
  }
  func.func @transform_13(%arg0: i32) -> (i32, i32, i32, i32) {
    %c0_i32 = arith.constant 0 : i32
    %c0_i32_0 = arith.constant 0 : i32
    %c0_i32_1 = arith.constant 0 : i32
    %c0_i32_2 = arith.constant 0 : i32
    return %arg0, %c0_i32, %c0_i32_0, %c0_i32_1 : i32, i32, i32, i32
  }
}

</mosaic_0001>

<llo_original>
// kernel: tpu_custom_call.1
$region0: #{tpu_custom_call.1}
  #allocation0 [shape = 'u32[]', space=smem, size = 0x4, offset = 0x4, fixed_abs, tag = 'smem constant byte address 0x4 - core index']
  #allocation1 [shape = 'u32[144,128]{1,0:T(1,128)}', space=vmem, size = 0x12000, scoped, tag = 'internal scratch']
  #allocation2 [shape = 'f32[18,24,32]{2,1,0:T(8,128)}', space=vmem, size = 0x36000, scoped, tag = 'scratch operand']
  #allocation3 [shape = 'bf16[256,288]{1,0:T(16,128)(2,1)}', space=vmem, size = 0x30000, scoped, tag = 'scratch operand']
  #allocation4 [shape = 'f32[18,24,64]{2,1,0:T(8,128)}', space=vmem, size = 0x36000, scoped, tag = 'scratch operand']
  #allocation5 [shape = 'bf16[256,576]{1,0:T(16,128)(2,1)}', space=vmem, size = 0x50000, scoped, tag = 'scratch operand']
  %s0 = inlined_call_operand.vmem [shape: f32[2,16,16,32], index: 0, kind: input, shape index: {}]
  %s1 = inlined_call_operand.vmem [shape: f32[32,32], index: 1, kind: input, shape index: {}]
  %s2 = inlined_call_operand.vmem [shape: f32[1,32], index: 2, kind: input, shape index: {}]
  %s3 = inlined_call_operand.vmem [shape: f32[1,32], index: 3, kind: input, shape index: {}]
  %s4 = inlined_call_operand.vmem [shape: bf16[288,64], index: 4, kind: input, shape index: {}]
  %s5 = inlined_call_operand.hbm [shape: f32[1,64], index: 5, kind: input, shape index: {}]
  %s6 = inlined_call_operand.hbm [shape: f32[64,64], index: 6, kind: input, shape index: {}]
  %s7 = inlined_call_operand.hbm [shape: f32[1,64], index: 7, kind: input, shape index: {}]
  %s8 = inlined_call_operand.hbm [shape: f32[1,64], index: 8, kind: input, shape index: {}]
  %s9 = inlined_call_operand.vmem [shape: bf16[576,64], index: 9, kind: input, shape index: {}]
  %s10 = inlined_call_operand.vmem [shape: f32[1,64], index: 10, kind: input, shape index: {}]
  %s11 = inlined_call_operand.vmem [shape: bf16[32,64], index: 11, kind: input, shape index: {}]
  %s12 = inlined_call_operand.vmem [shape: f32[1,64], index: 12, kind: input, shape index: {}]
  %s13 = inlined_call_operand.hbm [shape: f32[2,16,16,64], index: 13, kind: output, shape index: {}]
  %s14 = sld [smem:[#allocation0]]
  $region101: #{tpu_custom_call.1} parent=0
    _
  %s16 = ssub.s32 1, %s14
  %s17 = scalar_select 0, %s16, %s14
  $region1: #{tpu_custom_call.1} parent=0
    #allocation6 [shape = 'u8[512]{0}', space=vmem, size = 0x400, scoped, tag = 'input window, operand 5, single buffered']
    #allocation7 [shape = 's32[2]{0}', space=sflag, size = 0x8, scoped, tag = 'scoped memory for tpu_custom_call.1']
    #allocation8 [shape = 's32[2]{0}', space=sflag, size = 0x8, scoped, tag = 'scoped memory for tpu_custom_call.1']
    #allocation9 [shape = 'u8[32768]{0}', space=vmem, size = 0x8000, scoped, tag = 'input window, operand 6, single buffered']
    #allocation10 [shape = 's32[1]{0}', space=sflag, size = 0x4, scoped, tag = 'scoped memory for tpu_custom_call.1']
    #allocation11 [shape = 'u8[512]{0}', space=vmem, size = 0x400, scoped, tag = 'input window, operand 7, single buffered']
    #allocation12 [shape = 'u8[512]{0}', space=vmem, size = 0x400, scoped, tag = 'input window, operand 8, single buffered']
    #allocation13 [shape = 's32[1]{0}', space=sflag, size = 0x4, scoped, tag = 'scoped memory for tpu_custom_call.1']
    #allocation14 [shape = 'u8[262144]{0}', space=vmem, size = 0x40000, scoped, tag = 'output window, operand 0']
    %18 = vsyncpa [#allocation7], 0
    %19 = vsyncpa [#allocation10], 0
    %20 = vsyncpa [#allocation13], 0
    %21 = vsyncpa [#allocation8], 0
    %s22 = scalar_lea.sflag [#allocation8], 1
    %23 = vsyncpa %s22, 0
    loop: start=0, step=1, limit=4
    $region2: #{tpu_custom_call.1} parent=1 // loop_pre_header
      _
    $region3: #{tpu_custom_call.1} parent=1 // loop_header
      %s25 = sphi 0, %s29
      %p26 = scmp.ge.s32.totalorder %s25, 4
      %s35 = sphi 0, %s37
      %s38 = sphi 0, %s35
      %s39 = sphi 0, %s38
      %s55 = sphi 0, %s39
      %s59 = sphi 0, %s59
      %s61 = sphi 0, %s59
      %s62 = sphi 0, %s61
      %s76 = sphi 0, %s62
      %s80 = sphi 0, %s80
      %s82 = sphi 0, %s80
      %s83 = sphi 0, %s82
      %s97 = sphi 0, %s83
      %s101 = sphi 0, %s101
      %s103 = sphi 0, %s101
      %s104 = sphi 0, %s103
      %s118 = sphi 0, %s104
      %s122 = sphi 0, %s122
      %s124 = sphi 0, %s122
      %s125 = sphi 0, %s124
      %s139 = sphi 0, %s125
      %s143 = sphi 0, %s143
      %s145 = sphi 0, %s143
      %s146 = sphi 0, %s145
      %s160 = sphi 0, %s146
      %s164 = sphi 0, %s164
      %s166 = sphi 0, %s164
      %s167 = sphi 0, %s166
      %s181 = sphi 0, %s167
      %s185 = sphi 0, %s185
      %s187 = sphi 0, %s185
      %s188 = sphi 0, %s187
      %s202 = sphi 0, %s188
      %s206 = sphi 0, %s206
      %s208 = sphi 0, %s206
      %s209 = sphi 0, %s208
      %s223 = sphi 0, %s209
      %s227 = sphi 0, %s227
      %s229 = sphi 0, %s227
      %s230 = sphi 0, %s229
      %s244 = sphi 0, %s230
      %s248 = sphi 0, %s248
      %s250 = sphi 0, %s248
      %s251 = sphi 0, %s250
      %s265 = sphi 0, %s251
      %s269 = sphi 0, %s269
      %s271 = sphi 0, %s269
      %s272 = sphi 0, %s271
      %s286 = sphi 0, %s272
      %s290 = sphi 0, %s290
      %s292 = sphi 0, %s290
      %s293 = sphi 0, %s292
      %s307 = sphi 0, %s293
      %s313 = sphi 0, %s315
      %s316 = sphi 0, %s313
      %s317 = sphi 0, %s316
      %s333 = sphi 0, %s317
    $region4: #{tpu_custom_call.1} parent=1 // loop_header_branch
      %28 = sbr.rel (%p26) target = $region8
    $region5: #{tpu_custom_call.1} parent=1 // loop_body
      %s30 = ssub.s32 %s25, 1
      %s31 = ssub.s32 %s25, 2
      %s32 = sadd.s32 %s25, 1
      %s33 = ssub.s32 %s25, %s32
      %p34 = scmp.eq.s32.totalorder %s33, 0
      %s36 = sadd.s32 %s35, 1
      %s37 = scalar_select %p34, %s35, %s36
      %p40 = pneg %p34
      %p41 = scmp.eq.s32.totalorder %s25, 1
      %p42 = por %p40, %p41
      %p43 = scmp.ne.s32.totalorder %s35, %s38
      %p44 = scmp.eq.s32.totalorder %s25, 0
      %p45 = por %p43, %p44
      %p46 = scmp.ne.s32.totalorder %s35, %s38
      %p47 = scmp.eq.s32.totalorder %s30, 1
      %p48 = por %p46, %p47
      %p49 = scmp.ne.s32.totalorder %s38, %s39
      %p50 = scmp.eq.s32.totalorder %s30, 0
      %p51 = por %p49, %p50
      %p52 = scmp.ne.s32.totalorder %s38, %s39
      %p53 = scmp.eq.s32.totalorder %s31, 1
      %p54 = por %p52, %p53
      %p56 = scmp.ne.s32.totalorder %s39, %s55
      %p57 = scmp.eq.s32.totalorder %s31, 0
      %p58 = por %p56, %p57
      %s60 = sadd.s32 %s59, 1
      %p63 = scmp.eq.s32.totalorder %s25, 1
      %p64 = scmp.ne.s32.totalorder %s59, %s61
      %p65 = scmp.eq.s32.totalorder %s25, 0
      %p66 = por %p64, %p65
      %p67 = scmp.ne.s32.totalorder %s59, %s61
      %p68 = scmp.eq.s32.totalorder %s30, 1
      %p69 = por %p67, %p68
      %p70 = scmp.ne.s32.totalorder %s61, %s62
      %p71 = scmp.eq.s32.totalorder %s30, 0
      %p72 = por %p70, %p71
      %p73 = scmp.ne.s32.totalorder %s61, %s62
      %p74 = scmp.eq.s32.totalorder %s31, 1
      %p75 = por %p73, %p74
      %p77 = scmp.ne.s32.totalorder %s62, %s76
      %p78 = scmp.eq.s32.totalorder %s31, 0
      %p79 = por %p77, %p78
      %s81 = sadd.s32 %s80, 1
      %p84 = scmp.eq.s32.totalorder %s25, 1
      %p85 = scmp.ne.s32.totalorder %s80, %s82
      %p86 = scmp.eq.s32.totalorder %s25, 0
      %p87 = por %p85, %p86
      %p88 = scmp.ne.s32.totalorder %s80, %s82
      %p89 = scmp.eq.s32.totalorder %s30, 1
      %p90 = por %p88, %p89
      %p91 = scmp.ne.s32.totalorder %s82, %s83
      %p92 = scmp.eq.s32.totalorder %s30, 0
      %p93 = por %p91, %p92
      %p94 = scmp.ne.s32.totalorder %s82, %s83
      %p95 = scmp.eq.s32.totalorder %s31, 1
      %p96 = por %p94, %p95
      %p98 = scmp.ne.s32.totalorder %s83, %s97
      %p99 = scmp.eq.s32.totalorder %s31, 0
      %p100 = por %p98, %p99
      %s102 = sadd.s32 %s101, 1
      %p105 = scmp.eq.s32.totalorder %s25, 1
      %p106 = scmp.ne.s32.totalorder %s101, %s103
      %p107 = scmp.eq.s32.totalorder %s25, 0
      %p108 = por %p106, %p107
      %p109 = scmp.ne.s32.totalorder %s101, %s103
      %p110 = scmp.eq.s32.totalorder %s30, 1
      %p111 = por %p109, %p110
      %p112 = scmp.ne.s32.totalorder %s103, %s104
      %p113 = scmp.eq.s32.totalorder %s30, 0
      %p114 = por %p112, %p113
      %p115 = scmp.ne.s32.totalorder %s103, %s104
      %p116 = scmp.eq.s32.totalorder %s31, 1
      %p117 = por %p115, %p116
      %p119 = scmp.ne.s32.totalorder %s104, %s118
      %p120 = scmp.eq.s32.totalorder %s31, 0
      %p121 = por %p119, %p120
      %s123 = sadd.s32 %s122, 1
      %p126 = scmp.eq.s32.totalorder %s25, 1
      %p127 = scmp.ne.s32.totalorder %s122, %s124
      %p128 = scmp.eq.s32.totalorder %s25, 0
      %p129 = por %p127, %p128
      %p130 = scmp.ne.s32.totalorder %s122, %s124
      %p131 = scmp.eq.s32.totalorder %s30, 1
      %p132 = por %p130, %p131
      %p133 = scmp.ne.s32.totalorder %s124, %s125
      %p134 = scmp.eq.s32.totalorder %s30, 0
      %p135 = por %p133, %p134
      %p136 = scmp.ne.s32.totalorder %s124, %s125
      %p137 = scmp.eq.s32.totalorder %s31, 1
      %p138 = por %p136, %p137
      %p140 = scmp.ne.s32.totalorder %s125, %s139
      %p141 = scmp.eq.s32.totalorder %s31, 0
      %p142 = por %p140, %p141
      %s144 = sadd.s32 %s143, 1
      %p147 = scmp.eq.s32.totalorder %s25, 1
      %p148 = scmp.ne.s32.totalorder %s143, %s145
      %p149 = scmp.eq.s32.totalorder %s25, 0
      %p150 = por %p148, %p149
      %p151 = scmp.ne.s32.totalorder %s143, %s145
      %p152 = scmp.eq.s32.totalorder %s30, 1
      %p153 = por %p151, %p152
      %p154 = scmp.ne.s32.totalorder %s145, %s146
      %p155 = scmp.eq.s32.totalorder %s30, 0
      %p156 = por %p154, %p155
      %p157 = scmp.ne.s32.totalorder %s145, %s146
      %p158 = scmp.eq.s32.totalorder %s31, 1
      %p159 = por %p157, %p158
      %p161 = scmp.ne.s32.totalorder %s146, %s160
      %p162 = scmp.eq.s32.totalorder %s31, 0
      %p163 = por %p161, %p162
      %s165 = sadd.s32 %s164, 1
      %p168 = scmp.eq.s32.totalorder %s25, 1
      %p169 = scmp.ne.s32.totalorder %s164, %s166
      %p170 = scmp.eq.s32.totalorder %s25, 0
      %p171 = por %p169, %p170
      %p172 = scmp.ne.s32.totalorder %s164, %s166
      %p173 = scmp.eq.s32.totalorder %s30, 1
      %p174 = por %p172, %p173
      %p175 = scmp.ne.s32.totalorder %s166, %s167
      %p176 = scmp.eq.s32.totalorder %s30, 0
      %p177 = por %p175, %p176
      %p178 = scmp.ne.s32.totalorder %s166, %s167
      %p179 = scmp.eq.s32.totalorder %s31, 1
      %p180 = por %p178, %p179
      %p182 = scmp.ne.s32.totalorder %s167, %s181
      %p183 = scmp.eq.s32.totalorder %s31, 0
      %p184 = por %p182, %p183
      %s186 = sadd.s32 %s185, 1
      %p189 = scmp.eq.s32.totalorder %s25, 1
      %p190 = scmp.ne.s32.totalorder %s185, %s187
      %p191 = scmp.eq.s32.totalorder %s25, 0
      %p192 = por %p190, %p191
      %p193 = scmp.ne.s32.totalorder %s185, %s187
      %p194 = scmp.eq.s32.totalorder %s30, 1
      %p195 = por %p193, %p194
      %p196 = scmp.ne.s32.totalorder %s187, %s188
      %p197 = scmp.eq.s32.totalorder %s30, 0
      %p198 = por %p196, %p197
      %p199 = scmp.ne.s32.totalorder %s187, %s188
      %p200 = scmp.eq.s32.totalorder %s31, 1
      %p201 = por %p199, %p200
      %p203 = scmp.ne.s32.totalorder %s188, %s202
      %p204 = scmp.eq.s32.totalorder %s31, 0
      %p205 = por %p203, %p204
      %s207 = sadd.s32 %s206, 1
      %p210 = scmp.eq.s32.totalorder %s25, 1
      %p211 = scmp.ne.s32.totalorder %s206, %s208
      %p212 = scmp.eq.s32.totalorder %s25, 0
      %p213 = por %p211, %p212
      %p214 = scmp.ne.s32.totalorder %s206, %s208
      %p215 = scmp.eq.s32.totalorder %s30, 1
      %p216 = por %p214, %p215
      %p217 = scmp.ne.s32.totalorder %s208, %s209
      %p218 = scmp.eq.s32.totalorder %s30, 0
      %p219 = por %p217, %p218
      %p220 = scmp.ne.s32.totalorder %s208, %s209
      %p221 = scmp.eq.s32.totalorder %s31, 1
      %p222 = por %p220, %p221
      %p224 = scmp.ne.s32.totalorder %s209, %s223
      %p225 = scmp.eq.s32.totalorder %s31, 0
      %p226 = por %p224, %p225
      %s228 = sadd.s32 %s227, 1
      %p231 = scmp.eq.s32.totalorder %s25, 1
      %p232 = scmp.ne.s32.totalorder %s227, %s229
      %p233 = scmp.eq.s32.totalorder %s25, 0
      %p234 = por %p232, %p233
      %p235 = scmp.ne.s32.totalorder %s227, %s229
      %p236 = scmp.eq.s32.totalorder %s30, 1
      %p237 = por %p235, %p236
      %p238 = scmp.ne.s32.totalorder %s229, %s230
      %p239 = scmp.eq.s32.totalorder %s30, 0
      %p240 = por %p238, %p239
      %p241 = scmp.ne.s32.totalorder %s229, %s230
      %p242 = scmp.eq.s32.totalorder %s31, 1
      %p243 = por %p241, %p242
      %p245 = scmp.ne.s32.totalorder %s230, %s244
      %p246 = scmp.eq.s32.totalorder %s31, 0
      %p247 = por %p245, %p246
      %s249 = sadd.s32 %s248, 1
      %p252 = scmp.eq.s32.totalorder %s25, 1
      %p253 = scmp.ne.s32.totalorder %s248, %s250
      %p254 = scmp.eq.s32.totalorder %s25, 0
      %p255 = por %p253, %p254
      %p256 = scmp.ne.s32.totalorder %s248, %s250
      %p257 = scmp.eq.s32.totalorder %s30, 1
      %p258 = por %p256, %p257
      %p259 = scmp.ne.s32.totalorder %s250, %s251
      %p260 = scmp.eq.s32.totalorder %s30, 0
      %p261 = por %p259, %p260
      %p262 = scmp.ne.s32.totalorder %s250, %s251
      %p263 = scmp.eq.s32.totalorder %s31, 1
      %p264 = por %p262, %p263
      %p266 = scmp.ne.s32.totalorder %s251, %s265
      %p267 = scmp.eq.s32.totalorder %s31, 0
      %p268 = por %p266, %p267
      %s270 = sadd.s32 %s269, 1
      %p273 = scmp.eq.s32.totalorder %s25, 1
      %p274 = scmp.ne.s32.totalorder %s269, %s271
      %p275 = scmp.eq.s32.totalorder %s25, 0
      %p276 = por %p274, %p275
      %p277 = scmp.ne.s32.totalorder %s269, %s271
      %p278 = scmp.eq.s32.totalorder %s30, 1
      %p279 = por %p277, %p278
      %p280 = scmp.ne.s32.totalorder %s271, %s272
      %p281 = scmp.eq.s32.totalorder %s30, 0
      %p282 = por %p280, %p281
      %p283 = scmp.ne.s32.totalorder %s271, %s272
      %p284 = scmp.eq.s32.totalorder %s31, 1
      %p285 = por %p283, %p284
      %p287 = scmp.ne.s32.totalorder %s272, %s286
      %p288 = scmp.eq.s32.totalorder %s31, 0
      %p289 = por %p287, %p288
      %s291 = sadd.s32 %s290, 1
      %p294 = scmp.eq.s32.totalorder %s25, 1
      %p295 = scmp.ne.s32.totalorder %s290, %s292
      %p296 = scmp.eq.s32.totalorder %s25, 0
      %p297 = por %p295, %p296
      %p298 = scmp.ne.s32.totalorder %s290, %s292
      %p299 = scmp.eq.s32.totalorder %s30, 1
      %p300 = por %p298, %p299
      %p301 = scmp.ne.s32.totalorder %s292, %s293
      %p302 = scmp.eq.s32.totalorder %s30, 0
      %p303 = por %p301, %p302
      %p304 = scmp.ne.s32.totalorder %s292, %s293
      %p305 = scmp.eq.s32.totalorder %s31, 1
      %p306 = por %p304, %p305
      %p308 = scmp.ne.s32.totalorder %s293, %s307
      %p309 = scmp.eq.s32.totalorder %s31, 0
      %p310 = por %p308, %p309
      %s311 = ssub.s32 %s25, %s32
      %p312 = scmp.eq.s32.totalorder %s311, 0
      %s314 = sadd.s32 %s313, 1
      %s315 = scalar_select %p312, %s313, %s314
      %p318 = pneg %p312
      %p319 = scmp.eq.s32.totalorder %s25, 1
      %p320 = por %p318, %p319
      %p321 = scmp.ne.s32.totalorder %s313, %s316
      %p322 = scmp.eq.s32.totalorder %s25, 0
      %p323 = por %p321, %p322
      %p324 = scmp.ne.s32.totalorder %s313, %s316
      %p325 = scmp.eq.s32.totalorder %s30, 1
      %p326 = por %p324, %p325
      %p327 = scmp.ne.s32.totalorder %s316, %s317
      %p328 = scmp.eq.s32.totalorder %s30, 0
      %p329 = por %p327, %p328
      %p330 = scmp.ne.s32.totalorder %s316, %s317
      %p331 = scmp.eq.s32.totalorder %s31, 1
      %p332 = por %p330, %p331
      %p334 = scmp.ne.s32.totalorder %s317, %s333
      %p335 = scmp.eq.s32.totalorder %s31, 0
      %p336 = por %p334, %p335
      %p337 = scmp.le.s32.totalorder 1, %s25
      %p338 = scmp.lt.s32.totalorder %s25, 3
      %p339 = pnand %p337, %p338
      %p340 = pneg %p339
      // Predicated region
      $region9: #{tpu_custom_call.1} parent=5 // pred_check
        _
      $region10: #{tpu_custom_call.1} parent=5 // pred_check_branch
        %342 = sbr.rel (%p339) target = $region12
      $region11: #{tpu_custom_call.1} parent=5 // pred_region
        %s343 = ssub.s32 %s25, 1
        // Predicated region
        $region13: #{tpu_custom_call.1} parent=11 // pred_check
          %p344 = pneg %p72
        $region14: #{tpu_custom_call.1} parent=11 // pred_check_branch
          %346 = sbr.rel (%p344) target = $region16
        $region15: #{tpu_custom_call.1} parent=11 // pred_region
          _
        $region16: #{tpu_custom_call.1} parent=11 // pred_fallthru
          _
        // Predicated region
        $region17: #{tpu_custom_call.1} parent=11 // pred_check
          %p347 = pneg %p93
        $region18: #{tpu_custom_call.1} parent=11 // pred_check_branch
          %349 = sbr.rel (%p347) target = $region20
        $region19: #{tpu_custom_call.1} parent=11 // pred_region
          _
        $region20: #{tpu_custom_call.1} parent=11 // pred_fallthru
          _
        // Predicated region
        $region21: #{tpu_custom_call.1} parent=11 // pred_check
          %p350 = pneg %p114
        $region22: #{tpu_custom_call.1} parent=11 // pred_check_branch
          %352 = sbr.rel (%p350) target = $region24
        $region23: #{tpu_custom_call.1} parent=11 // pred_region
          _
        $region24: #{tpu_custom_call.1} parent=11 // pred_fallthru
          _
        // Predicated region
        $region25: #{tpu_custom_call.1} parent=11 // pred_check
          %p353 = pneg %p135
        $region26: #{tpu_custom_call.1} parent=11 // pred_check_branch
          %355 = sbr.rel (%p353) target = $region28
        $region27: #{tpu_custom_call.1} parent=11 // pred_region
          _
        $region28: #{tpu_custom_call.1} parent=11 // pred_fallthru
          _
        // Predicated region
        $region29: #{tpu_custom_call.1} parent=11 // pred_check
          %p356 = pneg %p156
        $region30: #{tpu_custom_call.1} parent=11 // pred_check_branch
          %358 = sbr.rel (%p356) target = $region32
        $region31: #{tpu_custom_call.1} parent=11 // pred_region
          %s360 = ssub.s32 16, 16
          %361 = vsyncadd [#allocation7], %s360
          %s363 = sshll.u32 [#allocation6], 4
          %s364 = int_to_ptr.vmem [resolvable:$true] %s363
          %366 = dma.hbm_to_vmem [thread:$0]  %s5, 16, %s364, [#allocation7]
        $region32: #{tpu_custom_call.1} parent=11 // pred_fallthru
          _
        // Predicated region
        $region33: #{tpu_custom_call.1} parent=11 // pred_check
          %p367 = pneg %p177
        $region34: #{tpu_custom_call.1} parent=11 // pred_check_branch
          %369 = sbr.rel (%p367) target = $region36
        $region35: #{tpu_custom_call.1} parent=11 // pred_region
          %s371 = ssub.s32 1024, 1024
          %372 = vsyncadd [#allocation10], %s371
          %s373 = sshll.u32 [#allocation9], 4
          %s374 = int_to_ptr.vmem [resolvable:$true] %s373
          %379 = dma.hbm_to_vmem [thread:$0]  %s6, 1024, %s374, [#allocation10], 128, 128, 8
        $region36: #{tpu_custom_call.1} parent=11 // pred_fallthru
          _
        // Predicated region
        $region37: #{tpu_custom_call.1} parent=11 // pred_check
          %p380 = pneg %p198
        $region38: #{tpu_custom_call.1} parent=11 // pred_check_branch
          %382 = sbr.rel (%p380) target = $region40
        $region39: #{tpu_custom_call.1} parent=11 // pred_region
          %s384 = ssub.s32 16, 16
          %385 = vsyncadd [#allocation10], %s384
          %s387 = sshll.u32 [#allocation11], 4
          %s388 = int_to_ptr.vmem [resolvable:$true] %s387
          %390 = dma.hbm_to_vmem [thread:$0]  %s7, 16, %s388, [#allocation10]
        $region40: #{tpu_custom_call.1} parent=11 // pred_fallthru
          _
        // Predicated region
        $region41: #{tpu_custom_call.1} parent=11 // pred_check
          %p391 = pneg %p219
        $region42: #{tpu_custom_call.1} parent=11 // pred_check_branch
          %393 = sbr.rel (%p391) target = $region44
        $region43: #{tpu_custom_call.1} parent=11 // pred_region
          %s395 = ssub.s32 16, 16
          %396 = vsyncadd [#allocation13], %s395
          %s398 = sshll.u32 [#allocation12], 4
          %s399 = int_to_ptr.vmem [resolvable:$true] %s398
          %401 = dma.hbm_to_vmem [thread:$0]  %s8, 16, %s399, [#allocation13]
        $region44: #{tpu_custom_call.1} parent=11 // pred_fallthru
          _
        // Predicated region
        $region45: #{tpu_custom_call.1} parent=11 // pred_check
          %p402 = pneg %p240
        $region46: #{tpu_custom_call.1} parent=11 // pred_check_branch
          %404 = sbr.rel (%p402) target = $region48
        $region47: #{tpu_custom_call.1} parent=11 // pred_region
          _
        $region48: #{tpu_custom_call.1} parent=11 // pred_fallthru
          _
        // Predicated region
        $region49: #{tpu_custom_call.1} parent=11 // pred_check
          %p405 = pneg %p261
        $region50: #{tpu_custom_call.1} parent=11 // pred_check_branch
          %407 = sbr.rel (%p405) target = $region52
        $region51: #{tpu_custom_call.1} parent=11 // pred_region
          _
        $region52: #{tpu_custom_call.1} parent=11 // pred_fallthru
          _
        // Predicated region
        $region53: #{tpu_custom_call.1} parent=11 // pred_check
          %p408 = pneg %p282
        $region54: #{tpu_custom_call.1} parent=11 // pred_check_branch
          %410 = sbr.rel (%p408) target = $region56
        $region55: #{tpu_custom_call.1} parent=11 // pred_region
          _
        $region56: #{tpu_custom_call.1} parent=11 // pred_fallthru
          _
        // Predicated region
        $region57: #{tpu_custom_call.1} parent=11 // pred_check
          %p411 = pneg %p303
        $region58: #{tpu_custom_call.1} parent=11 // pred_check_branch
          %413 = sbr.rel (%p411) target = $region60
        $region59: #{tpu_custom_call.1} parent=11 // pred_region
          _
        $region60: #{tpu_custom_call.1} parent=11 // pred_fallthru
          _
      $region12: #{tpu_custom_call.1} parent=5 // pred_fallthru
        _
      %p414 = scmp.lt.s32.totalorder %s25, 2
      // Predicated region
      $region61: #{tpu_custom_call.1} parent=5 // pred_check
        %p415 = pneg %p414
      $region62: #{tpu_custom_call.1} parent=5 // pred_check_branch
        %417 = sbr.rel (%p415) target = $region64
      $region63: #{tpu_custom_call.1} parent=5 // pred_region
        // Predicated region
        $region65: #{tpu_custom_call.1} parent=63 // pred_check
          %p418 = pneg %p45
        $region66: #{tpu_custom_call.1} parent=63 // pred_check_branch
          %420 = sbr.rel (%p418) target = $region68
        $region67: #{tpu_custom_call.1} parent=63 // pred_region
          %p421 = scmp.lt.s32.totalorder %s25, 1
          %s422 = scalar_select %p421, %s25, 1
          %s423 = smul.addr %s422, 32
          %s424 = smul.addr %s423, 8
          %s425 = scalar_lea.vmem %s0, %s424
        $region68: #{tpu_custom_call.1} parent=63 // pred_fallthru
          _
      $region64: #{tpu_custom_call.1} parent=5 // pred_fallthru
        _
      %p426 = scmp.le.s32.totalorder 1, %s25
      %p427 = scmp.lt.s32.totalorder %s25, 3
      %p428 = pnand %p426, %p427
      %p429 = pneg %p428
      // Predicated region
      $region69: #{tpu_custom_call.1} parent=5 // pred_check
        _
      $region70: #{tpu_custom_call.1} parent=5 // pred_check_branch
        %431 = sbr.rel (%p428) target = $region72
      $region71: #{tpu_custom_call.1} parent=5 // pred_region
        %s432 = ssub.s32 %s25, 1
        // Predicated region
        $region73: #{tpu_custom_call.1} parent=71 // pred_check
          %p433 = pneg %p156
        $region74: #{tpu_custom_call.1} parent=71 // pred_check_branch
          %435 = sbr.rel (%p433) target = $region76
        $region75: #{tpu_custom_call.1} parent=71 // pred_region
          %436 = dma.done [#allocation7], 16
        $region76: #{tpu_custom_call.1} parent=71 // pred_fallthru
          _
        // Predicated region
        $region77: #{tpu_custom_call.1} parent=71 // pred_check
          %p437 = pneg %p177
        $region78: #{tpu_custom_call.1} parent=71 // pred_check_branch
          %439 = sbr.rel (%p437) target = $region80
        $region79: #{tpu_custom_call.1} parent=71 // pred_region
          %440 = dma.done [#allocation10], 1024
        $region80: #{tpu_custom_call.1} parent=71 // pred_fallthru
          _
        // Predicated region
        $region81: #{tpu_custom_call.1} parent=71 // pred_check
          %p441 = pneg %p198
        $region82: #{tpu_custom_call.1} parent=71 // pred_check_branch
          %443 = sbr.rel (%p441) target = $region84
        $region83: #{tpu_custom_call.1} parent=71 // pred_region
          %444 = dma.done [#allocation10], 16
        $region84: #{tpu_custom_call.1} parent=71 // pred_fallthru
          _
        // Predicated region
        $region85: #{tpu_custom_call.1} parent=71 // pred_check
          %p445 = pneg %p219
        $region86: #{tpu_custom_call.1} parent=71 // pred_check_branch
          %447 = sbr.rel (%p445) target = $region88
        $region87: #{tpu_custom_call.1} parent=71 // pred_region
          %448 = dma.done [#allocation13], 16
        $region88: #{tpu_custom_call.1} parent=71 // pred_fallthru
          _
        %p449 = scmp.lt.s32.totalorder %s30, 1
        %s450 = scalar_select %p449, %s30, 1
        %s451 = smul.addr %s450, 32
        %s452 = smul.addr %s451, 8
        %s453 = scalar_lea.vmem %s0, %s452
        %p454 = pneg %p51
        %p455 = pneg %p48
        %p456 = pneg %p72
        %p457 = pneg %p69
        %p458 = pneg %p93
        %p459 = pneg %p90
        %p460 = pneg %p114
        %p461 = pneg %p111
        %p462 = pneg %p135
        %p463 = pneg %p132
        %p464 = pneg %p156
        %p465 = pneg %p153
        %p466 = pneg %p177
        %p467 = pneg %p174
        %p468 = pneg %p198
        %p469 = pneg %p195
        %p470 = pneg %p219
        %p471 = pneg %p216
        %p472 = pneg %p240
        %p473 = pneg %p237
        %p474 = pneg %p261
        %p475 = pneg %p258
        %p476 = pneg %p282
        %p477 = pneg %p279
        %p478 = pneg %p303
        %p479 = pneg %p300
        %p480 = pneg %p329
        %p481 = pneg %p326
        %s482 = sand.u32 %s316, 1
        %s483 = scalar_lea.sflag [#allocation8], %s482
        %s484 = sand.u32 %s316, 1
        %s485 = smul.addr %s484, 256
        %s486 = scalar_lea.vmem [#allocation14], %s485
        %p487 = scmp.lt.s32.totalorder %s30, 1
        %s488 = scalar_select %p487, %s30, 1
        %s489 = smul.addr %s488, 32
        %s490 = smul.addr %s489, 8
        %s491 = scalar_lea.vmem %s0, %s490
        %v493 = vld [vmem:[%s491] sm:$0xff]
        %v494 = vld [vmem:[%s491 + $0x8] sm:$0xff]
        %v495 = vld [vmem:[%s491 + $0x10] sm:$0xff]
        %v496 = vld [vmem:[%s491 + $0x18] sm:$0xff]
        %v497 = vld [vmem:[%s491 + $0x20] sm:$0xff]
        %v498 = vld [vmem:[%s491 + $0x28] sm:$0xff]
        %v499 = vld [vmem:[%s491 + $0x30] sm:$0xff]
        %v500 = vld [vmem:[%s491 + $0x38] sm:$0xff]
        %v501 = vld [vmem:[%s491 + $0x40] sm:$0xff]
        %v502 = vld [vmem:[%s491 + $0x48] sm:$0xff]
        %v503 = vld [vmem:[%s491 + $0x50] sm:$0xff]
        %v504 = vld [vmem:[%s491 + $0x58] sm:$0xff]
        %v505 = vld [vmem:[%s491 + $0x60] sm:$0xff]
        %v506 = vld [vmem:[%s491 + $0x68] sm:$0xff]
        %v507 = vld [vmem:[%s491 + $0x70] sm:$0xff]
        %v508 = vld [vmem:[%s491 + $0x78] sm:$0xff]
        %v509 = vld [vmem:[%s491 + $0x80] sm:$0xff]
        %v510 = vld [vmem:[%s491 + $0x88] sm:$0xff]
        %v511 = vld [vmem:[%s491 + $0x90] sm:$0xff]
        %v512 = vld [vmem:[%s491 + $0x98] sm:$0xff]
        %v513 = vld [vmem:[%s491 + $0xa0] sm:$0xff]
        %v514 = vld [vmem:[%s491 + $0xa8] sm:$0xff]
        %v515 = vld [vmem:[%s491 + $0xb0] sm:$0xff]
        %v516 = vld [vmem:[%s491 + $0xb8] sm:$0xff]
        %v517 = vld [vmem:[%s491 + $0xc0] sm:$0xff]
        %v518 = vld [vmem:[%s491 + $0xc8] sm:$0xff]
        %v519 = vld [vmem:[%s491 + $0xd0] sm:$0xff]
        %v520 = vld [vmem:[%s491 + $0xd8] sm:$0xff]
        %v521 = vld [vmem:[%s491 + $0xe0] sm:$0xff]
        %v522 = vld [vmem:[%s491 + $0xe8] sm:$0xff]
        %v523 = vld [vmem:[%s491 + $0xf0] sm:$0xff]
        %v524 = vld [vmem:[%s491 + $0xf8] sm:$0xff]
        %v525 = vld [vmem:[%s2] sm:$0x1]
        %v526 = vld [vmem:[%s3] sm:$0x1]
        %vm527 = vcmask 261120
        %v528 = vsel %vm527, %v493, 0.0
        %v529 = vsel %vm527, %v494, 0.0
        %v530 = vadd.f32 %v528, %v529
        %v531 = vsel %vm527, %v495, 0.0
        %v532 = vadd.f32 %v530, %v531
        %v533 = vsel %vm527, %v496, 0.0
        %v534 = vadd.f32 %v532, %v533
        %v535 = vsel %vm527, %v497, 0.0
        %v536 = vadd.f32 %v534, %v535
        %v537 = vsel %vm527, %v498, 0.0
        %v538 = vadd.f32 %v536, %v537
        %v539 = vsel %vm527, %v499, 0.0
        %v540 = vadd.f32 %v538, %v539
        %v541 = vsel %vm527, %v500, 0.0
        %v542 = vadd.f32 %v540, %v541
        %v543 = vsel %vm527, %v501, 0.0
        %v544 = vadd.f32 %v542, %v543
        %v545 = vsel %vm527, %v502, 0.0
        %v546 = vadd.f32 %v544, %v545
        %v547 = vsel %vm527, %v503, 0.0
        %v548 = vadd.f32 %v546, %v547
        %v549 = vsel %vm527, %v504, 0.0
        %v550 = vadd.f32 %v548, %v549
        %v551 = vsel %vm527, %v505, 0.0
        %v552 = vadd.f32 %v550, %v551
        %v553 = vsel %vm527, %v506, 0.0
        %v554 = vadd.f32 %v552, %v553
        %v555 = vsel %vm527, %v507, 0.0
        %v556 = vadd.f32 %v554, %v555
        %v557 = vsel %vm527, %v508, 0.0
        %v558 = vadd.f32 %v556, %v557
        %v559 = vsel %vm527, %v509, 0.0
        %v560 = vadd.f32 %v558, %v559
        %v561 = vsel %vm527, %v510, 0.0
        %v562 = vadd.f32 %v560, %v561
        %v563 = vsel %vm527, %v511, 0.0
        %v564 = vadd.f32 %v562, %v563
        %v565 = vsel %vm527, %v512, 0.0
        %v566 = vadd.f32 %v564, %v565
        %v567 = vsel %vm527, %v513, 0.0
        %v568 = vadd.f32 %v566, %v567
        %v569 = vsel %vm527, %v514, 0.0
        %v570 = vadd.f32 %v568, %v569
        %v571 = vsel %vm527, %v515, 0.0
        %v572 = vadd.f32 %v570, %v571
        %v573 = vsel %vm527, %v516, 0.0
        %v574 = vadd.f32 %v572, %v573
        %v575 = vsel %vm527, %v517, 0.0
        %v576 = vadd.f32 %v574, %v575
        %v577 = vsel %vm527, %v518, 0.0
        %v578 = vadd.f32 %v576, %v577
        %v579 = vsel %vm527, %v519, 0.0
        %v580 = vadd.f32 %v578, %v579
        %v581 = vsel %vm527, %v520, 0.0
        %v582 = vadd.f32 %v580, %v581
        %v583 = vsel %vm527, %v521, 0.0
        %v584 = vadd.f32 %v582, %v583
        %v585 = vsel %vm527, %v522, 0.0
        %v586 = vadd.f32 %v584, %v585
        %v587 = vsel %vm527, %v523, 0.0
        %v588 = vadd.f32 %v586, %v587
        %v589 = vsel %vm527, %v524, 0.0
        %v590 = vadd.f32 %v588, %v589
        %v591 = vrot.slane %v590, 4
        %v592 = vadd.f32 %v590, %v591
        %v593 = vrot.slane %v592, 2
        %v594 = vadd.f32 %v592, %v593
        %v595 = vrot.slane %v594, 1
        %v596 = vadd.f32 %v594, %v595
        %v597 = vmul.f32 %v493, %v493
        %v598 = vmul.f32 %v494, %v494
        %v599 = vmul.f32 %v495, %v495
        %v600 = vmul.f32 %v496, %v496
        %v601 = vmul.f32 %v497, %v497
        %v602 = vmul.f32 %v498, %v498
        %v603 = vmul.f32 %v499, %v499
        %v604 = vmul.f32 %v500, %v500
        %v605 = vmul.f32 %v501, %v501
        %v606 = vmul.f32 %v502, %v502
        %v607 = vmul.f32 %v503, %v503
        %v608 = vmul.f32 %v504, %v504
        %v609 = vmul.f32 %v505, %v505
        %v610 = vmul.f32 %v506, %v506
        %v611 = vmul.f32 %v507, %v507
        %v612 = vmul.f32 %v508, %v508
        %v613 = vmul.f32 %v509, %v509
        %v614 = vmul.f32 %v510, %v510
        %v615 = vmul.f32 %v511, %v511
        %v616 = vmul.f32 %v512, %v512
        %v617 = vmul.f32 %v513, %v513
        %v618 = vmul.f32 %v514, %v514
        %v619 = vmul.f32 %v515, %v515
        %v620 = vmul.f32 %v516, %v516
        %v621 = vmul.f32 %v517, %v517
        %v622 = vmul.f32 %v518, %v518
        %v623 = vmul.f32 %v519, %v519
        %v624 = vmul.f32 %v520, %v520
        %v625 = vmul.f32 %v521, %v521
        %v626 = vmul.f32 %v522, %v522
        %v627 = vmul.f32 %v523, %v523
        %v628 = vmul.f32 %v524, %v524
        %v629 = vsel %vm527, %v597, 0.0
        %v630 = vsel %vm527, %v598, 0.0
        %v631 = vadd.f32 %v629, %v630
        %v632 = vsel %vm527, %v599, 0.0
        %v633 = vadd.f32 %v631, %v632
        %v634 = vsel %vm527, %v600, 0.0
        %v635 = vadd.f32 %v633, %v634
        %v636 = vsel %vm527, %v601, 0.0
        %v637 = vadd.f32 %v635, %v636
        %v638 = vsel %vm527, %v602, 0.0
        %v639 = vadd.f32 %v637, %v638
        %v640 = vsel %vm527, %v603, 0.0
        %v641 = vadd.f32 %v639, %v640
        %v642 = vsel %vm527, %v604, 0.0
        %v643 = vadd.f32 %v641, %v642
        %v644 = vsel %vm527, %v605, 0.0
        %v645 = vadd.f32 %v643, %v644
        %v646 = vsel %vm527, %v606, 0.0
        %v647 = vadd.f32 %v645, %v646
        %v648 = vsel %vm527, %v607, 0.0
        %v649 = vadd.f32 %v647, %v648
        %v650 = vsel %vm527, %v608, 0.0
        %v651 = vadd.f32 %v649, %v650
        %v652 = vsel %vm527, %v609, 0.0
        %v653 = vadd.f32 %v651, %v652
        %v654 = vsel %vm527, %v610, 0.0
        %v655 = vadd.f32 %v653, %v654
        %v656 = vsel %vm527, %v611, 0.0
        %v657 = vadd.f32 %v655, %v656
        %v658 = vsel %vm527, %v612, 0.0
        %v659 = vadd.f32 %v657, %v658
        %v660 = vsel %vm527, %v613, 0.0
        %v661 = vadd.f32 %v659, %v660
        %v662 = vsel %vm527, %v614, 0.0
        %v663 = vadd.f32 %v661, %v662
        %v664 = vsel %vm527, %v615, 0.0
        %v665 = vadd.f32 %v663, %v664
        %v666 = vsel %vm527, %v616, 0.0
        %v667 = vadd.f32 %v665, %v666
        %v668 = vsel %vm527, %v617, 0.0
        %v669 = vadd.f32 %v667, %v668
        %v670 = vsel %vm527, %v618, 0.0
        %v671 = vadd.f32 %v669, %v670
        %v672 = vsel %vm527, %v619, 0.0
        %v673 = vadd.f32 %v671, %v672
        %v674 = vsel %vm527, %v620, 0.0
        %v675 = vadd.f32 %v673, %v674
        %v676 = vsel %vm527, %v621, 0.0
        %v677 = vadd.f32 %v675, %v676
        %v678 = vsel %vm527, %v622, 0.0
        %v679 = vadd.f32 %v677, %v678
        %v680 = vsel %vm527, %v623, 0.0
        %v681 = vadd.f32 %v679, %v680
        %v682 = vsel %vm527, %v624, 0.0
        %v683 = vadd.f32 %v681, %v682
        %v684 = vsel %vm527, %v625, 0.0
        %v685 = vadd.f32 %v683, %v684
        %v686 = vsel %vm527, %v626, 0.0
        %v687 = vadd.f32 %v685, %v686
        %v688 = vsel %vm527, %v627, 0.0
        %v689 = vadd.f32 %v687, %v688
        %v690 = vsel %vm527, %v628, 0.0
        %v691 = vadd.f32 %v689, %v690
        %v692 = vrot.slane %v691, 4
        %v693 = vadd.f32 %v691, %v692
        %v694 = vrot.slane %v693, 2
        %v695 = vadd.f32 %v693, %v694
        %v696 = vrot.slane %v695, 1
        %v697 = vadd.f32 %v695, %v696
        %v698 = vld [vmem:[%s1] sm:$0xff]
        %v699 = vld [vmem:[%s1 + $0x8] sm:$0xff]
        %v700 = vld [vmem:[%s1 + $0x10] sm:$0xff]
        %v701 = vld [vmem:[%s1 + $0x18] sm:$0xff]
        %v703 = vsel %vm527, %v596, 0
        %705 = vmatprep.subr.mxu0 0.0
        %v706 = vand.u32 %v698, 4294901760
        %707 = vmatpush1.msra.mxu0 %v706
        %708 = vmatprep.subr.mxu0 0.0
        %v709 = vand.u32 %v699, 4294901760
        %710 = vmatpush1.msra.mxu0 %v709
        %711 = vmatprep.subr.mxu0 0.0
        %v712 = vand.u32 %v700, 4294901760
        %713 = vmatpush1.msra.mxu0 %v712
        %714 = vmatprep.subr.mxu0 0.0
        %v715 = vand.u32 %v701, 4294901760
        %716 = vmatpush1.msra.mxu0 %v715
        %717 = vmatprep.subr.mxu0 0.0
        %718 = vmatpush1.msra.mxu0 0.0
        %719 = vmatprep.subr.mxu0 0.0
        %720 = vmatpush1.msra.mxu0 0.0
        %721 = vmatprep.subr.mxu0 0.0
        %722 = vmatpush1.msra.mxu0 0.0
        %723 = vmatprep.subr.mxu0 0.0
        %724 = vmatpush1.msra.mxu0 0.0
        %725 = vmatprep.subr.mxu0 0.0
        %726 = vmatpush1.msra.mxu0 0.0
        %727 = vmatprep.subr.mxu0 0.0
        %728 = vmatpush1.msra.mxu0 0.0
        %729 = vmatprep.subr.mxu0 0.0
        %730 = vmatpush1.msra.mxu0 0.0
        %731 = vmatprep.subr.mxu0 0.0
        %732 = vmatpush1.msra.mxu0 0.0
        %733 = vmatprep.subr.mxu0 0.0
        %734 = vmatpush1.msra.mxu0 0.0
        %735 = vmatprep.subr.mxu0 0.0
        %736 = vmatpush1.msra.mxu0 0.0
        %737 = vmatprep.subr.mxu0 0.0
        %738 = vmatpush1.msra.mxu0 0.0
        %739 = vmatprep.subr.mxu0 0.0
        %740 = vmatpush1.msra.mxu0 0.0
        %741 = vmatprep.subr.mxu0 0.0
        %742 = vmatpush1.msra.mxu0 0.0
        %743 = vmatprep.subr.mxu0 0.0
        %744 = vmatpush1.msra.mxu0 0.0
        %745 = vmatprep.subr.mxu0 0.0
        %746 = vmatpush1.msra.mxu0 0.0
        %747 = vmatprep.subr.mxu0 0.0
        %748 = vmatpush1.msra.mxu0 0.0
        %749 = vmatprep.subr.mxu0 0.0
        %750 = vmatpush1.msra.mxu0 0.0
        %751 = vmatprep.subr.mxu0 0.0
        %752 = vmatpush1.msra.mxu0 0.0
        %753 = vmatprep.subr.mxu0 0.0
        %754 = vmatpush1.msra.mxu0 0.0
        %755 = vmatprep.subr.mxu0 0.0
        %756 = vmatpush1.msra.mxu0 0.0
        %757 = vmatprep.subr.mxu0 0.0
        %758 = vmatpush1.msra.mxu0 0.0
        %759 = vmatprep.subr.mxu0 0.0
        %760 = vmatpush1.msra.mxu0 0.0
        %761 = vmatprep.subr.mxu0 0.0
        %762 = vmatpush1.msra.mxu0 0.0
        %763 = vmatprep.subr.mxu0 0.0
        %764 = vmatpush1.msra.mxu0 0.0
        %765 = vmatprep.subr.mxu0 0.0
        %766 = vmatpush1.msra.mxu0 0.0
        %767 = vmatprep.subr.mxu0 0.0
        %768 = vmatpush1.msra.mxu0 0.0
        %769 = vmatprep.subr.mxu0 0.0
        %770 = vmatpush1.msra.mxu0 0.0
        %771 = vmatprep.subr.mxu0 0.0
        %772 = vmatpush1.msra.mxu0 0.0
        %773 = vmatprep.mubr.f32.mxu0 0.0
        %v774 = vand.u32 %v703, 4294901760
        %v775 = vsub.f32 %v703, %v774
        %v776 = vand.u32 %v775, 4294901760
        %v777 = vsub.f32 %v775, %v776
        %v778 = vand.u32 %v777, 4294901760
        %779 = vmatmul.mubr.f32.gmra.mrb[0].mxu0 %v778
        %v780 = vpop.f32.mrb[0].mxu0
        %v781 = vadd.f32 0.0, %v780
        %v782 = vpop.f32.mrb[0].mxu0
        %783 = vdwg.mxu0
        %784 = vmatprep.subr.mxu0 0.0
        %v785 = vand.u32 %v698, 4294901760
        %v786 = vsub.f32 %v698, %v785
        %v787 = vand.u32 %v786, 4294901760
        %v788 = vsub.f32 %v786, %v787
        %v789 = vand.u32 %v788, 4294901760
        %790 = vmatpush1.msra.mxu0 %v789
        %791 = vmatprep.subr.mxu0 0.0
        %v792 = vand.u32 %v699, 4294901760
        %v793 = vsub.f32 %v699, %v792
        %v794 = vand.u32 %v793, 4294901760
        %v795 = vsub.f32 %v793, %v794
        %v796 = vand.u32 %v795, 4294901760
        %797 = vmatpush1.msra.mxu0 %v796
        %798 = vmatprep.subr.mxu0 0.0
        %v799 = vand.u32 %v700, 4294901760
        %v800 = vsub.f32 %v700, %v799
        %v801 = vand.u32 %v800, 4294901760
        %v802 = vsub.f32 %v800, %v801
        %v803 = vand.u32 %v802, 4294901760
        %804 = vmatpush1.msra.mxu0 %v803
        %805 = vmatprep.subr.mxu0 0.0
        %v806 = vand.u32 %v701, 4294901760
        %v807 = vsub.f32 %v701, %v806
        %v808 = vand.u32 %v807, 4294901760
        %v809 = vsub.f32 %v807, %v808
        %v810 = vand.u32 %v809, 4294901760
        %811 = vmatpush1.msra.mxu0 %v810
        %812 = vmatprep.subr.mxu0 0.0
        %813 = vmatpush1.msra.mxu0 0.0
        %814 = vmatprep.subr.mxu0 0.0
        %815 = vmatpush1.msra.mxu0 0.0
        %816 = vmatprep.subr.mxu0 0.0
        %817 = vmatpush1.msra.mxu0 0.0
        %818 = vmatprep.subr.mxu0 0.0
        %819 = vmatpush1.msra.mxu0 0.0
        %820 = vmatprep.subr.mxu0 0.0
        %821 = vmatpush1.msra.mxu0 0.0
        %822 = vmatprep.subr.mxu0 0.0
        %823 = vmatpush1.msra.mxu0 0.0
        %824 = vmatprep.subr.mxu0 0.0
        %825 = vmatpush1.msra.mxu0 0.0
        %826 = vmatprep.subr.mxu0 0.0
        %827 = vmatpush1.msra.mxu0 0.0
        %828 = vmatprep.subr.mxu0 0.0
        %829 = vmatpush1.msra.mxu0 0.0
        %830 = vmatprep.subr.mxu0 0.0
        %831 = vmatpush1.msra.mxu0 0.0
        %832 = vmatprep.subr.mxu0 0.0
        %833 = vmatpush1.msra.mxu0 0.0
        %834 = vmatprep.subr.mxu0 0.0
        %835 = vmatpush1.msra.mxu0 0.0
        %836 = vmatprep.subr.mxu0 0.0
        %837 = vmatpush1.msra.mxu0 0.0
        %838 = vmatprep.subr.mxu0 0.0
        %839 = vmatpush1.msra.mxu0 0.0
        %840 = vmatprep.subr.mxu0 0.0
        %841 = vmatpush1.msra.mxu0 0.0
        %842 = vmatprep.subr.mxu0 0.0
        %843 = vmatpush1.msra.mxu0 0.0
        %844 = vmatprep.subr.mxu0 0.0
        %845 = vmatpush1.msra.mxu0 0.0
        %846 = vmatprep.subr.mxu0 0.0
        %847 = vmatpush1.msra.mxu0 0.0
        %848 = vmatprep.subr.mxu0 0.0
        %849 = vmatpush1.msra.mxu0 0.0
        %850 = vmatprep.subr.mxu0 0.0
        %851 = vmatpush1.msra.mxu0 0.0
        %852 = vmatprep.subr.mxu0 0.0
        %853 = vmatpush1.msra.mxu0 0.0
        %854 = vmatprep.subr.mxu0 0.0
        %855 = vmatpush1.msra.mxu0 0.0
        %856 = vmatprep.subr.mxu0 0.0
        %857 = vmatpush1.msra.mxu0 0.0
        %858 = vmatprep.subr.mxu0 0.0
        %859 = vmatpush1.msra.mxu0 0.0
        %860 = vmatprep.subr.mxu0 0.0
        %861 = vmatpush1.msra.mxu0 0.0
        %862 = vmatprep.subr.mxu0 0.0
        %863 = vmatpush1.msra.mxu0 0.0
        %864 = vmatprep.subr.mxu0 0.0
        %865 = vmatpush1.msra.mxu0 0.0
        %866 = vmatprep.subr.mxu0 0.0
        %867 = vmatpush1.msra.mxu0 0.0
        %868 = vmatprep.mubr.f32.mxu0 0.0
        %v869 = vand.u32 %v703, 4294901760
        %870 = vmatmul.mubr.f32.gmra.mrb[0].mxu0 %v869
        %v871 = vpop.f32.mrb[0].mxu0
        %v872 = vadd.f32 %v781, %v871
        %v873 = vpop.f32.mrb[0].mxu0
        %874 = vdwg.mxu0
        %875 = vmatprep.subr.mxu0 0.0
        %v876 = vand.u32 %v698, 4294901760
        %v877 = vsub.f32 %v698, %v876
        %878 = vmatpush1.msra.mxu0 %v877
        %879 = vmatprep.subr.mxu0 0.0
        %v880 = vand.u32 %v699, 4294901760
        %v881 = vsub.f32 %v699, %v880
        %882 = vmatpush1.msra.mxu0 %v881
        %883 = vmatprep.subr.mxu0 0.0
        %v884 = vand.u32 %v700, 4294901760
        %v885 = vsub.f32 %v700, %v884
        %886 = vmatpush1.msra.mxu0 %v885
        %887 = vmatprep.subr.mxu0 0.0
        %v888 = vand.u32 %v701, 4294901760
        %v889 = vsub.f32 %v701, %v888
        %890 = vmatpush1.msra.mxu0 %v889
        %891 = vmatprep.subr.mxu0 0.0
        %892 = vmatpush1.msra.mxu0 0.0
        %893 = vmatprep.subr.mxu0 0.0
        %894 = vmatpush1.msra.mxu0 0.0
        %895 = vmatprep.subr.mxu0 0.0
        %896 = vmatpush1.msra.mxu0 0.0
        %897 = vmatprep.subr.mxu0 0.0
        %898 = vmatpush1.msra.mxu0 0.0
        %899 = vmatprep.subr.mxu0 0.0
        %900 = vmatpush1.msra.mxu0 0.0
        %901 = vmatprep.subr.mxu0 0.0
        %902 = vmatpush1.msra.mxu0 0.0
        %903 = vmatprep.subr.mxu0 0.0
        %904 = vmatpush1.msra.mxu0 0.0
        %905 = vmatprep.subr.mxu0 0.0
        %906 = vmatpush1.msra.mxu0 0.0
        %907 = vmatprep.subr.mxu0 0.0
        %908 = vmatpush1.msra.mxu0 0.0
        %909 = vmatprep.subr.mxu0 0.0
        %910 = vmatpush1.msra.mxu0 0.0
        %911 = vmatprep.subr.mxu0 0.0
        %912 = vmatpush1.msra.mxu0 0.0
        %913 = vmatprep.subr.mxu0 0.0
        %914 = vmatpush1.msra.mxu0 0.0
        %915 = vmatprep.subr.mxu0 0.0
        %916 = vmatpush1.msra.mxu0 0.0
        %917 = vmatprep.subr.mxu0 0.0
        %918 = vmatpush1.msra.mxu0 0.0
        %919 = vmatprep.subr.mxu0 0.0
        %920 = vmatpush1.msra.mxu0 0.0
        %921 = vmatprep.subr.mxu0 0.0
        %922 = vmatpush1.msra.mxu0 0.0
        %923 = vmatprep.subr.mxu0 0.0
        %924 = vmatpush1.msra.mxu0 0.0
        %925 = vmatprep.subr.mxu0 0.0
        %926 = vmatpush1.msra.mxu0 0.0
        %927 = vmatprep.subr.mxu0 0.0
        %928 = vmatpush1.msra.mxu0 0.0
        %929 = vmatprep.subr.mxu0 0.0
        %930 = vmatpush1.msra.mxu0 0.0
        %931 = vmatprep.subr.mxu0 0.0
        %932 = vmatpush1.msra.mxu0 0.0
        %933 = vmatprep.subr.mxu0 0.0
        %934 = vmatpush1.msra.mxu0 0.0
        %935 = vmatprep.subr.mxu0 0.0
        %936 = vmatpush1.msra.mxu0 0.0
        %937 = vmatprep.subr.mxu0 0.0
        %938 = vmatpush1.msra.mxu0 0.0
        %939 = vmatprep.subr.mxu0 0.0
        %940 = vmatpush1.msra.mxu0 0.0
        %941 = vmatprep.subr.mxu0 0.0
        %942 = vmatpush1.msra.mxu0 0.0
        %943 = vmatprep.subr.mxu0 0.0
        %944 = vmatpush1.msra.mxu0 0.0
        %945 = vmatprep.subr.mxu0 0.0
        %946 = vmatpush1.msra.mxu0 0.0
        %947 = vmatprep.mubr.f32.mxu0 0.0
        %v948 = vand.u32 %v703, 4294901760
        %v949 = vsub.f32 %v703, %v948
        %950 = vmatmul.mubr.f32.gmra.mrb[0].mxu0 %v949
        %v951 = vpop.f32.mrb[0].mxu0
        %v952 = vadd.f32 %v872, %v951
        %v953 = vpop.f32.mrb[0].mxu0
        %954 = vdwg.mxu0
        %955 = vmatprep.subr.mxu0 0.0
        %v956 = vand.u32 %v698, 4294901760
        %957 = vmatpush1.msra.mxu0 %v956
        %958 = vmatprep.subr.mxu0 0.0
        %v959 = vand.u32 %v699, 4294901760
        %960 = vmatpush1.msra.mxu0 %v959
        %961 = vmatprep.subr.mxu0 0.0
        %v962 = vand.u32 %v700, 4294901760
        %963 = vmatpush1.msra.mxu0 %v962
        %964 = vmatprep.subr.mxu0 0.0
        %v965 = vand.u32 %v701, 4294901760
        %966 = vmatpush1.msra.mxu0 %v965
        %967 = vmatprep.subr.mxu0 0.0
        %968 = vmatpush1.msra.mxu0 0.0
        %969 = vmatprep.subr.mxu0 0.0
        %970 = vmatpush1.msra.mxu0 0.0
        %971 = vmatprep.subr.mxu0 0.0
        %972 = vmatpush1.msra.mxu0 0.0
        %973 = vmatprep.subr.mxu0 0.0
        %974 = vmatpush1.msra.mxu0 0.0
        %975 = vmatprep.subr.mxu0 0.0
        %976 = vmatpush1.msra.mxu0 0.0
        %977 = vmatprep.subr.mxu0 0.0
        %978 = vmatpush1.msra.mxu0 0.0
        %979 = vmatprep.subr.mxu0 0.0
        %980 = vmatpush1.msra.mxu0 0.0
        %981 = vmatprep.subr.mxu0 0.0
        %982 = vmatpush1.msra.mxu0 0.0
        %983 = vmatprep.subr.mxu0 0.0
        %984 = vmatpush1.msra.mxu0 0.0
        %985 = vmatprep.subr.mxu0 0.0
        %986 = vmatpush1.msra.mxu0 0.0
        %987 = vmatprep.subr.mxu0 0.0
        %988 = vmatpush1.msra.mxu0 0.0
        %989 = vmatprep.subr.mxu0 0.0
        %990 = vmatpush1.msra.mxu0 0.0
        %991 = vmatprep.subr.mxu0 0.0
        %992 = vmatpush1.msra.mxu0 0.0
        %993 = vmatprep.subr.mxu0 0.0
        %994 = vmatpush1.msra.mxu0 0.0
        %995 = vmatprep.subr.mxu0 0.0
        %996 = vmatpush1.msra.mxu0 0.0
        %997 = vmatprep.subr.mxu0 0.0
        %998 = vmatpush1.msra.mxu0 0.0
        %999 = vmatprep.subr.mxu0 0.0
        %1000 = vmatpush1.msra.mxu0 0.0
        %1001 = vmatprep.subr.mxu0 0.0
        %1002 = vmatpush1.msra.mxu0 0.0
        %1003 = vmatprep.subr.mxu0 0.0
        %1004 = vmatpush1.msra.mxu0 0.0
        %1005 = vmatprep.subr.mxu0 0.0
        %1006 = vmatpush1.msra.mxu0 0.0
        %1007 = vmatprep.subr.mxu0 0.0
        %1008 = vmatpush1.msra.mxu0 0.0
        %1009 = vmatprep.subr.mxu0 0.0
        %1010 = vmatpush1.msra.mxu0 0.0
        %1011 = vmatprep.subr.mxu0 0.0
        %1012 = vmatpush1.msra.mxu0 0.0
        %1013 = vmatprep.subr.mxu0 0.0
        %1014 = vmatpush1.msra.mxu0 0.0
        %1015 = vmatprep.subr.mxu0 0.0
        %1016 = vmatpush1.msra.mxu0 0.0
        %1017 = vmatprep.subr.mxu0 0.0
        %1018 = vmatpush1.msra.mxu0 0.0
        %1019 = vmatprep.subr.mxu0 0.0
        %1020 = vmatpush1.msra.mxu0 0.0
        %1021 = vmatprep.subr.mxu0 0.0
        %1022 = vmatpush1.msra.mxu0 0.0
        %1023 = vmatprep.mubr.f32.mxu0 0.0
        %v1024 = vand.u32 %v703, 4294901760
        %v1025 = vsub.f32 %v703, %v1024
        %v1026 = vand.u32 %v1025, 4294901760
        %1027 = vmatmul.mubr.f32.gmra.mrb[0].mxu0 %v1026
        %v1028 = vpop.f32.mrb[0].mxu0
        %v1029 = vadd.f32 %v952, %v1028
        %v1030 = vpop.f32.mrb[0].mxu0
        %1031 = vdwg.mxu0
        %1032 = vmatprep.subr.mxu0 0.0
        %v1033 = vand.u32 %v698, 4294901760
        %v1034 = vsub.f32 %v698, %v1033
        %v1035 = vand.u32 %v1034, 4294901760
        %1036 = vmatpush1.msra.mxu0 %v1035
        %1037 = vmatprep.subr.mxu0 0.0
        %v1038 = vand.u32 %v699, 4294901760
        %v1039 = vsub.f32 %v699, %v1038
        %v1040 = vand.u32 %v1039, 4294901760
        %1041 = vmatpush1.msra.mxu0 %v1040
        %1042 = vmatprep.subr.mxu0 0.0
        %v1043 = vand.u32 %v700, 4294901760
        %v1044 = vsub.f32 %v700, %v1043
        %v1045 = vand.u32 %v1044, 4294901760
        %1046 = vmatpush1.msra.mxu0 %v1045
        %1047 = vmatprep.subr.mxu0 0.0
        %v1048 = vand.u32 %v701, 4294901760
        %v1049 = vsub.f32 %v701, %v1048
        %v1050 = vand.u32 %v1049, 4294901760
        %1051 = vmatpush1.msra.mxu0 %v1050
        %1052 = vmatprep.subr.mxu0 0.0
        %1053 = vmatpush1.msra.mxu0 0.0
        %1054 = vmatprep.subr.mxu0 0.0
        %1055 = vmatpush1.msra.mxu0 0.0
        %1056 = vmatprep.subr.mxu0 0.0
        %1057 = vmatpush1.msra.mxu0 0.0
        %1058 = vmatprep.subr.mxu0 0.0
        %1059 = vmatpush1.msra.mxu0 0.0
        %1060 = vmatprep.subr.mxu0 0.0
        %1061 = vmatpush1.msra.mxu0 0.0
        %1062 = vmatprep.subr.mxu0 0.0
        %1063 = vmatpush1.msra.mxu0 0.0
        %1064 = vmatprep.subr.mxu0 0.0
        %1065 = vmatpush1.msra.mxu0 0.0
        %1066 = vmatprep.subr.mxu0 0.0
        %1067 = vmatpush1.msra.mxu0 0.0
        %1068 = vmatprep.subr.mxu0 0.0
        %1069 = vmatpush1.msra.mxu0 0.0
        %1070 = vmatprep.subr.mxu0 0.0
        %1071 = vmatpush1.msra.mxu0 0.0
        %1072 = vmatprep.subr.mxu0 0.0
        %1073 = vmatpush1.msra.mxu0 0.0
        %1074 = vmatprep.subr.mxu0 0.0
        %1075 = vmatpush1.msra.mxu0 0.0
        %1076 = vmatprep.subr.mxu0 0.0
        %1077 = vmatpush1.msra.mxu0 0.0
        %1078 = vmatprep.subr.mxu0 0.0
        %1079 = vmatpush1.msra.mxu0 0.0
        %1080 = vmatprep.subr.mxu0 0.0
        %1081 = vmatpush1.msra.mxu0 0.0
        %1082 = vmatprep.subr.mxu0 0.0
        %1083 = vmatpush1.msra.mxu0 0.0
        %1084 = vmatprep.subr.mxu0 0.0
        %1085 = vmatpush1.msra.mxu0 0.0
        %1086 = vmatprep.subr.mxu0 0.0
        %1087 = vmatpush1.msra.mxu0 0.0
        %1088 = vmatprep.subr.mxu0 0.0
        %1089 = vmatpush1.msra.mxu0 0.0
        %1090 = vmatprep.subr.mxu0 0.0
        %1091 = vmatpush1.msra.mxu0 0.0
        %1092 = vmatprep.subr.mxu0 0.0
        %1093 = vmatpush1.msra.mxu0 0.0
        %1094 = vmatprep.subr.mxu0 0.0
        %1095 = vmatpush1.msra.mxu0 0.0
        %1096 = vmatprep.subr.mxu0 0.0
        %1097 = vmatpush1.msra.mxu0 0.0
        %1098 = vmatprep.subr.mxu0 0.0
        %1099 = vmatpush1.msra.mxu0 0.0
        %1100 = vmatprep.subr.mxu0 0.0
        %1101 = vmatpush1.msra.mxu0 0.0
        %1102 = vmatprep.subr.mxu0 0.0
        %1103 = vmatpush1.msra.mxu0 0.0
        %1104 = vmatprep.subr.mxu0 0.0
        %1105 = vmatpush1.msra.mxu0 0.0
        %1106 = vmatprep.subr.mxu0 0.0
        %1107 = vmatpush1.msra.mxu0 0.0
        %1108 = vmatprep.mubr.f32.mxu0 0.0
        %v1109 = vand.u32 %v703, 4294901760
        %1110 = vmatmul.mubr.f32.gmra.mrb[0].mxu0 %v1109
        %v1111 = vpop.f32.mrb[0].mxu0
        %v1112 = vadd.f32 %v1029, %v1111
        %v1113 = vpop.f32.mrb[0].mxu0
        %1114 = vdwg.mxu0
        %1115 = vmatprep.subr.mxu0 0.0
        %v1116 = vand.u32 %v698, 4294901760
        %1117 = vmatpush1.msra.mxu0 %v1116
        %1118 = vmatprep.subr.mxu0 0.0
        %v1119 = vand.u32 %v699, 4294901760
        %1120 = vmatpush1.msra.mxu0 %v1119
        %1121 = vmatprep.subr.mxu0 0.0
        %v1122 = vand.u32 %v700, 4294901760
        %1123 = vmatpush1.msra.mxu0 %v1122
        %1124 = vmatprep.subr.mxu0 0.0
        %v1125 = vand.u32 %v701, 4294901760
        %1126 = vmatpush1.msra.mxu0 %v1125
        %1127 = vmatprep.subr.mxu0 0.0
        %1128 = vmatpush1.msra.mxu0 0.0
        %1129 = vmatprep.subr.mxu0 0.0
        %1130 = vmatpush1.msra.mxu0 0.0
        %1131 = vmatprep.subr.mxu0 0.0
        %1132 = vmatpush1.msra.mxu0 0.0
        %1133 = vmatprep.subr.mxu0 0.0
        %1134 = vmatpush1.msra.mxu0 0.0
        %1135 = vmatprep.subr.mxu0 0.0
        %1136 = vmatpush1.msra.mxu0 0.0
        %1137 = vmatprep.subr.mxu0 0.0
        %1138 = vmatpush1.msra.mxu0 0.0
        %1139 = vmatprep.subr.mxu0 0.0
        %1140 = vmatpush1.msra.mxu0 0.0
        %1141 = vmatprep.subr.mxu0 0.0
        %1142 = vmatpush1.msra.mxu0 0.0
        %1143 = vmatprep.subr.mxu0 0.0
        %1144 = vmatpush1.msra.mxu0 0.0
        %1145 = vmatprep.subr.mxu0 0.0
        %1146 = vmatpush1.msra.mxu0 0.0
        %1147 = vmatprep.subr.mxu0 0.0
        %1148 = vmatpush1.msra.mxu0 0.0
        %1149 = vmatprep.subr.mxu0 0.0
        %1150 = vmatpush1.msra.mxu0 0.0
        %1151 = vmatprep.subr.mxu0 0.0
        %1152 = vmatpush1.msra.mxu0 0.0
        %1153 = vmatprep.subr.mxu0 0.0
        %1154 = vmatpush1.msra.mxu0 0.0
        %1155 = vmatprep.subr.mxu0 0.0
        %1156 = vmatpush1.msra.mxu0 0.0
        %1157 = vmatprep.subr.mxu0 0.0
        %1158 = vmatpush1.msra.mxu0 0.0
        %1159 = vmatprep.subr.mxu0 0.0
        %1160 = vmatpush1.msra.mxu0 0.0
        %1161 = vmatprep.subr.mxu0 0.0
        %1162 = vmatpush1.msra.mxu0 0.0
        %1163 = vmatprep.subr.mxu0 0.0
        %1164 = vmatpush1.msra.mxu0 0.0
        %1165 = vmatprep.subr.mxu0 0.0
        %1166 = vmatpush1.msra.mxu0 0.0
        %1167 = vmatprep.subr.mxu0 0.0
        %1168 = vmatpush1.msra.mxu0 0.0
        %1169 = vmatprep.subr.mxu0 0.0
        %1170 = vmatpush1.msra.mxu0 0.0
        %1171 = vmatprep.subr.mxu0 0.0
        %1172 = vmatpush1.msra.mxu0 0.0
        %1173 = vmatprep.subr.mxu0 0.0
        %1174 = vmatpush1.msra.mxu0 0.0
        %1175 = vmatprep.subr.mxu0 0.0
        %1176 = vmatpush1.msra.mxu0 0.0
        %1177 = vmatprep.subr.mxu0 0.0
        %1178 = vmatpush1.msra.mxu0 0.0
        %1179 = vmatprep.subr.mxu0 0.0
        %1180 = vmatpush1.msra.mxu0 0.0
        %1181 = vmatprep.subr.mxu0 0.0
        %1182 = vmatpush1.msra.mxu0 0.0
        %1183 = vmatprep.mubr.f32.mxu0 0.0
        %v1184 = vand.u32 %v703, 4294901760
        %1185 = vmatmul.mubr.f32.gmra.mrb[0].mxu0 %v1184
        %v1186 = vpop.f32.mrb[0].mxu0
        %v1187 = vadd.f32 %v1112, %v1186
        %v1188 = vpop.f32.mrb[0].mxu0
        %1189 = vdwg.mxu0
        %v1191 = vsel %vm527, %v697, 0
        %1193 = vmatprep.subr.mxu0 0.0
        %v1194 = vand.u32 %v698, 4294901760
        %1195 = vmatpush1.msra.mxu0 %v1194
        %1196 = vmatprep.subr.mxu0 0.0
        %v1197 = vand.u32 %v699, 4294901760
        %1198 = vmatpush1.msra.mxu0 %v1197
        %1199 = vmatprep.subr.mxu0 0.0
        %v1200 = vand.u32 %v700, 4294901760
        %1201 = vmatpush1.msra.mxu0 %v1200
        %1202 = vmatprep.subr.mxu0 0.0
        %v1203 = vand.u32 %v701, 4294901760
        %1204 = vmatpush1.msra.mxu0 %v1203
        %1205 = vmatprep.subr.mxu0 0.0
        %1206 = vmatpush1.msra.mxu0 0.0
        %1207 = vmatprep.subr.mxu0 0.0
        %1208 = vmatpush1.msra.mxu0 0.0
        %1209 = vmatprep.subr.mxu0 0.0
        %1210 = vmatpush1.msra.mxu0 0.0
        %1211 = vmatprep.subr.mxu0 0.0
        %1212 = vmatpush1.msra.mxu0 0.0
        %1213 = vmatprep.subr.mxu0 0.0
        %1214 = vmatpush1.msra.mxu0 0.0
        %1215 = vmatprep.subr.mxu0 0.0
        %1216 = vmatpush1.msra.mxu0 0.0
        %1217 = vmatprep.subr.mxu0 0.0
        %1218 = vmatpush1.msra.mxu0 0.0
        %1219 = vmatprep.subr.mxu0 0.0
        %1220 = vmatpush1.msra.mxu0 0.0
        %1221 = vmatprep.subr.mxu0 0.0
        %1222 = vmatpush1.msra.mxu0 0.0
        %1223 = vmatprep.subr.mxu0 0.0
        %1224 = vmatpush1.msra.mxu0 0.0
        %1225 = vmatprep.subr.mxu0 0.0
        %1226 = vmatpush1.msra.mxu0 0.0
        %1227 = vmatprep.subr.mxu0 0.0
        %1228 = vmatpush1.msra.mxu0 0.0
        %1229 = vmatprep.subr.mxu0 0.0
        %1230 = vmatpush1.msra.mxu0 0.0
        %1231 = vmatprep.subr.mxu0 0.0
        %1232 = vmatpush1.msra.mxu0 0.0
        %1233 = vmatprep.subr.mxu0 0.0
        %1234 = vmatpush1.msra.mxu0 0.0
        %1235 = vmatprep.subr.mxu0 0.0
        %1236 = vmatpush1.msra.mxu0 0.0
        %1237 = vmatprep.subr.mxu0 0.0
        %1238 = vmatpush1.msra.mxu0 0.0
        %1239 = vmatprep.subr.mxu0 0.0
        %1240 = vmatpush1.msra.mxu0 0.0
        %1241 = vmatprep.subr.mxu0 0.0
        %1242 = vmatpush1.msra.mxu0 0.0
        %1243 = vmatprep.subr.mxu0 0.0
        %1244 = vmatpush1.msra.mxu0 0.0
        %1245 = vmatprep.subr.mxu0 0.0
        %1246 = vmatpush1.msra.mxu0 0.0
        %1247 = vmatprep.subr.mxu0 0.0
        %1248 = vmatpush1.msra.mxu0 0.0
        %1249 = vmatprep.subr.mxu0 0.0
        %1250 = vmatpush1.msra.mxu0 0.0
        %1251 = vmatprep.subr.mxu0 0.0
        %1252 = vmatpush1.msra.mxu0 0.0
        %1253 = vmatprep.subr.mxu0 0.0
        %1254 = vmatpush1.msra.mxu0 0.0
        %1255 = vmatprep.subr.mxu0 0.0
        %1256 = vmatpush1.msra.mxu0 0.0
        %1257 = vmatprep.subr.mxu0 0.0
        %1258 = vmatpush1.msra.mxu0 0.0
        %1259 = vmatprep.subr.mxu0 0.0
        %1260 = vmatpush1.msra.mxu0 0.0
        %1261 = vmatprep.mubr.f32.mxu0 0.0
        %v1262 = vand.u32 %v1191, 4294901760
        %v1263 = vsub.f32 %v1191, %v1262
        %v1264 = vand.u32 %v1263, 4294901760
        %v1265 = vsub.f32 %v1263, %v1264
        %v1266 = vand.u32 %v1265, 4294901760
        %1267 = vmatmul.mubr.f32.gmra.mrb[0].mxu0 %v1266
        %v1268 = vpop.f32.mrb[0].mxu0
        %v1269 = vadd.f32 0.0, %v1268
        %v1270 = vpop.f32.mrb[0].mxu0
        %1271 = vdwg.mxu0
        %1272 = vmatprep.subr.mxu0 0.0
        %v1273 = vand.u32 %v698, 4294901760
        %v1274 = vsub.f32 %v698, %v1273
        %v1275 = vand.u32 %v1274, 4294901760
        %v1276 = vsub.f32 %v1274, %v1275
        %v1277 = vand.u32 %v1276, 4294901760
        %1278 = vmatpush1.msra.mxu0 %v1277
        %1279 = vmatprep.subr.mxu0 0.0
        %v1280 = vand.u32 %v699, 4294901760
        %v1281 = vsub.f32 %v699, %v1280
        %v1282 = vand.u32 %v1281, 4294901760
        %v1283 = vsub.f32 %v1281, %v1282
        %v1284 = vand.u32 %v1283, 4294901760
        %1285 = vmatpush1.msra.mxu0 %v1284
        %1286 = vmatprep.subr.mxu0 0.0
        %v1287 = vand.u32 %v700, 4294901760
        %v1288 = vsub.f32 %v700, %v1287
        %v1289 = vand.u32 %v1288, 4294901760
        %v1290 = vsub.f32 %v1288, %v1289
        %v1291 = vand.u32 %v1290, 4294901760
        %1292 = vmatpush1.msra.mxu0 %v1291
        %1293 = vmatprep.subr.mxu0 0.0
        %v1294 = vand.u32 %v701, 4294901760
        %v1295 = vsub.f32 %v701, %v1294
        %v1296 = vand.u32 %v1295, 4294901760
        %v1297 = vsub.f32 %v1295, %v1296
        %v1298 = vand.u32 %v1297, 4294901760
        %1299 = vmatpush1.msra.mxu0 %v1298
        %1300 = vmatprep.subr.mxu0 0.0
        %1301 = vmatpush1.msra.mxu0 0.0
        %1302 = vmatprep.subr.mxu0 0.0
        %1303 = vmatpush1.msra.mxu0 0.0
        %1304 = vmatprep.subr.mxu0 0.0
        %1305 = vmatpush1.msra.mxu0 0.0
        %1306 = vmatprep.subr.mxu0 0.0
        %1307 = vmatpush1.msra.mxu0 0.0
        %1308 = vmatprep.subr.mxu0 0.0
        %1309 = vmatpush1.msra.mxu0 0.0
        %1310 = vmatprep.subr.mxu0 0.0
        %1311 = vmatpush1.msra.mxu0 0.0
        %1312 = vmatprep.subr.mxu0 0.0
        %1313 = vmatpush1.msra.mxu0 0.0
        %1314 = vmatprep.subr.mxu0 0.0
        %1315 = vmatpush1.msra.mxu0 0.0
        %1316 = vmatprep.subr.mxu0 0.0
        %1317 = vmatpush1.msra.mxu0 0.0
        %1318 = vmatprep.subr.mxu0 0.0
        %1319 = vmatpush1.msra.mxu0 0.0
        %1320 = vmatprep.subr.mxu0 0.0
        %1321 = vmatpush1.msra.mxu0 0.0
        %1322 = vmatprep.subr.mxu0 0.0
        %1323 = vmatpush1.msra.mxu0 0.0
        %1324 = vmatprep.subr.mxu0 0.0
        %1325 = vmatpush1.msra.mxu0 0.0
        %1326 = vmatprep.subr.mxu0 0.0
        %1327 = vmatpush1.msra.mxu0 0.0
        %1328 = vmatprep.subr.mxu0 0.0
        %1329 = vmatpush1.msra.mxu0 0.0
        %1330 = vmatprep.subr.mxu0 0.0
        %1331 = vmatpush1.msra.mxu0 0.0
        %1332 = vmatprep.subr.mxu0 0.0
        %1333 = vmatpush1.msra.mxu0 0.0
        %1334 = vmatprep.subr.mxu0 0.0
        %1335 = vmatpush1.msra.mxu0 0.0
        %1336 = vmatprep.subr.mxu0 0.0
        %1337 = vmatpush1.msra.mxu0 0.0
        %1338 = vmatprep.subr.mxu0 0.0
        %1339 = vmatpush1.msra.mxu0 0.0
        %1340 = vmatprep.subr.mxu0 0.0
        %1341 = vmatpush1.msra.mxu0 0.0
        %1342 = vmatprep.subr.mxu0 0.0
        %1343 = vmatpush1.msra.mxu0 0.0
        %1344 = vmatprep.subr.mxu0 0.0
        %1345 = vmatpush1.msra.mxu0 0.0
        %1346 = vmatprep.subr.mxu0 0.0
        %1347 = vmatpush1.msra.mxu0 0.0
        %1348 = vmatprep.subr.mxu0 0.0
        %1349 = vmatpush1.msra.mxu0 0.0
        %1350 = vmatprep.subr.mxu0 0.0
        %1351 = vmatpush1.msra.mxu0 0.0
        %1352 = vmatprep.subr.mxu0 0.0
        %1353 = vmatpush1.msra.mxu0 0.0
        %1354 = vmatprep.subr.mxu0 0.0
        %1355 = vmatpush1.msra.mxu0 0.0
        %1356 = vmatprep.mubr.f32.mxu0 0.0
        %v1357 = vand.u32 %v1191, 4294901760
        %1358 = vmatmul.mubr.f32.gmra.mrb[0].mxu0 %v1357
        %v1359 = vpop.f32.mrb[0].mxu0
        %v1360 = vadd.f32 %v1269, %v1359
        %v1361 = vpop.f32.mrb[0].mxu0
        %1362 = vdwg.mxu0
        %1363 = vmatprep.subr.mxu0 0.0
        %v1364 = vand.u32 %v698, 4294901760
        %v1365 = vsub.f32 %v698, %v1364
        %1366 = vmatpush1.msra.mxu0 %v1365
        %1367 = vmatprep.subr.mxu0 0.0
        %v1368 = vand.u32 %v699, 4294901760
        %v1369 = vsub.f32 %v699, %v1368
        %1370 = vmatpush1.msra.mxu0 %v1369
        %1371 = vmatprep.subr.mxu0 0.0
        %v1372 = vand.u32 %v700, 4294901760
        %v1373 = vsub.f32 %v700, %v1372
        %1374 = vmatpush1.msra.mxu0 %v1373
        %1375 = vmatprep.subr.mxu0 0.0
        %v1376 = vand.u32 %v701, 4294901760
        %v1377 = vsub.f32 %v701, %v1376
        %1378 = vmatpush1.msra.mxu0 %v1377
        %1379 = vmatprep.subr.mxu0 0.0
        %1380 = vmatpush1.msra.mxu0 0.0
        %1381 = vmatprep.subr.mxu0 0.0
        %1382 = vmatpush1.msra.mxu0 0.0
        %1383 = vmatprep.subr.mxu0 0.0
        %1384 = vmatpush1.msra.mxu0 0.0
        %1385 = vmatprep.subr.mxu0 0.0
        %1386 = vmatpush1.msra.mxu0 0.0
        %1387 = vmatprep.subr.mxu0 0.0
        %1388 = vmatpush1.msra.mxu0 0.0
        %1389 = vmatprep.subr.mxu0 0.0
        %1390 = vmatpush1.msra.mxu0 0.0
        %1391 = vmatprep.subr.mxu0 0.0
        %1392 = vmatpush1.msra.mxu0 0.0
        %1393 = vmatprep.subr.mxu0 0.0
        %1394 = vmatpush1.msra.mxu0 0.0
        %1395 = vmatprep.subr.mxu0 0.0
        %1396 = vmatpush1.msra.mxu0 0.0
        %1397 = vmatprep.subr.mxu0 0.0
        %1398 = vmatpush1.msra.mxu0 0.0
        %1399 = vmatprep.subr.mxu0 0.0
        %1400 = vmatpush1.msra.mxu0 0.0
        %1401 = vmatprep.subr.mxu0 0.0
        %1402 = vmatpush1.msra.mxu0 0.0
        %1403 = vmatprep.subr.mxu0 0.0
        %1404 = vmatpush1.msra.mxu0 0.0
        %1405 = vmatprep.subr.mxu0 0.0
        %1406 = vmatpush1.msra.mxu0 0.0
        %1407 = vmatprep.subr.mxu0 0.0
        %1408 = vmatpush1.msra.mxu0 0.0
        %1409 = vmatprep.subr.mxu0 0.0
        %1410 = vmatpush1.msra.mxu0 0.0
        %1411 = vmatprep.subr.mxu0 0.0
        %1412 = vmatpush1.msra.mxu0 0.0
        %1413 = vmatprep.subr.mxu0 0.0
        %1414 = vmatpush1.msra.mxu0 0.0
        %1415 = vmatprep.subr.mxu0 0.0
        %1416 = vmatpush1.msra.mxu0 0.0
        %1417 = vmatprep.subr.mxu0 0.0
        %1418 = vmatpush1.msra.mxu0 0.0
        %1419 = vmatprep.subr.mxu0 0.0
        %1420 = vmatpush1.msra.mxu0 0.0
        %1421 = vmatprep.subr.mxu0 0.0
        %1422 = vmatpush1.msra.mxu0 0.0
        %1423 = vmatprep.subr.mxu0 0.0
        %1424 = vmatpush1.msra.mxu0 0.0
        %1425 = vmatprep.subr.mxu0 0.0
        %1426 = vmatpush1.msra.mxu0 0.0
        %1427 = vmatprep.subr.mxu0 0.0
        %1428 = vmatpush1.msra.mxu0 0.0
        %1429 = vmatprep.subr.mxu0 0.0
        %1430 = vmatpush1.msra.mxu0 0.0
        %1431 = vmatprep.subr.mxu0 0.0
        %1432 = vmatpush1.msra.mxu0 0.0
        %1433 = vmatprep.subr.mxu0 0.0
        %1434 = vmatpush1.msra.mxu0 0.0
        %1435 = vmatprep.mubr.f32.mxu0 0.0
        %v1436 = vand.u32 %v1191, 4294901760
        %v1437 = vsub.f32 %v1191, %v1436
        %1438 = vmatmul.mubr.f32.gmra.mrb[0].mxu0 %v1437
        %v1439 = vpop.f32.mrb[0].mxu0
        %v1440 = vadd.f32 %v1360, %v1439
        %v1441 = vpop.f32.mrb[0].mxu0
        %1442 = vdwg.mxu0
        %1443 = vmatprep.subr.mxu0 0.0
        %v1444 = vand.u32 %v698, 4294901760
        %1445 = vmatpush1.msra.mxu0 %v1444
        %1446 = vmatprep.subr.mxu0 0.0
        %v1447 = vand.u32 %v699, 4294901760
        %1448 = vmatpush1.msra.mxu0 %v1447
        %1449 = vmatprep.subr.mxu0 0.0
        %v1450 = vand.u32 %v700, 4294901760
        %1451 = vmatpush1.msra.mxu0 %v1450
        %1452 = vmatprep.subr.mxu0 0.0
        %v1453 = vand.u32 %v701, 4294901760
        %1454 = vmatpush1.msra.mxu0 %v1453
        %1455 = vmatprep.subr.mxu0 0.0
        %1456 = vmatpush1.msra.mxu0 0.0
        %1457 = vmatprep.subr.mxu0 0.0
        %1458 = vmatpush1.msra.mxu0 0.0
        %1459 = vmatprep.subr.mxu0 0.0
        %1460 = vmatpush1.msra.mxu0 0.0
        %1461 = vmatprep.subr.mxu0 0.0
        %1462 = vmatpush1.msra.mxu0 0.0
        %1463 = vmatprep.subr.mxu0 0.0
        %1464 = vmatpush1.msra.mxu0 0.0
        %1465 = vmatprep.subr.mxu0 0.0
        %1466 = vmatpush1.msra.mxu0 0.0
        %1467 = vmatprep.subr.mxu0 0.0
        %1468 = vmatpush1.msra.mxu0 0.0
        %1469 = vmatprep.subr.mxu0 0.0
        %1470 = vmatpush1.msra.mxu0 0.0
        %1471 = vmatprep.subr.mxu0 0.0
        %1472 = vmatpush1.msra.mxu0 0.0
        %1473 = vmatprep.subr.mxu0 0.0
        %1474 = vmatpush1.msra.mxu0 0.0
        %1475 = vmatprep.subr.mxu0 0.0
        %1476 = vmatpush1.msra.mxu0 0.0
        %1477 = vmatprep.subr.mxu0 0.0
        %1478 = vmatpush1.msra.mxu0 0.0
        %1479 = vmatprep.subr.mxu0 0.0
        %1480 = vmatpush1.msra.mxu0 0.0
        %1481 = vmatprep.subr.mxu0 0.0
        %1482 = vmatpush1.msra.mxu0 0.0
        %1483 = vmatprep.subr.mxu0 0.0
        %1484 = vmatpush1.msra.mxu0 0.0
        %1485 = vmatprep.subr.mxu0 0.0
        %1486 = vmatpush1.msra.mxu0 0.0
        %1487 = vmatprep.subr.mxu0 0.0
        %1488 = vmatpush1.msra.mxu0 0.0
        %1489 = vmatprep.subr.mxu0 0.0
        %1490 = vmatpush1.msra.mxu0 0.0
        %1491 = vmatprep.subr.mxu0 0.0
        %1492 = vmatpush1.msra.mxu0 0.0
        %1493 = vmatprep.subr.mxu0 0.0
        %1494 = vmatpush1.msra.mxu0 0.0
        %1495 = vmatprep.subr.mxu0 0.0
        %1496 = vmatpush1.msra.mxu0 0.0
        %1497 = vmatprep.subr.mxu0 0.0
        %1498 = vmatpush1.msra.mxu0 0.0
        %1499 = vmatprep.subr.mxu0 0.0
        %1500 = vmatpush1.msra.mxu0 0.0
        %1501 = vmatprep.subr.mxu0 0.0
        %1502 = vmatpush1.msra.mxu0 0.0
        %1503 = vmatprep.subr.mxu0 0.0
        %1504 = vmatpush1.msra.mxu0 0.0
        %1505 = vmatprep.subr.mxu0 0.0
        %1506 = vmatpush1.msra.mxu0 0.0
        %1507 = vmatprep.subr.mxu0 0.0
        %1508 = vmatpush1.msra.mxu0 0.0
        %1509 = vmatprep.subr.mxu0 0.0
        %1510 = vmatpush1.msra.mxu0 0.0
        %1511 = vmatprep.mubr.f32.mxu0 0.0
        %v1512 = vand.u32 %v1191, 4294901760
        %v1513 = vsub.f32 %v1191, %v1512
        %v1514 = vand.u32 %v1513, 4294901760
        %1515 = vmatmul.mubr.f32.gmra.mrb[0].mxu0 %v1514
        %v1516 = vpop.f32.mrb[0].mxu0
        %v1517 = vadd.f32 %v1440, %v1516
        %v1518 = vpop.f32.mrb[0].mxu0
        %1519 = vdwg.mxu0
        %1520 = vmatprep.subr.mxu0 0.0
        %v1521 = vand.u32 %v698, 4294901760
        %v1522 = vsub.f32 %v698, %v1521
        %v1523 = vand.u32 %v1522, 4294901760
        %1524 = vmatpush1.msra.mxu0 %v1523
        %1525 = vmatprep.subr.mxu0 0.0
        %v1526 = vand.u32 %v699, 4294901760
        %v1527 = vsub.f32 %v699, %v1526
        %v1528 = vand.u32 %v1527, 4294901760
        %1529 = vmatpush1.msra.mxu0 %v1528
        %1530 = vmatprep.subr.mxu0 0.0
        %v1531 = vand.u32 %v700, 4294901760
        %v1532 = vsub.f32 %v700, %v1531
        %v1533 = vand.u32 %v1532, 4294901760
        %1534 = vmatpush1.msra.mxu0 %v1533
        %1535 = vmatprep.subr.mxu0 0.0
        %v1536 = vand.u32 %v701, 4294901760
        %v1537 = vsub.f32 %v701, %v1536
        %v1538 = vand.u32 %v1537, 4294901760
        %1539 = vmatpush1.msra.mxu0 %v1538
        %1540 = vmatprep.subr.mxu0 0.0
        %1541 = vmatpush1.msra.mxu0 0.0
        %1542 = vmatprep.subr.mxu0 0.0
        %1543 = vmatpush1.msra.mxu0 0.0
        %1544 = vmatprep.subr.mxu0 0.0
        %1545 = vmatpush1.msra.mxu0 0.0
        %1546 = vmatprep.subr.mxu0 0.0
        %1547 = vmatpush1.msra.mxu0 0.0
        %1548 = vmatprep.subr.mxu0 0.0
        %1549 = vmatpush1.msra.mxu0 0.0
        %1550 = vmatprep.subr.mxu0 0.0
        %1551 = vmatpush1.msra.mxu0 0.0
        %1552 = vmatprep.subr.mxu0 0.0
        %1553 = vmatpush1.msra.mxu0 0.0
        %1554 = vmatprep.subr.mxu0 0.0
        %1555 = vmatpush1.msra.mxu0 0.0
        %1556 = vmatprep.subr.mxu0 0.0
        %1557 = vmatpush1.msra.mxu0 0.0
        %1558 = vmatprep.subr.mxu0 0.0
        %1559 = vmatpush1.msra.mxu0 0.0
        %1560 = vmatprep.subr.mxu0 0.0
        %1561 = vmatpush1.msra.mxu0 0.0
        %1562 = vmatprep.subr.mxu0 0.0
        %1563 = vmatpush1.msra.mxu0 0.0
        %1564 = vmatprep.subr.mxu0 0.0
        %1565 = vmatpush1.msra.mxu0 0.0
        %1566 = vmatprep.subr.mxu0 0.0
        %1567 = vmatpush1.msra.mxu0 0.0
        %1568 = vmatprep.subr.mxu0 0.0
        %1569 = vmatpush1.msra.mxu0 0.0
        %1570 = vmatprep.subr.mxu0 0.0
        %1571 = vmatpush1.msra.mxu0 0.0
        %1572 = vmatprep.subr.mxu0 0.0
        %1573 = vmatpush1.msra.mxu0 0.0
        %1574 = vmatprep.subr.mxu0 0.0
        %1575 = vmatpush1.msra.mxu0 0.0
        %1576 = vmatprep.subr.mxu0 0.0
        %1577 = vmatpush1.msra.mxu0 0.0
        %1578 = vmatprep.subr.mxu0 0.0
        %1579 = vmatpush1.msra.mxu0 0.0
        %1580 = vmatprep.subr.mxu0 0.0
        %1581 = vmatpush1.msra.mxu0 0.0
        %1582 = vmatprep.subr.mxu0 0.0
        %1583 = vmatpush1.msra.mxu0 0.0
        %1584 = vmatprep.subr.mxu0 0.0
        %1585 = vmatpush1.msra.mxu0 0.0
        %1586 = vmatprep.subr.mxu0 0.0
        %1587 = vmatpush1.msra.mxu0 0.0
        %1588 = vmatprep.subr.mxu0 0.0
        %1589 = vmatpush1.msra.mxu0 0.0
        %1590 = vmatprep.subr.mxu0 0.0
        %1591 = vmatpush1.msra.mxu0 0.0
        %1592 = vmatprep.subr.mxu0 0.0
        %1593 = vmatpush1.msra.mxu0 0.0
        %1594 = vmatprep.subr.mxu0 0.0
        %1595 = vmatpush1.msra.mxu0 0.0
        %1596 = vmatprep.mubr.f32.mxu0 0.0
        %v1597 = vand.u32 %v1191, 4294901760
        %1598 = vmatmul.mubr.f32.gmra.mrb[0].mxu0 %v1597
        %v1599 = vpop.f32.mrb[0].mxu0
        %v1600 = vadd.f32 %v1517, %v1599
        %v1601 = vpop.f32.mrb[0].mxu0
        %1602 = vdwg.mxu0
        %1603 = vmatprep.subr.mxu0 0.0
        %v1604 = vand.u32 %v698, 4294901760
        %1605 = vmatpush1.msra.mxu0 %v1604
        %1606 = vmatprep.subr.mxu0 0.0
        %v1607 = vand.u32 %v699, 4294901760
        %1608 = vmatpush1.msra.mxu0 %v1607
        %1609 = vmatprep.subr.mxu0 0.0
        %v1610 = vand.u32 %v700, 4294901760
        %1611 = vmatpush1.msra.mxu0 %v1610
        %1612 = vmatprep.subr.mxu0 0.0
        %v1613 = vand.u32 %v701, 4294901760
        %1614 = vmatpush1.msra.mxu0 %v1613
        %1615 = vmatprep.subr.mxu0 0.0
        %1616 = vmatpush1.msra.mxu0 0.0
        %1617 = vmatprep.subr.mxu0 0.0
        %1618 = vmatpush1.msra.mxu0 0.0
        %1619 = vmatprep.subr.mxu0 0.0
        %1620 = vmatpush1.msra.mxu0 0.0
        %1621 = vmatprep.subr.mxu0 0.0
        %1622 = vmatpush1.msra.mxu0 0.0
        %1623 = vmatprep.subr.mxu0 0.0
        %1624 = vmatpush1.msra.mxu0 0.0
        %1625 = vmatprep.subr.mxu0 0.0
        %1626 = vmatpush1.msra.mxu0 0.0
        %1627 = vmatprep.subr.mxu0 0.0
        %1628 = vmatpush1.msra.mxu0 0.0
        %1629 = vmatprep.subr.mxu0 0.0
        %1630 = vmatpush1.msra.mxu0 0.0
        %1631 = vmatprep.subr.mxu0 0.0
        %1632 = vmatpush1.msra.mxu0 0.0
        %1633 = vmatprep.subr.mxu0 0.0
        %1634 = vmatpush1.msra.mxu0 0.0
        %1635 = vmatprep.subr.mxu0 0.0
        %1636 = vmatpush1.msra.mxu0 0.0
        %1637 = vmatprep.subr.mxu0 0.0
        %1638 = vmatpush1.msra.mxu0 0.0
        %1639 = vmatprep.subr.mxu0 0.0
        %1640 = vmatpush1.msra.mxu0 0.0
        %1641 = vmatprep.subr.mxu0 0.0
        %1642 = vmatpush1.msra.mxu0 0.0
        %1643 = vmatprep.subr.mxu0 0.0
        %1644 = vmatpush1.msra.mxu0 0.0
        %1645 = vmatprep.subr.mxu0 0.0
        %1646 = vmatpush1.msra.mxu0 0.0
        %1647 = vmatprep.subr.mxu0 0.0
        %1648 = vmatpush1.msra.mxu0 0.0
        %1649 = vmatprep.subr.mxu0 0.0
        %1650 = vmatpush1.msra.mxu0 0.0
        %1651 = vmatprep.subr.mxu0 0.0
        %1652 = vmatpush1.msra.mxu0 0.0
        %1653 = vmatprep.subr.mxu0 0.0
        %1654 = vmatpush1.msra.mxu0 0.0
        %1655 = vmatprep.subr.mxu0 0.0
        %1656 = vmatpush1.msra.mxu0 0.0
        %1657 = vmatprep.subr.mxu0 0.0
        %1658 = vmatpush1.msra.mxu0 0.0
        %1659 = vmatprep.subr.mxu0 0.0
        %1660 = vmatpush1.msra.mxu0 0.0
        %1661 = vmatprep.subr.mxu0 0.0
        %1662 = vmatpush1.msra.mxu0 0.0
        %1663 = vmatprep.subr.mxu0 0.0
        %1664 = vmatpush1.msra.mxu0 0.0
        %1665 = vmatprep.subr.mxu0 0.0
        %1666 = vmatpush1.msra.mxu0 0.0
        %1667 = vmatprep.subr.mxu0 0.0
        %1668 = vmatpush1.msra.mxu0 0.0
        %1669 = vmatprep.subr.mxu0 0.0
        %1670 = vmatpush1.msra.mxu0 0.0
        %1671 = vmatprep.mubr.f32.mxu0 0.0
        %v1672 = vand.u32 %v1191, 4294901760
        %1673 = vmatmul.mubr.f32.gmra.mrb[0].mxu0 %v1672
        %v1674 = vpop.f32.mrb[0].mxu0
        %v1675 = vadd.f32 %v1600, %v1674
        %v1676 = vpop.f32.mrb[0].mxu0
        %1677 = vdwg.mxu0
        %v1678 = vmul.f32 %v1187, %v1187
        %v1679 = vsub.f32 %v1675, %v1678
        %v1680 = vadd.f32 %v1679, 1e-05
        %v1681 = vrsqrt.pop %v1680
        %v1682 = vlaneseq
        %v1683 = vshrl.u32 %v1682, 7
        %v1684 = vsub.s32 0, %v1683
        %v1685 = vrot.slane %v1187, %v1684
        %v1686 = vsub.f32 %v493, %v1685
        %v1687 = vsub.f32 %v494, %v1685
        %v1688 = vsub.f32 %v495, %v1685
        %v1689 = vsub.f32 %v496, %v1685
        %v1690 = vsub.f32 %v497, %v1685
        %v1691 = vsub.f32 %v498, %v1685
        %v1692 = vsub.f32 %v499, %v1685
        %v1693 = vsub.f32 %v500, %v1685
        %v1694 = vsub.f32 %v501, %v1685
        %v1695 = vsub.f32 %v502, %v1685
        %v1696 = vsub.f32 %v503, %v1685
        %v1697 = vsub.f32 %v504, %v1685
        %v1698 = vsub.f32 %v505, %v1685
        %v1699 = vsub.f32 %v506, %v1685
        %v1700 = vsub.f32 %v507, %v1685
        %v1701 = vsub.f32 %v508, %v1685
        %v1702 = vsub.f32 %v509, %v1685
        %v1703 = vsub.f32 %v510, %v1685
        %v1704 = vsub.f32 %v511, %v1685
        %v1705 = vsub.f32 %v512, %v1685
        %v1706 = vsub.f32 %v513, %v1685
        %v1707 = vsub.f32 %v514, %v1685
        %v1708 = vsub.f32 %v515, %v1685
        %v1709 = vsub.f32 %v516, %v1685
        %v1710 = vsub.f32 %v517, %v1685
        %v1711 = vsub.f32 %v518, %v1685
        %v1712 = vsub.f32 %v519, %v1685
        %v1713 = vsub.f32 %v520, %v1685
        %v1714 = vsub.f32 %v521, %v1685
        %v1715 = vsub.f32 %v522, %v1685
        %v1716 = vsub.f32 %v523, %v1685
        %v1717 = vsub.f32 %v524, %v1685
        %v1718 = vlaneseq
        %v1719 = vshrl.u32 %v1718, 7
        %v1720 = vsub.s32 0, %v1719
        %v1721 = vrot.slane %v1681, %v1720
        %v1722 = vmul.f32 %v1686, %v1721
        %v1723 = vmul.f32 %v1687, %v1721
        %v1724 = vmul.f32 %v1688, %v1721
        %v1725 = vmul.f32 %v1689, %v1721
        %v1726 = vmul.f32 %v1690, %v1721
        %v1727 = vmul.f32 %v1691, %v1721
        %v1728 = vmul.f32 %v1692, %v1721
        %v1729 = vmul.f32 %v1693, %v1721
        %v1730 = vmul.f32 %v1694, %v1721
        %v1731 = vmul.f32 %v1695, %v1721
        %v1732 = vmul.f32 %v1696, %v1721
        %v1733 = vmul.f32 %v1697, %v1721
        %v1734 = vmul.f32 %v1698, %v1721
        %v1735 = vmul.f32 %v1699, %v1721
        %v1736 = vmul.f32 %v1700, %v1721
        %v1737 = vmul.f32 %v1701, %v1721
        %v1738 = vmul.f32 %v1702, %v1721
        %v1739 = vmul.f32 %v1703, %v1721
        %v1740 = vmul.f32 %v1704, %v1721
        %v1741 = vmul.f32 %v1705, %v1721
        %v1742 = vmul.f32 %v1706, %v1721
        %v1743 = vmul.f32 %v1707, %v1721
        %v1744 = vmul.f32 %v1708, %v1721
        %v1745 = vmul.f32 %v1709, %v1721
        %v1746 = vmul.f32 %v1710, %v1721
        %v1747 = vmul.f32 %v1711, %v1721
        %v1748 = vmul.f32 %v1712, %v1721
        %v1749 = vmul.f32 %v1713, %v1721
        %v1750 = vmul.f32 %v1714, %v1721
        %v1751 = vmul.f32 %v1715, %v1721
        %v1752 = vmul.f32 %v1716, %v1721
        %v1753 = vmul.f32 %v1717, %v1721
        %v1755 = vlaneseq
        %v1756 = vshrl.u32 %v1755, 7
        %v1757 = vsub.s32 0, %v1756
        %v1758 = vrot.slane %v525, %v1757
        %v1760 = vmul.f32 %v1722, %v1758
        %v1761 = vmul.f32 %v1723, %v1758
        %v1762 = vmul.f32 %v1724, %v1758
        %v1763 = vmul.f32 %v1725, %v1758
        %v1764 = vmul.f32 %v1726, %v1758
        %v1765 = vmul.f32 %v1727, %v1758
        %v1766 = vmul.f32 %v1728, %v1758
        %v1767 = vmul.f32 %v1729, %v1758
        %v1768 = vmul.f32 %v1730, %v1758
        %v1769 = vmul.f32 %v1731, %v1758
        %v1770 = vmul.f32 %v1732, %v1758
        %v1771 = vmul.f32 %v1733, %v1758
        %v1772 = vmul.f32 %v1734, %v1758
        %v1773 = vmul.f32 %v1735, %v1758
        %v1774 = vmul.f32 %v1736, %v1758
        %v1775 = vmul.f32 %v1737, %v1758
        %v1776 = vmul.f32 %v1738, %v1758
        %v1777 = vmul.f32 %v1739, %v1758
        %v1778 = vmul.f32 %v1740, %v1758
        %v1779 = vmul.f32 %v1741, %v1758
        %v1780 = vmul.f32 %v1742, %v1758
        %v1781 = vmul.f32 %v1743, %v1758
        %v1782 = vmul.f32 %v1744, %v1758
        %v1783 = vmul.f32 %v1745, %v1758
        %v1784 = vmul.f32 %v1746, %v1758
        %v1785 = vmul.f32 %v1747, %v1758
        %v1786 = vmul.f32 %v1748, %v1758
        %v1787 = vmul.f32 %v1749, %v1758
        %v1788 = vmul.f32 %v1750, %v1758
        %v1789 = vmul.f32 %v1751, %v1758
        %v1790 = vmul.f32 %v1752, %v1758
        %v1791 = vmul.f32 %v1753, %v1758
        %v1793 = vlaneseq
        %v1794 = vshrl.u32 %v1793, 7
        %v1795 = vsub.s32 0, %v1794
        %v1796 = vrot.slane %v526, %v1795
        %v1798 = vadd.f32 %v1760, %v1796
        %v1799 = vadd.f32 %v1761, %v1796
        %v1800 = vadd.f32 %v1762, %v1796
        %v1801 = vadd.f32 %v1763, %v1796
        %v1802 = vadd.f32 %v1764, %v1796
        %v1803 = vadd.f32 %v1765, %v1796
        %v1804 = vadd.f32 %v1766, %v1796
        %v1805 = vadd.f32 %v1767, %v1796
        %v1806 = vadd.f32 %v1768, %v1796
        %v1807 = vadd.f32 %v1769, %v1796
        %v1808 = vadd.f32 %v1770, %v1796
        %v1809 = vadd.f32 %v1771, %v1796
        %v1810 = vadd.f32 %v1772, %v1796
        %v1811 = vadd.f32 %v1773, %v1796
        %v1812 = vadd.f32 %v1774, %v1796
        %v1813 = vadd.f32 %v1775, %v1796
        %v1814 = vadd.f32 %v1776, %v1796
        %v1815 = vadd.f32 %v1777, %v1796
        %v1816 = vadd.f32 %v1778, %v1796
        %v1817 = vadd.f32 %v1779, %v1796
        %v1818 = vadd.f32 %v1780, %v1796
        %v1819 = vadd.f32 %v1781, %v1796
        %v1820 = vadd.f32 %v1782, %v1796
        %v1821 = vadd.f32 %v1783, %v1796
        %v1822 = vadd.f32 %v1784, %v1796
        %v1823 = vadd.f32 %v1785, %v1796
        %v1824 = vadd.f32 %v1786, %v1796
        %v1825 = vadd.f32 %v1787, %v1796
        %v1826 = vadd.f32 %v1788, %v1796
        %v1827 = vadd.f32 %v1789, %v1796
        %v1828 = vadd.f32 %v1790, %v1796
        %v1829 = vadd.f32 %v1791, %v1796
        %v1830 = vxor.u32 %v1798, 2147483648
        %v1831 = vxor.u32 %v1799, 2147483648
        %v1832 = vxor.u32 %v1800, 2147483648
        %v1833 = vxor.u32 %v1801, 2147483648
        %v1834 = vxor.u32 %v1802, 2147483648
        %v1835 = vxor.u32 %v1803, 2147483648
        %v1836 = vxor.u32 %v1804, 2147483648
        %v1837 = vxor.u32 %v1805, 2147483648
        %v1838 = vxor.u32 %v1806, 2147483648
        %v1839 = vxor.u32 %v1807, 2147483648
        %v1840 = vxor.u32 %v1808, 2147483648
        %v1841 = vxor.u32 %v1809, 2147483648
        %v1842 = vxor.u32 %v1810, 2147483648
        %v1843 = vxor.u32 %v1811, 2147483648
        %v1844 = vxor.u32 %v1812, 2147483648
        %v1845 = vxor.u32 %v1813, 2147483648
        %v1846 = vxor.u32 %v1814, 2147483648
        %v1847 = vxor.u32 %v1815, 2147483648
        %v1848 = vxor.u32 %v1816, 2147483648
        %v1849 = vxor.u32 %v1817, 2147483648
        %v1850 = vxor.u32 %v1818, 2147483648
        %v1851 = vxor.u32 %v1819, 2147483648
        %v1852 = vxor.u32 %v1820, 2147483648
        %v1853 = vxor.u32 %v1821, 2147483648
        %v1854 = vxor.u32 %v1822, 2147483648
        %v1855 = vxor.u32 %v1823, 2147483648
        %v1856 = vxor.u32 %v1824, 2147483648
        %v1857 = vxor.u32 %v1825, 2147483648
        %v1858 = vxor.u32 %v1826, 2147483648
        %v1859 = vxor.u32 %v1827, 2147483648
        %v1860 = vxor.u32 %v1828, 2147483648
        %v1861 = vxor.u32 %v1829, 2147483648
        %v1862 = vmul.f32 %v1830, 1.442695
        %v1863 = vpow.pop %v1862
        %v1864 = vmul.f32 %v1831, 1.442695
        %v1865 = vpow.pop %v1864
        %v1866 = vmul.f32 %v1832, 1.442695
        %v1867 = vpow.pop %v1866
        %v1868 = vmul.f32 %v1833, 1.442695
        %v1869 = vpow.pop %v1868
        %v1870 = vmul.f32 %v1834, 1.442695
        %v1871 = vpow.pop %v1870
        %v1872 = vmul.f32 %v1835, 1.442695
        %v1873 = vpow.pop %v1872
        %v1874 = vmul.f32 %v1836, 1.442695
        %v1875 = vpow.pop %v1874
        %v1876 = vmul.f32 %v1837, 1.442695
        %v1877 = vpow.pop %v1876
        %v1878 = vmul.f32 %v1838, 1.442695
        %v1879 = vpow.pop %v1878
        %v1880 = vmul.f32 %v1839, 1.442695
        %v1881 = vpow.pop %v1880
        %v1882 = vmul.f32 %v1840, 1.442695
        %v1883 = vpow.pop %v1882
        %v1884 = vmul.f32 %v1841, 1.442695
        %v1885 = vpow.pop %v1884
        %v1886 = vmul.f32 %v1842, 1.442695
        %v1887 = vpow.pop %v1886
        %v1888 = vmul.f32 %v1843, 1.442695
        %v1889 = vpow.pop %v1888
        %v1890 = vmul.f32 %v1844, 1.442695
        %v1891 = vpow.pop %v1890
        %v1892 = vmul.f32 %v1845, 1.442695
        %v1893 = vpow.pop %v1892
        %v1894 = vmul.f32 %v1846, 1.442695
        %v1895 = vpow.pop %v1894
        %v1896 = vmul.f32 %v1847, 1.442695
        %v1897 = vpow.pop %v1896
        %v1898 = vmul.f32 %v1848, 1.442695
        %v1899 = vpow.pop %v1898
        %v1900 = vmul.f32 %v1849, 1.442695
        %v1901 = vpow.pop %v1900
        %v1902 = vmul.f32 %v1850, 1.442695
        %v1903 = vpow.pop %v1902
        %v1904 = vmul.f32 %v1851, 1.442695
        %v1905 = vpow.pop %v1904
        %v1906 = vmul.f32 %v1852, 1.442695
        %v1907 = vpow.pop %v1906
        %v1908 = vmul.f32 %v1853, 1.442695
        %v1909 = vpow.pop %v1908
        %v1910 = vmul.f32 %v1854, 1.442695
        %v1911 = vpow.pop %v1910
        %v1912 = vmul.f32 %v1855, 1.442695
        %v1913 = vpow.pop %v1912
        %v1914 = vmul.f32 %v1856, 1.442695
        %v1915 = vpow.pop %v1914
        %v1916 = vmul.f32 %v1857, 1.442695
        %v1917 = vpow.pop %v1916
        %v1918 = vmul.f32 %v1858, 1.442695
        %v1919 = vpow.pop %v1918
        %v1920 = vmul.f32 %v1859, 1.442695
        %v1921 = vpow.pop %v1920
        %v1922 = vmul.f32 %v1860, 1.442695
        %v1923 = vpow.pop %v1922
        %v1924 = vmul.f32 %v1861, 1.442695
        %v1925 = vpow.pop %v1924
        %v1926 = vadd.f32 %v1863, 1.0
        %v1927 = vadd.f32 %v1865, 1.0
        %v1928 = vadd.f32 %v1867, 1.0
        %v1929 = vadd.f32 %v1869, 1.0
        %v1930 = vadd.f32 %v1871, 1.0
        %v1931 = vadd.f32 %v1873, 1.0
        %v1932 = vadd.f32 %v1875, 1.0
        %v1933 = vadd.f32 %v1877, 1.0
        %v1934 = vadd.f32 %v1879, 1.0
        %v1935 = vadd.f32 %v1881, 1.0
        %v1936 = vadd.f32 %v1883, 1.0
        %v1937 = vadd.f32 %v1885, 1.0
        %v1938 = vadd.f32 %v1887, 1.0
        %v1939 = vadd.f32 %v1889, 1.0
        %v1940 = vadd.f32 %v1891, 1.0
        %v1941 = vadd.f32 %v1893, 1.0
        %v1942 = vadd.f32 %v1895, 1.0
        %v1943 = vadd.f32 %v1897, 1.0
        %v1944 = vadd.f32 %v1899, 1.0
        %v1945 = vadd.f32 %v1901, 1.0
        %v1946 = vadd.f32 %v1903, 1.0
        %v1947 = vadd.f32 %v1905, 1.0
        %v1948 = vadd.f32 %v1907, 1.0
        %v1949 = vadd.f32 %v1909, 1.0
        %v1950 = vadd.f32 %v1911, 1.0
        %v1951 = vadd.f32 %v1913, 1.0
        %v1952 = vadd.f32 %v1915, 1.0
        %v1953 = vadd.f32 %v1917, 1.0
        %v1954 = vadd.f32 %v1919, 1.0
        %v1955 = vadd.f32 %v1921, 1.0
        %v1956 = vadd.f32 %v1923, 1.0
        %v1957 = vadd.f32 %v1925, 1.0
        %v1958 = vrcp.pop %v1926
        %v1959 = vmul.f32 1.0, %v1958
        %v1960 = vrcp.pop %v1927
        %v1961 = vmul.f32 1.0, %v1960
        %v1962 = vrcp.pop %v1928
        %v1963 = vmul.f32 1.0, %v1962
        %v1964 = vrcp.pop %v1929
        %v1965 = vmul.f32 1.0, %v1964
        %v1966 = vrcp.pop %v1930
        %v1967 = vmul.f32 1.0, %v1966
        %v1968 = vrcp.pop %v1931
        %v1969 = vmul.f32 1.0, %v1968
        %v1970 = vrcp.pop %v1932
        %v1971 = vmul.f32 1.0, %v1970
        %v1972 = vrcp.pop %v1933
        %v1973 = vmul.f32 1.0, %v1972
        %v1974 = vrcp.pop %v1934
        %v1975 = vmul.f32 1.0, %v1974
        %v1976 = vrcp.pop %v1935
        %v1977 = vmul.f32 1.0, %v1976
        %v1978 = vrcp.pop %v1936
        %v1979 = vmul.f32 1.0, %v1978
        %v1980 = vrcp.pop %v1937
        %v1981 = vmul.f32 1.0, %v1980
        %v1982 = vrcp.pop %v1938
        %v1983 = vmul.f32 1.0, %v1982
        %v1984 = vrcp.pop %v1939
        %v1985 = vmul.f32 1.0, %v1984
        %v1986 = vrcp.pop %v1940
        %v1987 = vmul.f32 1.0, %v1986
        %v1988 = vrcp.pop %v1941
        %v1989 = vmul.f32 1.0, %v1988
        %v1990 = vrcp.pop %v1942
        %v1991 = vmul.f32 1.0, %v1990
        %v1992 = vrcp.pop %v1943
        %v1993 = vmul.f32 1.0, %v1992
        %v1994 = vrcp.pop %v1944
        %v1995 = vmul.f32 1.0, %v1994
        %v1996 = vrcp.pop %v1945
        %v1997 = vmul.f32 1.0, %v1996
        %v1998 = vrcp.pop %v1946
        %v1999 = vmul.f32 1.0, %v1998
        %v2000 = vrcp.pop %v1947
        %v2001 = vmul.f32 1.0, %v2000
        %v2002 = vrcp.pop %v1948
        %v2003 = vmul.f32 1.0, %v2002
        %v2004 = vrcp.pop %v1949
        %v2005 = vmul.f32 1.0, %v2004
        %v2006 = vrcp.pop %v1950
        %v2007 = vmul.f32 1.0, %v2006
        %v2008 = vrcp.pop %v1951
        %v2009 = vmul.f32 1.0, %v2008
        %v2010 = vrcp.pop %v1952
        %v2011 = vmul.f32 1.0, %v2010
        %v2012 = vrcp.pop %v1953
        %v2013 = vmul.f32 1.0, %v2012
        %v2014 = vrcp.pop %v1954
        %v2015 = vmul.f32 1.0, %v2014
        %v2016 = vrcp.pop %v1955
        %v2017 = vmul.f32 1.0, %v2016
        %v2018 = vrcp.pop %v1956
        %v2019 = vmul.f32 1.0, %v2018
        %v2020 = vrcp.pop %v1957
        %v2021 = vmul.f32 1.0, %v2020
        %v2022 = vmul.f32 %v1798, %v1959
        %v2023 = vmul.f32 %v1799, %v1961
        %v2024 = vmul.f32 %v1800, %v1963
        %v2025 = vmul.f32 %v1801, %v1965
        %v2026 = vmul.f32 %v1802, %v1967
        %v2027 = vmul.f32 %v1803, %v1969
        %v2028 = vmul.f32 %v1804, %v1971
        %v2029 = vmul.f32 %v1805, %v1973
        %v2030 = vmul.f32 %v1806, %v1975
        %v2031 = vmul.f32 %v1807, %v1977
        %v2032 = vmul.f32 %v1808, %v1979
        %v2033 = vmul.f32 %v1809, %v1981
        %v2034 = vmul.f32 %v1810, %v1983
        %v2035 = vmul.f32 %v1811, %v1985
        %v2036 = vmul.f32 %v1812, %v1987
        %v2037 = vmul.f32 %v1813, %v1989
        %v2038 = vmul.f32 %v1814, %v1991
        %v2039 = vmul.f32 %v1815, %v1993
        %v2040 = vmul.f32 %v1816, %v1995
        %v2041 = vmul.f32 %v1817, %v1997
        %v2042 = vmul.f32 %v1818, %v1999
        %v2043 = vmul.f32 %v1819, %v2001
        %v2044 = vmul.f32 %v1820, %v2003
        %v2045 = vmul.f32 %v1821, %v2005
        %v2046 = vmul.f32 %v1822, %v2007
        %v2047 = vmul.f32 %v1823, %v2009
        %v2048 = vmul.f32 %v1824, %v2011
        %v2049 = vmul.f32 %v1825, %v2013
        %v2050 = vmul.f32 %v1826, %v2015
        %v2051 = vmul.f32 %v1827, %v2017
        %v2052 = vmul.f32 %v1828, %v2019
        %v2053 = vmul.f32 %v1829, %v2021
        %v2054 = vld [vmem:[#allocation6] sm:$0x1]
        %2055 = vst.msk [vmem:[#allocation2] sm:$0xff] %vm527, 0.0
        %2056 = vst.msk [vmem:[#allocation2 + $0x8] sm:$0xff] %vm527, 0.0
        %2057 = vst.msk [vmem:[#allocation2 + $0x10] sm:$0xff] %vm527, 0.0
        %s2058 = scalar_lea.vmem [#allocation2], 408
        %2059 = vst.msk [vmem:[%s2058] sm:$0xff] %vm527, 0.0
        %2060 = vst.msk [vmem:[%s2058 + $0x8] sm:$0xff] %vm527, 0.0
        %2061 = vst.msk [vmem:[%s2058 + $0x10] sm:$0xff] %vm527, 0.0
        %vm2062 = vcmask 253952
        %2063 = vst.msk [vmem:[#allocation2] sm:$0x1] %vm2062, 0.0
        %2064 = vst.msk [vmem:[#allocation2 + $0x18] sm:$0x1] %vm2062, 0.0
        %2065 = vst.msk [vmem:[#allocation2 + $0x30] sm:$0x1] %vm2062, 0.0
        %2066 = vst.msk [vmem:[#allocation2 + $0x48] sm:$0x1] %vm2062, 0.0
        %2067 = vst.msk [vmem:[#allocation2 + $0x60] sm:$0x1] %vm2062, 0.0
        %2068 = vst.msk [vmem:[#allocation2 + $0x78] sm:$0x1] %vm2062, 0.0
        %2069 = vst.msk [vmem:[#allocation2 + $0x90] sm:$0x1] %vm2062, 0.0
        %2070 = vst.msk [vmem:[#allocation2 + $0xa8] sm:$0x1] %vm2062, 0.0
        %2071 = vst.msk [vmem:[#allocation2 + $0xc0] sm:$0x1] %vm2062, 0.0
        %2072 = vst.msk [vmem:[#allocation2 + $0xd8] sm:$0x1] %vm2062, 0.0
        %2073 = vst.msk [vmem:[#allocation2 + $0xf0] sm:$0x1] %vm2062, 0.0
        %2074 = vst.msk [vmem:[#allocation2 + $0x108] sm:$0x1] %vm2062, 0.0
        %2075 = vst.msk [vmem:[#allocation2 + $0x120] sm:$0x1] %vm2062, 0.0
        %2076 = vst.msk [vmem:[#allocation2 + $0x138] sm:$0x1] %vm2062, 0.0
        %2077 = vst.msk [vmem:[#allocation2 + $0x150] sm:$0x1] %vm2062, 0.0
        %2078 = vst.msk [vmem:[#allocation2 + $0x168] sm:$0x1] %vm2062, 0.0
        %2079 = vst.msk [vmem:[#allocation2 + $0x180] sm:$0x1] %vm2062, 0.0
        %2080 = vst.msk [vmem:[#allocation2 + $0x198] sm:$0x1] %vm2062, 0.0
        %2081 = vst.msk [vmem:[#allocation2 + $0x11] sm:$0x1] %vm2062, 0.0
        %2082 = vst.msk [vmem:[#allocation2 + $0x29] sm:$0x1] %vm2062, 0.0
        %2083 = vst.msk [vmem:[#allocation2 + $0x41] sm:$0x1] %vm2062, 0.0
        %2084 = vst.msk [vmem:[#allocation2 + $0x59] sm:$0x1] %vm2062, 0.0
        %2085 = vst.msk [vmem:[#allocation2 + $0x71] sm:$0x1] %vm2062, 0.0
        %2086 = vst.msk [vmem:[#allocation2 + $0x89] sm:$0x1] %vm2062, 0.0
        %2087 = vst.msk [vmem:[#allocation2 + $0xa1] sm:$0x1] %vm2062, 0.0
        %2088 = vst.msk [vmem:[#allocation2 + $0xb9] sm:$0x1] %vm2062, 0.0
        %2089 = vst.msk [vmem:[#allocation2 + $0xd1] sm:$0x1] %vm2062, 0.0
        %2090 = vst.msk [vmem:[#allocation2 + $0xe9] sm:$0x1] %vm2062, 0.0
        %2091 = vst.msk [vmem:[#allocation2 + $0x101] sm:$0x1] %vm2062, 0.0
        %2092 = vst.msk [vmem:[#allocation2 + $0x119] sm:$0x1] %vm2062, 0.0
        %2093 = vst.msk [vmem:[#allocation2 + $0x131] sm:$0x1] %vm2062, 0.0
        %2094 = vst.msk [vmem:[#allocation2 + $0x149] sm:$0x1] %vm2062, 0.0
        %2095 = vst.msk [vmem:[#allocation2 + $0x161] sm:$0x1] %vm2062, 0.0
        %2096 = vst.msk [vmem:[#allocation2 + $0x179] sm:$0x1] %vm2062, 0.0
        %2097 = vst.msk [vmem:[#allocation2 + $0x191] sm:$0x1] %vm2062, 0.0
        %2098 = vst.msk [vmem:[#allocation2 + $0x1a9] sm:$0x1] %vm2062, 0.0
        %s2099 = scalar_lea.vmem [#allocation2], 24
        %2100 = vst.msk [vmem:[%s2099 + $0x1] sm:$0xff] %vm527, %v2022
        %2101 = vst.msk [vmem:[%s2099 + $0x9] sm:$0xff] %vm527, %v2023
        %2102 = vst.msk [vmem:[%s2099 + $0x19] sm:$0xff] %vm527, %v2024
        %2103 = vst.msk [vmem:[%s2099 + $0x21] sm:$0xff] %vm527, %v2025
        %2104 = vst.msk [vmem:[%s2099 + $0x31] sm:$0xff] %vm527, %v2026
        %2105 = vst.msk [vmem:[%s2099 + $0x39] sm:$0xff] %vm527, %v2027
        %2106 = vst.msk [vmem:[%s2099 + $0x49] sm:$0xff] %vm527, %v2028
        %2107 = vst.msk [vmem:[%s2099 + $0x51] sm:$0xff] %vm527, %v2029
        %2108 = vst.msk [vmem:[%s2099 + $0x61] sm:$0xff] %vm527, %v2030
        %2109 = vst.msk [vmem:[%s2099 + $0x69] sm:$0xff] %vm527, %v2031
        %2110 = vst.msk [vmem:[%s2099 + $0x79] sm:$0xff] %vm527, %v2032
        %2111 = vst.msk [vmem:[%s2099 + $0x81] sm:$0xff] %vm527, %v2033
        %2112 = vst.msk [vmem:[%s2099 + $0x91] sm:$0xff] %vm527, %v2034
        %2113 = vst.msk [vmem:[%s2099 + $0x99] sm:$0xff] %vm527, %v2035
        %2114 = vst.msk [vmem:[%s2099 + $0xa9] sm:$0xff] %vm527, %v2036
        %2115 = vst.msk [vmem:[%s2099 + $0xb1] sm:$0xff] %vm527, %v2037
        %2116 = vst.msk [vmem:[%s2099 + $0xc1] sm:$0xff] %vm527, %v2038
        %2117 = vst.msk [vmem:[%s2099 + $0xc9] sm:$0xff] %vm527, %v2039
        %2118 = vst.msk [vmem:[%s2099 + $0xd9] sm:$0xff] %vm527, %v2040
        %2119 = vst.msk [vmem:[%s2099 + $0xe1] sm:$0xff] %vm527, %v2041
        %2120 = vst.msk [vmem:[%s2099 + $0xf1] sm:$0xff] %vm527, %v2042
        %2121 = vst.msk [vmem:[%s2099 + $0xf9] sm:$0xff] %vm527, %v2043
        %2122 = vst.msk [vmem:[%s2099 + $0x109] sm:$0xff] %vm527, %v2044
        %2123 = vst.msk [vmem:[%s2099 + $0x111] sm:$0xff] %vm527, %v2045
        %2124 = vst.msk [vmem:[%s2099 + $0x121] sm:$0xff] %vm527, %v2046
        %2125 = vst.msk [vmem:[%s2099 + $0x129] sm:$0xff] %vm527, %v2047
        %2126 = vst.msk [vmem:[%s2099 + $0x139] sm:$0xff] %vm527, %v2048
        %2127 = vst.msk [vmem:[%s2099 + $0x141] sm:$0xff] %vm527, %v2049
        %2128 = vst.msk [vmem:[%s2099 + $0x151] sm:$0xff] %vm527, %v2050
        %2129 = vst.msk [vmem:[%s2099 + $0x159] sm:$0xff] %vm527, %v2051
        %2130 = vst.msk [vmem:[%s2099 + $0x169] sm:$0xff] %vm527, %v2052
        %2131 = vst.msk [vmem:[%s2099 + $0x171] sm:$0xff] %vm527, %v2053
        %v2132 = vld [vmem:[#allocation2] sm:$0xff]
        %v2133 = vld [vmem:[#allocation2 + $0x8] sm:$0xff]
        %v2134 = vld [vmem:[#allocation2 + $0x18] sm:$0xff]
        %v2135 = vld [vmem:[#allocation2 + $0x20] sm:$0xff]
        %v2136 = vld [vmem:[#allocation2 + $0x30] sm:$0xff]
        %v2137 = vld [vmem:[#allocation2 + $0x38] sm:$0xff]
        %v2138 = vld [vmem:[#allocation2 + $0x48] sm:$0xff]
        %v2139 = vld [vmem:[#allocation2 + $0x50] sm:$0xff]
        %v2140 = vld [vmem:[#allocation2 + $0x60] sm:$0xff]
        %v2141 = vld [vmem:[#allocation2 + $0x68] sm:$0xff]
        %v2142 = vld [vmem:[#allocation2 + $0x78] sm:$0xff]
        %v2143 = vld [vmem:[#allocation2 + $0x80] sm:$0xff]
        %v2144 = vld [vmem:[#allocation2 + $0x90] sm:$0xff]
        %v2145 = vld [vmem:[#allocation2 + $0x98] sm:$0xff]
        %v2146 = vld [vmem:[#allocation2 + $0xa8] sm:$0xff]
        %v2147 = vld [vmem:[#allocation2 + $0xb0] sm:$0xff]
        %v2148 = vld [vmem:[#allocation2 + $0xc0] sm:$0xff]
        %v2149 = vld [vmem:[#allocation2 + $0xc8] sm:$0xff]
        %v2150 = vld [vmem:[#allocation2 + $0xd8] sm:$0xff]
        %v2151 = vld [vmem:[#allocation2 + $0xe0] sm:$0xff]
        %v2152 = vld [vmem:[#allocation2 + $0xf0] sm:$0xff]
        %v2153 = vld [vmem:[#allocation2 + $0xf8] sm:$0xff]
        %v2154 = vld [vmem:[#allocation2 + $0x108] sm:$0xff]
        %v2155 = vld [vmem:[#allocation2 + $0x110] sm:$0xff]
        %v2156 = vld [vmem:[#allocation2 + $0x120] sm:$0xff]
        %v2157 = vld [vmem:[#allocation2 + $0x128] sm:$0xff]
        %v2158 = vld [vmem:[#allocation2 + $0x138] sm:$0xff]
        %v2159 = vld [vmem:[#allocation2 + $0x140] sm:$0xff]
        %v2160 = vld [vmem:[#allocation2 + $0x150] sm:$0xff]
        %v2161 = vld [vmem:[#allocation2 + $0x158] sm:$0xff]
        %v2162 = vld [vmem:[#allocation2 + $0x168] sm:$0xff]
        %v2163 = vld [vmem:[#allocation2 + $0x170] sm:$0xff]
        %v2164 = vpack.c.bf16 %v2133, %v2132
        %v2165 = vpack.c.bf16 %v2135, %v2134
        %v2166 = vpack.c.bf16 %v2137, %v2136
        %v2167 = vpack.c.bf16 %v2139, %v2138
        %v2168 = vpack.c.bf16 %v2141, %v2140
        %v2169 = vpack.c.bf16 %v2143, %v2142
        %v2170 = vpack.c.bf16 %v2145, %v2144
        %v2171 = vpack.c.bf16 %v2147, %v2146
        %v2172 = vpack.c.bf16 %v2149, %v2148
        %v2173 = vpack.c.bf16 %v2151, %v2150
        %v2174 = vpack.c.bf16 %v2153, %v2152
        %v2175 = vpack.c.bf16 %v2155, %v2154
        %v2176 = vpack.c.bf16 %v2157, %v2156
        %v2177 = vpack.c.bf16 %v2159, %v2158
        %v2178 = vpack.c.bf16 %v2161, %v2160
        %v2179 = vpack.c.bf16 %v2163, %v2162
        %2180 = vst.msk [vmem:[#allocation3] sm:$0xff] %vm527, %v2164
        %2181 = vst.msk [vmem:[#allocation3 + $0x18] sm:$0xff] %vm527, %v2165
        %2182 = vst.msk [vmem:[#allocation3 + $0x30] sm:$0xff] %vm527, %v2166
        %2183 = vst.msk [vmem:[#allocation3 + $0x48] sm:$0xff] %vm527, %v2167
        %2184 = vst.msk [vmem:[#allocation3 + $0x60] sm:$0xff] %vm527, %v2168
        %2185 = vst.msk [vmem:[#allocation3 + $0x78] sm:$0xff] %vm527, %v2169
        %2186 = vst.msk [vmem:[#allocation3 + $0x90] sm:$0xff] %vm527, %v2170
        %2187 = vst.msk [vmem:[#allocation3 + $0xa8] sm:$0xff] %vm527, %v2171
        %2188 = vst.msk [vmem:[#allocation3 + $0xc0] sm:$0xff] %vm527, %v2172
        %2189 = vst.msk [vmem:[#allocation3 + $0xd8] sm:$0xff] %vm527, %v2173
        %2190 = vst.msk [vmem:[#allocation3 + $0xf0] sm:$0xff] %vm527, %v2174
        %2191 = vst.msk [vmem:[#allocation3 + $0x108] sm:$0xff] %vm527, %v2175
        %2192 = vst.msk [vmem:[#allocation3 + $0x120] sm:$0xff] %vm527, %v2176
        %2193 = vst.msk [vmem:[#allocation3 + $0x138] sm:$0xff] %vm527, %v2177
        %2194 = vst.msk [vmem:[#allocation3 + $0x150] sm:$0xff] %vm527, %v2178
        %2195 = vst.msk [vmem:[#allocation3 + $0x168] sm:$0xff] %vm527, %v2179
        %v2196 = vld [vmem:[#allocation2 + $0x1] sm:$0xff]
        %v2197 = vld [vmem:[#allocation2 + $0x9] sm:$0xff]
        %v2198 = vld [vmem:[#allocation2 + $0x19] sm:$0xff]
        %v2199 = vld [vmem:[#allocation2 + $0x21] sm:$0xff]
        %v2200 = vld [vmem:[#allocation2 + $0x31] sm:$0xff]
        %v2201 = vld [vmem:[#allocation2 + $0x39] sm:$0xff]
        %v2202 = vld [vmem:[#allocation2 + $0x49] sm:$0xff]
        %v2203 = vld [vmem:[#allocation2 + $0x51] sm:$0xff]
        %v2204 = vld [vmem:[#allocation2 + $0x61] sm:$0xff]
        %v2205 = vld [vmem:[#allocation2 + $0x69] sm:$0xff]
        %v2206 = vld [vmem:[#allocation2 + $0x79] sm:$0xff]
        %v2207 = vld [vmem:[#allocation2 + $0x81] sm:$0xff]
        %v2208 = vld [vmem:[#allocation2 + $0x91] sm:$0xff]
        %v2209 = vld [vmem:[#allocation2 + $0x99] sm:$0xff]
        %v2210 = vld [vmem:[#allocation2 + $0xa9] sm:$0xff]
        %v2211 = vld [vmem:[#allocation2 + $0xb1] sm:$0xff]
        %v2212 = vld [vmem:[#allocation2 + $0xc1] sm:$0xff]
        %v2213 = vld [vmem:[#allocation2 + $0xc9] sm:$0xff]
        %v2214 = vld [vmem:[#allocation2 + $0xd9] sm:$0xff]
        %v2215 = vld [vmem:[#allocation2 + $0xe1] sm:$0xff]
        %v2216 = vld [vmem:[#allocation2 + $0xf1] sm:$0xff]
        %v2217 = vld [vmem:[#allocation2 + $0xf9] sm:$0xff]
        %v2218 = vld [vmem:[#allocation2 + $0x109] sm:$0xff]
        %v2219 = vld [vmem:[#allocation2 + $0x111] sm:$0xff]
        %v2220 = vld [vmem:[#allocation2 + $0x121] sm:$0xff]
        %v2221 = vld [vmem:[#allocation2 + $0x129] sm:$0xff]
        %v2222 = vld [vmem:[#allocation2 + $0x139] sm:$0xff]
        %v2223 = vld [vmem:[#allocation2 + $0x141] sm:$0xff]
        %v2224 = vld [vmem:[#allocation2 + $0x151] sm:$0xff]
        %v2225 = vld [vmem:[#allocation2 + $0x159] sm:$0xff]
        %v2226 = vld [vmem:[#allocation2 + $0x169] sm:$0xff]
        %v2227 = vld [vmem:[#allocation2 + $0x171] sm:$0xff]
        %v2228 = vpack.c.bf16 %v2197, %v2196
        %v2229 = vpack.c.bf16 %v2199, %v2198
        %v2230 = vpack.c.bf16 %v2201, %v2200
        %v2231 = vpack.c.bf16 %v2203, %v2202
        %v2232 = vpack.c.bf16 %v2205, %v2204
        %v2233 = vpack.c.bf16 %v2207, %v2206
        %v2234 = vpack.c.bf16 %v2209, %v2208
        %v2235 = vpack.c.bf16 %v2211, %v2210
        %v2236 = vpack.c.bf16 %v2213, %v2212
        %v2237 = vpack.c.bf16 %v2215, %v2214
        %v2238 = vpack.c.bf16 %v2217, %v2216
        %v2239 = vpack.c.bf16 %v2219, %v2218
        %v2240 = vpack.c.bf16 %v2221, %v2220
        %v2241 = vpack.c.bf16 %v2223, %v2222
        %v2242 = vpack.c.bf16 %v2225, %v2224
        %v2243 = vpack.c.bf16 %v2227, %v2226
        %2260 = vrot.lane.b32.xlu0 %v2228, 32
        %v2261 = vpop.permute.xlu0 %2260
        %2262 = vrot.lane.b32.xlu0 %v2229, 32
        %v2263 = vpop.permute.xlu0 %2262
        %2264 = vrot.lane.b32.xlu0 %v2230, 32
        %v2265 = vpop.permute.xlu0 %2264
        %2266 = vrot.lane.b32.xlu0 %v2231, 32
        %v2267 = vpop.permute.xlu0 %2266
        %2268 = vrot.lane.b32.xlu0 %v2232, 32
        %v2269 = vpop.permute.xlu0 %2268
        %2270 = vrot.lane.b32.xlu0 %v2233, 32
        %v2271 = vpop.permute.xlu0 %2270
        %2272 = vrot.lane.b32.xlu0 %v2234, 32
        %v2273 = vpop.permute.xlu0 %2272
        %2274 = vrot.lane.b32.xlu0 %v2235, 32
        %v2275 = vpop.permute.xlu0 %2274
        %2276 = vrot.lane.b32.xlu0 %v2236, 32
        %v2277 = vpop.permute.xlu0 %2276
        %2278 = vrot.lane.b32.xlu0 %v2237, 32
        %v2279 = vpop.permute.xlu0 %2278
        %2280 = vrot.lane.b32.xlu0 %v2238, 32
        %v2281 = vpop.permute.xlu0 %2280
        %2282 = vrot.lane.b32.xlu0 %v2239, 32
        %v2283 = vpop.permute.xlu0 %2282
        %2284 = vrot.lane.b32.xlu0 %v2240, 32
        %v2285 = vpop.permute.xlu0 %2284
        %2286 = vrot.lane.b32.xlu0 %v2241, 32
        %v2287 = vpop.permute.xlu0 %2286
        %2288 = vrot.lane.b32.xlu0 %v2242, 32
        %v2289 = vpop.permute.xlu0 %2288
        %2290 = vrot.lane.b32.xlu0 %v2243, 32
        %v2291 = vpop.permute.xlu0 %2290
        %vm2308 = vcmask 523520
        %2309 = vst.msk [vmem:[#allocation3] sm:$0xff] %vm2308, %v2261
        %2310 = vst.msk [vmem:[#allocation3 + $0x18] sm:$0xff] %vm2308, %v2263
        %2311 = vst.msk [vmem:[#allocation3 + $0x30] sm:$0xff] %vm2308, %v2265
        %2312 = vst.msk [vmem:[#allocation3 + $0x48] sm:$0xff] %vm2308, %v2267
        %2313 = vst.msk [vmem:[#allocation3 + $0x60] sm:$0xff] %vm2308, %v2269
        %2314 = vst.msk [vmem:[#allocation3 + $0x78] sm:$0xff] %vm2308, %v2271
        %2315 = vst.msk [vmem:[#allocation3 + $0x90] sm:$0xff] %vm2308, %v2273
        %2316 = vst.msk [vmem:[#allocation3 + $0xa8] sm:$0xff] %vm2308, %v2275
        %2317 = vst.msk [vmem:[#allocation3 + $0xc0] sm:$0xff] %vm2308, %v2277
        %2318 = vst.msk [vmem:[#allocation3 + $0xd8] sm:$0xff] %vm2308, %v2279
        %2319 = vst.msk [vmem:[#allocation3 + $0xf0] sm:$0xff] %vm2308, %v2281
        %2320 = vst.msk [vmem:[#allocation3 + $0x108] sm:$0xff] %vm2308, %v2283
        %2321 = vst.msk [vmem:[#allocation3 + $0x120] sm:$0xff] %vm2308, %v2285
        %2322 = vst.msk [vmem:[#allocation3 + $0x138] sm:$0xff] %vm2308, %v2287
        %2323 = vst.msk [vmem:[#allocation3 + $0x150] sm:$0xff] %vm2308, %v2289
        %2324 = vst.msk [vmem:[#allocation3 + $0x168] sm:$0xff] %vm2308, %v2291
        %v2325 = vld [vmem:[#allocation2 + $0x2] sm:$0xff]
        %v2326 = vld [vmem:[#allocation2 + $0xa] sm:$0xff]
        %v2327 = vld [vmem:[#allocation2 + $0x1a] sm:$0xff]
        %v2328 = vld [vmem:[#allocation2 + $0x22] sm:$0xff]
        %v2329 = vld [vmem:[#allocation2 + $0x32] sm:$0xff]
        %v2330 = vld [vmem:[#allocation2 + $0x3a] sm:$0xff]
        %v2331 = vld [vmem:[#allocation2 + $0x4a] sm:$0xff]
        %v2332 = vld [vmem:[#allocation2 + $0x52] sm:$0xff]
        %v2333 = vld [vmem:[#allocation2 + $0x62] sm:$0xff]
        %v2334 = vld [vmem:[#allocation2 + $0x6a] sm:$0xff]
        %v2335 = vld [vmem:[#allocation2 + $0x7a] sm:$0xff]
        %v2336 = vld [vmem:[#allocation2 + $0x82] sm:$0xff]
        %v2337 = vld [vmem:[#allocation2 + $0x92] sm:$0xff]
        %v2338 = vld [vmem:[#allocation2 + $0x9a] sm:$0xff]
        %v2339 = vld [vmem:[#allocation2 + $0xaa] sm:$0xff]
        %v2340 = vld [vmem:[#allocation2 + $0xb2] sm:$0xff]
        %v2341 = vld [vmem:[#allocation2 + $0xc2] sm:$0xff]
        %v2342 = vld [vmem:[#allocation2 + $0xca] sm:$0xff]
        %v2343 = vld [vmem:[#allocation2 + $0xda] sm:$0xff]
        %v2344 = vld [vmem:[#allocation2 + $0xe2] sm:$0xff]
        %v2345 = vld [vmem:[#allocation2 + $0xf2] sm:$0xff]
        %v2346 = vld [vmem:[#allocation2 + $0xfa] sm:$0xff]
        %v2347 = vld [vmem:[#allocation2 + $0x10a] sm:$0xff]
        %v2348 = vld [vmem:[#allocation2 + $0x112] sm:$0xff]
        %v2349 = vld [vmem:[#allocation2 + $0x122] sm:$0xff]
        %v2350 = vld [vmem:[#allocation2 + $0x12a] sm:$0xff]
        %v2351 = vld [vmem:[#allocation2 + $0x13a] sm:$0xff]
        %v2352 = vld [vmem:[#allocation2 + $0x142] sm:$0xff]
        %v2353 = vld [vmem:[#allocation2 + $0x152] sm:$0xff]
        %v2354 = vld [vmem:[#allocation2 + $0x15a] sm:$0xff]
        %v2355 = vld [vmem:[#allocation2 + $0x16a] sm:$0xff]
        %v2356 = vld [vmem:[#allocation2 + $0x172] sm:$0xff]
        %v2357 = vpack.c.bf16 %v2326, %v2325
        %v2358 = vpack.c.bf16 %v2328, %v2327
        %v2359 = vpack.c.bf16 %v2330, %v2329
        %v2360 = vpack.c.bf16 %v2332, %v2331
        %v2361 = vpack.c.bf16 %v2334, %v2333
        %v2362 = vpack.c.bf16 %v2336, %v2335
        %v2363 = vpack.c.bf16 %v2338, %v2337
        %v2364 = vpack.c.bf16 %v2340, %v2339
        %v2365 = vpack.c.bf16 %v2342, %v2341
        %v2366 = vpack.c.bf16 %v2344, %v2343
        %v2367 = vpack.c.bf16 %v2346, %v2345
        %v2368 = vpack.c.bf16 %v2348, %v2347
        %v2369 = vpack.c.bf16 %v2350, %v2349
        %v2370 = vpack.c.bf16 %v2352, %v2351
        %v2371 = vpack.c.bf16 %v2354, %v2353
        %v2372 = vpack.c.bf16 %v2356, %v2355
        %2389 = vrot.lane.b32.xlu0 %v2357, 64
        %v2390 = vpop.permute.xlu0 %2389
        %2391 = vrot.lane.b32.xlu0 %v2358, 64
        %v2392 = vpop.permute.xlu0 %2391
        %2393 = vrot.lane.b32.xlu0 %v2359, 64
        %v2394 = vpop.permute.xlu0 %2393
        %2395 = vrot.lane.b32.xlu0 %v2360, 64
        %v2396 = vpop.permute.xlu0 %2395
        %2397 = vrot.lane.b32.xlu0 %v2361, 64
        %v2398 = vpop.permute.xlu0 %2397
        %2399 = vrot.lane.b32.xlu0 %v2362, 64
        %v2400 = vpop.permute.xlu0 %2399
        %2401 = vrot.lane.b32.xlu0 %v2363, 64
        %v2402 = vpop.permute.xlu0 %2401
        %2403 = vrot.lane.b32.xlu0 %v2364, 64
        %v2404 = vpop.permute.xlu0 %2403
        %2405 = vrot.lane.b32.xlu0 %v2365, 64
        %v2406 = vpop.permute.xlu0 %2405
        %2407 = vrot.lane.b32.xlu0 %v2366, 64
        %v2408 = vpop.permute.xlu0 %2407
        %2409 = vrot.lane.b32.xlu0 %v2367, 64
        %v2410 = vpop.permute.xlu0 %2409
        %2411 = vrot.lane.b32.xlu0 %v2368, 64
        %v2412 = vpop.permute.xlu0 %2411
        %2413 = vrot.lane.b32.xlu0 %v2369, 64
        %v2414 = vpop.permute.xlu0 %2413
        %2415 = vrot.lane.b32.xlu0 %v2370, 64
        %v2416 = vpop.permute.xlu0 %2415
        %2417 = vrot.lane.b32.xlu0 %v2371, 64
        %v2418 = vpop.permute.xlu0 %2417
        %2419 = vrot.lane.b32.xlu0 %v2372, 64
        %v2420 = vpop.permute.xlu0 %2419
        %vm2437 = vcmask 785920
        %2438 = vst.msk [vmem:[#allocation3] sm:$0xff] %vm2437, %v2390
        %2439 = vst.msk [vmem:[#allocation3 + $0x18] sm:$0xff] %vm2437, %v2392
        %2440 = vst.msk [vmem:[#allocation3 + $0x30] sm:$0xff] %vm2437, %v2394
        %2441 = vst.msk [vmem:[#allocation3 + $0x48] sm:$0xff] %vm2437, %v2396
        %2442 = vst.msk [vmem:[#allocation3 + $0x60] sm:$0xff] %vm2437, %v2398
        %2443 = vst.msk [vmem:[#allocation3 + $0x78] sm:$0xff] %vm2437, %v2400
        %2444 = vst.msk [vmem:[#allocation3 + $0x90] sm:$0xff] %vm2437, %v2402
        %2445 = vst.msk [vmem:[#allocation3 + $0xa8] sm:$0xff] %vm2437, %v2404
        %2446 = vst.msk [vmem:[#allocation3 + $0xc0] sm:$0xff] %vm2437, %v2406
        %2447 = vst.msk [vmem:[#allocation3 + $0xd8] sm:$0xff] %vm2437, %v2408
        %2448 = vst.msk [vmem:[#allocation3 + $0xf0] sm:$0xff] %vm2437, %v2410
        %2449 = vst.msk [vmem:[#allocation3 + $0x108] sm:$0xff] %vm2437, %v2412
        %2450 = vst.msk [vmem:[#allocation3 + $0x120] sm:$0xff] %vm2437, %v2414
        %2451 = vst.msk [vmem:[#allocation3 + $0x138] sm:$0xff] %vm2437, %v2416
        %2452 = vst.msk [vmem:[#allocation3 + $0x150] sm:$0xff] %vm2437, %v2418
        %2453 = vst.msk [vmem:[#allocation3 + $0x168] sm:$0xff] %vm2437, %v2420
        %v2454 = vld [vmem:[%s2099] sm:$0xff]
        %v2455 = vld [vmem:[%s2099 + $0x8] sm:$0xff]
        %v2456 = vld [vmem:[%s2099 + $0x18] sm:$0xff]
        %v2457 = vld [vmem:[%s2099 + $0x20] sm:$0xff]
        %v2458 = vld [vmem:[%s2099 + $0x30] sm:$0xff]
        %v2459 = vld [vmem:[%s2099 + $0x38] sm:$0xff]
        %v2460 = vld [vmem:[%s2099 + $0x48] sm:$0xff]
        %v2461 = vld [vmem:[%s2099 + $0x50] sm:$0xff]
        %v2462 = vld [vmem:[%s2099 + $0x60] sm:$0xff]
        %v2463 = vld [vmem:[%s2099 + $0x68] sm:$0xff]
        %v2464 = vld [vmem:[%s2099 + $0x78] sm:$0xff]
        %v2465 = vld [vmem:[%s2099 + $0x80] sm:$0xff]
        %v2466 = vld [vmem:[%s2099 + $0x90] sm:$0xff]
        %v2467 = vld [vmem:[%s2099 + $0x98] sm:$0xff]
        %v2468 = vld [vmem:[%s2099 + $0xa8] sm:$0xff]
        %v2469 = vld [vmem:[%s2099 + $0xb0] sm:$0xff]
        %v2470 = vld [vmem:[%s2099 + $0xc0] sm:$0xff]
        %v2471 = vld [vmem:[%s2099 + $0xc8] sm:$0xff]
        %v2472 = vld [vmem:[%s2099 + $0xd8] sm:$0xff]
        %v2473 = vld [vmem:[%s2099 + $0xe0] sm:$0xff]
        %v2474 = vld [vmem:[%s2099 + $0xf0] sm:$0xff]
        %v2475 = vld [vmem:[%s2099 + $0xf8] sm:$0xff]
        %v2476 = vld [vmem:[%s2099 + $0x108] sm:$0xff]
        %v2477 = vld [vmem:[%s2099 + $0x110] sm:$0xff]
        %v2478 = vld [vmem:[%s2099 + $0x120] sm:$0xff]
        %v2479 = vld [vmem:[%s2099 + $0x128] sm:$0xff]
        %v2480 = vld [vmem:[%s2099 + $0x138] sm:$0xff]
        %v2481 = vld [vmem:[%s2099 + $0x140] sm:$0xff]
        %v2482 = vld [vmem:[%s2099 + $0x150] sm:$0xff]
        %v2483 = vld [vmem:[%s2099 + $0x158] sm:$0xff]
        %v2484 = vld [vmem:[%s2099 + $0x168] sm:$0xff]
        %v2485 = vld [vmem:[%s2099 + $0x170] sm:$0xff]
        %v2486 = vpack.c.bf16 %v2455, %v2454
        %v2487 = vpack.c.bf16 %v2457, %v2456
        %v2488 = vpack.c.bf16 %v2459, %v2458
        %v2489 = vpack.c.bf16 %v2461, %v2460
        %v2490 = vpack.c.bf16 %v2463, %v2462
        %v2491 = vpack.c.bf16 %v2465, %v2464
        %v2492 = vpack.c.bf16 %v2467, %v2466
        %v2493 = vpack.c.bf16 %v2469, %v2468
        %v2494 = vpack.c.bf16 %v2471, %v2470
        %v2495 = vpack.c.bf16 %v2473, %v2472
        %v2496 = vpack.c.bf16 %v2475, %v2474
        %v2497 = vpack.c.bf16 %v2477, %v2476
        %v2498 = vpack.c.bf16 %v2479, %v2478
        %v2499 = vpack.c.bf16 %v2481, %v2480
        %v2500 = vpack.c.bf16 %v2483, %v2482
        %v2501 = vpack.c.bf16 %v2485, %v2484
        %2518 = vrot.lane.b32.xlu0 %v2486, 96
        %v2519 = vpop.permute.xlu0 %2518
        %2520 = vrot.lane.b32.xlu0 %v2487, 96
        %v2521 = vpop.permute.xlu0 %2520
        %2522 = vrot.lane.b32.xlu0 %v2488, 96
        %v2523 = vpop.permute.xlu0 %2522
        %2524 = vrot.lane.b32.xlu0 %v2489, 96
        %v2525 = vpop.permute.xlu0 %2524
        %2526 = vrot.lane.b32.xlu0 %v2490, 96
        %v2527 = vpop.permute.xlu0 %2526
        %2528 = vrot.lane.b32.xlu0 %v2491, 96
        %v2529 = vpop.permute.xlu0 %2528
        %2530 = vrot.lane.b32.xlu0 %v2492, 96
        %v2531 = vpop.permute.xlu0 %2530
        %2532 = vrot.lane.b32.xlu0 %v2493, 96
        %v2533 = vpop.permute.xlu0 %2532
        %2534 = vrot.lane.b32.xlu0 %v2494, 96
        %v2535 = vpop.permute.xlu0 %2534
        %2536 = vrot.lane.b32.xlu0 %v2495, 96
        %v2537 = vpop.permute.xlu0 %2536
        %2538 = vrot.lane.b32.xlu0 %v2496, 96
        %v2539 = vpop.permute.xlu0 %2538
        %2540 = vrot.lane.b32.xlu0 %v2497, 96
        %v2541 = vpop.permute.xlu0 %2540
        %2542 = vrot.lane.b32.xlu0 %v2498, 96
        %v2543 = vpop.permute.xlu0 %2542
        %2544 = vrot.lane.b32.xlu0 %v2499, 96
        %v2545 = vpop.permute.xlu0 %2544
        %2546 = vrot.lane.b32.xlu0 %v2500, 96
        %v2547 = vpop.permute.xlu0 %2546
        %2548 = vrot.lane.b32.xlu0 %v2501, 96
        %v2549 = vpop.permute.xlu0 %2548
        %vm2566 = vcmask 1048320
        %2567 = vst.msk [vmem:[#allocation3] sm:$0xff] %vm2566, %v2519
        %2568 = vst.msk [vmem:[#allocation3 + $0x18] sm:$0xff] %vm2566, %v2521
        %2569 = vst.msk [vmem:[#allocation3 + $0x30] sm:$0xff] %vm2566, %v2523
        %2570 = vst.msk [vmem:[#allocation3 + $0x48] sm:$0xff] %vm2566, %v2525
        %2571 = vst.msk [vmem:[#allocation3 + $0x60] sm:$0xff] %vm2566, %v2527
        %2572 = vst.msk [vmem:[#allocation3 + $0x78] sm:$0xff] %vm2566, %v2529
        %2573 = vst.msk [vmem:[#allocation3 + $0x90] sm:$0xff] %vm2566, %v2531
        %2574 = vst.msk [vmem:[#allocation3 + $0xa8] sm:$0xff] %vm2566, %v2533
        %2575 = vst.msk [vmem:[#allocation3 + $0xc0] sm:$0xff] %vm2566, %v2535
        %2576 = vst.msk [vmem:[#allocation3 + $0xd8] sm:$0xff] %vm2566, %v2537
        %2577 = vst.msk [vmem:[#allocation3 + $0xf0] sm:$0xff] %vm2566, %v2539
        %2578 = vst.msk [vmem:[#allocation3 + $0x108] sm:$0xff] %vm2566, %v2541
        %2579 = vst.msk [vmem:[#allocation3 + $0x120] sm:$0xff] %vm2566, %v2543
        %2580 = vst.msk [vmem:[#allocation3 + $0x138] sm:$0xff] %vm2566, %v2545
        %2581 = vst.msk [vmem:[#allocation3 + $0x150] sm:$0xff] %vm2566, %v2547
        %2582 = vst.msk [vmem:[#allocation3 + $0x168] sm:$0xff] %vm2566, %v2549
        %v2583 = vld [vmem:[%s2099 + $0x1] sm:$0xff]
        %v2584 = vld [vmem:[%s2099 + $0x9] sm:$0xff]
        %v2585 = vld [vmem:[%s2099 + $0x19] sm:$0xff]
        %v2586 = vld [vmem:[%s2099 + $0x21] sm:$0xff]
        %v2587 = vld [vmem:[%s2099 + $0x31] sm:$0xff]
        %v2588 = vld [vmem:[%s2099 + $0x39] sm:$0xff]
        %v2589 = vld [vmem:[%s2099 + $0x49] sm:$0xff]
        %v2590 = vld [vmem:[%s2099 + $0x51] sm:$0xff]
        %v2591 = vld [vmem:[%s2099 + $0x61] sm:$0xff]
        %v2592 = vld [vmem:[%s2099 + $0x69] sm:$0xff]
        %v2593 = vld [vmem:[%s2099 + $0x79] sm:$0xff]
        %v2594 = vld [vmem:[%s2099 + $0x81] sm:$0xff]
        %v2595 = vld [vmem:[%s2099 + $0x91] sm:$0xff]
        %v2596 = vld [vmem:[%s2099 + $0x99] sm:$0xff]
        %v2597 = vld [vmem:[%s2099 + $0xa9] sm:$0xff]
        %v2598 = vld [vmem:[%s2099 + $0xb1] sm:$0xff]
        %v2599 = vld [vmem:[%s2099 + $0xc1] sm:$0xff]
        %v2600 = vld [vmem:[%s2099 + $0xc9] sm:$0xff]
        %v2601 = vld [vmem:[%s2099 + $0xd9] sm:$0xff]
        %v2602 = vld [vmem:[%s2099 + $0xe1] sm:$0xff]
        %v2603 = vld [vmem:[%s2099 + $0xf1] sm:$0xff]
        %v2604 = vld [vmem:[%s2099 + $0xf9] sm:$0xff]
        %v2605 = vld [vmem:[%s2099 + $0x109] sm:$0xff]
        %v2606 = vld [vmem:[%s2099 + $0x111] sm:$0xff]
        %v2607 = vld [vmem:[%s2099 + $0x121] sm:$0xff]
        %v2608 = vld [vmem:[%s2099 + $0x129] sm:$0xff]
        %v2609 = vld [vmem:[%s2099 + $0x139] sm:$0xff]
        %v2610 = vld [vmem:[%s2099 + $0x141] sm:$0xff]
        %v2611 = vld [vmem:[%s2099 + $0x151] sm:$0xff]
        %v2612 = vld [vmem:[%s2099 + $0x159] sm:$0xff]
        %v2613 = vld [vmem:[%s2099 + $0x169] sm:$0xff]
        %v2614 = vld [vmem:[%s2099 + $0x171] sm:$0xff]
        %v2615 = vpack.c.bf16 %v2584, %v2583
        %v2616 = vpack.c.bf16 %v2586, %v2585
        %v2617 = vpack.c.bf16 %v2588, %v2587
        %v2618 = vpack.c.bf16 %v2590, %v2589
        %v2619 = vpack.c.bf16 %v2592, %v2591
        %v2620 = vpack.c.bf16 %v2594, %v2593
        %v2621 = vpack.c.bf16 %v2596, %v2595
        %v2622 = vpack.c.bf16 %v2598, %v2597
        %v2623 = vpack.c.bf16 %v2600, %v2599
        %v2624 = vpack.c.bf16 %v2602, %v2601
        %v2625 = vpack.c.bf16 %v2604, %v2603
        %v2626 = vpack.c.bf16 %v2606, %v2605
        %v2627 = vpack.c.bf16 %v2608, %v2607
        %v2628 = vpack.c.bf16 %v2610, %v2609
        %v2629 = vpack.c.bf16 %v2612, %v2611
        %v2630 = vpack.c.bf16 %v2614, %v2613
        %2631 = vst.msk [vmem:[#allocation3 + $0x8] sm:$0xff] %vm527, %v2615
        %2632 = vst.msk [vmem:[#allocation3 + $0x20] sm:$0xff] %vm527, %v2616
        %2633 = vst.msk [vmem:[#allocation3 + $0x38] sm:$0xff] %vm527, %v2617
        %2634 = vst.msk [vmem:[#allocation3 + $0x50] sm:$0xff] %vm527, %v2618
        %2635 = vst.msk [vmem:[#allocation3 + $0x68] sm:$0xff] %vm527, %v2619
        %2636 = vst.msk [vmem:[#allocation3 + $0x80] sm:$0xff] %vm527, %v2620
        %2637 = vst.msk [vmem:[#allocation3 + $0x98] sm:$0xff] %vm527, %v2621
        %2638 = vst.msk [vmem:[#allocation3 + $0xb0] sm:$0xff] %vm527, %v2622
        %2639 = vst.msk [vmem:[#allocation3 + $0xc8] sm:$0xff] %vm527, %v2623
        %2640 = vst.msk [vmem:[#allocation3 + $0xe0] sm:$0xff] %vm527, %v2624
        %2641 = vst.msk [vmem:[#allocation3 + $0xf8] sm:$0xff] %vm527, %v2625
        %2642 = vst.msk [vmem:[#allocation3 + $0x110] sm:$0xff] %vm527, %v2626
        %2643 = vst.msk [vmem:[#allocation3 + $0x128] sm:$0xff] %vm527, %v2627
        %2644 = vst.msk [vmem:[#allocation3 + $0x140] sm:$0xff] %vm527, %v2628
        %2645 = vst.msk [vmem:[#allocation3 + $0x158] sm:$0xff] %vm527, %v2629
        %2646 = vst.msk [vmem:[#allocation3 + $0x170] sm:$0xff] %vm527, %v2630
        %v2647 = vld [vmem:[%s2099 + $0x2] sm:$0xff]
        %v2648 = vld [vmem:[%s2099 + $0xa] sm:$0xff]
        %v2649 = vld [vmem:[%s2099 + $0x1a] sm:$0xff]
        %v2650 = vld [vmem:[%s2099 + $0x22] sm:$0xff]
        %v2651 = vld [vmem:[%s2099 + $0x32] sm:$0xff]
        %v2652 = vld [vmem:[%s2099 + $0x3a] sm:$0xff]
        %v2653 = vld [vmem:[%s2099 + $0x4a] sm:$0xff]
        %v2654 = vld [vmem:[%s2099 + $0x52] sm:$0xff]
        %v2655 = vld [vmem:[%s2099 + $0x62] sm:$0xff]
        %v2656 = vld [vmem:[%s2099 + $0x6a] sm:$0xff]
        %v2657 = vld [vmem:[%s2099 + $0x7a] sm:$0xff]
        %v2658 = vld [vmem:[%s2099 + $0x82] sm:$0xff]
        %v2659 = vld [vmem:[%s2099 + $0x92] sm:$0xff]
        %v2660 = vld [vmem:[%s2099 + $0x9a] sm:$0xff]
        %v2661 = vld [vmem:[%s2099 + $0xaa] sm:$0xff]
        %v2662 = vld [vmem:[%s2099 + $0xb2] sm:$0xff]
        %v2663 = vld [vmem:[%s2099 + $0xc2] sm:$0xff]
        %v2664 = vld [vmem:[%s2099 + $0xca] sm:$0xff]
        %v2665 = vld [vmem:[%s2099 + $0xda] sm:$0xff]
        %v2666 = vld [vmem:[%s2099 + $0xe2] sm:$0xff]
        %v2667 = vld [vmem:[%s2099 + $0xf2] sm:$0xff]
        %v2668 = vld [vmem:[%s2099 + $0xfa] sm:$0xff]
        %v2669 = vld [vmem:[%s2099 + $0x10a] sm:$0xff]
        %v2670 = vld [vmem:[%s2099 + $0x112] sm:$0xff]
        %v2671 = vld [vmem:[%s2099 + $0x122] sm:$0xff]
        %v2672 = vld [vmem:[%s2099 + $0x12a] sm:$0xff]
        %v2673 = vld [vmem:[%s2099 + $0x13a] sm:$0xff]
        %v2674 = vld [vmem:[%s2099 + $0x142] sm:$0xff]
        %v2675 = vld [vmem:[%s2099 + $0x152] sm:$0xff]
        %v2676 = vld [vmem:[%s2099 + $0x15a] sm:$0xff]
        %v2677 = vld [vmem:[%s2099 + $0x16a] sm:$0xff]
        %v2678 = vld [vmem:[%s2099 + $0x172] sm:$0xff]
        %v2679 = vpack.c.bf16 %v2648, %v2647
        %v2680 = vpack.c.bf16 %v2650, %v2649
        %v2681 = vpack.c.bf16 %v2652, %v2651
        %v2682 = vpack.c.bf16 %v2654, %v2653
        %v2683 = vpack.c.bf16 %v2656, %v2655
        %v2684 = vpack.c.bf16 %v2658, %v2657
        %v2685 = vpack.c.bf16 %v2660, %v2659
        %v2686 = vpack.c.bf16 %v2662, %v2661
        %v2687 = vpack.c.bf16 %v2664, %v2663
        %v2688 = vpack.c.bf16 %v2666, %v2665
        %v2689 = vpack.c.bf16 %v2668, %v2667
        %v2690 = vpack.c.bf16 %v2670, %v2669
        %v2691 = vpack.c.bf16 %v2672, %v2671
        %v2692 = vpack.c.bf16 %v2674, %v2673
        %v2693 = vpack.c.bf16 %v2676, %v2675
        %v2694 = vpack.c.bf16 %v2678, %v2677
        %2711 = vrot.lane.b32.xlu0 %v2679, 32
        %v2712 = vpop.permute.xlu0 %2711
        %2713 = vrot.lane.b32.xlu0 %v2680, 32
        %v2714 = vpop.permute.xlu0 %2713
        %2715 = vrot.lane.b32.xlu0 %v2681, 32
        %v2716 = vpop.permute.xlu0 %2715
        %2717 = vrot.lane.b32.xlu0 %v2682, 32
        %v2718 = vpop.permute.xlu0 %2717
        %2719 = vrot.lane.b32.xlu0 %v2683, 32
        %v2720 = vpop.permute.xlu0 %2719
        %2721 = vrot.lane.b32.xlu0 %v2684, 32
        %v2722 = vpop.permute.xlu0 %2721
        %2723 = vrot.lane.b32.xlu0 %v2685, 32
        %v2724 = vpop.permute.xlu0 %2723
        %2725 = vrot.lane.b32.xlu0 %v2686, 32
        %v2726 = vpop.permute.xlu0 %2725
        %2727 = vrot.lane.b32.xlu0 %v2687, 32
        %v2728 = vpop.permute.xlu0 %2727
        %2729 = vrot.lane.b32.xlu0 %v2688, 32
        %v2730 = vpop.permute.xlu0 %2729
        %2731 = vrot.lane.b32.xlu0 %v2689, 32
        %v2732 = vpop.permute.xlu0 %2731
        %2733 = vrot.lane.b32.xlu0 %v2690, 32
        %v2734 = vpop.permute.xlu0 %2733
        %2735 = vrot.lane.b32.xlu0 %v2691, 32
        %v2736 = vpop.permute.xlu0 %2735
        %2737 = vrot.lane.b32.xlu0 %v2692, 32
        %v2738 = vpop.permute.xlu0 %2737
        %2739 = vrot.lane.b32.xlu0 %v2693, 32
        %v2740 = vpop.permute.xlu0 %2739
        %2741 = vrot.lane.b32.xlu0 %v2694, 32
        %v2742 = vpop.permute.xlu0 %2741
        %2759 = vst.msk [vmem:[#allocation3 + $0x8] sm:$0xff] %vm2308, %v2712
        %2760 = vst.msk [vmem:[#allocation3 + $0x20] sm:$0xff] %vm2308, %v2714
        %2761 = vst.msk [vmem:[#allocation3 + $0x38] sm:$0xff] %vm2308, %v2716
        %2762 = vst.msk [vmem:[#allocation3 + $0x50] sm:$0xff] %vm2308, %v2718
        %2763 = vst.msk [vmem:[#allocation3 + $0x68] sm:$0xff] %vm2308, %v2720
        %2764 = vst.msk [vmem:[#allocation3 + $0x80] sm:$0xff] %vm2308, %v2722
        %2765 = vst.msk [vmem:[#allocation3 + $0x98] sm:$0xff] %vm2308, %v2724
        %2766 = vst.msk [vmem:[#allocation3 + $0xb0] sm:$0xff] %vm2308, %v2726
        %2767 = vst.msk [vmem:[#allocation3 + $0xc8] sm:$0xff] %vm2308, %v2728
        %2768 = vst.msk [vmem:[#allocation3 + $0xe0] sm:$0xff] %vm2308, %v2730
        %2769 = vst.msk [vmem:[#allocation3 + $0xf8] sm:$0xff] %vm2308, %v2732
        %2770 = vst.msk [vmem:[#allocation3 + $0x110] sm:$0xff] %vm2308, %v2734
        %2771 = vst.msk [vmem:[#allocation3 + $0x128] sm:$0xff] %vm2308, %v2736
        %2772 = vst.msk [vmem:[#allocation3 + $0x140] sm:$0xff] %vm2308, %v2738
        %2773 = vst.msk [vmem:[#allocation3 + $0x158] sm:$0xff] %vm2308, %v2740
        %2774 = vst.msk [vmem:[#allocation3 + $0x170] sm:$0xff] %vm2308, %v2742
        %s2775 = scalar_lea.vmem [#allocation2], 48
        %v2776 = vld [vmem:[%s2775] sm:$0xff]
        %v2777 = vld [vmem:[%s2775 + $0x8] sm:$0xff]
        %v2778 = vld [vmem:[%s2775 + $0x18] sm:$0xff]
        %v2779 = vld [vmem:[%s2775 + $0x20] sm:$0xff]
        %v2780 = vld [vmem:[%s2775 + $0x30] sm:$0xff]
        %v2781 = vld [vmem:[%s2775 + $0x38] sm:$0xff]
        %v2782 = vld [vmem:[%s2775 + $0x48] sm:$0xff]
        %v2783 = vld [vmem:[%s2775 + $0x50] sm:$0xff]
        %v2784 = vld [vmem:[%s2775 + $0x60] sm:$0xff]
        %v2785 = vld [vmem:[%s2775 + $0x68] sm:$0xff]
        %v2786 = vld [vmem:[%s2775 + $0x78] sm:$0xff]
        %v2787 = vld [vmem:[%s2775 + $0x80] sm:$0xff]
        %v2788 = vld [vmem:[%s2775 + $0x90] sm:$0xff]
        %v2789 = vld [vmem:[%s2775 + $0x98] sm:$0xff]
        %v2790 = vld [vmem:[%s2775 + $0xa8] sm:$0xff]
        %v2791 = vld [vmem:[%s2775 + $0xb0] sm:$0xff]
        %v2792 = vld [vmem:[%s2775 + $0xc0] sm:$0xff]
        %v2793 = vld [vmem:[%s2775 + $0xc8] sm:$0xff]
        %v2794 = vld [vmem:[%s2775 + $0xd8] sm:$0xff]
        %v2795 = vld [vmem:[%s2775 + $0xe0] sm:$0xff]
        %v2796 = vld [vmem:[%s2775 + $0xf0] sm:$0xff]
        %v2797 = vld [vmem:[%s2775 + $0xf8] sm:$0xff]
        %v2798 = vld [vmem:[%s2775 + $0x108] sm:$0xff]
        %v2799 = vld [vmem:[%s2775 + $0x110] sm:$0xff]
        %v2800 = vld [vmem:[%s2775 + $0x120] sm:$0xff]
        %v2801 = vld [vmem:[%s2775 + $0x128] sm:$0xff]
        %v2802 = vld [vmem:[%s2775 + $0x138] sm:$0xff]
        %v2803 = vld [vmem:[%s2775 + $0x140] sm:$0xff]
        %v2804 = vld [vmem:[%s2775 + $0x150] sm:$0xff]
        %v2805 = vld [vmem:[%s2775 + $0x158] sm:$0xff]
        %v2806 = vld [vmem:[%s2775 + $0x168] sm:$0xff]
        %v2807 = vld [vmem:[%s2775 + $0x170] sm:$0xff]
        %v2808 = vpack.c.bf16 %v2777, %v2776
        %v2809 = vpack.c.bf16 %v2779, %v2778
        %v2810 = vpack.c.bf16 %v2781, %v2780
        %v2811 = vpack.c.bf16 %v2783, %v2782
        %v2812 = vpack.c.bf16 %v2785, %v2784
        %v2813 = vpack.c.bf16 %v2787, %v2786
        %v2814 = vpack.c.bf16 %v2789, %v2788
        %v2815 = vpack.c.bf16 %v2791, %v2790
        %v2816 = vpack.c.bf16 %v2793, %v2792
        %v2817 = vpack.c.bf16 %v2795, %v2794
        %v2818 = vpack.c.bf16 %v2797, %v2796
        %v2819 = vpack.c.bf16 %v2799, %v2798
        %v2820 = vpack.c.bf16 %v2801, %v2800
        %v2821 = vpack.c.bf16 %v2803, %v2802
        %v2822 = vpack.c.bf16 %v2805, %v2804
        %v2823 = vpack.c.bf16 %v2807, %v2806
        %2840 = vrot.lane.b32.xlu0 %v2808, 64
        %v2841 = vpop.permute.xlu0 %2840
        %2842 = vrot.lane.b32.xlu0 %v2809, 64
        %v2843 = vpop.permute.xlu0 %2842
        %2844 = vrot.lane.b32.xlu0 %v2810, 64
        %v2845 = vpop.permute.xlu0 %2844
        %2846 = vrot.lane.b32.xlu0 %v2811, 64
        %v2847 = vpop.permute.xlu0 %2846
        %2848 = vrot.lane.b32.xlu0 %v2812, 64
        %v2849 = vpop.permute.xlu0 %2848
        %2850 = vrot.lane.b32.xlu0 %v2813, 64
        %v2851 = vpop.permute.xlu0 %2850
        %2852 = vrot.lane.b32.xlu0 %v2814, 64
        %v2853 = vpop.permute.xlu0 %2852
        %2854 = vrot.lane.b32.xlu0 %v2815, 64
        %v2855 = vpop.permute.xlu0 %2854
        %2856 = vrot.lane.b32.xlu0 %v2816, 64
        %v2857 = vpop.permute.xlu0 %2856
        %2858 = vrot.lane.b32.xlu0 %v2817, 64
        %v2859 = vpop.permute.xlu0 %2858
        %2860 = vrot.lane.b32.xlu0 %v2818, 64
        %v2861 = vpop.permute.xlu0 %2860
        %2862 = vrot.lane.b32.xlu0 %v2819, 64
        %v2863 = vpop.permute.xlu0 %2862
        %2864 = vrot.lane.b32.xlu0 %v2820, 64
        %v2865 = vpop.permute.xlu0 %2864
        %2866 = vrot.lane.b32.xlu0 %v2821, 64
        %v2867 = vpop.permute.xlu0 %2866
        %2868 = vrot.lane.b32.xlu0 %v2822, 64
        %v2869 = vpop.permute.xlu0 %2868
        %2870 = vrot.lane.b32.xlu0 %v2823, 64
        %v2871 = vpop.permute.xlu0 %2870
        %2888 = vst.msk [vmem:[#allocation3 + $0x8] sm:$0xff] %vm2437, %v2841
        %2889 = vst.msk [vmem:[#allocation3 + $0x20] sm:$0xff] %vm2437, %v2843
        %2890 = vst.msk [vmem:[#allocation3 + $0x38] sm:$0xff] %vm2437, %v2845
        %2891 = vst.msk [vmem:[#allocation3 + $0x50] sm:$0xff] %vm2437, %v2847
        %2892 = vst.msk [vmem:[#allocation3 + $0x68] sm:$0xff] %vm2437, %v2849
        %2893 = vst.msk [vmem:[#allocation3 + $0x80] sm:$0xff] %vm2437, %v2851
        %2894 = vst.msk [vmem:[#allocation3 + $0x98] sm:$0xff] %vm2437, %v2853
        %2895 = vst.msk [vmem:[#allocation3 + $0xb0] sm:$0xff] %vm2437, %v2855
        %2896 = vst.msk [vmem:[#allocation3 + $0xc8] sm:$0xff] %vm2437, %v2857
        %2897 = vst.msk [vmem:[#allocation3 + $0xe0] sm:$0xff] %vm2437, %v2859
        %2898 = vst.msk [vmem:[#allocation3 + $0xf8] sm:$0xff] %vm2437, %v2861
        %2899 = vst.msk [vmem:[#allocation3 + $0x110] sm:$0xff] %vm2437, %v2863
        %2900 = vst.msk [vmem:[#allocation3 + $0x128] sm:$0xff] %vm2437, %v2865
        %2901 = vst.msk [vmem:[#allocation3 + $0x140] sm:$0xff] %vm2437, %v2867
        %2902 = vst.msk [vmem:[#allocation3 + $0x158] sm:$0xff] %vm2437, %v2869
        %2903 = vst.msk [vmem:[#allocation3 + $0x170] sm:$0xff] %vm2437, %v2871
        %v2904 = vld [vmem:[%s2775 + $0x1] sm:$0xff]
        %v2905 = vld [vmem:[%s2775 + $0x9] sm:$0xff]
        %v2906 = vld [vmem:[%s2775 + $0x19] sm:$0xff]
        %v2907 = vld [vmem:[%s2775 + $0x21] sm:$0xff]
        %v2908 = vld [vmem:[%s2775 + $0x31] sm:$0xff]
        %v2909 = vld [vmem:[%s2775 + $0x39] sm:$0xff]
        %v2910 = vld [vmem:[%s2775 + $0x49] sm:$0xff]
        %v2911 = vld [vmem:[%s2775 + $0x51] sm:$0xff]
        %v2912 = vld [vmem:[%s2775 + $0x61] sm:$0xff]
        %v2913 = vld [vmem:[%s2775 + $0x69] sm:$0xff]
        %v2914 = vld [vmem:[%s2775 + $0x79] sm:$0xff]
        %v2915 = vld [vmem:[%s2775 + $0x81] sm:$0xff]
        %v2916 = vld [vmem:[%s2775 + $0x91] sm:$0xff]
        %v2917 = vld [vmem:[%s2775 + $0x99] sm:$0xff]
        %v2918 = vld [vmem:[%s2775 + $0xa9] sm:$0xff]
        %v2919 = vld [vmem:[%s2775 + $0xb1] sm:$0xff]
        %v2920 = vld [vmem:[%s2775 + $0xc1] sm:$0xff]
        %v2921 = vld [vmem:[%s2775 + $0xc9] sm:$0xff]
        %v2922 = vld [vmem:[%s2775 + $0xd9] sm:$0xff]
        %v2923 = vld [vmem:[%s2775 + $0xe1] sm:$0xff]
        %v2924 = vld [vmem:[%s2775 + $0xf1] sm:$0xff]
        %v2925 = vld [vmem:[%s2775 + $0xf9] sm:$0xff]
        %v2926 = vld [vmem:[%s2775 + $0x109] sm:$0xff]
        %v2927 = vld [vmem:[%s2775 + $0x111] sm:$0xff]
        %v2928 = vld [vmem:[%s2775 + $0x121] sm:$0xff]
        %v2929 = vld [vmem:[%s2775 + $0x129] sm:$0xff]
        %v2930 = vld [vmem:[%s2775 + $0x139] sm:$0xff]
        %v2931 = vld [vmem:[%s2775 + $0x141] sm:$0xff]
        %v2932 = vld [vmem:[%s2775 + $0x151] sm:$0xff]
        %v2933 = vld [vmem:[%s2775 + $0x159] sm:$0xff]
        %v2934 = vld [vmem:[%s2775 + $0x169] sm:$0xff]
        %v2935 = vld [vmem:[%s2775 + $0x171] sm:$0xff]
        %v2936 = vpack.c.bf16 %v2905, %v2904
        %v2937 = vpack.c.bf16 %v2907, %v2906
        %v2938 = vpack.c.bf16 %v2909, %v2908
        %v2939 = vpack.c.bf16 %v2911, %v2910
        %v2940 = vpack.c.bf16 %v2913, %v2912
        %v2941 = vpack.c.bf16 %v2915, %v2914
        %v2942 = vpack.c.bf16 %v2917, %v2916
        %v2943 = vpack.c.bf16 %v2919, %v2918
        %v2944 = vpack.c.bf16 %v2921, %v2920
        %v2945 = vpack.c.bf16 %v2923, %v2922
        %v2946 = vpack.c.bf16 %v2925, %v2924
        %v2947 = vpack.c.bf16 %v2927, %v2926
        %v2948 = vpack.c.bf16 %v2929, %v2928
        %v2949 = vpack.c.bf16 %v2931, %v2930
        %v2950 = vpack.c.bf16 %v2933, %v2932
        %v2951 = vpack.c.bf16 %v2935, %v2934
        %2968 = vrot.lane.b32.xlu0 %v2936, 96
        %v2969 = vpop.permute.xlu0 %2968
        %2970 = vrot.lane.b32.xlu0 %v2937, 96
        %v2971 = vpop.permute.xlu0 %2970
        %2972 = vrot.lane.b32.xlu0 %v2938, 96
        %v2973 = vpop.permute.xlu0 %2972
        %2974 = vrot.lane.b32.xlu0 %v2939, 96
        %v2975 = vpop.permute.xlu0 %2974
        %2976 = vrot.lane.b32.xlu0 %v2940, 96
        %v2977 = vpop.permute.xlu0 %2976
        %2978 = vrot.lane.b32.xlu0 %v2941, 96
        %v2979 = vpop.permute.xlu0 %2978
        %2980 = vrot.lane.b32.xlu0 %v2942, 96
        %v2981 = vpop.permute.xlu0 %2980
        %2982 = vrot.lane.b32.xlu0 %v2943, 96
        %v2983 = vpop.permute.xlu0 %2982
        %2984 = vrot.lane.b32.xlu0 %v2944, 96
        %v2985 = vpop.permute.xlu0 %2984
        %2986 = vrot.lane.b32.xlu0 %v2945, 96
        %v2987 = vpop.permute.xlu0 %2986
        %2988 = vrot.lane.b32.xlu0 %v2946, 96
        %v2989 = vpop.permute.xlu0 %2988
        %2990 = vrot.lane.b32.xlu0 %v2947, 96
        %v2991 = vpop.permute.xlu0 %2990
        %2992 = vrot.lane.b32.xlu0 %v2948, 96
        %v2993 = vpop.permute.xlu0 %2992
        %2994 = vrot.lane.b32.xlu0 %v2949, 96
        %v2995 = vpop.permute.xlu0 %2994
        %2996 = vrot.lane.b32.xlu0 %v2950, 96
        %v2997 = vpop.permute.xlu0 %2996
        %2998 = vrot.lane.b32.xlu0 %v2951, 96
        %v2999 = vpop.permute.xlu0 %2998
        %3016 = vst.msk [vmem:[#allocation3 + $0x8] sm:$0xff] %vm2566, %v2969
        %3017 = vst.msk [vmem:[#allocation3 + $0x20] sm:$0xff] %vm2566, %v2971
        %3018 = vst.msk [vmem:[#allocation3 + $0x38] sm:$0xff] %vm2566, %v2973
        %3019 = vst.msk [vmem:[#allocation3 + $0x50] sm:$0xff] %vm2566, %v2975
        %3020 = vst.msk [vmem:[#allocation3 + $0x68] sm:$0xff] %vm2566, %v2977
        %3021 = vst.msk [vmem:[#allocation3 + $0x80] sm:$0xff] %vm2566, %v2979
        %3022 = vst.msk [vmem:[#allocation3 + $0x98] sm:$0xff] %vm2566, %v2981
        %3023 = vst.msk [vmem:[#allocation3 + $0xb0] sm:$0xff] %vm2566, %v2983
        %3024 = vst.msk [vmem:[#allocation3 + $0xc8] sm:$0xff] %vm2566, %v2985
        %3025 = vst.msk [vmem:[#allocation3 + $0xe0] sm:$0xff] %vm2566, %v2987
        %3026 = vst.msk [vmem:[#allocation3 + $0xf8] sm:$0xff] %vm2566, %v2989
        %3027 = vst.msk [vmem:[#allocation3 + $0x110] sm:$0xff] %vm2566, %v2991
        %3028 = vst.msk [vmem:[#allocation3 + $0x128] sm:$0xff] %vm2566, %v2993
        %3029 = vst.msk [vmem:[#allocation3 + $0x140] sm:$0xff] %vm2566, %v2995
        %3030 = vst.msk [vmem:[#allocation3 + $0x158] sm:$0xff] %vm2566, %v2997
        %3031 = vst.msk [vmem:[#allocation3 + $0x170] sm:$0xff] %vm2566, %v2999
        %v3032 = vld [vmem:[%s2775 + $0x2] sm:$0xff]
        %v3033 = vld [vmem:[%s2775 + $0xa] sm:$0xff]
        %v3034 = vld [vmem:[%s2775 + $0x1a] sm:$0xff]
        %v3035 = vld [vmem:[%s2775 + $0x22] sm:$0xff]
        %v3036 = vld [vmem:[%s2775 + $0x32] sm:$0xff]
        %v3037 = vld [vmem:[%s2775 + $0x3a] sm:$0xff]
        %v3038 = vld [vmem:[%s2775 + $0x4a] sm:$0xff]
        %v3039 = vld [vmem:[%s2775 + $0x52] sm:$0xff]
        %v3040 = vld [vmem:[%s2775 + $0x62] sm:$0xff]
        %v3041 = vld [vmem:[%s2775 + $0x6a] sm:$0xff]
        %v3042 = vld [vmem:[%s2775 + $0x7a] sm:$0xff]
        %v3043 = vld [vmem:[%s2775 + $0x82] sm:$0xff]
        %v3044 = vld [vmem:[%s2775 + $0x92] sm:$0xff]
        %v3045 = vld [vmem:[%s2775 + $0x9a] sm:$0xff]
        %v3046 = vld [vmem:[%s2775 + $0xaa] sm:$0xff]
        %v3047 = vld [vmem:[%s2775 + $0xb2] sm:$0xff]
        %v3048 = vld [vmem:[%s2775 + $0xc2] sm:$0xff]
        %v3049 = vld [vmem:[%s2775 + $0xca] sm:$0xff]
        %v3050 = vld [vmem:[%s2775 + $0xda] sm:$0xff]
        %v3051 = vld [vmem:[%s2775 + $0xe2] sm:$0xff]
        %v3052 = vld [vmem:[%s2775 + $0xf2] sm:$0xff]
        %v3053 = vld [vmem:[%s2775 + $0xfa] sm:$0xff]
        %v3054 = vld [vmem:[%s2775 + $0x10a] sm:$0xff]
        %v3055 = vld [vmem:[%s2775 + $0x112] sm:$0xff]
        %v3056 = vld [vmem:[%s2775 + $0x122] sm:$0xff]
        %v3057 = vld [vmem:[%s2775 + $0x12a] sm:$0xff]
        %v3058 = vld [vmem:[%s2775 + $0x13a] sm:$0xff]
        %v3059 = vld [vmem:[%s2775 + $0x142] sm:$0xff]
        %v3060 = vld [vmem:[%s2775 + $0x152] sm:$0xff]
        %v3061 = vld [vmem:[%s2775 + $0x15a] sm:$0xff]
        %v3062 = vld [vmem:[%s2775 + $0x16a] sm:$0xff]
        %v3063 = vld [vmem:[%s2775 + $0x172] sm:$0xff]
        %v3064 = vpack.c.bf16 %v3033, %v3032
        %v3065 = vpack.c.bf16 %v3035, %v3034
        %v3066 = vpack.c.bf16 %v3037, %v3036
        %v3067 = vpack.c.bf16 %v3039, %v3038
        %v3068 = vpack.c.bf16 %v3041, %v3040
        %v3069 = vpack.c.bf16 %v3043, %v3042
        %v3070 = vpack.c.bf16 %v3045, %v3044
        %v3071 = vpack.c.bf16 %v3047, %v3046
        %v3072 = vpack.c.bf16 %v3049, %v3048
        %v3073 = vpack.c.bf16 %v3051, %v3050
        %v3074 = vpack.c.bf16 %v3053, %v3052
        %v3075 = vpack.c.bf16 %v3055, %v3054
        %v3076 = vpack.c.bf16 %v3057, %v3056
        %v3077 = vpack.c.bf16 %v3059, %v3058
        %v3078 = vpack.c.bf16 %v3061, %v3060
        %v3079 = vpack.c.bf16 %v3063, %v3062
        %3080 = vst.msk [vmem:[#allocation3 + $0x10] sm:$0xff] %vm527, %v3064
        %3081 = vst.msk [vmem:[#allocation3 + $0x28] sm:$0xff] %vm527, %v3065
        %3082 = vst.msk [vmem:[#allocation3 + $0x40] sm:$0xff] %vm527, %v3066
        %3083 = vst.msk [vmem:[#allocation3 + $0x58] sm:$0xff] %vm527, %v3067
        %3084 = vst.msk [vmem:[#allocation3 + $0x70] sm:$0xff] %vm527, %v3068
        %3085 = vst.msk [vmem:[#allocation3 + $0x88] sm:$0xff] %vm527, %v3069
        %3086 = vst.msk [vmem:[#allocation3 + $0xa0] sm:$0xff] %vm527, %v3070
        %3087 = vst.msk [vmem:[#allocation3 + $0xb8] sm:$0xff] %vm527, %v3071
        %3088 = vst.msk [vmem:[#allocation3 + $0xd0] sm:$0xff] %vm527, %v3072
        %3089 = vst.msk [vmem:[#allocation3 + $0xe8] sm:$0xff] %vm527, %v3073
        %3090 = vst.msk [vmem:[#allocation3 + $0x100] sm:$0xff] %vm527, %v3074
        %3091 = vst.msk [vmem:[#allocation3 + $0x118] sm:$0xff] %vm527, %v3075
        %3092 = vst.msk [vmem:[#allocation3 + $0x130] sm:$0xff] %vm527, %v3076
        %3093 = vst.msk [vmem:[#allocation3 + $0x148] sm:$0xff] %vm527, %v3077
        %3094 = vst.msk [vmem:[#allocation3 + $0x160] sm:$0xff] %vm527, %v3078
        %3095 = vst.msk [vmem:[#allocation3 + $0x178] sm:$0xff] %vm527, %v3079
        %v3096 = vld [vmem:[#allocation3] sm:$0xff]
        %v3097 = vld [vmem:[#allocation3 + $0x8] sm:$0xff]
        %v3098 = vld [vmem:[#allocation3 + $0x10] sm:$0xff]
        %v3099 = vld [vmem:[#allocation3 + $0x18] sm:$0xff]
        %v3100 = vld [vmem:[#allocation3 + $0x20] sm:$0xff]
        %v3101 = vld [vmem:[#allocation3 + $0x28] sm:$0xff]
        %v3102 = vld [vmem:[#allocation3 + $0x30] sm:$0xff]
        %v3103 = vld [vmem:[#allocation3 + $0x38] sm:$0xff]
        %v3104 = vld [vmem:[#allocation3 + $0x40] sm:$0xff]
        %v3105 = vld [vmem:[#allocation3 + $0x48] sm:$0xff]
        %v3106 = vld [vmem:[#allocation3 + $0x50] sm:$0xff]
        %v3107 = vld [vmem:[#allocation3 + $0x58] sm:$0xff]
        %v3108 = vld [vmem:[#allocation3 + $0x60] sm:$0xff]
        %v3109 = vld [vmem:[#allocation3 + $0x68] sm:$0xff]
        %v3110 = vld [vmem:[#allocation3 + $0x70] sm:$0xff]
        %v3111 = vld [vmem:[#allocation3 + $0x78] sm:$0xff]
        %v3112 = vld [vmem:[#allocation3 + $0x80] sm:$0xff]
        %v3113 = vld [vmem:[#allocation3 + $0x88] sm:$0xff]
        %v3114 = vld [vmem:[#allocation3 + $0x90] sm:$0xff]
        %v3115 = vld [vmem:[#allocation3 + $0x98] sm:$0xff]
        %v3116 = vld [vmem:[#allocation3 + $0xa0] sm:$0xff]
        %v3117 = vld [vmem:[#allocation3 + $0xa8] sm:$0xff]
        %v3118 = vld [vmem:[#allocation3 + $0xb0] sm:$0xff]
        %v3119 = vld [vmem:[#allocation3 + $0xb8] sm:$0xff]
        %v3120 = vld [vmem:[#allocation3 + $0xc0] sm:$0xff]
        %v3121 = vld [vmem:[#allocation3 + $0xc8] sm:$0xff]
        %v3122 = vld [vmem:[#allocation3 + $0xd0] sm:$0xff]
        %v3123 = vld [vmem:[#allocation3 + $0xd8] sm:$0xff]
        %v3124 = vld [vmem:[#allocation3 + $0xe0] sm:$0xff]
        %v3125 = vld [vmem:[#allocation3 + $0xe8] sm:$0xff]
        %v3126 = vld [vmem:[#allocation3 + $0xf0] sm:$0xff]
        %v3127 = vld [vmem:[#allocation3 + $0xf8] sm:$0xff]
        %v3128 = vld [vmem:[#allocation3 + $0x100] sm:$0xff]
        %v3129 = vld [vmem:[#allocation3 + $0x108] sm:$0xff]
        %v3130 = vld [vmem:[#allocation3 + $0x110] sm:$0xff]
        %v3131 = vld [vmem:[#allocation3 + $0x118] sm:$0xff]
        %v3132 = vld [vmem:[#allocation3 + $0x120] sm:$0xff]
        %v3133 = vld [vmem:[#allocation3 + $0x128] sm:$0xff]
        %v3134 = vld [vmem:[#allocation3 + $0x130] sm:$0xff]
        %v3135 = vld [vmem:[#allocation3 + $0x138] sm:$0xff]
        %v3136 = vld [vmem:[#allocation3 + $0x140] sm:$0xff]
        %v3137 = vld [vmem:[#allocation3 + $0x148] sm:$0xff]
        %v3138 = vld [vmem:[#allocation3 + $0x150] sm:$0xff]
        %v3139 = vld [vmem:[#allocation3 + $0x158] sm:$0xff]
        %v3140 = vld [vmem:[#allocation3 + $0x160] sm:$0xff]
        %v3141 = vld [vmem:[#allocation3 + $0x168] sm:$0xff]
        %v3142 = vld [vmem:[#allocation3 + $0x170] sm:$0xff]
        %v3143 = vld [vmem:[#allocation3 + $0x178] sm:$0xff]
        %v3144 = vld [vmem:[%s4] sm:$0xf]
        %v3145 = vld [vmem:[%s4 + $0x4] sm:$0xf]
        %v3146 = vld [vmem:[%s4 + $0x8] sm:$0xf]
        %v3147 = vld [vmem:[%s4 + $0xc] sm:$0xf]
        %v3148 = vld [vmem:[%s4 + $0x10] sm:$0xf]
        %v3149 = vld [vmem:[%s4 + $0x14] sm:$0xf]
        %v3150 = vld [vmem:[%s4 + $0x18] sm:$0xf]
        %v3151 = vld [vmem:[%s4 + $0x1c] sm:$0xf]
        %v3152 = vld [vmem:[%s4 + $0x20] sm:$0xf]
        %v3153 = vld [vmem:[%s4 + $0x24] sm:$0xf]
        %v3154 = vld [vmem:[%s4 + $0x28] sm:$0xf]
        %v3155 = vld [vmem:[%s4 + $0x2c] sm:$0xf]
        %v3156 = vld [vmem:[%s4 + $0x30] sm:$0xf]
        %v3157 = vld [vmem:[%s4 + $0x34] sm:$0xf]
        %v3158 = vld [vmem:[%s4 + $0x38] sm:$0xf]
        %v3159 = vld [vmem:[%s4 + $0x3c] sm:$0xf]
        %v3160 = vld [vmem:[%s4 + $0x40] sm:$0xf]
        %v3161 = vld [vmem:[%s4 + $0x44] sm:$0xf]
        %v3162 = vld [vmem:[%s4 + $0x48] sm:$0xf]
        %v3163 = vld [vmem:[%s4 + $0x4c] sm:$0xf]
        %v3164 = vld [vmem:[%s4 + $0x50] sm:$0xf]
        %v3165 = vld [vmem:[%s4 + $0x54] sm:$0xf]
        %v3166 = vld [vmem:[%s4 + $0x58] sm:$0xf]
        %v3167 = vld [vmem:[%s4 + $0x5c] sm:$0xf]
        %v3168 = vld [vmem:[%s4 + $0x60] sm:$0xf]
        %v3169 = vld [vmem:[%s4 + $0x64] sm:$0xf]
        %v3170 = vld [vmem:[%s4 + $0x68] sm:$0xf]
        %v3171 = vld [vmem:[%s4 + $0x6c] sm:$0xf]
        %v3172 = vld [vmem:[%s4 + $0x70] sm:$0xf]
        %v3173 = vld [vmem:[%s4 + $0x74] sm:$0xf]
        %v3174 = vld [vmem:[%s4 + $0x78] sm:$0xf]
        %v3175 = vld [vmem:[%s4 + $0x7c] sm:$0xf]
        %v3176 = vld [vmem:[%s4 + $0x80] sm:$0xf]
        %v3177 = vld [vmem:[%s4 + $0x84] sm:$0xf]
        %v3178 = vld [vmem:[%s4 + $0x88] sm:$0xf]
        %v3179 = vld [vmem:[%s4 + $0x8c] sm:$0xf]
        %v3181 = vlaneseq
        %v3182 = vshrl.u32 %v3181, 7
        %v3183 = vsub.s32 0, %v3182
        %v3184 = vrot.slane %v2054, %v3183
        %v3222 = vunpack.c.l.b16 %v3144
        %v3223 = vunpack.c.l.b16 %v3145
        %v3224 = vunpack.c.l.b16 %v3146
        %v3225 = vunpack.c.l.b16 %v3147
        %v3226 = vunpack.c.l.b16 %v3148
        %v3227 = vunpack.c.l.b16 %v3149
        %v3228 = vunpack.c.l.b16 %v3150
        %v3229 = vunpack.c.l.b16 %v3151
        %v3230 = vunpack.c.l.b16 %v3152
        %v3231 = vunpack.c.l.b16 %v3153
        %v3232 = vunpack.c.l.b16 %v3154
        %v3233 = vunpack.c.l.b16 %v3155
        %v3234 = vunpack.c.l.b16 %v3156
        %v3235 = vunpack.c.l.b16 %v3157
        %v3236 = vunpack.c.l.b16 %v3158
        %v3237 = vunpack.c.l.b16 %v3159
        %v3238 = vunpack.c.l.b16 %v3160
        %v3239 = vunpack.c.l.b16 %v3161
        %v3240 = vunpack.c.l.b16 %v3162
        %v3241 = vunpack.c.l.b16 %v3163
        %v3242 = vunpack.c.l.b16 %v3164
        %v3243 = vunpack.c.l.b16 %v3165
        %v3244 = vunpack.c.l.b16 %v3166
        %v3245 = vunpack.c.l.b16 %v3167
        %v3246 = vunpack.c.l.b16 %v3168
        %v3247 = vunpack.c.l.b16 %v3169
        %v3248 = vunpack.c.l.b16 %v3170
        %v3249 = vunpack.c.l.b16 %v3171
        %v3250 = vunpack.c.l.b16 %v3172
        %v3251 = vunpack.c.l.b16 %v3173
        %v3252 = vunpack.c.l.b16 %v3174
        %v3253 = vunpack.c.l.b16 %v3175
        %v3254 = vunpack.c.l.b16 %v3176
        %v3255 = vunpack.c.l.b16 %v3177
        %v3256 = vunpack.c.l.b16 %v3178
        %v3257 = vunpack.c.l.b16 %v3179
        %v3258 = vpack.c.b16 %v3223, %v3222
        %v3259 = vpack.c.b16 %v3225, %v3224
        %v3260 = vpack.c.b16 %v3227, %v3226
        %v3261 = vpack.c.b16 %v3229, %v3228
        %v3262 = vpack.c.b16 %v3231, %v3230
        %v3263 = vpack.c.b16 %v3233, %v3232
        %v3264 = vpack.c.b16 %v3235, %v3234
        %v3265 = vpack.c.b16 %v3237, %v3236
        %v3266 = vpack.c.b16 %v3239, %v3238
        %v3267 = vpack.c.b16 %v3241, %v3240
        %v3268 = vpack.c.b16 %v3243, %v3242
        %v3269 = vpack.c.b16 %v3245, %v3244
        %v3270 = vpack.c.b16 %v3247, %v3246
        %v3271 = vpack.c.b16 %v3249, %v3248
        %v3272 = vpack.c.b16 %v3251, %v3250
        %v3273 = vpack.c.b16 %v3253, %v3252
        %v3274 = vpack.c.b16 %v3255, %v3254
        %v3275 = vpack.c.b16 %v3257, %v3256
        %v3295 = vsel %vm527, %v3098, 0
        %v3298 = vsel %vm527, %v3101, 0
        %v3301 = vsel %vm527, %v3104, 0
        %v3304 = vsel %vm527, %v3107, 0
        %v3307 = vsel %vm527, %v3110, 0
        %v3310 = vsel %vm527, %v3113, 0
        %v3313 = vsel %vm527, %v3116, 0
        %v3316 = vsel %vm527, %v3119, 0
        %v3319 = vsel %vm527, %v3122, 0
        %v3322 = vsel %vm527, %v3125, 0
        %v3325 = vsel %vm527, %v3128, 0
        %v3328 = vsel %vm527, %v3131, 0
        %v3331 = vsel %vm527, %v3134, 0
        %v3334 = vsel %vm527, %v3137, 0
        %v3337 = vsel %vm527, %v3140, 0
        %v3340 = vsel %vm527, %v3143, 0
        %3342 = vmatprep.subr.bf16.mxu0 0
        %3343 = vmatpush1.bf16.msra.mxu0 %v3258
        %3344 = vmatprep.subr.bf16.mxu0 0
        %3345 = vmatpush1.bf16.msra.mxu0 %v3259
        %3346 = vmatprep.subr.bf16.mxu0 0
        %3347 = vmatpush1.bf16.msra.mxu0 %v3260
        %3348 = vmatprep.subr.bf16.mxu0 0
        %3349 = vmatpush1.bf16.msra.mxu0 %v3261
        %3350 = vmatprep.subr.bf16.mxu0 0
        %3351 = vmatpush1.bf16.msra.mxu0 %v3262
        %3352 = vmatprep.subr.bf16.mxu0 0
        %3353 = vmatpush1.bf16.msra.mxu0 %v3263
        %3354 = vmatprep.subr.bf16.mxu0 0
        %3355 = vmatpush1.bf16.msra.mxu0 %v3264
        %3356 = vmatprep.subr.bf16.mxu0 0
        %3357 = vmatpush1.bf16.msra.mxu0 %v3265
        %3358 = vmatprep.subr.bf16.mxu0 0
        %3359 = vmatpush1.bf16.msra.mxu0 %v3266
        %3360 = vmatprep.subr.bf16.mxu0 0
        %3361 = vmatpush1.bf16.msra.mxu0 %v3267
        %3362 = vmatprep.subr.bf16.mxu0 0
        %3363 = vmatpush1.bf16.msra.mxu0 %v3268
        %3364 = vmatprep.subr.bf16.mxu0 0
        %3365 = vmatpush1.bf16.msra.mxu0 %v3269
        %3366 = vmatprep.subr.bf16.mxu0 0
        %3367 = vmatpush1.bf16.msra.mxu0 %v3270
        %3368 = vmatprep.subr.bf16.mxu0 0
        %3369 = vmatpush1.bf16.msra.mxu0 %v3271
        %3370 = vmatprep.subr.bf16.mxu0 0
        %3371 = vmatpush1.bf16.msra.mxu0 %v3272
        %3372 = vmatprep.subr.bf16.mxu0 0
        %3373 = vmatpush1.bf16.msra.mxu0 %v3273
        %3374 = vmatprep.mubr.bf16.mxu0 %v3097
        %3375 = vmatmul.mubr.bf16.gmra.mrb[0].mxu0 %v3096
        %v3376 = vpop.f32.mrb[0].mxu0
        %v3377 = vadd.f32 %v3184, %v3376
        %v3378 = vpop.f32.mrb[0].mxu0
        %v3379 = vpop.f32.mrb[0].mxu0
        %v3380 = vadd.f32 %v3184, %v3379
        %v3381 = vpop.f32.mrb[0].mxu0
        %3382 = vmatprep.mubr.bf16.mxu0 %v3100
        %3383 = vmatmul.mubr.bf16.gmra.mrb[0].mxu0 %v3099
        %v3384 = vpop.f32.mrb[0].mxu0
        %v3385 = vadd.f32 %v3184, %v3384
        %v3386 = vpop.f32.mrb[0].mxu0
        %v3387 = vpop.f32.mrb[0].mxu0
        %v3388 = vadd.f32 %v3184, %v3387
        %v3389 = vpop.f32.mrb[0].mxu0
        %3390 = vmatprep.mubr.bf16.mxu0 %v3103
        %3391 = vmatmul.mubr.bf16.gmra.mrb[0].mxu0 %v3102
        %v3392 = vpop.f32.mrb[0].mxu0
        %v3393 = vadd.f32 %v3184, %v3392
        %v3394 = vpop.f32.mrb[0].mxu0
        %v3395 = vpop.f32.mrb[0].mxu0
        %v3396 = vadd.f32 %v3184, %v3395
        %v3397 = vpop.f32.mrb[0].mxu0
        %3398 = vmatprep.mubr.bf16.mxu0 %v3106
        %3399 = vmatmul.mubr.bf16.gmra.mrb[0].mxu0 %v3105
        %v3400 = vpop.f32.mrb[0].mxu0
        %v3401 = vadd.f32 %v3184, %v3400
        %v3402 = vpop.f32.mrb[0].mxu0
        %v3403 = vpop.f32.mrb[0].mxu0
        %v3404 = vadd.f32 %v3184, %v3403
        %v3405 = vpop.f32.mrb[0].mxu0
        %3406 = vmatprep.mubr.bf16.mxu0 %v3109
        %3407 = vmatmul.mubr.bf16.gmra.mrb[0].mxu0 %v3108
        %v3408 = vpop.f32.mrb[0].mxu0
        %v3409 = vadd.f32 %v3184, %v3408
        %v3410 = vpop.f32.mrb[0].mxu0
        %v3411 = vpop.f32.mrb[0].mxu0
        %v3412 = vadd.f32 %v3184, %v3411
        %v3413 = vpop.f32.mrb[0].mxu0
        %3414 = vmatprep.mubr.bf16.mxu0 %v3112
        %3415 = vmatmul.mubr.bf16.gmra.mrb[0].mxu0 %v3111
        %v3416 = vpop.f32.mrb[0].mxu0
        %v3417 = vadd.f32 %v3184, %v3416
        %v3418 = vpop.f32.mrb[0].mxu0
        %v3419 = vpop.f32.mrb[0].mxu0
        %v3420 = vadd.f32 %v3184, %v3419
        %v3421 = vpop.f32.mrb[0].mxu0
        %3422 = vmatprep.mubr.bf16.mxu0 %v3115
        %3423 = vmatmul.mubr.bf16.gmra.mrb[0].mxu0 %v3114
        %v3424 = vpop.f32.mrb[0].mxu0
        %v3425 = vadd.f32 %v3184, %v3424
        %v3426 = vpop.f32.mrb[0].mxu0
        %v3427 = vpop.f32.mrb[0].mxu0
        %v3428 = vadd.f32 %v3184, %v3427
        %v3429 = vpop.f32.mrb[0].mxu0
        %3430 = vmatprep.mubr.bf16.mxu0 %v3118
        %3431 = vmatmul.mubr.bf16.gmra.mrb[0].mxu0 %v3117
        %v3432 = vpop.f32.mrb[0].mxu0
        %v3433 = vadd.f32 %v3184, %v3432
        %v3434 = vpop.f32.mrb[0].mxu0
        %v3435 = vpop.f32.mrb[0].mxu0
        %v3436 = vadd.f32 %v3184, %v3435
        %v3437 = vpop.f32.mrb[0].mxu0
        %3438 = vmatprep.mubr.bf16.mxu0 %v3121
        %3439 = vmatmul.mubr.bf16.gmra.mrb[0].mxu0 %v3120
        %v3440 = vpop.f32.mrb[0].mxu0
        %v3441 = vadd.f32 %v3184, %v3440
        %v3442 = vpop.f32.mrb[0].mxu0
        %v3443 = vpop.f32.mrb[0].mxu0
        %v3444 = vadd.f32 %v3184, %v3443
        %v3445 = vpop.f32.mrb[0].mxu0
        %3446 = vmatprep.mubr.bf16.mxu0 %v3124
        %3447 = vmatmul.mubr.bf16.gmra.mrb[0].mxu0 %v3123
        %v3448 = vpop.f32.mrb[0].mxu0
        %v3449 = vadd.f32 %v3184, %v3448
        %v3450 = vpop.f32.mrb[0].mxu0
        %v3451 = vpop.f32.mrb[0].mxu0
        %v3452 = vadd.f32 %v3184, %v3451
        %v3453 = vpop.f32.mrb[0].mxu0
        %3454 = vmatprep.mubr.bf16.mxu0 %v3127
        %3455 = vmatmul.mubr.bf16.gmra.mrb[0].mxu0 %v3126
        %v3456 = vpop.f32.mrb[0].mxu0
        %v3457 = vadd.f32 %v3184, %v3456
        %v3458 = vpop.f32.mrb[0].mxu0
        %v3459 = vpop.f32.mrb[0].mxu0
        %v3460 = vadd.f32 %v3184, %v3459
        %v3461 = vpop.f32.mrb[0].mxu0
        %3462 = vmatprep.mubr.bf16.mxu0 %v3130
        %3463 = vmatmul.mubr.bf16.gmra.mrb[0].mxu0 %v3129
        %v3464 = vpop.f32.mrb[0].mxu0
        %v3465 = vadd.f32 %v3184, %v3464
        %v3466 = vpop.f32.mrb[0].mxu0
        %v3467 = vpop.f32.mrb[0].mxu0
        %v3468 = vadd.f32 %v3184, %v3467
        %v3469 = vpop.f32.mrb[0].mxu0
        %3470 = vmatprep.mubr.bf16.mxu0 %v3133
        %3471 = vmatmul.mubr.bf16.gmra.mrb[0].mxu0 %v3132
        %v3472 = vpop.f32.mrb[0].mxu0
        %v3473 = vadd.f32 %v3184, %v3472
        %v3474 = vpop.f32.mrb[0].mxu0
        %v3475 = vpop.f32.mrb[0].mxu0
        %v3476 = vadd.f32 %v3184, %v3475
        %v3477 = vpop.f32.mrb[0].mxu0
        %3478 = vmatprep.mubr.bf16.mxu0 %v3136
        %3479 = vmatmul.mubr.bf16.gmra.mrb[0].mxu0 %v3135
        %v3480 = vpop.f32.mrb[0].mxu0
        %v3481 = vadd.f32 %v3184, %v3480
        %v3482 = vpop.f32.mrb[0].mxu0
        %v3483 = vpop.f32.mrb[0].mxu0
        %v3484 = vadd.f32 %v3184, %v3483
        %v3485 = vpop.f32.mrb[0].mxu0
        %3486 = vmatprep.mubr.bf16.mxu0 %v3139
        %3487 = vmatmul.mubr.bf16.gmra.mrb[0].mxu0 %v3138
        %v3488 = vpop.f32.mrb[0].mxu0
        %v3489 = vadd.f32 %v3184, %v3488
        %v3490 = vpop.f32.mrb[0].mxu0
        %v3491 = vpop.f32.mrb[0].mxu0
        %v3492 = vadd.f32 %v3184, %v3491
        %v3493 = vpop.f32.mrb[0].mxu0
        %3494 = vmatprep.mubr.bf16.mxu0 %v3142
        %3495 = vmatmul.mubr.bf16.gmra.mrb[0].mxu0 %v3141
        %v3496 = vpop.f32.mrb[0].mxu0
        %v3497 = vadd.f32 %v3184, %v3496
        %v3498 = vpop.f32.mrb[0].mxu0
        %v3499 = vpop.f32.mrb[0].mxu0
        %v3500 = vadd.f32 %v3184, %v3499
        %v3501 = vpop.f32.mrb[0].mxu0
        %3502 = vdwg.mxu0
        %3503 = vmatprep.subr.bf16.mxu0 0
        %3504 = vmatpush1.bf16.msra.mxu0 %v3274
        %3505 = vmatprep.subr.bf16.mxu0 0
        %3506 = vmatpush1.bf16.msra.mxu0 %v3275
        %3507 = vmatprep.subr.bf16.mxu0 0
        %3508 = vmatpush1.bf16.msra.mxu0 0
        %3509 = vmatprep.subr.bf16.mxu0 0
        %3510 = vmatpush1.bf16.msra.mxu0 0
        %3511 = vmatprep.subr.bf16.mxu0 0
        %3512 = vmatpush1.bf16.msra.mxu0 0
        %3513 = vmatprep.subr.bf16.mxu0 0
        %3514 = vmatpush1.bf16.msra.mxu0 0
        %3515 = vmatprep.subr.bf16.mxu0 0
        %3516 = vmatpush1.bf16.msra.mxu0 0
        %3517 = vmatprep.subr.bf16.mxu0 0
        %3518 = vmatpush1.bf16.msra.mxu0 0
        %3519 = vmatprep.subr.bf16.mxu0 0
        %3520 = vmatpush1.bf16.msra.mxu0 0
        %3521 = vmatprep.subr.bf16.mxu0 0
        %3522 = vmatpush1.bf16.msra.mxu0 0
        %3523 = vmatprep.subr.bf16.mxu0 0
        %3524 = vmatpush1.bf16.msra.mxu0 0
        %3525 = vmatprep.subr.bf16.mxu0 0
        %3526 = vmatpush1.bf16.msra.mxu0 0
        %3527 = vmatprep.subr.bf16.mxu0 0
        %3528 = vmatpush1.bf16.msra.mxu0 0
        %3529 = vmatprep.subr.bf16.mxu0 0
        %3530 = vmatpush1.bf16.msra.mxu0 0
        %3531 = vmatprep.subr.bf16.mxu0 0
        %3532 = vmatpush1.bf16.msra.mxu0 0
        %3533 = vmatprep.subr.bf16.mxu0 0
        %3534 = vmatpush1.bf16.msra.mxu0 0
        %3535 = vmatprep.mubr.bf16.mxu0 0
        %3536 = vmatmul.mubr.bf16.gmra.mrb[0].mxu0 %v3295
        %v3537 = vpop.f32.mrb[0].mxu0
        %v3538 = vadd.f32 %v3377, %v3537
        %v3539 = vpop.f32.mrb[0].mxu0
        %v3540 = vpop.f32.mrb[0].mxu0
        %v3541 = vadd.f32 %v3380, %v3540
        %v3542 = vpop.f32.mrb[0].mxu0
        %3543 = vmatprep.mubr.bf16.mxu0 0
        %3544 = vmatmul.mubr.bf16.gmra.mrb[0].mxu0 %v3298
        %v3545 = vpop.f32.mrb[0].mxu0
        %v3546 = vadd.f32 %v3385, %v3545
        %v3547 = vpop.f32.mrb[0].mxu0
        %v3548 = vpop.f32.mrb[0].mxu0
        %v3549 = vadd.f32 %v3388, %v3548
        %v3550 = vpop.f32.mrb[0].mxu0
        %3551 = vmatprep.mubr.bf16.mxu0 0
        %3552 = vmatmul.mubr.bf16.gmra.mrb[0].mxu0 %v3301
        %v3553 = vpop.f32.mrb[0].mxu0
        %v3554 = vadd.f32 %v3393, %v3553
        %v3555 = vpop.f32.mrb[0].mxu0
        %v3556 = vpop.f32.mrb[0].mxu0
        %v3557 = vadd.f32 %v3396, %v3556
        %v3558 = vpop.f32.mrb[0].mxu0
        %3559 = vmatprep.mubr.bf16.mxu0 0
        %3560 = vmatmul.mubr.bf16.gmra.mrb[0].mxu0 %v3304
        %v3561 = vpop.f32.mrb[0].mxu0
        %v3562 = vadd.f32 %v3401, %v3561
        %v3563 = vpop.f32.mrb[0].mxu0
        %v3564 = vpop.f32.mrb[0].mxu0
        %v3565 = vadd.f32 %v3404, %v3564
        %v3566 = vpop.f32.mrb[0].mxu0
        %3567 = vmatprep.mubr.bf16.mxu0 0
        %3568 = vmatmul.mubr.bf16.gmra.mrb[0].mxu0 %v3307
        %v3569 = vpop.f32.mrb[0].mxu0
        %v3570 = vadd.f32 %v3409, %v3569
        %v3571 = vpop.f32.mrb[0].mxu0
        %v3572 = vpop.f32.mrb[0].mxu0
        %v3573 = vadd.f32 %v3412, %v3572
        %v3574 = vpop.f32.mrb[0].mxu0
        %3575 = vmatprep.mubr.bf16.mxu0 0
        %3576 = vmatmul.mubr.bf16.gmra.mrb[0].mxu0 %v3310
        %v3577 = vpop.f32.mrb[0].mxu0
        %v3578 = vadd.f32 %v3417, %v3577
        %v3579 = vpop.f32.mrb[0].mxu0
        %v3580 = vpop.f32.mrb[0].mxu0
        %v3581 = vadd.f32 %v3420, %v3580
        %v3582 = vpop.f32.mrb[0].mxu0
        %3583 = vmatprep.mubr.bf16.mxu0 0
        %3584 = vmatmul.mubr.bf16.gmra.mrb[0].mxu0 %v3313
        %v3585 = vpop.f32.mrb[0].mxu0
        %v3586 = vadd.f32 %v3425, %v3585
        %v3587 = vpop.f32.mrb[0].mxu0
        %v3588 = vpop.f32.mrb[0].mxu0
        %v3589 = vadd.f32 %v3428, %v3588
        %v3590 = vpop.f32.mrb[0].mxu0
        %3591 = vmatprep.mubr.bf16.mxu0 0
        %3592 = vmatmul.mubr.bf16.gmra.mrb[0].mxu0 %v3316
        %v3593 = vpop.f32.mrb[0].mxu0
        %v3594 = vadd.f32 %v3433, %v3593
        %v3595 = vpop.f32.mrb[0].mxu0
        %v3596 = vpop.f32.mrb[0].mxu0
        %v3597 = vadd.f32 %v3436, %v3596
        %v3598 = vpop.f32.mrb[0].mxu0
        %3599 = vmatprep.mubr.bf16.mxu0 0
        %3600 = vmatmul.mubr.bf16.gmra.mrb[0].mxu0 %v3319
        %v3601 = vpop.f32.mrb[0].mxu0
        %v3602 = vadd.f32 %v3441, %v3601
        %v3603 = vpop.f32.mrb[0].mxu0
        %v3604 = vpop.f32.mrb[0].mxu0
        %v3605 = vadd.f32 %v3444, %v3604
        %v3606 = vpop.f32.mrb[0].mxu0
        %3607 = vmatprep.mubr.bf16.mxu0 0
        %3608 = vmatmul.mubr.bf16.gmra.mrb[0].mxu0 %v3322
        %v3609 = vpop.f32.mrb[0].mxu0
        %v3610 = vadd.f32 %v3449, %v3609
        %v3611 = vpop.f32.mrb[0].mxu0
        %v3612 = vpop.f32.mrb[0].mxu0
        %v3613 = vadd.f32 %v3452, %v3612
        %v3614 = vpop.f32.mrb[0].mxu0
        %3615 = vmatprep.mubr.bf16.mxu0 0
        %3616 = vmatmul.mubr.bf16.gmra.mrb[0].mxu0 %v3325
        %v3617 = vpop.f32.mrb[0].mxu0
        %v3618 = vadd.f32 %v3457, %v3617
        %v3619 = vpop.f32.mrb[0].mxu0
        %v3620 = vpop.f32.mrb[0].mxu0
        %v3621 = vadd.f32 %v3460, %v3620
        %v3622 = vpop.f32.mrb[0].mxu0
        %3623 = vmatprep.mubr.bf16.mxu0 0
        %3624 = vmatmul.mubr.bf16.gmra.mrb[0].mxu0 %v3328
        %v3625 = vpop.f32.mrb[0].mxu0
        %v3626 = vadd.f32 %v3465, %v3625
        %v3627 = vpop.f32.mrb[0].mxu0
        %v3628 = vpop.f32.mrb[0].mxu0
        %v3629 = vadd.f32 %v3468, %v3628
        %v3630 = vpop.f32.mrb[0].mxu0
        %3631 = vmatprep.mubr.bf16.mxu0 0
        %3632 = vmatmul.mubr.bf16.gmra.mrb[0].mxu0 %v3331
        %v3633 = vpop.f32.mrb[0].mxu0
        %v3634 = vadd.f32 %v3473, %v3633
        %v3635 = vpop.f32.mrb[0].mxu0
        %v3636 = vpop.f32.mrb[0].mxu0
        %v3637 = vadd.f32 %v3476, %v3636
        %v3638 = vpop.f32.mrb[0].mxu0
        %3639 = vmatprep.mubr.bf16.mxu0 0
        %3640 = vmatmul.mubr.bf16.gmra.mrb[0].mxu0 %v3334
        %v3641 = vpop.f32.mrb[0].mxu0
        %v3642 = vadd.f32 %v3481, %v3641
        %v3643 = vpop.f32.mrb[0].mxu0
        %v3644 = vpop.f32.mrb[0].mxu0
        %v3645 = vadd.f32 %v3484, %v3644
        %v3646 = vpop.f32.mrb[0].mxu0
        %3647 = vmatprep.mubr.bf16.mxu0 0
        %3648 = vmatmul.mubr.bf16.gmra.mrb[0].mxu0 %v3337
        %v3649 = vpop.f32.mrb[0].mxu0
        %v3650 = vadd.f32 %v3489, %v3649
        %v3651 = vpop.f32.mrb[0].mxu0
        %v3652 = vpop.f32.mrb[0].mxu0
        %v3653 = vadd.f32 %v3492, %v3652
        %v3654 = vpop.f32.mrb[0].mxu0
        %3655 = vmatprep.mubr.bf16.mxu0 0
        %3656 = vmatmul.mubr.bf16.gmra.mrb[0].mxu0 %v3340
        %v3657 = vpop.f32.mrb[0].mxu0
        %v3658 = vadd.f32 %v3497, %v3657
        %v3659 = vpop.f32.mrb[0].mxu0
        %v3660 = vpop.f32.mrb[0].mxu0
        %v3661 = vadd.f32 %v3500, %v3660
        %v3662 = vpop.f32.mrb[0].mxu0
        %3663 = vdwg.mxu0
        %v3664 = vld [vmem:[#allocation11] sm:$0x1]
        %v3665 = vld [vmem:[#allocation12] sm:$0x1]
        %vm3666 = vcmask 523264
        %v3667 = vsel %vm3666, %v3538, 0.0
        %v3668 = vsel %vm3666, %v3541, 0.0
        %v3669 = vadd.f32 %v3667, %v3668
        %v3670 = vsel %vm3666, %v3546, 0.0
        %v3671 = vadd.f32 %v3669, %v3670
        %v3672 = vsel %vm3666, %v3549, 0.0
        %v3673 = vadd.f32 %v3671, %v3672
        %v3674 = vsel %vm3666, %v3554, 0.0
        %v3675 = vadd.f32 %v3673, %v3674
        %v3676 = vsel %vm3666, %v3557, 0.0
        %v3677 = vadd.f32 %v3675, %v3676
        %v3678 = vsel %vm3666, %v3562, 0.0
        %v3679 = vadd.f32 %v3677, %v3678
        %v3680 = vsel %vm3666, %v3565, 0.0
        %v3681 = vadd.f32 %v3679, %v3680
        %v3682 = vsel %vm3666, %v3570, 0.0
        %v3683 = vadd.f32 %v3681, %v3682
        %v3684 = vsel %vm3666, %v3573, 0.0
        %v3685 = vadd.f32 %v3683, %v3684
        %v3686 = vsel %vm3666, %v3578, 0.0
        %v3687 = vadd.f32 %v3685, %v3686
        %v3688 = vsel %vm3666, %v3581, 0.0
        %v3689 = vadd.f32 %v3687, %v3688
        %v3690 = vsel %vm3666, %v3586, 0.0
        %v3691 = vadd.f32 %v3689, %v3690
        %v3692 = vsel %vm3666, %v3589, 0.0
        %v3693 = vadd.f32 %v3691, %v3692
        %v3694 = vsel %vm3666, %v3594, 0.0
        %v3695 = vadd.f32 %v3693, %v3694
        %v3696 = vsel %vm3666, %v3597, 0.0
        %v3697 = vadd.f32 %v3695, %v3696
        %v3698 = vsel %vm3666, %v3602, 0.0
        %v3699 = vadd.f32 %v3697, %v3698
        %v3700 = vsel %vm3666, %v3605, 0.0
        %v3701 = vadd.f32 %v3699, %v3700
        %v3702 = vsel %vm3666, %v3610, 0.0
        %v3703 = vadd.f32 %v3701, %v3702
        %v3704 = vsel %vm3666, %v3613, 0.0
        %v3705 = vadd.f32 %v3703, %v3704
        %v3706 = vsel %vm3666, %v3618, 0.0
        %v3707 = vadd.f32 %v3705, %v3706
        %v3708 = vsel %vm3666, %v3621, 0.0
        %v3709 = vadd.f32 %v3707, %v3708
        %v3710 = vsel %vm3666, %v3626, 0.0
        %v3711 = vadd.f32 %v3709, %v3710
        %v3712 = vsel %vm3666, %v3629, 0.0
        %v3713 = vadd.f32 %v3711, %v3712
        %v3714 = vsel %vm3666, %v3634, 0.0
        %v3715 = vadd.f32 %v3713, %v3714
        %v3716 = vsel %vm3666, %v3637, 0.0
        %v3717 = vadd.f32 %v3715, %v3716
        %v3718 = vsel %vm3666, %v3642, 0.0
        %v3719 = vadd.f32 %v3717, %v3718
        %v3720 = vsel %vm3666, %v3645, 0.0
        %v3721 = vadd.f32 %v3719, %v3720
        %v3722 = vsel %vm3666, %v3650, 0.0
        %v3723 = vadd.f32 %v3721, %v3722
        %v3724 = vsel %vm3666, %v3653, 0.0
        %v3725 = vadd.f32 %v3723, %v3724
        %v3726 = vsel %vm3666, %v3658, 0.0
        %v3727 = vadd.f32 %v3725, %v3726
        %v3728 = vsel %vm3666, %v3661, 0.0
        %v3729 = vadd.f32 %v3727, %v3728
        %v3730 = vrot.slane %v3729, 4
        %v3731 = vadd.f32 %v3729, %v3730
        %v3732 = vrot.slane %v3731, 2
        %v3733 = vadd.f32 %v3731, %v3732
        %v3734 = vrot.slane %v3733, 1
        %v3735 = vadd.f32 %v3733, %v3734
        %v3736 = vmul.f32 %v3538, %v3538
        %v3737 = vmul.f32 %v3541, %v3541
        %v3738 = vmul.f32 %v3546, %v3546
        %v3739 = vmul.f32 %v3549, %v3549
        %v3740 = vmul.f32 %v3554, %v3554
        %v3741 = vmul.f32 %v3557, %v3557
        %v3742 = vmul.f32 %v3562, %v3562
        %v3743 = vmul.f32 %v3565, %v3565
        %v3744 = vmul.f32 %v3570, %v3570
        %v3745 = vmul.f32 %v3573, %v3573
        %v3746 = vmul.f32 %v3578, %v3578
        %v3747 = vmul.f32 %v3581, %v3581
        %v3748 = vmul.f32 %v3586, %v3586
        %v3749 = vmul.f32 %v3589, %v3589
        %v3750 = vmul.f32 %v3594, %v3594
        %v3751 = vmul.f32 %v3597, %v3597
        %v3752 = vmul.f32 %v3602, %v3602
        %v3753 = vmul.f32 %v3605, %v3605
        %v3754 = vmul.f32 %v3610, %v3610
        %v3755 = vmul.f32 %v3613, %v3613
        %v3756 = vmul.f32 %v3618, %v3618
        %v3757 = vmul.f32 %v3621, %v3621
        %v3758 = vmul.f32 %v3626, %v3626
        %v3759 = vmul.f32 %v3629, %v3629
        %v3760 = vmul.f32 %v3634, %v3634
        %v3761 = vmul.f32 %v3637, %v3637
        %v3762 = vmul.f32 %v3642, %v3642
        %v3763 = vmul.f32 %v3645, %v3645
        %v3764 = vmul.f32 %v3650, %v3650
        %v3765 = vmul.f32 %v3653, %v3653
        %v3766 = vmul.f32 %v3658, %v3658
        %v3767 = vmul.f32 %v3661, %v3661
        %v3768 = vsel %vm3666, %v3736, 0.0
        %v3769 = vsel %vm3666, %v3737, 0.0
        %v3770 = vadd.f32 %v3768, %v3769
        %v3771 = vsel %vm3666, %v3738, 0.0
        %v3772 = vadd.f32 %v3770, %v3771
        %v3773 = vsel %vm3666, %v3739, 0.0
        %v3774 = vadd.f32 %v3772, %v3773
        %v3775 = vsel %vm3666, %v3740, 0.0
        %v3776 = vadd.f32 %v3774, %v3775
        %v3777 = vsel %vm3666, %v3741, 0.0
        %v3778 = vadd.f32 %v3776, %v3777
        %v3779 = vsel %vm3666, %v3742, 0.0
        %v3780 = vadd.f32 %v3778, %v3779
        %v3781 = vsel %vm3666, %v3743, 0.0
        %v3782 = vadd.f32 %v3780, %v3781
        %v3783 = vsel %vm3666, %v3744, 0.0
        %v3784 = vadd.f32 %v3782, %v3783
        %v3785 = vsel %vm3666, %v3745, 0.0
        %v3786 = vadd.f32 %v3784, %v3785
        %v3787 = vsel %vm3666, %v3746, 0.0
        %v3788 = vadd.f32 %v3786, %v3787
        %v3789 = vsel %vm3666, %v3747, 0.0
        %v3790 = vadd.f32 %v3788, %v3789
        %v3791 = vsel %vm3666, %v3748, 0.0
        %v3792 = vadd.f32 %v3790, %v3791
        %v3793 = vsel %vm3666, %v3749, 0.0
        %v3794 = vadd.f32 %v3792, %v3793
        %v3795 = vsel %vm3666, %v3750, 0.0
        %v3796 = vadd.f32 %v3794, %v3795
        %v3797 = vsel %vm3666, %v3751, 0.0
        %v3798 = vadd.f32 %v3796, %v3797
        %v3799 = vsel %vm3666, %v3752, 0.0
        %v3800 = vadd.f32 %v3798, %v3799
        %v3801 = vsel %vm3666, %v3753, 0.0
        %v3802 = vadd.f32 %v3800, %v3801
        %v3803 = vsel %vm3666, %v3754, 0.0
        %v3804 = vadd.f32 %v3802, %v3803
        %v3805 = vsel %vm3666, %v3755, 0.0
        %v3806 = vadd.f32 %v3804, %v3805
        %v3807 = vsel %vm3666, %v3756, 0.0
        %v3808 = vadd.f32 %v3806, %v3807
        %v3809 = vsel %vm3666, %v3757, 0.0
        %v3810 = vadd.f32 %v3808, %v3809
        %v3811 = vsel %vm3666, %v3758, 0.0
        %v3812 = vadd.f32 %v3810, %v3811
        %v3813 = vsel %vm3666, %v3759, 0.0
        %v3814 = vadd.f32 %v3812, %v3813
        %v3815 = vsel %vm3666, %v3760, 0.0
        %v3816 = vadd.f32 %v3814, %v3815
        %v3817 = vsel %vm3666, %v3761, 0.0
        %v3818 = vadd.f32 %v3816, %v3817
        %v3819 = vsel %vm3666, %v3762, 0.0
        %v3820 = vadd.f32 %v3818, %v3819
        %v3821 = vsel %vm3666, %v3763, 0.0
        %v3822 = vadd.f32 %v3820, %v3821
        %v3823 = vsel %vm3666, %v3764, 0.0
        %v3824 = vadd.f32 %v3822, %v3823
        %v3825 = vsel %vm3666, %v3765, 0.0
        %v3826 = vadd.f32 %v3824, %v3825
        %v3827 = vsel %vm3666, %v3766, 0.0
        %v3828 = vadd.f32 %v3826, %v3827
        %v3829 = vsel %vm3666, %v3767, 0.0
        %v3830 = vadd.f32 %v3828, %v3829
        %v3831 = vrot.slane %v3830, 4
        %v3832 = vadd.f32 %v3830, %v3831
        %v3833 = vrot.slane %v3832, 2
        %v3834 = vadd.f32 %v3832, %v3833
        %v3835 = vrot.slane %v3834, 1
        %v3836 = vadd.f32 %v3834, %v3835
        %v3837 = vld [vmem:[#allocation9] sm:$0xff]
        %v3838 = vld [vmem:[#allocation9 + $0x8] sm:$0xff]
        %v3839 = vld [vmem:[#allocation9 + $0x10] sm:$0xff]
        %v3840 = vld [vmem:[#allocation9 + $0x18] sm:$0xff]
        %v3841 = vld [vmem:[#allocation9 + $0x20] sm:$0xff]
        %v3842 = vld [vmem:[#allocation9 + $0x28] sm:$0xff]
        %v3843 = vld [vmem:[#allocation9 + $0x30] sm:$0xff]
        %v3844 = vld [vmem:[#allocation9 + $0x38] sm:$0xff]
        %v3846 = vsel %vm3666, %v3735, 0
        %3848 = vmatprep.subr.mxu0 0.0
        %v3849 = vand.u32 %v3837, 4294901760
        %3850 = vmatpush1.msra.mxu0 %v3849
        %3851 = vmatprep.subr.mxu0 0.0
        %v3852 = vand.u32 %v3838, 4294901760
        %3853 = vmatpush1.msra.mxu0 %v3852
        %3854 = vmatprep.subr.mxu0 0.0
        %v3855 = vand.u32 %v3839, 4294901760
        %3856 = vmatpush1.msra.mxu0 %v3855
        %3857 = vmatprep.subr.mxu0 0.0
        %v3858 = vand.u32 %v3840, 4294901760
        %3859 = vmatpush1.msra.mxu0 %v3858
        %3860 = vmatprep.subr.mxu0 0.0
        %v3861 = vand.u32 %v3841, 4294901760
        %3862 = vmatpush1.msra.mxu0 %v3861
        %3863 = vmatprep.subr.mxu0 0.0
        %v3864 = vand.u32 %v3842, 4294901760
        %3865 = vmatpush1.msra.mxu0 %v3864
        %3866 = vmatprep.subr.mxu0 0.0
        %v3867 = vand.u32 %v3843, 4294901760
        %3868 = vmatpush1.msra.mxu0 %v3867
        %3869 = vmatprep.subr.mxu0 0.0
        %v3870 = vand.u32 %v3844, 4294901760
        %3871 = vmatpush1.msra.mxu0 %v3870
        %3872 = vmatprep.subr.mxu0 0.0
        %3873 = vmatpush1.msra.mxu0 0.0
        %3874 = vmatprep.subr.mxu0 0.0
        %3875 = vmatpush1.msra.mxu0 0.0
        %3876 = vmatprep.subr.mxu0 0.0
        %3877 = vmatpush1.msra.mxu0 0.0
        %3878 = vmatprep.subr.mxu0 0.0
        %3879 = vmatpush1.msra.mxu0 0.0
        %3880 = vmatprep.subr.mxu0 0.0
        %3881 = vmatpush1.msra.mxu0 0.0
        %3882 = vmatprep.subr.mxu0 0.0
        %3883 = vmatpush1.msra.mxu0 0.0
        %3884 = vmatprep.subr.mxu0 0.0
        %3885 = vmatpush1.msra.mxu0 0.0
        %3886 = vmatprep.subr.mxu0 0.0
        %3887 = vmatpush1.msra.mxu0 0.0
        %3888 = vmatprep.subr.mxu0 0.0
        %3889 = vmatpush1.msra.mxu0 0.0
        %3890 = vmatprep.subr.mxu0 0.0
        %3891 = vmatpush1.msra.mxu0 0.0
        %3892 = vmatprep.subr.mxu0 0.0
        %3893 = vmatpush1.msra.mxu0 0.0
        %3894 = vmatprep.subr.mxu0 0.0
        %3895 = vmatpush1.msra.mxu0 0.0
        %3896 = vmatprep.subr.mxu0 0.0
        %3897 = vmatpush1.msra.mxu0 0.0
        %3898 = vmatprep.subr.mxu0 0.0
        %3899 = vmatpush1.msra.mxu0 0.0
        %3900 = vmatprep.subr.mxu0 0.0
        %3901 = vmatpush1.msra.mxu0 0.0
        %3902 = vmatprep.subr.mxu0 0.0
        %3903 = vmatpush1.msra.mxu0 0.0
        %3904 = vmatprep.subr.mxu0 0.0
        %3905 = vmatpush1.msra.mxu0 0.0
        %3906 = vmatprep.subr.mxu0 0.0
        %3907 = vmatpush1.msra.mxu0 0.0
        %3908 = vmatprep.subr.mxu0 0.0
        %3909 = vmatpush1.msra.mxu0 0.0
        %3910 = vmatprep.subr.mxu0 0.0
        %3911 = vmatpush1.msra.mxu0 0.0
        %3912 = vmatprep.subr.mxu0 0.0
        %3913 = vmatpush1.msra.mxu0 0.0
        %3914 = vmatprep.subr.mxu0 0.0
        %3915 = vmatpush1.msra.mxu0 0.0
        %3916 = vmatprep.subr.mxu0 0.0
        %3917 = vmatpush1.msra.mxu0 0.0
        %3918 = vmatprep.subr.mxu0 0.0
        %3919 = vmatpush1.msra.mxu0 0.0
        %3920 = vmatprep.mubr.f32.mxu0 0.0
        %v3921 = vand.u32 %v3846, 4294901760
        %v3922 = vsub.f32 %v3846, %v3921
        %v3923 = vand.u32 %v3922, 4294901760
        %v3924 = vsub.f32 %v3922, %v3923
        %v3925 = vand.u32 %v3924, 4294901760
        %3926 = vmatmul.mubr.f32.gmra.mrb[0].mxu0 %v3925
        %v3927 = vpop.f32.mrb[0].mxu0
        %v3928 = vadd.f32 0.0, %v3927
        %v3929 = vpop.f32.mrb[0].mxu0
        %3930 = vdwg.mxu0
        %3931 = vmatprep.subr.mxu0 0.0
        %v3932 = vand.u32 %v3837, 4294901760
        %v3933 = vsub.f32 %v3837, %v3932
        %v3934 = vand.u32 %v3933, 4294901760
        %v3935 = vsub.f32 %v3933, %v3934
        %v3936 = vand.u32 %v3935, 4294901760
        %3937 = vmatpush1.msra.mxu0 %v3936
        %3938 = vmatprep.subr.mxu0 0.0
        %v3939 = vand.u32 %v3838, 4294901760
        %v3940 = vsub.f32 %v3838, %v3939
        %v3941 = vand.u32 %v3940, 4294901760
        %v3942 = vsub.f32 %v3940, %v3941
        %v3943 = vand.u32 %v3942, 4294901760
        %3944 = vmatpush1.msra.mxu0 %v3943
        %3945 = vmatprep.subr.mxu0 0.0
        %v3946 = vand.u32 %v3839, 4294901760
        %v3947 = vsub.f32 %v3839, %v3946
        %v3948 = vand.u32 %v3947, 4294901760
        %v3949 = vsub.f32 %v3947, %v3948
        %v3950 = vand.u32 %v3949, 4294901760
        %3951 = vmatpush1.msra.mxu0 %v3950
        %3952 = vmatprep.subr.mxu0 0.0
        %v3953 = vand.u32 %v3840, 4294901760
        %v3954 = vsub.f32 %v3840, %v3953
        %v3955 = vand.u32 %v3954, 4294901760
        %v3956 = vsub.f32 %v3954, %v3955
        %v3957 = vand.u32 %v3956, 4294901760
        %3958 = vmatpush1.msra.mxu0 %v3957
        %3959 = vmatprep.subr.mxu0 0.0
        %v3960 = vand.u32 %v3841, 4294901760
        %v3961 = vsub.f32 %v3841, %v3960
        %v3962 = vand.u32 %v3961, 4294901760
        %v3963 = vsub.f32 %v3961, %v3962
        %v3964 = vand.u32 %v3963, 4294901760
        %3965 = vmatpush1.msra.mxu0 %v3964
        %3966 = vmatprep.subr.mxu0 0.0
        %v3967 = vand.u32 %v3842, 4294901760
        %v3968 = vsub.f32 %v3842, %v3967
        %v3969 = vand.u32 %v3968, 4294901760
        %v3970 = vsub.f32 %v3968, %v3969
        %v3971 = vand.u32 %v3970, 4294901760
        %3972 = vmatpush1.msra.mxu0 %v3971
        %3973 = vmatprep.subr.mxu0 0.0
        %v3974 = vand.u32 %v3843, 4294901760
        %v3975 = vsub.f32 %v3843, %v3974
        %v3976 = vand.u32 %v3975, 4294901760
        %v3977 = vsub.f32 %v3975, %v3976
        %v3978 = vand.u32 %v3977, 4294901760
        %3979 = vmatpush1.msra.mxu0 %v3978
        %3980 = vmatprep.subr.mxu0 0.0
        %v3981 = vand.u32 %v3844, 4294901760
        %v3982 = vsub.f32 %v3844, %v3981
        %v3983 = vand.u32 %v3982, 4294901760
        %v3984 = vsub.f32 %v3982, %v3983
        %v3985 = vand.u32 %v3984, 4294901760
        %3986 = vmatpush1.msra.mxu0 %v3985
        %3987 = vmatprep.subr.mxu0 0.0
        %3988 = vmatpush1.msra.mxu0 0.0
        %3989 = vmatprep.subr.mxu0 0.0
        %3990 = vmatpush1.msra.mxu0 0.0
        %3991 = vmatprep.subr.mxu0 0.0
        %3992 = vmatpush1.msra.mxu0 0.0
        %3993 = vmatprep.subr.mxu0 0.0
        %3994 = vmatpush1.msra.mxu0 0.0
        %3995 = vmatprep.subr.mxu0 0.0
        %3996 = vmatpush1.msra.mxu0 0.0
        %3997 = vmatprep.subr.mxu0 0.0
        %3998 = vmatpush1.msra.mxu0 0.0
        %3999 = vmatprep.subr.mxu0 0.0
        %4000 = vmatpush1.msra.mxu0 0.0
        %4001 = vmatprep.subr.mxu0 0.0
        %4002 = vmatpush1.msra.mxu0 0.0
        %4003 = vmatprep.subr.mxu0 0.0
        %4004 = vmatpush1.msra.mxu0 0.0
        %4005 = vmatprep.subr.mxu0 0.0
        %4006 = vmatpush1.msra.mxu0 0.0
        %4007 = vmatprep.subr.mxu0 0.0
        %4008 = vmatpush1.msra.mxu0 0.0
        %4009 = vmatprep.subr.mxu0 0.0
        %4010 = vmatpush1.msra.mxu0 0.0
        %4011 = vmatprep.subr.mxu0 0.0
        %4012 = vmatpush1.msra.mxu0 0.0
        %4013 = vmatprep.subr.mxu0 0.0
        %4014 = vmatpush1.msra.mxu0 0.0
        %4015 = vmatprep.subr.mxu0 0.0
        %4016 = vmatpush1.msra.mxu0 0.0
        %4017 = vmatprep.subr.mxu0 0.0
        %4018 = vmatpush1.msra.mxu0 0.0
        %4019 = vmatprep.subr.mxu0 0.0
        %4020 = vmatpush1.msra.mxu0 0.0
        %4021 = vmatprep.subr.mxu0 0.0
        %4022 = vmatpush1.msra.mxu0 0.0
        %4023 = vmatprep.subr.mxu0 0.0
        %4024 = vmatpush1.msra.mxu0 0.0
        %4025 = vmatprep.subr.mxu0 0.0
        %4026 = vmatpush1.msra.mxu0 0.0
        %4027 = vmatprep.subr.mxu0 0.0
        %4028 = vmatpush1.msra.mxu0 0.0
        %4029 = vmatprep.subr.mxu0 0.0
        %4030 = vmatpush1.msra.mxu0 0.0
        %4031 = vmatprep.subr.mxu0 0.0
        %4032 = vmatpush1.msra.mxu0 0.0
        %4033 = vmatprep.subr.mxu0 0.0
        %4034 = vmatpush1.msra.mxu0 0.0
        %4035 = vmatprep.mubr.f32.mxu0 0.0
        %v4036 = vand.u32 %v3846, 4294901760
        %4037 = vmatmul.mubr.f32.gmra.mrb[0].mxu0 %v4036
        %v4038 = vpop.f32.mrb[0].mxu0
        %v4039 = vadd.f32 %v3928, %v4038
        %v4040 = vpop.f32.mrb[0].mxu0
        %4041 = vdwg.mxu0
        %4042 = vmatprep.subr.mxu0 0.0
        %v4043 = vand.u32 %v3837, 4294901760
        %v4044 = vsub.f32 %v3837, %v4043
        %4045 = vmatpush1.msra.mxu0 %v4044
        %4046 = vmatprep.subr.mxu0 0.0
        %v4047 = vand.u32 %v3838, 4294901760
        %v4048 = vsub.f32 %v3838, %v4047
        %4049 = vmatpush1.msra.mxu0 %v4048
        %4050 = vmatprep.subr.mxu0 0.0
        %v4051 = vand.u32 %v3839, 4294901760
        %v4052 = vsub.f32 %v3839, %v4051
        %4053 = vmatpush1.msra.mxu0 %v4052
        %4054 = vmatprep.subr.mxu0 0.0
        %v4055 = vand.u32 %v3840, 4294901760
        %v4056 = vsub.f32 %v3840, %v4055
        %4057 = vmatpush1.msra.mxu0 %v4056
        %4058 = vmatprep.subr.mxu0 0.0
        %v4059 = vand.u32 %v3841, 4294901760
        %v4060 = vsub.f32 %v3841, %v4059
        %4061 = vmatpush1.msra.mxu0 %v4060
        %4062 = vmatprep.subr.mxu0 0.0
        %v4063 = vand.u32 %v3842, 4294901760
        %v4064 = vsub.f32 %v3842, %v4063
        %4065 = vmatpush1.msra.mxu0 %v4064
        %4066 = vmatprep.subr.mxu0 0.0
        %v4067 = vand.u32 %v3843, 4294901760
        %v4068 = vsub.f32 %v3843, %v4067
        %4069 = vmatpush1.msra.mxu0 %v4068
        %4070 = vmatprep.subr.mxu0 0.0
        %v4071 = vand.u32 %v3844, 4294901760
        %v4072 = vsub.f32 %v3844, %v4071
        %4073 = vmatpush1.msra.mxu0 %v4072
        %4074 = vmatprep.subr.mxu0 0.0
        %4075 = vmatpush1.msra.mxu0 0.0
        %4076 = vmatprep.subr.mxu0 0.0
        %4077 = vmatpush1.msra.mxu0 0.0
        %4078 = vmatprep.subr.mxu0 0.0
        %4079 = vmatpush1.msra.mxu0 0.0
        %4080 = vmatprep.subr.mxu0 0.0
        %4081 = vmatpush1.msra.mxu0 0.0
        %4082 = vmatprep.subr.mxu0 0.0
        %4083 = vmatpush1.msra.mxu0 0.0
        %4084 = vmatprep.subr.mxu0 0.0
        %4085 = vmatpush1.msra.mxu0 0.0
        %4086 = vmatprep.subr.mxu0 0.0
        %4087 = vmatpush1.msra.mxu0 0.0
        %4088 = vmatprep.subr.mxu0 0.0
        %4089 = vmatpush1.msra.mxu0 0.0
        %4090 = vmatprep.subr.mxu0 0.0
        %4091 = vmatpush1.msra.mxu0 0.0
        %4092 = vmatprep.subr.mxu0 0.0
        %4093 = vmatpush1.msra.mxu0 0.0
        %4094 = vmatprep.subr.mxu0 0.0
        %4095 = vmatpush1.msra.mxu0 0.0
        %4096 = vmatprep.subr.mxu0 0.0
        %4097 = vmatpush1.msra.mxu0 0.0
        %4098 = vmatprep.subr.mxu0 0.0
        %4099 = vmatpush1.msra.mxu0 0.0
        %4100 = vmatprep.subr.mxu0 0.0
        %4101 = vmatpush1.msra.mxu0 0.0
        %4102 = vmatprep.subr.mxu0 0.0
        %4103 = vmatpush1.msra.mxu0 0.0
        %4104 = vmatprep.subr.mxu0 0.0
        %4105 = vmatpush1.msra.mxu0 0.0
        %4106 = vmatprep.subr.mxu0 0.0
        %4107 = vmatpush1.msra.mxu0 0.0
        %4108 = vmatprep.subr.mxu0 0.0
        %4109 = vmatpush1.msra.mxu0 0.0
        %4110 = vmatprep.subr.mxu0 0.0
        %4111 = vmatpush1.msra.mxu0 0.0
        %4112 = vmatprep.subr.mxu0 0.0
        %4113 = vmatpush1.msra.mxu0 0.0
        %4114 = vmatprep.subr.mxu0 0.0
        %4115 = vmatpush1.msra.mxu0 0.0
        %4116 = vmatprep.subr.mxu0 0.0
        %4117 = vmatpush1.msra.mxu0 0.0
        %4118 = vmatprep.subr.mxu0 0.0
        %4119 = vmatpush1.msra.mxu0 0.0
        %4120 = vmatprep.subr.mxu0 0.0
        %4121 = vmatpush1.msra.mxu0 0.0
        %4122 = vmatprep.mubr.f32.mxu0 0.0
        %v4123 = vand.u32 %v3846, 4294901760
        %v4124 = vsub.f32 %v3846, %v4123
        %4125 = vmatmul.mubr.f32.gmra.mrb[0].mxu0 %v4124
        %v4126 = vpop.f32.mrb[0].mxu0
        %v4127 = vadd.f32 %v4039, %v4126
        %v4128 = vpop.f32.mrb[0].mxu0
        %4129 = vdwg.mxu0
        %4130 = vmatprep.subr.mxu0 0.0
        %v4131 = vand.u32 %v3837, 4294901760
        %4132 = vmatpush1.msra.mxu0 %v4131
        %4133 = vmatprep.subr.mxu0 0.0
        %v4134 = vand.u32 %v3838, 4294901760
        %4135 = vmatpush1.msra.mxu0 %v4134
        %4136 = vmatprep.subr.mxu0 0.0
        %v4137 = vand.u32 %v3839, 4294901760
        %4138 = vmatpush1.msra.mxu0 %v4137
        %4139 = vmatprep.subr.mxu0 0.0
        %v4140 = vand.u32 %v3840, 4294901760
        %4141 = vmatpush1.msra.mxu0 %v4140
        %4142 = vmatprep.subr.mxu0 0.0
        %v4143 = vand.u32 %v3841, 4294901760
        %4144 = vmatpush1.msra.mxu0 %v4143
        %4145 = vmatprep.subr.mxu0 0.0
        %v4146 = vand.u32 %v3842, 4294901760
        %4147 = vmatpush1.msra.mxu0 %v4146
        %4148 = vmatprep.subr.mxu0 0.0
        %v4149 = vand.u32 %v3843, 4294901760
        %4150 = vmatpush1.msra.mxu0 %v4149
        %4151 = vmatprep.subr.mxu0 0.0
        %v4152 = vand.u32 %v3844, 4294901760
        %4153 = vmatpush1.msra.mxu0 %v4152
        %4154 = vmatprep.subr.mxu0 0.0
        %4155 = vmatpush1.msra.mxu0 0.0
        %4156 = vmatprep.subr.mxu0 0.0
        %4157 = vmatpush1.msra.mxu0 0.0
        %4158 = vmatprep.subr.mxu0 0.0
        %4159 = vmatpush1.msra.mxu0 0.0
        %4160 = vmatprep.subr.mxu0 0.0
        %4161 = vmatpush1.msra.mxu0 0.0
        %4162 = vmatprep.subr.mxu0 0.0
        %4163 = vmatpush1.msra.mxu0 0.0
        %4164 = vmatprep.subr.mxu0 0.0
        %4165 = vmatpush1.msra.mxu0 0.0
        %4166 = vmatprep.subr.mxu0 0.0
        %4167 = vmatpush1.msra.mxu0 0.0
        %4168 = vmatprep.subr.mxu0 0.0
        %4169 = vmatpush1.msra.mxu0 0.0
        %4170 = vmatprep.subr.mxu0 0.0
        %4171 = vmatpush1.msra.mxu0 0.0
        %4172 = vmatprep.subr.mxu0 0.0
        %4173 = vmatpush1.msra.mxu0 0.0
        %4174 = vmatprep.subr.mxu0 0.0
        %4175 = vmatpush1.msra.mxu0 0.0
        %4176 = vmatprep.subr.mxu0 0.0
        %4177 = vmatpush1.msra.mxu0 0.0
        %4178 = vmatprep.subr.mxu0 0.0
        %4179 = vmatpush1.msra.mxu0 0.0
        %4180 = vmatprep.subr.mxu0 0.0
        %4181 = vmatpush1.msra.mxu0 0.0
        %4182 = vmatprep.subr.mxu0 0.0
        %4183 = vmatpush1.msra.mxu0 0.0
        %4184 = vmatprep.subr.mxu0 0.0
        %4185 = vmatpush1.msra.mxu0 0.0
        %4186 = vmatprep.subr.mxu0 0.0
        %4187 = vmatpush1.msra.mxu0 0.0
        %4188 = vmatprep.subr.mxu0 0.0
        %4189 = vmatpush1.msra.mxu0 0.0
        %4190 = vmatprep.subr.mxu0 0.0
        %4191 = vmatpush1.msra.mxu0 0.0
        %4192 = vmatprep.subr.mxu0 0.0
        %4193 = vmatpush1.msra.mxu0 0.0
        %4194 = vmatprep.subr.mxu0 0.0
        %4195 = vmatpush1.msra.mxu0 0.0
        %4196 = vmatprep.subr.mxu0 0.0
        %4197 = vmatpush1.msra.mxu0 0.0
        %4198 = vmatprep.subr.mxu0 0.0
        %4199 = vmatpush1.msra.mxu0 0.0
        %4200 = vmatprep.subr.mxu0 0.0
        %4201 = vmatpush1.msra.mxu0 0.0
        %4202 = vmatprep.mubr.f32.mxu0 0.0
        %v4203 = vand.u32 %v3846, 4294901760
        %v4204 = vsub.f32 %v3846, %v4203
        %v4205 = vand.u32 %v4204, 4294901760
        %4206 = vmatmul.mubr.f32.gmra.mrb[0].mxu0 %v4205
        %v4207 = vpop.f32.mrb[0].mxu0
        %v4208 = vadd.f32 %v4127, %v4207
        %v4209 = vpop.f32.mrb[0].mxu0
        %4210 = vdwg.mxu0
        %4211 = vmatprep.subr.mxu0 0.0
        %v4212 = vand.u32 %v3837, 4294901760
        %v4213 = vsub.f32 %v3837, %v4212
        %v4214 = vand.u32 %v4213, 4294901760
        %4215 = vmatpush1.msra.mxu0 %v4214
        %4216 = vmatprep.subr.mxu0 0.0
        %v4217 = vand.u32 %v3838, 4294901760
        %v4218 = vsub.f32 %v3838, %v4217
        %v4219 = vand.u32 %v4218, 4294901760
        %4220 = vmatpush1.msra.mxu0 %v4219
        %4221 = vmatprep.subr.mxu0 0.0
        %v4222 = vand.u32 %v3839, 4294901760
        %v4223 = vsub.f32 %v3839, %v4222
        %v4224 = vand.u32 %v4223, 4294901760
        %4225 = vmatpush1.msra.mxu0 %v4224
        %4226 = vmatprep.subr.mxu0 0.0
        %v4227 = vand.u32 %v3840, 4294901760
        %v4228 = vsub.f32 %v3840, %v4227
        %v4229 = vand.u32 %v4228, 4294901760
        %4230 = vmatpush1.msra.mxu0 %v4229
        %4231 = vmatprep.subr.mxu0 0.0
        %v4232 = vand.u32 %v3841, 4294901760
        %v4233 = vsub.f32 %v3841, %v4232
        %v4234 = vand.u32 %v4233, 4294901760
        %4235 = vmatpush1.msra.mxu0 %v4234
        %4236 = vmatprep.subr.mxu0 0.0
        %v4237 = vand.u32 %v3842, 4294901760
        %v4238 = vsub.f32 %v3842, %v4237
        %v4239 = vand.u32 %v4238, 4294901760
        %4240 = vmatpush1.msra.mxu0 %v4239
        %4241 = vmatprep.subr.mxu0 0.0
        %v4242 = vand.u32 %v3843, 4294901760
        %v4243 = vsub.f32 %v3843, %v4242
        %v4244 = vand.u32 %v4243, 4294901760
        %4245 = vmatpush1.msra.mxu0 %v4244
        %4246 = vmatprep.subr.mxu0 0.0
        %v4247 = vand.u32 %v3844, 4294901760
        %v4248 = vsub.f32 %v3844, %v4247
        %v4249 = vand.u32 %v4248, 4294901760
        %4250 = vmatpush1.msra.mxu0 %v4249
        %4251 = vmatprep.subr.mxu0 0.0
        %4252 = vmatpush1.msra.mxu0 0.0
        %4253 = vmatprep.subr.mxu0 0.0
        %4254 = vmatpush1.msra.mxu0 0.0
        %4255 = vmatprep.subr.mxu0 0.0
        %4256 = vmatpush1.msra.mxu0 0.0
        %4257 = vmatprep.subr.mxu0 0.0
        %4258 = vmatpush1.msra.mxu0 0.0
        %4259 = vmatprep.subr.mxu0 0.0
        %4260 = vmatpush1.msra.mxu0 0.0
        %4261 = vmatprep.subr.mxu0 0.0
        %4262 = vmatpush1.msra.mxu0 0.0
        %4263 = vmatprep.subr.mxu0 0.0
        %4264 = vmatpush1.msra.mxu0 0.0
        %4265 = vmatprep.subr.mxu0 0.0
        %4266 = vmatpush1.msra.mxu0 0.0
        %4267 = vmatprep.subr.mxu0 0.0
        %4268 = vmatpush1.msra.mxu0 0.0
        %4269 = vmatprep.subr.mxu0 0.0
        %4270 = vmatpush1.msra.mxu0 0.0
        %4271 = vmatprep.subr.mxu0 0.0
        %4272 = vmatpush1.msra.mxu0 0.0
        %4273 = vmatprep.subr.mxu0 0.0
        %4274 = vmatpush1.msra.mxu0 0.0
        %4275 = vmatprep.subr.mxu0 0.0
        %4276 = vmatpush1.msra.mxu0 0.0
        %4277 = vmatprep.subr.mxu0 0.0
        %4278 = vmatpush1.msra.mxu0 0.0
        %4279 = vmatprep.subr.mxu0 0.0
        %4280 = vmatpush1.msra.mxu0 0.0
        %4281 = vmatprep.subr.mxu0 0.0
        %4282 = vmatpush1.msra.mxu0 0.0
        %4283 = vmatprep.subr.mxu0 0.0
        %4284 = vmatpush1.msra.mxu0 0.0
        %4285 = vmatprep.subr.mxu0 0.0
        %4286 = vmatpush1.msra.mxu0 0.0
        %4287 = vmatprep.subr.mxu0 0.0
        %4288 = vmatpush1.msra.mxu0 0.0
        %4289 = vmatprep.subr.mxu0 0.0
        %4290 = vmatpush1.msra.mxu0 0.0
        %4291 = vmatprep.subr.mxu0 0.0
        %4292 = vmatpush1.msra.mxu0 0.0
        %4293 = vmatprep.subr.mxu0 0.0
        %4294 = vmatpush1.msra.mxu0 0.0
        %4295 = vmatprep.subr.mxu0 0.0
        %4296 = vmatpush1.msra.mxu0 0.0
        %4297 = vmatprep.subr.mxu0 0.0
        %4298 = vmatpush1.msra.mxu0 0.0
        %4299 = vmatprep.mubr.f32.mxu0 0.0
        %v4300 = vand.u32 %v3846, 4294901760
        %4301 = vmatmul.mubr.f32.gmra.mrb[0].mxu0 %v4300
        %v4302 = vpop.f32.mrb[0].mxu0
        %v4303 = vadd.f32 %v4208, %v4302
        %v4304 = vpop.f32.mrb[0].mxu0
        %4305 = vdwg.mxu0
        %4306 = vmatprep.subr.mxu0 0.0
        %v4307 = vand.u32 %v3837, 4294901760
        %4308 = vmatpush1.msra.mxu0 %v4307
        %4309 = vmatprep.subr.mxu0 0.0
        %v4310 = vand.u32 %v3838, 4294901760
        %4311 = vmatpush1.msra.mxu0 %v4310
        %4312 = vmatprep.subr.mxu0 0.0
        %v4313 = vand.u32 %v3839, 4294901760
        %4314 = vmatpush1.msra.mxu0 %v4313
        %4315 = vmatprep.subr.mxu0 0.0
        %v4316 = vand.u32 %v3840, 4294901760
        %4317 = vmatpush1.msra.mxu0 %v4316
        %4318 = vmatprep.subr.mxu0 0.0
        %v4319 = vand.u32 %v3841, 4294901760
        %4320 = vmatpush1.msra.mxu0 %v4319
        %4321 = vmatprep.subr.mxu0 0.0
        %v4322 = vand.u32 %v3842, 4294901760
        %4323 = vmatpush1.msra.mxu0 %v4322
        %4324 = vmatprep.subr.mxu0 0.0
        %v4325 = vand.u32 %v3843, 4294901760
        %4326 = vmatpush1.msra.mxu0 %v4325
        %4327 = vmatprep.subr.mxu0 0.0
        %v4328 = vand.u32 %v3844, 4294901760
        %4329 = vmatpush1.msra.mxu0 %v4328
        %4330 = vmatprep.subr.mxu0 0.0
        %4331 = vmatpush1.msra.mxu0 0.0
        %4332 = vmatprep.subr.mxu0 0.0
        %4333 = vmatpush1.msra.mxu0 0.0
        %4334 = vmatprep.subr.mxu0 0.0
        %4335 = vmatpush1.msra.mxu0 0.0
        %4336 = vmatprep.subr.mxu0 0.0
        %4337 = vmatpush1.msra.mxu0 0.0
        %4338 = vmatprep.subr.mxu0 0.0
        %4339 = vmatpush1.msra.mxu0 0.0
        %4340 = vmatprep.subr.mxu0 0.0
        %4341 = vmatpush1.msra.mxu0 0.0
        %4342 = vmatprep.subr.mxu0 0.0
        %4343 = vmatpush1.msra.mxu0 0.0
        %4344 = vmatprep.subr.mxu0 0.0
        %4345 = vmatpush1.msra.mxu0 0.0
        %4346 = vmatprep.subr.mxu0 0.0
        %4347 = vmatpush1.msra.mxu0 0.0
        %4348 = vmatprep.subr.mxu0 0.0
        %4349 = vmatpush1.msra.mxu0 0.0
        %4350 = vmatprep.subr.mxu0 0.0
        %4351 = vmatpush1.msra.mxu0 0.0
        %4352 = vmatprep.subr.mxu0 0.0
        %4353 = vmatpush1.msra.mxu0 0.0
        %4354 = vmatprep.subr.mxu0 0.0
        %4355 = vmatpush1.msra.mxu0 0.0
        %4356 = vmatprep.subr.mxu0 0.0
        %4357 = vmatpush1.msra.mxu0 0.0
        %4358 = vmatprep.subr.mxu0 0.0
        %4359 = vmatpush1.msra.mxu0 0.0
        %4360 = vmatprep.subr.mxu0 0.0
        %4361 = vmatpush1.msra.mxu0 0.0
        %4362 = vmatprep.subr.mxu0 0.0
        %4363 = vmatpush1.msra.mxu0 0.0
        %4364 = vmatprep.subr.mxu0 0.0
        %4365 = vmatpush1.msra.mxu0 0.0
        %4366 = vmatprep.subr.mxu0 0.0
        %4367 = vmatpush1.msra.mxu0 0.0
        %4368 = vmatprep.subr.mxu0 0.0
        %4369 = vmatpush1.msra.mxu0 0.0
        %4370 = vmatprep.subr.mxu0 0.0
        %4371 = vmatpush1.msra.mxu0 0.0
        %4372 = vmatprep.subr.mxu0 0.0
        %4373 = vmatpush1.msra.mxu0 0.0
        %4374 = vmatprep.subr.mxu0 0.0
        %4375 = vmatpush1.msra.mxu0 0.0
        %4376 = vmatprep.subr.mxu0 0.0
        %4377 = vmatpush1.msra.mxu0 0.0
        %4378 = vmatprep.mubr.f32.mxu0 0.0
        %v4379 = vand.u32 %v3846, 4294901760
        %4380 = vmatmul.mubr.f32.gmra.mrb[0].mxu0 %v4379
        %v4381 = vpop.f32.mrb[0].mxu0
        %v4382 = vadd.f32 %v4303, %v4381
        %v4383 = vpop.f32.mrb[0].mxu0
        %4384 = vdwg.mxu0
        %v4386 = vsel %vm3666, %v3836, 0
        %4388 = vmatprep.subr.mxu0 0.0
        %v4389 = vand.u32 %v3837, 4294901760
        %4390 = vmatpush1.msra.mxu0 %v4389
        %4391 = vmatprep.subr.mxu0 0.0
        %v4392 = vand.u32 %v3838, 4294901760
        %4393 = vmatpush1.msra.mxu0 %v4392
        %4394 = vmatprep.subr.mxu0 0.0
        %v4395 = vand.u32 %v3839, 4294901760
        %4396 = vmatpush1.msra.mxu0 %v4395
        %4397 = vmatprep.subr.mxu0 0.0
        %v4398 = vand.u32 %v3840, 4294901760
        %4399 = vmatpush1.msra.mxu0 %v4398
        %4400 = vmatprep.subr.mxu0 0.0
        %v4401 = vand.u32 %v3841, 4294901760
        %4402 = vmatpush1.msra.mxu0 %v4401
        %4403 = vmatprep.subr.mxu0 0.0
        %v4404 = vand.u32 %v3842, 4294901760
        %4405 = vmatpush1.msra.mxu0 %v4404
        %4406 = vmatprep.subr.mxu0 0.0
        %v4407 = vand.u32 %v3843, 4294901760
        %4408 = vmatpush1.msra.mxu0 %v4407
        %4409 = vmatprep.subr.mxu0 0.0
        %v4410 = vand.u32 %v3844, 4294901760
        %4411 = vmatpush1.msra.mxu0 %v4410
        %4412 = vmatprep.subr.mxu0 0.0
        %4413 = vmatpush1.msra.mxu0 0.0
        %4414 = vmatprep.subr.mxu0 0.0
        %4415 = vmatpush1.msra.mxu0 0.0
        %4416 = vmatprep.subr.mxu0 0.0
        %4417 = vmatpush1.msra.mxu0 0.0
        %4418 = vmatprep.subr.mxu0 0.0
        %4419 = vmatpush1.msra.mxu0 0.0
        %4420 = vmatprep.subr.mxu0 0.0
        %4421 = vmatpush1.msra.mxu0 0.0
        %4422 = vmatprep.subr.mxu0 0.0
        %4423 = vmatpush1.msra.mxu0 0.0
        %4424 = vmatprep.subr.mxu0 0.0
        %4425 = vmatpush1.msra.mxu0 0.0
        %4426 = vmatprep.subr.mxu0 0.0
        %4427 = vmatpush1.msra.mxu0 0.0
        %4428 = vmatprep.subr.mxu0 0.0
        %4429 = vmatpush1.msra.mxu0 0.0
        %4430 = vmatprep.subr.mxu0 0.0
        %4431 = vmatpush1.msra.mxu0 0.0
        %4432 = vmatprep.subr.mxu0 0.0
        %4433 = vmatpush1.msra.mxu0 0.0
        %4434 = vmatprep.subr.mxu0 0.0
        %4435 = vmatpush1.msra.mxu0 0.0
        %4436 = vmatprep.subr.mxu0 0.0
        %4437 = vmatpush1.msra.mxu0 0.0
        %4438 = vmatprep.subr.mxu0 0.0
        %4439 = vmatpush1.msra.mxu0 0.0
        %4440 = vmatprep.subr.mxu0 0.0
        %4441 = vmatpush1.msra.mxu0 0.0
        %4442 = vmatprep.subr.mxu0 0.0
        %4443 = vmatpush1.msra.mxu0 0.0
        %4444 = vmatprep.subr.mxu0 0.0
        %4445 = vmatpush1.msra.mxu0 0.0
        %4446 = vmatprep.subr.mxu0 0.0
        %4447 = vmatpush1.msra.mxu0 0.0
        %4448 = vmatprep.subr.mxu0 0.0
        %4449 = vmatpush1.msra.mxu0 0.0
        %4450 = vmatprep.subr.mxu0 0.0
        %4451 = vmatpush1.msra.mxu0 0.0
        %4452 = vmatprep.subr.mxu0 0.0
        %4453 = vmatpush1.msra.mxu0 0.0
        %4454 = vmatprep.subr.mxu0 0.0
        %4455 = vmatpush1.msra.mxu0 0.0
        %4456 = vmatprep.subr.mxu0 0.0
        %4457 = vmatpush1.msra.mxu0 0.0
        %4458 = vmatprep.subr.mxu0 0.0
        %4459 = vmatpush1.msra.mxu0 0.0
        %4460 = vmatprep.mubr.f32.mxu0 0.0
        %v4461 = vand.u32 %v4386, 4294901760
        %v4462 = vsub.f32 %v4386, %v4461
        %v4463 = vand.u32 %v4462, 4294901760
        %v4464 = vsub.f32 %v4462, %v4463
        %v4465 = vand.u32 %v4464, 4294901760
        %4466 = vmatmul.mubr.f32.gmra.mrb[0].mxu0 %v4465
        %v4467 = vpop.f32.mrb[0].mxu0
        %v4468 = vadd.f32 0.0, %v4467
        %v4469 = vpop.f32.mrb[0].mxu0
        %4470 = vdwg.mxu0
        %4471 = vmatprep.subr.mxu0 0.0
        %v4472 = vand.u32 %v3837, 4294901760
        %v4473 = vsub.f32 %v3837, %v4472
        %v4474 = vand.u32 %v4473, 4294901760
        %v4475 = vsub.f32 %v4473, %v4474
        %v4476 = vand.u32 %v4475, 4294901760
        %4477 = vmatpush1.msra.mxu0 %v4476
        %4478 = vmatprep.subr.mxu0 0.0
        %v4479 = vand.u32 %v3838, 4294901760
        %v4480 = vsub.f32 %v3838, %v4479
        %v4481 = vand.u32 %v4480, 4294901760
        %v4482 = vsub.f32 %v4480, %v4481
        %v4483 = vand.u32 %v4482, 4294901760
        %4484 = vmatpush1.msra.mxu0 %v4483
        %4485 = vmatprep.subr.mxu0 0.0
        %v4486 = vand.u32 %v3839, 4294901760
        %v4487 = vsub.f32 %v3839, %v4486
        %v4488 = vand.u32 %v4487, 4294901760
        %v4489 = vsub.f32 %v4487, %v4488
        %v4490 = vand.u32 %v4489, 4294901760
        %4491 = vmatpush1.msra.mxu0 %v4490
        %4492 = vmatprep.subr.mxu0 0.0
        %v4493 = vand.u32 %v3840, 4294901760
        %v4494 = vsub.f32 %v3840, %v4493
        %v4495 = vand.u32 %v4494, 4294901760
        %v4496 = vsub.f32 %v4494, %v4495
        %v4497 = vand.u32 %v4496, 4294901760
        %4498 = vmatpush1.msra.mxu0 %v4497
        %4499 = vmatprep.subr.mxu0 0.0
        %v4500 = vand.u32 %v3841, 4294901760
        %v4501 = vsub.f32 %v3841, %v4500
        %v4502 = vand.u32 %v4501, 4294901760
        %v4503 = vsub.f32 %v4501, %v4502
        %v4504 = vand.u32 %v4503, 4294901760
        %4505 = vmatpush1.msra.mxu0 %v4504
        %4506 = vmatprep.subr.mxu0 0.0
        %v4507 = vand.u32 %v3842, 4294901760
        %v4508 = vsub.f32 %v3842, %v4507
        %v4509 = vand.u32 %v4508, 4294901760
        %v4510 = vsub.f32 %v4508, %v4509
        %v4511 = vand.u32 %v4510, 4294901760
        %4512 = vmatpush1.msra.mxu0 %v4511
        %4513 = vmatprep.subr.mxu0 0.0
        %v4514 = vand.u32 %v3843, 4294901760
        %v4515 = vsub.f32 %v3843, %v4514
        %v4516 = vand.u32 %v4515, 4294901760
        %v4517 = vsub.f32 %v4515, %v4516
        %v4518 = vand.u32 %v4517, 4294901760
        %4519 = vmatpush1.msra.mxu0 %v4518
        %4520 = vmatprep.subr.mxu0 0.0
        %v4521 = vand.u32 %v3844, 4294901760
        %v4522 = vsub.f32 %v3844, %v4521
        %v4523 = vand.u32 %v4522, 4294901760
        %v4524 = vsub.f32 %v4522, %v4523
        %v4525 = vand.u32 %v4524, 4294901760
        %4526 = vmatpush1.msra.mxu0 %v4525
        %4527 = vmatprep.subr.mxu0 0.0
        %4528 = vmatpush1.msra.mxu0 0.0
        %4529 = vmatprep.subr.mxu0 0.0
        %4530 = vmatpush1.msra.mxu0 0.0
        %4531 = vmatprep.subr.mxu0 0.0
        %4532 = vmatpush1.msra.mxu0 0.0
        %4533 = vmatprep.subr.mxu0 0.0
        %4534 = vmatpush1.msra.mxu0 0.0
        %4535 = vmatprep.subr.mxu0 0.0
        %4536 = vmatpush1.msra.mxu0 0.0
        %4537 = vmatprep.subr.mxu0 0.0
        %4538 = vmatpush1.msra.mxu0 0.0
        %4539 = vmatprep.subr.mxu0 0.0
        %4540 = vmatpush1.msra.mxu0 0.0
        %4541 = vmatprep.subr.mxu0 0.0
        %4542 = vmatpush1.msra.mxu0 0.0
        %4543 = vmatprep.subr.mxu0 0.0
        %4544 = vmatpush1.msra.mxu0 0.0
        %4545 = vmatprep.subr.mxu0 0.0
        %4546 = vmatpush1.msra.mxu0 0.0
        %4547 = vmatprep.subr.mxu0 0.0
        %4548 = vmatpush1.msra.mxu0 0.0
        %4549 = vmatprep.subr.mxu0 0.0
        %4550 = vmatpush1.msra.mxu0 0.0
        %4551 = vmatprep.subr.mxu0 0.0
        %4552 = vmatpush1.msra.mxu0 0.0
        %4553 = vmatprep.subr.mxu0 0.0
        %4554 = vmatpush1.msra.mxu0 0.0
        %4555 = vmatprep.subr.mxu0 0.0
        %4556 = vmatpush1.msra.mxu0 0.0
        %4557 = vmatprep.subr.mxu0 0.0
        %4558 = vmatpush1.msra.mxu0 0.0
        %4559 = vmatprep.subr.mxu0 0.0
        %4560 = vmatpush1.msra.mxu0 0.0
        %4561 = vmatprep.subr.mxu0 0.0
        %4562 = vmatpush1.msra.mxu0 0.0
        %4563 = vmatprep.subr.mxu0 0.0
        %4564 = vmatpush1.msra.mxu0 0.0
        %4565 = vmatprep.subr.mxu0 0.0
        %4566 = vmatpush1.msra.mxu0 0.0
        %4567 = vmatprep.subr.mxu0 0.0
        %4568 = vmatpush1.msra.mxu0 0.0
        %4569 = vmatprep.subr.mxu0 0.0
        %4570 = vmatpush1.msra.mxu0 0.0
        %4571 = vmatprep.subr.mxu0 0.0
        %4572 = vmatpush1.msra.mxu0 0.0
        %4573 = vmatprep.subr.mxu0 0.0
        %4574 = vmatpush1.msra.mxu0 0.0
        %4575 = vmatprep.mubr.f32.mxu0 0.0
        %v4576 = vand.u32 %v4386, 4294901760
        %4577 = vmatmul.mubr.f32.gmra.mrb[0].mxu0 %v4576
        %v4578 = vpop.f32.mrb[0].mxu0
        %v4579 = vadd.f32 %v4468, %v4578
        %v4580 = vpop.f32.mrb[0].mxu0
        %4581 = vdwg.mxu0
        %4582 = vmatprep.subr.mxu0 0.0
        %v4583 = vand.u32 %v3837, 4294901760
        %v4584 = vsub.f32 %v3837, %v4583
        %4585 = vmatpush1.msra.mxu0 %v4584
        %4586 = vmatprep.subr.mxu0 0.0
        %v4587 = vand.u32 %v3838, 4294901760
        %v4588 = vsub.f32 %v3838, %v4587
        %4589 = vmatpush1.msra.mxu0 %v4588
        %4590 = vmatprep.subr.mxu0 0.0
        %v4591 = vand.u32 %v3839, 4294901760
        %v4592 = vsub.f32 %v3839, %v4591
        %4593 = vmatpush1.msra.mxu0 %v4592
        %4594 = vmatprep.subr.mxu0 0.0
        %v4595 = vand.u32 %v3840, 4294901760
        %v4596 = vsub.f32 %v3840, %v4595
        %4597 = vmatpush1.msra.mxu0 %v4596
        %4598 = vmatprep.subr.mxu0 0.0
        %v4599 = vand.u32 %v3841, 4294901760
        %v4600 = vsub.f32 %v3841, %v4599
        %4601 = vmatpush1.msra.mxu0 %v4600
        %4602 = vmatprep.subr.mxu0 0.0
        %v4603 = vand.u32 %v3842, 4294901760
        %v4604 = vsub.f32 %v3842, %v4603
        %4605 = vmatpush1.msra.mxu0 %v4604
        %4606 = vmatprep.subr.mxu0 0.0
        %v4607 = vand.u32 %v3843, 4294901760
        %v4608 = vsub.f32 %v3843, %v4607
        %4609 = vmatpush1.msra.mxu0 %v4608
        %4610 = vmatprep.subr.mxu0 0.0
        %v4611 = vand.u32 %v3844, 4294901760
        %v4612 = vsub.f32 %v3844, %v4611
        %4613 = vmatpush1.msra.mxu0 %v4612
        %4614 = vmatprep.subr.mxu0 0.0
        %4615 = vmatpush1.msra.mxu0 0.0
        %4616 = vmatprep.subr.mxu0 0.0
        %4617 = vmatpush1.msra.mxu0 0.0
        %4618 = vmatprep.subr.mxu0 0.0
        %4619 = vmatpush1.msra.mxu0 0.0
        %4620 = vmatprep.subr.mxu0 0.0
        %4621 = vmatpush1.msra.mxu0 0.0
        %4622 = vmatprep.subr.mxu0 0.0
        %4623 = vmatpush1.msra.mxu0 0.0
        %4624 = vmatprep.subr.mxu0 0.0
        %4625 = vmatpush1.msra.mxu0 0.0
        %4626 = vmatprep.subr.mxu0 0.0
        %4627 = vmatpush1.msra.mxu0 0.0
        %4628 = vmatprep.subr.mxu0 0.0
        %4629 = vmatpush1.msra.mxu0 0.0
        %4630 = vmatprep.subr.mxu0 0.0
        %4631 = vmatpush1.msra.mxu0 0.0
        %4632 = vmatprep.subr.mxu0 0.0
        %4633 = vmatpush1.msra.mxu0 0.0
        %4634 = vmatprep.subr.mxu0 0.0
        %4635 = vmatpush1.msra.mxu0 0.0
        %4636 = vmatprep.subr.mxu0 0.0
        %4637 = vmatpush1.msra.mxu0 0.0
        %4638 = vmatprep.subr.mxu0 0.0
        %4639 = vmatpush1.msra.mxu0 0.0
        %4640 = vmatprep.subr.mxu0 0.0
        %4641 = vmatpush1.msra.mxu0 0.0
        %4642 = vmatprep.subr.mxu0 0.0
        %4643 = vmatpush1.msra.mxu0 0.0
        %4644 = vmatprep.subr.mxu0 0.0
        %4645 = vmatpush1.msra.mxu0 0.0
        %4646 = vmatprep.subr.mxu0 0.0
        %4647 = vmatpush1.msra.mxu0 0.0
        %4648 = vmatprep.subr.mxu0 0.0
        %4649 = vmatpush1.msra.mxu0 0.0
        %4650 = vmatprep.subr.mxu0 0.0
        %4651 = vmatpush1.msra.mxu0 0.0
        %4652 = vmatprep.subr.mxu0 0.0
        %4653 = vmatpush1.msra.mxu0 0.0
        %4654 = vmatprep.subr.mxu0 0.0
        %4655 = vmatpush1.msra.mxu0 0.0
        %4656 = vmatprep.subr.mxu0 0.0
        %4657 = vmatpush1.msra.mxu0 0.0
        %4658 = vmatprep.subr.mxu0 0.0
        %4659 = vmatpush1.msra.mxu0 0.0
        %4660 = vmatprep.subr.mxu0 0.0
        %4661 = vmatpush1.msra.mxu0 0.0
        %4662 = vmatprep.mubr.f32.mxu0 0.0
        %v4663 = vand.u32 %v4386, 4294901760
        %v4664 = vsub.f32 %v4386, %v4663
        %4665 = vmatmul.mubr.f32.gmra.mrb[0].mxu0 %v4664
        %v4666 = vpop.f32.mrb[0].mxu0
        %v4667 = vadd.f32 %v4579, %v4666
        %v4668 = vpop.f32.mrb[0].mxu0
        %4669 = vdwg.mxu0
        %4670 = vmatprep.subr.mxu0 0.0
        %v4671 = vand.u32 %v3837, 4294901760
        %4672 = vmatpush1.msra.mxu0 %v4671
        %4673 = vmatprep.subr.mxu0 0.0
        %v4674 = vand.u32 %v3838, 4294901760
        %4675 = vmatpush1.msra.mxu0 %v4674
        %4676 = vmatprep.subr.mxu0 0.0
        %v4677 = vand.u32 %v3839, 4294901760
        %4678 = vmatpush1.msra.mxu0 %v4677
        %4679 = vmatprep.subr.mxu0 0.0
        %v4680 = vand.u32 %v3840, 4294901760
        %4681 = vmatpush1.msra.mxu0 %v4680
        %4682 = vmatprep.subr.mxu0 0.0
        %v4683 = vand.u32 %v3841, 4294901760
        %4684 = vmatpush1.msra.mxu0 %v4683
        %4685 = vmatprep.subr.mxu0 0.0
        %v4686 = vand.u32 %v3842, 4294901760
        %4687 = vmatpush1.msra.mxu0 %v4686
        %4688 = vmatprep.subr.mxu0 0.0
        %v4689 = vand.u32 %v3843, 4294901760
        %4690 = vmatpush1.msra.mxu0 %v4689
        %4691 = vmatprep.subr.mxu0 0.0
        %v4692 = vand.u32 %v3844, 4294901760
        %4693 = vmatpush1.msra.mxu0 %v4692
        %4694 = vmatprep.subr.mxu0 0.0
        %4695 = vmatpush1.msra.mxu0 0.0
        %4696 = vmatprep.subr.mxu0 0.0
        %4697 = vmatpush1.msra.mxu0 0.0
        %4698 = vmatprep.subr.mxu0 0.0
        %4699 = vmatpush1.msra.mxu0 0.0
        %4700 = vmatprep.subr.mxu0 0.0
        %4701 = vmatpush1.msra.mxu0 0.0
        %4702 = vmatprep.subr.mxu0 0.0
        %4703 = vmatpush1.msra.mxu0 0.0
        %4704 = vmatprep.subr.mxu0 0.0
        %4705 = vmatpush1.msra.mxu0 0.0
        %4706 = vmatprep.subr.mxu0 0.0
        %4707 = vmatpush1.msra.mxu0 0.0
        %4708 = vmatprep.subr.mxu0 0.0
        %4709 = vmatpush1.msra.mxu0 0.0
        %4710 = vmatprep.subr.mxu0 0.0
        %4711 = vmatpush1.msra.mxu0 0.0
        %4712 = vmatprep.subr.mxu0 0.0
        %4713 = vmatpush1.msra.mxu0 0.0
        %4714 = vmatprep.subr.mxu0 0.0
        %4715 = vmatpush1.msra.mxu0 0.0
        %4716 = vmatprep.subr.mxu0 0.0
        %4717 = vmatpush1.msra.mxu0 0.0
        %4718 = vmatprep.subr.mxu0 0.0
        %4719 = vmatpush1.msra.mxu0 0.0
        %4720 = vmatprep.subr.mxu0 0.0
        %4721 = vmatpush1.msra.mxu0 0.0
        %4722 = vmatprep.subr.mxu0 0.0
        %4723 = vmatpush1.msra.mxu0 0.0
        %4724 = vmatprep.subr.mxu0 0.0
        %4725 = vmatpush1.msra.mxu0 0.0
        %4726 = vmatprep.subr.mxu0 0.0
        %4727 = vmatpush1.msra.mxu0 0.0
        %4728 = vmatprep.subr.mxu0 0.0
        %4729 = vmatpush1.msra.mxu0 0.0
        %4730 = vmatprep.subr.mxu0 0.0
        %4731 = vmatpush1.msra.mxu0 0.0
        %4732 = vmatprep.subr.mxu0 0.0
        %4733 = vmatpush1.msra.mxu0 0.0
        %4734 = vmatprep.subr.mxu0 0.0
        %4735 = vmatpush1.msra.mxu0 0.0
        %4736 = vmatprep.subr.mxu0 0.0
        %4737 = vmatpush1.msra.mxu0 0.0
        %4738 = vmatprep.subr.mxu0 0.0
        %4739 = vmatpush1.msra.mxu0 0.0
        %4740 = vmatprep.subr.mxu0 0.0
        %4741 = vmatpush1.msra.mxu0 0.0
        %4742 = vmatprep.mubr.f32.mxu0 0.0
        %v4743 = vand.u32 %v4386, 4294901760
        %v4744 = vsub.f32 %v4386, %v4743
        %v4745 = vand.u32 %v4744, 4294901760
        %4746 = vmatmul.mubr.f32.gmra.mrb[0].mxu0 %v4745
        %v4747 = vpop.f32.mrb[0].mxu0
        %v4748 = vadd.f32 %v4667, %v4747
        %v4749 = vpop.f32.mrb[0].mxu0
        %4750 = vdwg.mxu0
        %4751 = vmatprep.subr.mxu0 0.0
        %v4752 = vand.u32 %v3837, 4294901760
        %v4753 = vsub.f32 %v3837, %v4752
        %v4754 = vand.u32 %v4753, 4294901760
        %4755 = vmatpush1.msra.mxu0 %v4754
        %4756 = vmatprep.subr.mxu0 0.0
        %v4757 = vand.u32 %v3838, 4294901760
        %v4758 = vsub.f32 %v3838, %v4757
        %v4759 = vand.u32 %v4758, 4294901760
        %4760 = vmatpush1.msra.mxu0 %v4759
        %4761 = vmatprep.subr.mxu0 0.0
        %v4762 = vand.u32 %v3839, 4294901760
        %v4763 = vsub.f32 %v3839, %v4762
        %v4764 = vand.u32 %v4763, 4294901760
        %4765 = vmatpush1.msra.mxu0 %v4764
        %4766 = vmatprep.subr.mxu0 0.0
        %v4767 = vand.u32 %v3840, 4294901760
        %v4768 = vsub.f32 %v3840, %v4767
        %v4769 = vand.u32 %v4768, 4294901760
        %4770 = vmatpush1.msra.mxu0 %v4769
        %4771 = vmatprep.subr.mxu0 0.0
        %v4772 = vand.u32 %v3841, 4294901760
        %v4773 = vsub.f32 %v3841, %v4772
        %v4774 = vand.u32 %v4773, 4294901760
        %4775 = vmatpush1.msra.mxu0 %v4774
        %4776 = vmatprep.subr.mxu0 0.0
        %v4777 = vand.u32 %v3842, 4294901760
        %v4778 = vsub.f32 %v3842, %v4777
        %v4779 = vand.u32 %v4778, 4294901760
        %4780 = vmatpush1.msra.mxu0 %v4779
        %4781 = vmatprep.subr.mxu0 0.0
        %v4782 = vand.u32 %v3843, 4294901760
        %v4783 = vsub.f32 %v3843, %v4782
        %v4784 = vand.u32 %v4783, 4294901760
        %4785 = vmatpush1.msra.mxu0 %v4784
        %4786 = vmatprep.subr.mxu0 0.0
        %v4787 = vand.u32 %v3844, 4294901760
        %v4788 = vsub.f32 %v3844, %v4787
        %v4789 = vand.u32 %v4788, 4294901760
        %4790 = vmatpush1.msra.mxu0 %v4789
        %4791 = vmatprep.subr.mxu0 0.0
        %4792 = vmatpush1.msra.mxu0 0.0
        %4793 = vmatprep.subr.mxu0 0.0
        %4794 = vmatpush1.msra.mxu0 0.0
        %4795 = vmatprep.subr.mxu0 0.0
        %4796 = vmatpush1.msra.mxu0 0.0
        %4797 = vmatprep.subr.mxu0 0.0
        %4798 = vmatpush1.msra.mxu0 0.0
        %4799 = vmatprep.subr.mxu0 0.0
        %4800 = vmatpush1.msra.mxu0 0.0
        %4801 = vmatprep.subr.mxu0 0.0
        %4802 = vmatpush1.msra.mxu0 0.0
        %4803 = vmatprep.subr.mxu0 0.0
        %4804 = vmatpush1.msra.mxu0 0.0
        %4805 = vmatprep.subr.mxu0 0.0
        %4806 = vmatpush1.msra.mxu0 0.0
        %4807 = vmatprep.subr.mxu0 0.0
        %4808 = vmatpush1.msra.mxu0 0.0
        %4809 = vmatprep.subr.mxu0 0.0
        %4810 = vmatpush1.msra.mxu0 0.0
        %4811 = vmatprep.subr.mxu0 0.0
        %4812 = vmatpush1.msra.mxu0 0.0
        %4813 = vmatprep.subr.mxu0 0.0
        %4814 = vmatpush1.msra.mxu0 0.0
        %4815 = vmatprep.subr.mxu0 0.0
        %4816 = vmatpush1.msra.mxu0 0.0
        %4817 = vmatprep.subr.mxu0 0.0
        %4818 = vmatpush1.msra.mxu0 0.0
        %4819 = vmatprep.subr.mxu0 0.0
        %4820 = vmatpush1.msra.mxu0 0.0
        %4821 = vmatprep.subr.mxu0 0.0
        %4822 = vmatpush1.msra.mxu0 0.0
        %4823 = vmatprep.subr.mxu0 0.0
        %4824 = vmatpush1.msra.mxu0 0.0
        %4825 = vmatprep.subr.mxu0 0.0
        %4826 = vmatpush1.msra.mxu0 0.0
        %4827 = vmatprep.subr.mxu0 0.0
        %4828 = vmatpush1.msra.mxu0 0.0
        %4829 = vmatprep.subr.mxu0 0.0
        %4830 = vmatpush1.msra.mxu0 0.0
        %4831 = vmatprep.subr.mxu0 0.0
        %4832 = vmatpush1.msra.mxu0 0.0
        %4833 = vmatprep.subr.mxu0 0.0
        %4834 = vmatpush1.msra.mxu0 0.0
        %4835 = vmatprep.subr.mxu0 0.0
        %4836 = vmatpush1.msra.mxu0 0.0
        %4837 = vmatprep.subr.mxu0 0.0
        %4838 = vmatpush1.msra.mxu0 0.0
        %4839 = vmatprep.mubr.f32.mxu0 0.0
        %v4840 = vand.u32 %v4386, 4294901760
        %4841 = vmatmul.mubr.f32.gmra.mrb[0].mxu0 %v4840
        %v4842 = vpop.f32.mrb[0].mxu0
        %v4843 = vadd.f32 %v4748, %v4842
        %v4844 = vpop.f32.mrb[0].mxu0
        %4845 = vdwg.mxu0
        %4846 = vmatprep.subr.mxu0 0.0
        %v4847 = vand.u32 %v3837, 4294901760
        %4848 = vmatpush1.msra.mxu0 %v4847
        %4849 = vmatprep.subr.mxu0 0.0
        %v4850 = vand.u32 %v3838, 4294901760
        %4851 = vmatpush1.msra.mxu0 %v4850
        %4852 = vmatprep.subr.mxu0 0.0
        %v4853 = vand.u32 %v3839, 4294901760
        %4854 = vmatpush1.msra.mxu0 %v4853
        %4855 = vmatprep.subr.mxu0 0.0
        %v4856 = vand.u32 %v3840, 4294901760
        %4857 = vmatpush1.msra.mxu0 %v4856
        %4858 = vmatprep.subr.mxu0 0.0
        %v4859 = vand.u32 %v3841, 4294901760
        %4860 = vmatpush1.msra.mxu0 %v4859
        %4861 = vmatprep.subr.mxu0 0.0
        %v4862 = vand.u32 %v3842, 4294901760
        %4863 = vmatpush1.msra.mxu0 %v4862
        %4864 = vmatprep.subr.mxu0 0.0
        %v4865 = vand.u32 %v3843, 4294901760
        %4866 = vmatpush1.msra.mxu0 %v4865
        %4867 = vmatprep.subr.mxu0 0.0
        %v4868 = vand.u32 %v3844, 4294901760
        %4869 = vmatpush1.msra.mxu0 %v4868
        %4870 = vmatprep.subr.mxu0 0.0
        %4871 = vmatpush1.msra.mxu0 0.0
        %4872 = vmatprep.subr.mxu0 0.0
        %4873 = vmatpush1.msra.mxu0 0.0
        %4874 = vmatprep.subr.mxu0 0.0
        %4875 = vmatpush1.msra.mxu0 0.0
        %4876 = vmatprep.subr.mxu0 0.0
        %4877 = vmatpush1.msra.mxu0 0.0
        %4878 = vmatprep.subr.mxu0 0.0
        %4879 = vmatpush1.msra.mxu0 0.0
        %4880 = vmatprep.subr.mxu0 0.0
        %4881 = vmatpush1.msra.mxu0 0.0
        %4882 = vmatprep.subr.mxu0 0.0
        %4883 = vmatpush1.msra.mxu0 0.0
        %4884 = vmatprep.subr.mxu0 0.0
        %4885 = vmatpush1.msra.mxu0 0.0
        %4886 = vmatprep.subr.mxu0 0.0
        %4887 = vmatpush1.msra.mxu0 0.0
        %4888 = vmatprep.subr.mxu0 0.0
        %4889 = vmatpush1.msra.mxu0 0.0
        %4890 = vmatprep.subr.mxu0 0.0
        %4891 = vmatpush1.msra.mxu0 0.0
        %4892 = vmatprep.subr.mxu0 0.0
        %4893 = vmatpush1.msra.mxu0 0.0
        %4894 = vmatprep.subr.mxu0 0.0
        %4895 = vmatpush1.msra.mxu0 0.0
        %4896 = vmatprep.subr.mxu0 0.0
        %4897 = vmatpush1.msra.mxu0 0.0
        %4898 = vmatprep.subr.mxu0 0.0
        %4899 = vmatpush1.msra.mxu0 0.0
        %4900 = vmatprep.subr.mxu0 0.0
        %4901 = vmatpush1.msra.mxu0 0.0
        %4902 = vmatprep.subr.mxu0 0.0
        %4903 = vmatpush1.msra.mxu0 0.0
        %4904 = vmatprep.subr.mxu0 0.0
        %4905 = vmatpush1.msra.mxu0 0.0
        %4906 = vmatprep.subr.mxu0 0.0
        %4907 = vmatpush1.msra.mxu0 0.0
        %4908 = vmatprep.subr.mxu0 0.0
        %4909 = vmatpush1.msra.mxu0 0.0
        %4910 = vmatprep.subr.mxu0 0.0
        %4911 = vmatpush1.msra.mxu0 0.0
        %4912 = vmatprep.subr.mxu0 0.0
        %4913 = vmatpush1.msra.mxu0 0.0
        %4914 = vmatprep.subr.mxu0 0.0
        %4915 = vmatpush1.msra.mxu0 0.0
        %4916 = vmatprep.subr.mxu0 0.0
        %4917 = vmatpush1.msra.mxu0 0.0
        %4918 = vmatprep.mubr.f32.mxu0 0.0
        %v4919 = vand.u32 %v4386, 4294901760
        %4920 = vmatmul.mubr.f32.gmra.mrb[0].mxu0 %v4919
        %v4921 = vpop.f32.mrb[0].mxu0
        %v4922 = vadd.f32 %v4843, %v4921
        %v4923 = vpop.f32.mrb[0].mxu0
        %4924 = vdwg.mxu0
        %v4925 = vmul.f32 %v4382, %v4382
        %v4926 = vsub.f32 %v4922, %v4925
        %v4927 = vadd.f32 %v4926, 1e-05
        %v4928 = vrsqrt.pop %v4927
        %v4929 = vlaneseq
        %v4930 = vshrl.u32 %v4929, 7
        %v4931 = vsub.s32 0, %v4930
        %v4932 = vrot.slane %v4382, %v4931
        %v4933 = vsub.f32 %v3538, %v4932
        %v4934 = vsub.f32 %v3541, %v4932
        %v4935 = vsub.f32 %v3546, %v4932
        %v4936 = vsub.f32 %v3549, %v4932
        %v4937 = vsub.f32 %v3554, %v4932
        %v4938 = vsub.f32 %v3557, %v4932
        %v4939 = vsub.f32 %v3562, %v4932
        %v4940 = vsub.f32 %v3565, %v4932
        %v4941 = vsub.f32 %v3570, %v4932
        %v4942 = vsub.f32 %v3573, %v4932
        %v4943 = vsub.f32 %v3578, %v4932
        %v4944 = vsub.f32 %v3581, %v4932
        %v4945 = vsub.f32 %v3586, %v4932
        %v4946 = vsub.f32 %v3589, %v4932
        %v4947 = vsub.f32 %v3594, %v4932
        %v4948 = vsub.f32 %v3597, %v4932
        %v4949 = vsub.f32 %v3602, %v4932
        %v4950 = vsub.f32 %v3605, %v4932
        %v4951 = vsub.f32 %v3610, %v4932
        %v4952 = vsub.f32 %v3613, %v4932
        %v4953 = vsub.f32 %v3618, %v4932
        %v4954 = vsub.f32 %v3621, %v4932
        %v4955 = vsub.f32 %v3626, %v4932
        %v4956 = vsub.f32 %v3629, %v4932
        %v4957 = vsub.f32 %v3634, %v4932
        %v4958 = vsub.f32 %v3637, %v4932
        %v4959 = vsub.f32 %v3642, %v4932
        %v4960 = vsub.f32 %v3645, %v4932
        %v4961 = vsub.f32 %v3650, %v4932
        %v4962 = vsub.f32 %v3653, %v4932
        %v4963 = vsub.f32 %v3658, %v4932
        %v4964 = vsub.f32 %v3661, %v4932
        %v4965 = vlaneseq
        %v4966 = vshrl.u32 %v4965, 7
        %v4967 = vsub.s32 0, %v4966
        %v4968 = vrot.slane %v4928, %v4967
        %v4969 = vmul.f32 %v4933, %v4968
        %v4970 = vmul.f32 %v4934, %v4968
        %v4971 = vmul.f32 %v4935, %v4968
        %v4972 = vmul.f32 %v4936, %v4968
        %v4973 = vmul.f32 %v4937, %v4968
        %v4974 = vmul.f32 %v4938, %v4968
        %v4975 = vmul.f32 %v4939, %v4968
        %v4976 = vmul.f32 %v4940, %v4968
        %v4977 = vmul.f32 %v4941, %v4968
        %v4978 = vmul.f32 %v4942, %v4968
        %v4979 = vmul.f32 %v4943, %v4968
        %v4980 = vmul.f32 %v4944, %v4968
        %v4981 = vmul.f32 %v4945, %v4968
        %v4982 = vmul.f32 %v4946, %v4968
        %v4983 = vmul.f32 %v4947, %v4968
        %v4984 = vmul.f32 %v4948, %v4968
        %v4985 = vmul.f32 %v4949, %v4968
        %v4986 = vmul.f32 %v4950, %v4968
        %v4987 = vmul.f32 %v4951, %v4968
        %v4988 = vmul.f32 %v4952, %v4968
        %v4989 = vmul.f32 %v4953, %v4968
        %v4990 = vmul.f32 %v4954, %v4968
        %v4991 = vmul.f32 %v4955, %v4968
        %v4992 = vmul.f32 %v4956, %v4968
        %v4993 = vmul.f32 %v4957, %v4968
        %v4994 = vmul.f32 %v4958, %v4968
        %v4995 = vmul.f32 %v4959, %v4968
        %v4996 = vmul.f32 %v4960, %v4968
        %v4997 = vmul.f32 %v4961, %v4968
        %v4998 = vmul.f32 %v4962, %v4968
        %v4999 = vmul.f32 %v4963, %v4968
        %v5000 = vmul.f32 %v4964, %v4968
        %v5002 = vlaneseq
        %v5003 = vshrl.u32 %v5002, 7
        %v5004 = vsub.s32 0, %v5003
        %v5005 = vrot.slane %v3664, %v5004
        %v5007 = vmul.f32 %v4969, %v5005
        %v5008 = vmul.f32 %v4970, %v5005
        %v5009 = vmul.f32 %v4971, %v5005
        %v5010 = vmul.f32 %v4972, %v5005
        %v5011 = vmul.f32 %v4973, %v5005
        %v5012 = vmul.f32 %v4974, %v5005
        %v5013 = vmul.f32 %v4975, %v5005
        %v5014 = vmul.f32 %v4976, %v5005
        %v5015 = vmul.f32 %v4977, %v5005
        %v5016 = vmul.f32 %v4978, %v5005
        %v5017 = vmul.f32 %v4979, %v5005
        %v5018 = vmul.f32 %v4980, %v5005
        %v5019 = vmul.f32 %v4981, %v5005
        %v5020 = vmul.f32 %v4982, %v5005
        %v5021 = vmul.f32 %v4983, %v5005
        %v5022 = vmul.f32 %v4984, %v5005
        %v5023 = vmul.f32 %v4985, %v5005
        %v5024 = vmul.f32 %v4986, %v5005
        %v5025 = vmul.f32 %v4987, %v5005
        %v5026 = vmul.f32 %v4988, %v5005
        %v5027 = vmul.f32 %v4989, %v5005
        %v5028 = vmul.f32 %v4990, %v5005
        %v5029 = vmul.f32 %v4991, %v5005
        %v5030 = vmul.f32 %v4992, %v5005
        %v5031 = vmul.f32 %v4993, %v5005
        %v5032 = vmul.f32 %v4994, %v5005
        %v5033 = vmul.f32 %v4995, %v5005
        %v5034 = vmul.f32 %v4996, %v5005
        %v5035 = vmul.f32 %v4997, %v5005
        %v5036 = vmul.f32 %v4998, %v5005
        %v5037 = vmul.f32 %v4999, %v5005
        %v5038 = vmul.f32 %v5000, %v5005
        %v5040 = vlaneseq
        %v5041 = vshrl.u32 %v5040, 7
        %v5042 = vsub.s32 0, %v5041
        %v5043 = vrot.slane %v3665, %v5042
        %v5045 = vadd.f32 %v5007, %v5043
        %v5046 = vadd.f32 %v5008, %v5043
        %v5047 = vadd.f32 %v5009, %v5043
        %v5048 = vadd.f32 %v5010, %v5043
        %v5049 = vadd.f32 %v5011, %v5043
        %v5050 = vadd.f32 %v5012, %v5043
        %v5051 = vadd.f32 %v5013, %v5043
        %v5052 = vadd.f32 %v5014, %v5043
        %v5053 = vadd.f32 %v5015, %v5043
        %v5054 = vadd.f32 %v5016, %v5043
        %v5055 = vadd.f32 %v5017, %v5043
        %v5056 = vadd.f32 %v5018, %v5043
        %v5057 = vadd.f32 %v5019, %v5043
        %v5058 = vadd.f32 %v5020, %v5043
        %v5059 = vadd.f32 %v5021, %v5043
        %v5060 = vadd.f32 %v5022, %v5043
        %v5061 = vadd.f32 %v5023, %v5043
        %v5062 = vadd.f32 %v5024, %v5043
        %v5063 = vadd.f32 %v5025, %v5043
        %v5064 = vadd.f32 %v5026, %v5043
        %v5065 = vadd.f32 %v5027, %v5043
        %v5066 = vadd.f32 %v5028, %v5043
        %v5067 = vadd.f32 %v5029, %v5043
        %v5068 = vadd.f32 %v5030, %v5043
        %v5069 = vadd.f32 %v5031, %v5043
        %v5070 = vadd.f32 %v5032, %v5043
        %v5071 = vadd.f32 %v5033, %v5043
        %v5072 = vadd.f32 %v5034, %v5043
        %v5073 = vadd.f32 %v5035, %v5043
        %v5074 = vadd.f32 %v5036, %v5043
        %v5075 = vadd.f32 %v5037, %v5043
        %v5076 = vadd.f32 %v5038, %v5043
        %v5077 = vxor.u32 %v5045, 2147483648
        %v5078 = vxor.u32 %v5046, 2147483648
        %v5079 = vxor.u32 %v5047, 2147483648
        %v5080 = vxor.u32 %v5048, 2147483648
        %v5081 = vxor.u32 %v5049, 2147483648
        %v5082 = vxor.u32 %v5050, 2147483648
        %v5083 = vxor.u32 %v5051, 2147483648
        %v5084 = vxor.u32 %v5052, 2147483648
        %v5085 = vxor.u32 %v5053, 2147483648
        %v5086 = vxor.u32 %v5054, 2147483648
        %v5087 = vxor.u32 %v5055, 2147483648
        %v5088 = vxor.u32 %v5056, 2147483648
        %v5089 = vxor.u32 %v5057, 2147483648
        %v5090 = vxor.u32 %v5058, 2147483648
        %v5091 = vxor.u32 %v5059, 2147483648
        %v5092 = vxor.u32 %v5060, 2147483648
        %v5093 = vxor.u32 %v5061, 2147483648
        %v5094 = vxor.u32 %v5062, 2147483648
        %v5095 = vxor.u32 %v5063, 2147483648
        %v5096 = vxor.u32 %v5064, 2147483648
        %v5097 = vxor.u32 %v5065, 2147483648
        %v5098 = vxor.u32 %v5066, 2147483648
        %v5099 = vxor.u32 %v5067, 2147483648
        %v5100 = vxor.u32 %v5068, 2147483648
        %v5101 = vxor.u32 %v5069, 2147483648
        %v5102 = vxor.u32 %v5070, 2147483648
        %v5103 = vxor.u32 %v5071, 2147483648
        %v5104 = vxor.u32 %v5072, 2147483648
        %v5105 = vxor.u32 %v5073, 2147483648
        %v5106 = vxor.u32 %v5074, 2147483648
        %v5107 = vxor.u32 %v5075, 2147483648
        %v5108 = vxor.u32 %v5076, 2147483648
        %v5109 = vmul.f32 %v5077, 1.442695
        %v5110 = vpow.pop %v5109
        %v5111 = vmul.f32 %v5078, 1.442695
        %v5112 = vpow.pop %v5111
        %v5113 = vmul.f32 %v5079, 1.442695
        %v5114 = vpow.pop %v5113
        %v5115 = vmul.f32 %v5080, 1.442695
        %v5116 = vpow.pop %v5115
        %v5117 = vmul.f32 %v5081, 1.442695
        %v5118 = vpow.pop %v5117
        %v5119 = vmul.f32 %v5082, 1.442695
        %v5120 = vpow.pop %v5119
        %v5121 = vmul.f32 %v5083, 1.442695
        %v5122 = vpow.pop %v5121
        %v5123 = vmul.f32 %v5084, 1.442695
        %v5124 = vpow.pop %v5123
        %v5125 = vmul.f32 %v5085, 1.442695
        %v5126 = vpow.pop %v5125
        %v5127 = vmul.f32 %v5086, 1.442695
        %v5128 = vpow.pop %v5127
        %v5129 = vmul.f32 %v5087, 1.442695
        %v5130 = vpow.pop %v5129
        %v5131 = vmul.f32 %v5088, 1.442695
        %v5132 = vpow.pop %v5131
        %v5133 = vmul.f32 %v5089, 1.442695
        %v5134 = vpow.pop %v5133
        %v5135 = vmul.f32 %v5090, 1.442695
        %v5136 = vpow.pop %v5135
        %v5137 = vmul.f32 %v5091, 1.442695
        %v5138 = vpow.pop %v5137
        %v5139 = vmul.f32 %v5092, 1.442695
        %v5140 = vpow.pop %v5139
        %v5141 = vmul.f32 %v5093, 1.442695
        %v5142 = vpow.pop %v5141
        %v5143 = vmul.f32 %v5094, 1.442695
        %v5144 = vpow.pop %v5143
        %v5145 = vmul.f32 %v5095, 1.442695
        %v5146 = vpow.pop %v5145
        %v5147 = vmul.f32 %v5096, 1.442695
        %v5148 = vpow.pop %v5147
        %v5149 = vmul.f32 %v5097, 1.442695
        %v5150 = vpow.pop %v5149
        %v5151 = vmul.f32 %v5098, 1.442695
        %v5152 = vpow.pop %v5151
        %v5153 = vmul.f32 %v5099, 1.442695
        %v5154 = vpow.pop %v5153
        %v5155 = vmul.f32 %v5100, 1.442695
        %v5156 = vpow.pop %v5155
        %v5157 = vmul.f32 %v5101, 1.442695
        %v5158 = vpow.pop %v5157
        %v5159 = vmul.f32 %v5102, 1.442695
        %v5160 = vpow.pop %v5159
        %v5161 = vmul.f32 %v5103, 1.442695
        %v5162 = vpow.pop %v5161
        %v5163 = vmul.f32 %v5104, 1.442695
        %v5164 = vpow.pop %v5163
        %v5165 = vmul.f32 %v5105, 1.442695
        %v5166 = vpow.pop %v5165
        %v5167 = vmul.f32 %v5106, 1.442695
        %v5168 = vpow.pop %v5167
        %v5169 = vmul.f32 %v5107, 1.442695
        %v5170 = vpow.pop %v5169
        %v5171 = vmul.f32 %v5108, 1.442695
        %v5172 = vpow.pop %v5171
        %v5173 = vadd.f32 %v5110, 1.0
        %v5174 = vadd.f32 %v5112, 1.0
        %v5175 = vadd.f32 %v5114, 1.0
        %v5176 = vadd.f32 %v5116, 1.0
        %v5177 = vadd.f32 %v5118, 1.0
        %v5178 = vadd.f32 %v5120, 1.0
        %v5179 = vadd.f32 %v5122, 1.0
        %v5180 = vadd.f32 %v5124, 1.0
        %v5181 = vadd.f32 %v5126, 1.0
        %v5182 = vadd.f32 %v5128, 1.0
        %v5183 = vadd.f32 %v5130, 1.0
        %v5184 = vadd.f32 %v5132, 1.0
        %v5185 = vadd.f32 %v5134, 1.0
        %v5186 = vadd.f32 %v5136, 1.0
        %v5187 = vadd.f32 %v5138, 1.0
        %v5188 = vadd.f32 %v5140, 1.0
        %v5189 = vadd.f32 %v5142, 1.0
        %v5190 = vadd.f32 %v5144, 1.0
        %v5191 = vadd.f32 %v5146, 1.0
        %v5192 = vadd.f32 %v5148, 1.0
        %v5193 = vadd.f32 %v5150, 1.0
        %v5194 = vadd.f32 %v5152, 1.0
        %v5195 = vadd.f32 %v5154, 1.0
        %v5196 = vadd.f32 %v5156, 1.0
        %v5197 = vadd.f32 %v5158, 1.0
        %v5198 = vadd.f32 %v5160, 1.0
        %v5199 = vadd.f32 %v5162, 1.0
        %v5200 = vadd.f32 %v5164, 1.0
        %v5201 = vadd.f32 %v5166, 1.0
        %v5202 = vadd.f32 %v5168, 1.0
        %v5203 = vadd.f32 %v5170, 1.0
        %v5204 = vadd.f32 %v5172, 1.0
        %v5205 = vrcp.pop %v5173
        %v5206 = vmul.f32 1.0, %v5205
        %v5207 = vrcp.pop %v5174
        %v5208 = vmul.f32 1.0, %v5207
        %v5209 = vrcp.pop %v5175
        %v5210 = vmul.f32 1.0, %v5209
        %v5211 = vrcp.pop %v5176
        %v5212 = vmul.f32 1.0, %v5211
        %v5213 = vrcp.pop %v5177
        %v5214 = vmul.f32 1.0, %v5213
        %v5215 = vrcp.pop %v5178
        %v5216 = vmul.f32 1.0, %v5215
        %v5217 = vrcp.pop %v5179
        %v5218 = vmul.f32 1.0, %v5217
        %v5219 = vrcp.pop %v5180
        %v5220 = vmul.f32 1.0, %v5219
        %v5221 = vrcp.pop %v5181
        %v5222 = vmul.f32 1.0, %v5221
        %v5223 = vrcp.pop %v5182
        %v5224 = vmul.f32 1.0, %v5223
        %v5225 = vrcp.pop %v5183
        %v5226 = vmul.f32 1.0, %v5225
        %v5227 = vrcp.pop %v5184
        %v5228 = vmul.f32 1.0, %v5227
        %v5229 = vrcp.pop %v5185
        %v5230 = vmul.f32 1.0, %v5229
        %v5231 = vrcp.pop %v5186
        %v5232 = vmul.f32 1.0, %v5231
        %v5233 = vrcp.pop %v5187
        %v5234 = vmul.f32 1.0, %v5233
        %v5235 = vrcp.pop %v5188
        %v5236 = vmul.f32 1.0, %v5235
        %v5237 = vrcp.pop %v5189
        %v5238 = vmul.f32 1.0, %v5237
        %v5239 = vrcp.pop %v5190
        %v5240 = vmul.f32 1.0, %v5239
        %v5241 = vrcp.pop %v5191
        %v5242 = vmul.f32 1.0, %v5241
        %v5243 = vrcp.pop %v5192
        %v5244 = vmul.f32 1.0, %v5243
        %v5245 = vrcp.pop %v5193
        %v5246 = vmul.f32 1.0, %v5245
        %v5247 = vrcp.pop %v5194
        %v5248 = vmul.f32 1.0, %v5247
        %v5249 = vrcp.pop %v5195
        %v5250 = vmul.f32 1.0, %v5249
        %v5251 = vrcp.pop %v5196
        %v5252 = vmul.f32 1.0, %v5251
        %v5253 = vrcp.pop %v5197
        %v5254 = vmul.f32 1.0, %v5253
        %v5255 = vrcp.pop %v5198
        %v5256 = vmul.f32 1.0, %v5255
        %v5257 = vrcp.pop %v5199
        %v5258 = vmul.f32 1.0, %v5257
        %v5259 = vrcp.pop %v5200
        %v5260 = vmul.f32 1.0, %v5259
        %v5261 = vrcp.pop %v5201
        %v5262 = vmul.f32 1.0, %v5261
        %v5263 = vrcp.pop %v5202
        %v5264 = vmul.f32 1.0, %v5263
        %v5265 = vrcp.pop %v5203
        %v5266 = vmul.f32 1.0, %v5265
        %v5267 = vrcp.pop %v5204
        %v5268 = vmul.f32 1.0, %v5267
        %v5269 = vmul.f32 %v5045, %v5206
        %v5270 = vmul.f32 %v5046, %v5208
        %v5271 = vmul.f32 %v5047, %v5210
        %v5272 = vmul.f32 %v5048, %v5212
        %v5273 = vmul.f32 %v5049, %v5214
        %v5274 = vmul.f32 %v5050, %v5216
        %v5275 = vmul.f32 %v5051, %v5218
        %v5276 = vmul.f32 %v5052, %v5220
        %v5277 = vmul.f32 %v5053, %v5222
        %v5278 = vmul.f32 %v5054, %v5224
        %v5279 = vmul.f32 %v5055, %v5226
        %v5280 = vmul.f32 %v5056, %v5228
        %v5281 = vmul.f32 %v5057, %v5230
        %v5282 = vmul.f32 %v5058, %v5232
        %v5283 = vmul.f32 %v5059, %v5234
        %v5284 = vmul.f32 %v5060, %v5236
        %v5285 = vmul.f32 %v5061, %v5238
        %v5286 = vmul.f32 %v5062, %v5240
        %v5287 = vmul.f32 %v5063, %v5242
        %v5288 = vmul.f32 %v5064, %v5244
        %v5289 = vmul.f32 %v5065, %v5246
        %v5290 = vmul.f32 %v5066, %v5248
        %v5291 = vmul.f32 %v5067, %v5250
        %v5292 = vmul.f32 %v5068, %v5252
        %v5293 = vmul.f32 %v5069, %v5254
        %v5294 = vmul.f32 %v5070, %v5256
        %v5295 = vmul.f32 %v5071, %v5258
        %v5296 = vmul.f32 %v5072, %v5260
        %v5297 = vmul.f32 %v5073, %v5262
        %v5298 = vmul.f32 %v5074, %v5264
        %v5299 = vmul.f32 %v5075, %v5266
        %v5300 = vmul.f32 %v5076, %v5268
        %v5301 = vld [vmem:[%s10] sm:$0x1]
        %5302 = vst.msk [vmem:[#allocation4] sm:$0xff] %vm3666, 0.0
        %5303 = vst.msk [vmem:[#allocation4 + $0x8] sm:$0xff] %vm3666, 0.0
        %5304 = vst.msk [vmem:[#allocation4 + $0x10] sm:$0xff] %vm3666, 0.0
        %s5305 = scalar_lea.vmem [#allocation4], 408
        %5306 = vst.msk [vmem:[%s5305] sm:$0xff] %vm3666, 0.0
        %5307 = vst.msk [vmem:[%s5305 + $0x8] sm:$0xff] %vm3666, 0.0
        %5308 = vst.msk [vmem:[%s5305 + $0x10] sm:$0xff] %vm3666, 0.0
        %vm5309 = vcmask 516096
        %5310 = vst.msk [vmem:[#allocation4] sm:$0x1] %vm5309, 0.0
        %5311 = vst.msk [vmem:[#allocation4 + $0x18] sm:$0x1] %vm5309, 0.0
        %5312 = vst.msk [vmem:[#allocation4 + $0x30] sm:$0x1] %vm5309, 0.0
        %5313 = vst.msk [vmem:[#allocation4 + $0x48] sm:$0x1] %vm5309, 0.0
        %5314 = vst.msk [vmem:[#allocation4 + $0x60] sm:$0x1] %vm5309, 0.0
        %5315 = vst.msk [vmem:[#allocation4 + $0x78] sm:$0x1] %vm5309, 0.0
        %5316 = vst.msk [vmem:[#allocation4 + $0x90] sm:$0x1] %vm5309, 0.0
        %5317 = vst.msk [vmem:[#allocation4 + $0xa8] sm:$0x1] %vm5309, 0.0
        %5318 = vst.msk [vmem:[#allocation4 + $0xc0] sm:$0x1] %vm5309, 0.0
        %5319 = vst.msk [vmem:[#allocation4 + $0xd8] sm:$0x1] %vm5309, 0.0
        %5320 = vst.msk [vmem:[#allocation4 + $0xf0] sm:$0x1] %vm5309, 0.0
        %5321 = vst.msk [vmem:[#allocation4 + $0x108] sm:$0x1] %vm5309, 0.0
        %5322 = vst.msk [vmem:[#allocation4 + $0x120] sm:$0x1] %vm5309, 0.0
        %5323 = vst.msk [vmem:[#allocation4 + $0x138] sm:$0x1] %vm5309, 0.0
        %5324 = vst.msk [vmem:[#allocation4 + $0x150] sm:$0x1] %vm5309, 0.0
        %5325 = vst.msk [vmem:[#allocation4 + $0x168] sm:$0x1] %vm5309, 0.0
        %5326 = vst.msk [vmem:[#allocation4 + $0x180] sm:$0x1] %vm5309, 0.0
        %5327 = vst.msk [vmem:[#allocation4 + $0x198] sm:$0x1] %vm5309, 0.0
        %5328 = vst.msk [vmem:[#allocation4 + $0x11] sm:$0x1] %vm5309, 0.0
        %5329 = vst.msk [vmem:[#allocation4 + $0x29] sm:$0x1] %vm5309, 0.0
        %5330 = vst.msk [vmem:[#allocation4 + $0x41] sm:$0x1] %vm5309, 0.0
        %5331 = vst.msk [vmem:[#allocation4 + $0x59] sm:$0x1] %vm5309, 0.0
        %5332 = vst.msk [vmem:[#allocation4 + $0x71] sm:$0x1] %vm5309, 0.0
        %5333 = vst.msk [vmem:[#allocation4 + $0x89] sm:$0x1] %vm5309, 0.0
        %5334 = vst.msk [vmem:[#allocation4 + $0xa1] sm:$0x1] %vm5309, 0.0
        %5335 = vst.msk [vmem:[#allocation4 + $0xb9] sm:$0x1] %vm5309, 0.0
        %5336 = vst.msk [vmem:[#allocation4 + $0xd1] sm:$0x1] %vm5309, 0.0
        %5337 = vst.msk [vmem:[#allocation4 + $0xe9] sm:$0x1] %vm5309, 0.0
        %5338 = vst.msk [vmem:[#allocation4 + $0x101] sm:$0x1] %vm5309, 0.0
        %5339 = vst.msk [vmem:[#allocation4 + $0x119] sm:$0x1] %vm5309, 0.0
        %5340 = vst.msk [vmem:[#allocation4 + $0x131] sm:$0x1] %vm5309, 0.0
        %5341 = vst.msk [vmem:[#allocation4 + $0x149] sm:$0x1] %vm5309, 0.0
        %5342 = vst.msk [vmem:[#allocation4 + $0x161] sm:$0x1] %vm5309, 0.0
        %5343 = vst.msk [vmem:[#allocation4 + $0x179] sm:$0x1] %vm5309, 0.0
        %5344 = vst.msk [vmem:[#allocation4 + $0x191] sm:$0x1] %vm5309, 0.0
        %5345 = vst.msk [vmem:[#allocation4 + $0x1a9] sm:$0x1] %vm5309, 0.0
        %s5346 = scalar_lea.vmem [#allocation4], 24
        %5347 = vst.msk [vmem:[%s5346 + $0x1] sm:$0xff] %vm3666, %v5269
        %5348 = vst.msk [vmem:[%s5346 + $0x9] sm:$0xff] %vm3666, %v5270
        %5349 = vst.msk [vmem:[%s5346 + $0x19] sm:$0xff] %vm3666, %v5271
        %5350 = vst.msk [vmem:[%s5346 + $0x21] sm:$0xff] %vm3666, %v5272
        %5351 = vst.msk [vmem:[%s5346 + $0x31] sm:$0xff] %vm3666, %v5273
        %5352 = vst.msk [vmem:[%s5346 + $0x39] sm:$0xff] %vm3666, %v5274
        %5353 = vst.msk [vmem:[%s5346 + $0x49] sm:$0xff] %vm3666, %v5275
        %5354 = vst.msk [vmem:[%s5346 + $0x51] sm:$0xff] %vm3666, %v5276
        %5355 = vst.msk [vmem:[%s5346 + $0x61] sm:$0xff] %vm3666, %v5277
        %5356 = vst.msk [vmem:[%s5346 + $0x69] sm:$0xff] %vm3666, %v5278
        %5357 = vst.msk [vmem:[%s5346 + $0x79] sm:$0xff] %vm3666, %v5279
        %5358 = vst.msk [vmem:[%s5346 + $0x81] sm:$0xff] %vm3666, %v5280
        %5359 = vst.msk [vmem:[%s5346 + $0x91] sm:$0xff] %vm3666, %v5281
        %5360 = vst.msk [vmem:[%s5346 + $0x99] sm:$0xff] %vm3666, %v5282
        %5361 = vst.msk [vmem:[%s5346 + $0xa9] sm:$0xff] %vm3666, %v5283
        %5362 = vst.msk [vmem:[%s5346 + $0xb1] sm:$0xff] %vm3666, %v5284
        %5363 = vst.msk [vmem:[%s5346 + $0xc1] sm:$0xff] %vm3666, %v5285
        %5364 = vst.msk [vmem:[%s5346 + $0xc9] sm:$0xff] %vm3666, %v5286
        %5365 = vst.msk [vmem:[%s5346 + $0xd9] sm:$0xff] %vm3666, %v5287
        %5366 = vst.msk [vmem:[%s5346 + $0xe1] sm:$0xff] %vm3666, %v5288
        %5367 = vst.msk [vmem:[%s5346 + $0xf1] sm:$0xff] %vm3666, %v5289
        %5368 = vst.msk [vmem:[%s5346 + $0xf9] sm:$0xff] %vm3666, %v5290
        %5369 = vst.msk [vmem:[%s5346 + $0x109] sm:$0xff] %vm3666, %v5291
        %5370 = vst.msk [vmem:[%s5346 + $0x111] sm:$0xff] %vm3666, %v5292
        %5371 = vst.msk [vmem:[%s5346 + $0x121] sm:$0xff] %vm3666, %v5293
        %5372 = vst.msk [vmem:[%s5346 + $0x129] sm:$0xff] %vm3666, %v5294
        %5373 = vst.msk [vmem:[%s5346 + $0x139] sm:$0xff] %vm3666, %v5295
        %5374 = vst.msk [vmem:[%s5346 + $0x141] sm:$0xff] %vm3666, %v5296
        %5375 = vst.msk [vmem:[%s5346 + $0x151] sm:$0xff] %vm3666, %v5297
        %5376 = vst.msk [vmem:[%s5346 + $0x159] sm:$0xff] %vm3666, %v5298
        %5377 = vst.msk [vmem:[%s5346 + $0x169] sm:$0xff] %vm3666, %v5299
        %5378 = vst.msk [vmem:[%s5346 + $0x171] sm:$0xff] %vm3666, %v5300
        %v5379 = vld [vmem:[#allocation4] sm:$0xff]
        %v5380 = vld [vmem:[#allocation4 + $0x8] sm:$0xff]
        %v5381 = vld [vmem:[#allocation4 + $0x18] sm:$0xff]
        %v5382 = vld [vmem:[#allocation4 + $0x20] sm:$0xff]
        %v5383 = vld [vmem:[#allocation4 + $0x30] sm:$0xff]
        %v5384 = vld [vmem:[#allocation4 + $0x38] sm:$0xff]
        %v5385 = vld [vmem:[#allocation4 + $0x48] sm:$0xff]
        %v5386 = vld [vmem:[#allocation4 + $0x50] sm:$0xff]
        %v5387 = vld [vmem:[#allocation4 + $0x60] sm:$0xff]
        %v5388 = vld [vmem:[#allocation4 + $0x68] sm:$0xff]
        %v5389 = vld [vmem:[#allocation4 + $0x78] sm:$0xff]
        %v5390 = vld [vmem:[#allocation4 + $0x80] sm:$0xff]
        %v5391 = vld [vmem:[#allocation4 + $0x90] sm:$0xff]
        %v5392 = vld [vmem:[#allocation4 + $0x98] sm:$0xff]
        %v5393 = vld [vmem:[#allocation4 + $0xa8] sm:$0xff]
        %v5394 = vld [vmem:[#allocation4 + $0xb0] sm:$0xff]
        %v5395 = vld [vmem:[#allocation4 + $0xc0] sm:$0xff]
        %v5396 = vld [vmem:[#allocation4 + $0xc8] sm:$0xff]
        %v5397 = vld [vmem:[#allocation4 + $0xd8] sm:$0xff]
        %v5398 = vld [vmem:[#allocation4 + $0xe0] sm:$0xff]
        %v5399 = vld [vmem:[#allocation4 + $0xf0] sm:$0xff]
        %v5400 = vld [vmem:[#allocation4 + $0xf8] sm:$0xff]
        %v5401 = vld [vmem:[#allocation4 + $0x108] sm:$0xff]
        %v5402 = vld [vmem:[#allocation4 + $0x110] sm:$0xff]
        %v5403 = vld [vmem:[#allocation4 + $0x120] sm:$0xff]
        %v5404 = vld [vmem:[#allocation4 + $0x128] sm:$0xff]
        %v5405 = vld [vmem:[#allocation4 + $0x138] sm:$0xff]
        %v5406 = vld [vmem:[#allocation4 + $0x140] sm:$0xff]
        %v5407 = vld [vmem:[#allocation4 + $0x150] sm:$0xff]
        %v5408 = vld [vmem:[#allocation4 + $0x158] sm:$0xff]
        %v5409 = vld [vmem:[#allocation4 + $0x168] sm:$0xff]
        %v5410 = vld [vmem:[#allocation4 + $0x170] sm:$0xff]
        %v5411 = vpack.c.bf16 %v5380, %v5379
        %v5412 = vpack.c.bf16 %v5382, %v5381
        %v5413 = vpack.c.bf16 %v5384, %v5383
        %v5414 = vpack.c.bf16 %v5386, %v5385
        %v5415 = vpack.c.bf16 %v5388, %v5387
        %v5416 = vpack.c.bf16 %v5390, %v5389
        %v5417 = vpack.c.bf16 %v5392, %v5391
        %v5418 = vpack.c.bf16 %v5394, %v5393
        %v5419 = vpack.c.bf16 %v5396, %v5395
        %v5420 = vpack.c.bf16 %v5398, %v5397
        %v5421 = vpack.c.bf16 %v5400, %v5399
        %v5422 = vpack.c.bf16 %v5402, %v5401
        %v5423 = vpack.c.bf16 %v5404, %v5403
        %v5424 = vpack.c.bf16 %v5406, %v5405
        %v5425 = vpack.c.bf16 %v5408, %v5407
        %v5426 = vpack.c.bf16 %v5410, %v5409
        %5427 = vst.msk [vmem:[#allocation5] sm:$0xff] %vm3666, %v5411
        %5428 = vst.msk [vmem:[#allocation5 + $0x28] sm:$0xff] %vm3666, %v5412
        %5429 = vst.msk [vmem:[#allocation5 + $0x50] sm:$0xff] %vm3666, %v5413
        %5430 = vst.msk [vmem:[#allocation5 + $0x78] sm:$0xff] %vm3666, %v5414
        %5431 = vst.msk [vmem:[#allocation5 + $0xa0] sm:$0xff] %vm3666, %v5415
        %5432 = vst.msk [vmem:[#allocation5 + $0xc8] sm:$0xff] %vm3666, %v5416
        %5433 = vst.msk [vmem:[#allocation5 + $0xf0] sm:$0xff] %vm3666, %v5417
        %5434 = vst.msk [vmem:[#allocation5 + $0x118] sm:$0xff] %vm3666, %v5418
        %5435 = vst.msk [vmem:[#allocation5 + $0x140] sm:$0xff] %vm3666, %v5419
        %5436 = vst.msk [vmem:[#allocation5 + $0x168] sm:$0xff] %vm3666, %v5420
        %5437 = vst.msk [vmem:[#allocation5 + $0x190] sm:$0xff] %vm3666, %v5421
        %5438 = vst.msk [vmem:[#allocation5 + $0x1b8] sm:$0xff] %vm3666, %v5422
        %5439 = vst.msk [vmem:[#allocation5 + $0x1e0] sm:$0xff] %vm3666, %v5423
        %5440 = vst.msk [vmem:[#allocation5 + $0x208] sm:$0xff] %vm3666, %v5424
        %5441 = vst.msk [vmem:[#allocation5 + $0x230] sm:$0xff] %vm3666, %v5425
        %5442 = vst.msk [vmem:[#allocation5 + $0x258] sm:$0xff] %vm3666, %v5426
        %v5443 = vld [vmem:[#allocation4 + $0x1] sm:$0xff]
        %v5444 = vld [vmem:[#allocation4 + $0x9] sm:$0xff]
        %v5445 = vld [vmem:[#allocation4 + $0x19] sm:$0xff]
        %v5446 = vld [vmem:[#allocation4 + $0x21] sm:$0xff]
        %v5447 = vld [vmem:[#allocation4 + $0x31] sm:$0xff]
        %v5448 = vld [vmem:[#allocation4 + $0x39] sm:$0xff]
        %v5449 = vld [vmem:[#allocation4 + $0x49] sm:$0xff]
        %v5450 = vld [vmem:[#allocation4 + $0x51] sm:$0xff]
        %v5451 = vld [vmem:[#allocation4 + $0x61] sm:$0xff]
        %v5452 = vld [vmem:[#allocation4 + $0x69] sm:$0xff]
        %v5453 = vld [vmem:[#allocation4 + $0x79] sm:$0xff]
        %v5454 = vld [vmem:[#allocation4 + $0x81] sm:$0xff]
        %v5455 = vld [vmem:[#allocation4 + $0x91] sm:$0xff]
        %v5456 = vld [vmem:[#allocation4 + $0x99] sm:$0xff]
        %v5457 = vld [vmem:[#allocation4 + $0xa9] sm:$0xff]
        %v5458 = vld [vmem:[#allocation4 + $0xb1] sm:$0xff]
        %v5459 = vld [vmem:[#allocation4 + $0xc1] sm:$0xff]
        %v5460 = vld [vmem:[#allocation4 + $0xc9] sm:$0xff]
        %v5461 = vld [vmem:[#allocation4 + $0xd9] sm:$0xff]
        %v5462 = vld [vmem:[#allocation4 + $0xe1] sm:$0xff]
        %v5463 = vld [vmem:[#allocation4 + $0xf1] sm:$0xff]
        %v5464 = vld [vmem:[#allocation4 + $0xf9] sm:$0xff]
        %v5465 = vld [vmem:[#allocation4 + $0x109] sm:$0xff]
        %v5466 = vld [vmem:[#allocation4 + $0x111] sm:$0xff]
        %v5467 = vld [vmem:[#allocation4 + $0x121] sm:$0xff]
        %v5468 = vld [vmem:[#allocation4 + $0x129] sm:$0xff]
        %v5469 = vld [vmem:[#allocation4 + $0x139] sm:$0xff]
        %v5470 = vld [vmem:[#allocation4 + $0x141] sm:$0xff]
        %v5471 = vld [vmem:[#allocation4 + $0x151] sm:$0xff]
        %v5472 = vld [vmem:[#allocation4 + $0x159] sm:$0xff]
        %v5473 = vld [vmem:[#allocation4 + $0x169] sm:$0xff]
        %v5474 = vld [vmem:[#allocation4 + $0x171] sm:$0xff]
        %v5475 = vpack.c.bf16 %v5444, %v5443
        %v5476 = vpack.c.bf16 %v5446, %v5445
        %v5477 = vpack.c.bf16 %v5448, %v5447
        %v5478 = vpack.c.bf16 %v5450, %v5449
        %v5479 = vpack.c.bf16 %v5452, %v5451
        %v5480 = vpack.c.bf16 %v5454, %v5453
        %v5481 = vpack.c.bf16 %v5456, %v5455
        %v5482 = vpack.c.bf16 %v5458, %v5457
        %v5483 = vpack.c.bf16 %v5460, %v5459
        %v5484 = vpack.c.bf16 %v5462, %v5461
        %v5485 = vpack.c.bf16 %v5464, %v5463
        %v5486 = vpack.c.bf16 %v5466, %v5465
        %v5487 = vpack.c.bf16 %v5468, %v5467
        %v5488 = vpack.c.bf16 %v5470, %v5469
        %v5489 = vpack.c.bf16 %v5472, %v5471
        %v5490 = vpack.c.bf16 %v5474, %v5473
        %5507 = vrot.lane.b32.xlu0 %v5475, 64
        %v5508 = vpop.permute.xlu0 %5507
        %5509 = vrot.lane.b32.xlu0 %v5476, 64
        %v5510 = vpop.permute.xlu0 %5509
        %5511 = vrot.lane.b32.xlu0 %v5477, 64
        %v5512 = vpop.permute.xlu0 %5511
        %5513 = vrot.lane.b32.xlu0 %v5478, 64
        %v5514 = vpop.permute.xlu0 %5513
        %5515 = vrot.lane.b32.xlu0 %v5479, 64
        %v5516 = vpop.permute.xlu0 %5515
        %5517 = vrot.lane.b32.xlu0 %v5480, 64
        %v5518 = vpop.permute.xlu0 %5517
        %5519 = vrot.lane.b32.xlu0 %v5481, 64
        %v5520 = vpop.permute.xlu0 %5519
        %5521 = vrot.lane.b32.xlu0 %v5482, 64
        %v5522 = vpop.permute.xlu0 %5521
        %5523 = vrot.lane.b32.xlu0 %v5483, 64
        %v5524 = vpop.permute.xlu0 %5523
        %5525 = vrot.lane.b32.xlu0 %v5484, 64
        %v5526 = vpop.permute.xlu0 %5525
        %5527 = vrot.lane.b32.xlu0 %v5485, 64
        %v5528 = vpop.permute.xlu0 %5527
        %5529 = vrot.lane.b32.xlu0 %v5486, 64
        %v5530 = vpop.permute.xlu0 %5529
        %5531 = vrot.lane.b32.xlu0 %v5487, 64
        %v5532 = vpop.permute.xlu0 %5531
        %5533 = vrot.lane.b32.xlu0 %v5488, 64
        %v5534 = vpop.permute.xlu0 %5533
        %5535 = vrot.lane.b32.xlu0 %v5489, 64
        %v5536 = vpop.permute.xlu0 %5535
        %5537 = vrot.lane.b32.xlu0 %v5490, 64
        %v5538 = vpop.permute.xlu0 %5537
        %vm5555 = vcmask 1048064
        %5556 = vst.msk [vmem:[#allocation5] sm:$0xff] %vm5555, %v5508
        %5557 = vst.msk [vmem:[#allocation5 + $0x28] sm:$0xff] %vm5555, %v5510
        %5558 = vst.msk [vmem:[#allocation5 + $0x50] sm:$0xff] %vm5555, %v5512
        %5559 = vst.msk [vmem:[#allocation5 + $0x78] sm:$0xff] %vm5555, %v5514
        %5560 = vst.msk [vmem:[#allocation5 + $0xa0] sm:$0xff] %vm5555, %v5516
        %5561 = vst.msk [vmem:[#allocation5 + $0xc8] sm:$0xff] %vm5555, %v5518
        %5562 = vst.msk [vmem:[#allocation5 + $0xf0] sm:$0xff] %vm5555, %v5520
        %5563 = vst.msk [vmem:[#allocation5 + $0x118] sm:$0xff] %vm5555, %v5522
        %5564 = vst.msk [vmem:[#allocation5 + $0x140] sm:$0xff] %vm5555, %v5524
        %5565 = vst.msk [vmem:[#allocation5 + $0x168] sm:$0xff] %vm5555, %v5526
        %5566 = vst.msk [vmem:[#allocation5 + $0x190] sm:$0xff] %vm5555, %v5528
        %5567 = vst.msk [vmem:[#allocation5 + $0x1b8] sm:$0xff] %vm5555, %v5530
        %5568 = vst.msk [vmem:[#allocation5 + $0x1e0] sm:$0xff] %vm5555, %v5532
        %5569 = vst.msk [vmem:[#allocation5 + $0x208] sm:$0xff] %vm5555, %v5534
        %5570 = vst.msk [vmem:[#allocation5 + $0x230] sm:$0xff] %vm5555, %v5536
        %5571 = vst.msk [vmem:[#allocation5 + $0x258] sm:$0xff] %vm5555, %v5538
        %v5572 = vld [vmem:[#allocation4 + $0x2] sm:$0xff]
        %v5573 = vld [vmem:[#allocation4 + $0xa] sm:$0xff]
        %v5574 = vld [vmem:[#allocation4 + $0x1a] sm:$0xff]
        %v5575 = vld [vmem:[#allocation4 + $0x22] sm:$0xff]
        %v5576 = vld [vmem:[#allocation4 + $0x32] sm:$0xff]
        %v5577 = vld [vmem:[#allocation4 + $0x3a] sm:$0xff]
        %v5578 = vld [vmem:[#allocation4 + $0x4a] sm:$0xff]
        %v5579 = vld [vmem:[#allocation4 + $0x52] sm:$0xff]
        %v5580 = vld [vmem:[#allocation4 + $0x62] sm:$0xff]
        %v5581 = vld [vmem:[#allocation4 + $0x6a] sm:$0xff]
        %v5582 = vld [vmem:[#allocation4 + $0x7a] sm:$0xff]
        %v5583 = vld [vmem:[#allocation4 + $0x82] sm:$0xff]
        %v5584 = vld [vmem:[#allocation4 + $0x92] sm:$0xff]
        %v5585 = vld [vmem:[#allocation4 + $0x9a] sm:$0xff]
        %v5586 = vld [vmem:[#allocation4 + $0xaa] sm:$0xff]
        %v5587 = vld [vmem:[#allocation4 + $0xb2] sm:$0xff]
        %v5588 = vld [vmem:[#allocation4 + $0xc2] sm:$0xff]
        %v5589 = vld [vmem:[#allocation4 + $0xca] sm:$0xff]
        %v5590 = vld [vmem:[#allocation4 + $0xda] sm:$0xff]
        %v5591 = vld [vmem:[#allocation4 + $0xe2] sm:$0xff]
        %v5592 = vld [vmem:[#allocation4 + $0xf2] sm:$0xff]
        %v5593 = vld [vmem:[#allocation4 + $0xfa] sm:$0xff]
        %v5594 = vld [vmem:[#allocation4 + $0x10a] sm:$0xff]
        %v5595 = vld [vmem:[#allocation4 + $0x112] sm:$0xff]
        %v5596 = vld [vmem:[#allocation4 + $0x122] sm:$0xff]
        %v5597 = vld [vmem:[#allocation4 + $0x12a] sm:$0xff]
        %v5598 = vld [vmem:[#allocation4 + $0x13a] sm:$0xff]
        %v5599 = vld [vmem:[#allocation4 + $0x142] sm:$0xff]
        %v5600 = vld [vmem:[#allocation4 + $0x152] sm:$0xff]
        %v5601 = vld [vmem:[#allocation4 + $0x15a] sm:$0xff]
        %v5602 = vld [vmem:[#allocation4 + $0x16a] sm:$0xff]
        %v5603 = vld [vmem:[#allocation4 + $0x172] sm:$0xff]
        %v5604 = vpack.c.bf16 %v5573, %v5572
        %v5605 = vpack.c.bf16 %v5575, %v5574
        %v5606 = vpack.c.bf16 %v5577, %v5576
        %v5607 = vpack.c.bf16 %v5579, %v5578
        %v5608 = vpack.c.bf16 %v5581, %v5580
        %v5609 = vpack.c.bf16 %v5583, %v5582
        %v5610 = vpack.c.bf16 %v5585, %v5584
        %v5611 = vpack.c.bf16 %v5587, %v5586
        %v5612 = vpack.c.bf16 %v5589, %v5588
        %v5613 = vpack.c.bf16 %v5591, %v5590
        %v5614 = vpack.c.bf16 %v5593, %v5592
        %v5615 = vpack.c.bf16 %v5595, %v5594
        %v5616 = vpack.c.bf16 %v5597, %v5596
        %v5617 = vpack.c.bf16 %v5599, %v5598
        %v5618 = vpack.c.bf16 %v5601, %v5600
        %v5619 = vpack.c.bf16 %v5603, %v5602
        %5620 = vst.msk [vmem:[#allocation5 + $0x8] sm:$0xff] %vm3666, %v5604
        %5621 = vst.msk [vmem:[#allocation5 + $0x30] sm:$0xff] %vm3666, %v5605
        %5622 = vst.msk [vmem:[#allocation5 + $0x58] sm:$0xff] %vm3666, %v5606
        %5623 = vst.msk [vmem:[#allocation5 + $0x80] sm:$0xff] %vm3666, %v5607
        %5624 = vst.msk [vmem:[#allocation5 + $0xa8] sm:$0xff] %vm3666, %v5608
        %5625 = vst.msk [vmem:[#allocation5 + $0xd0] sm:$0xff] %vm3666, %v5609
        %5626 = vst.msk [vmem:[#allocation5 + $0xf8] sm:$0xff] %vm3666, %v5610
        %5627 = vst.msk [vmem:[#allocation5 + $0x120] sm:$0xff] %vm3666, %v5611
        %5628 = vst.msk [vmem:[#allocation5 + $0x148] sm:$0xff] %vm3666, %v5612
        %5629 = vst.msk [vmem:[#allocation5 + $0x170] sm:$0xff] %vm3666, %v5613
        %5630 = vst.msk [vmem:[#allocation5 + $0x198] sm:$0xff] %vm3666, %v5614
        %5631 = vst.msk [vmem:[#allocation5 + $0x1c0] sm:$0xff] %vm3666, %v5615
        %5632 = vst.msk [vmem:[#allocation5 + $0x1e8] sm:$0xff] %vm3666, %v5616
        %5633 = vst.msk [vmem:[#allocation5 + $0x210] sm:$0xff] %vm3666, %v5617
        %5634 = vst.msk [vmem:[#allocation5 + $0x238] sm:$0xff] %vm3666, %v5618
        %5635 = vst.msk [vmem:[#allocation5 + $0x260] sm:$0xff] %vm3666, %v5619
        %v5636 = vld [vmem:[%s5346] sm:$0xff]
        %v5637 = vld [vmem:[%s5346 + $0x8] sm:$0xff]
        %v5638 = vld [vmem:[%s5346 + $0x18] sm:$0xff]
        %v5639 = vld [vmem:[%s5346 + $0x20] sm:$0xff]
        %v5640 = vld [vmem:[%s5346 + $0x30] sm:$0xff]
        %v5641 = vld [vmem:[%s5346 + $0x38] sm:$0xff]
        %v5642 = vld [vmem:[%s5346 + $0x48] sm:$0xff]
        %v5643 = vld [vmem:[%s5346 + $0x50] sm:$0xff]
        %v5644 = vld [vmem:[%s5346 + $0x60] sm:$0xff]
        %v5645 = vld [vmem:[%s5346 + $0x68] sm:$0xff]
        %v5646 = vld [vmem:[%s5346 + $0x78] sm:$0xff]
        %v5647 = vld [vmem:[%s5346 + $0x80] sm:$0xff]
        %v5648 = vld [vmem:[%s5346 + $0x90] sm:$0xff]
        %v5649 = vld [vmem:[%s5346 + $0x98] sm:$0xff]
        %v5650 = vld [vmem:[%s5346 + $0xa8] sm:$0xff]
        %v5651 = vld [vmem:[%s5346 + $0xb0] sm:$0xff]
        %v5652 = vld [vmem:[%s5346 + $0xc0] sm:$0xff]
        %v5653 = vld [vmem:[%s5346 + $0xc8] sm:$0xff]
        %v5654 = vld [vmem:[%s5346 + $0xd8] sm:$0xff]
        %v5655 = vld [vmem:[%s5346 + $0xe0] sm:$0xff]
        %v5656 = vld [vmem:[%s5346 + $0xf0] sm:$0xff]
        %v5657 = vld [vmem:[%s5346 + $0xf8] sm:$0xff]
        %v5658 = vld [vmem:[%s5346 + $0x108] sm:$0xff]
        %v5659 = vld [vmem:[%s5346 + $0x110] sm:$0xff]
        %v5660 = vld [vmem:[%s5346 + $0x120] sm:$0xff]
        %v5661 = vld [vmem:[%s5346 + $0x128] sm:$0xff]
        %v5662 = vld [vmem:[%s5346 + $0x138] sm:$0xff]
        %v5663 = vld [vmem:[%s5346 + $0x140] sm:$0xff]
        %v5664 = vld [vmem:[%s5346 + $0x150] sm:$0xff]
        %v5665 = vld [vmem:[%s5346 + $0x158] sm:$0xff]
        %v5666 = vld [vmem:[%s5346 + $0x168] sm:$0xff]
        %v5667 = vld [vmem:[%s5346 + $0x170] sm:$0xff]
        %v5668 = vpack.c.bf16 %v5637, %v5636
        %v5669 = vpack.c.bf16 %v5639, %v5638
        %v5670 = vpack.c.bf16 %v5641, %v5640
        %v5671 = vpack.c.bf16 %v5643, %v5642
        %v5672 = vpack.c.bf16 %v5645, %v5644
        %v5673 = vpack.c.bf16 %v5647, %v5646
        %v5674 = vpack.c.bf16 %v5649, %v5648
        %v5675 = vpack.c.bf16 %v5651, %v5650
        %v5676 = vpack.c.bf16 %v5653, %v5652
        %v5677 = vpack.c.bf16 %v5655, %v5654
        %v5678 = vpack.c.bf16 %v5657, %v5656
        %v5679 = vpack.c.bf16 %v5659, %v5658
        %v5680 = vpack.c.bf16 %v5661, %v5660
        %v5681 = vpack.c.bf16 %v5663, %v5662
        %v5682 = vpack.c.bf16 %v5665, %v5664
        %v5683 = vpack.c.bf16 %v5667, %v5666
        %5700 = vrot.lane.b32.xlu0 %v5668, 64
        %v5701 = vpop.permute.xlu0 %5700
        %5702 = vrot.lane.b32.xlu0 %v5669, 64
        %v5703 = vpop.permute.xlu0 %5702
        %5704 = vrot.lane.b32.xlu0 %v5670, 64
        %v5705 = vpop.permute.xlu0 %5704
        %5706 = vrot.lane.b32.xlu0 %v5671, 64
        %v5707 = vpop.permute.xlu0 %5706
        %5708 = vrot.lane.b32.xlu0 %v5672, 64
        %v5709 = vpop.permute.xlu0 %5708
        %5710 = vrot.lane.b32.xlu0 %v5673, 64
        %v5711 = vpop.permute.xlu0 %5710
        %5712 = vrot.lane.b32.xlu0 %v5674, 64
        %v5713 = vpop.permute.xlu0 %5712
        %5714 = vrot.lane.b32.xlu0 %v5675, 64
        %v5715 = vpop.permute.xlu0 %5714
        %5716 = vrot.lane.b32.xlu0 %v5676, 64
        %v5717 = vpop.permute.xlu0 %5716
        %5718 = vrot.lane.b32.xlu0 %v5677, 64
        %v5719 = vpop.permute.xlu0 %5718
        %5720 = vrot.lane.b32.xlu0 %v5678, 64
        %v5721 = vpop.permute.xlu0 %5720
        %5722 = vrot.lane.b32.xlu0 %v5679, 64
        %v5723 = vpop.permute.xlu0 %5722
        %5724 = vrot.lane.b32.xlu0 %v5680, 64
        %v5725 = vpop.permute.xlu0 %5724
        %5726 = vrot.lane.b32.xlu0 %v5681, 64
        %v5727 = vpop.permute.xlu0 %5726
        %5728 = vrot.lane.b32.xlu0 %v5682, 64
        %v5729 = vpop.permute.xlu0 %5728
        %5730 = vrot.lane.b32.xlu0 %v5683, 64
        %v5731 = vpop.permute.xlu0 %5730
        %5748 = vst.msk [vmem:[#allocation5 + $0x8] sm:$0xff] %vm5555, %v5701
        %5749 = vst.msk [vmem:[#allocation5 + $0x30] sm:$0xff] %vm5555, %v5703
        %5750 = vst.msk [vmem:[#allocation5 + $0x58] sm:$0xff] %vm5555, %v5705
        %5751 = vst.msk [vmem:[#allocation5 + $0x80] sm:$0xff] %vm5555, %v5707
        %5752 = vst.msk [vmem:[#allocation5 + $0xa8] sm:$0xff] %vm5555, %v5709
        %5753 = vst.msk [vmem:[#allocation5 + $0xd0] sm:$0xff] %vm5555, %v5711
        %5754 = vst.msk [vmem:[#allocation5 + $0xf8] sm:$0xff] %vm5555, %v5713
        %5755 = vst.msk [vmem:[#allocation5 + $0x120] sm:$0xff] %vm5555, %v5715
        %5756 = vst.msk [vmem:[#allocation5 + $0x148] sm:$0xff] %vm5555, %v5717
        %5757 = vst.msk [vmem:[#allocation5 + $0x170] sm:$0xff] %vm5555, %v5719
        %5758 = vst.msk [vmem:[#allocation5 + $0x198] sm:$0xff] %vm5555, %v5721
        %5759 = vst.msk [vmem:[#allocation5 + $0x1c0] sm:$0xff] %vm5555, %v5723
        %5760 = vst.msk [vmem:[#allocation5 + $0x1e8] sm:$0xff] %vm5555, %v5725
        %5761 = vst.msk [vmem:[#allocation5 + $0x210] sm:$0xff] %vm5555, %v5727
        %5762 = vst.msk [vmem:[#allocation5 + $0x238] sm:$0xff] %vm5555, %v5729
        %5763 = vst.msk [vmem:[#allocation5 + $0x260] sm:$0xff] %vm5555, %v5731
        %v5764 = vld [vmem:[%s5346 + $0x1] sm:$0xff]
        %v5765 = vld [vmem:[%s5346 + $0x9] sm:$0xff]
        %v5766 = vld [vmem:[%s5346 + $0x19] sm:$0xff]
        %v5767 = vld [vmem:[%s5346 + $0x21] sm:$0xff]
        %v5768 = vld [vmem:[%s5346 + $0x31] sm:$0xff]
        %v5769 = vld [vmem:[%s5346 + $0x39] sm:$0xff]
        %v5770 = vld [vmem:[%s5346 + $0x49] sm:$0xff]
        %v5771 = vld [vmem:[%s5346 + $0x51] sm:$0xff]
        %v5772 = vld [vmem:[%s5346 + $0x61] sm:$0xff]
        %v5773 = vld [vmem:[%s5346 + $0x69] sm:$0xff]
        %v5774 = vld [vmem:[%s5346 + $0x79] sm:$0xff]
        %v5775 = vld [vmem:[%s5346 + $0x81] sm:$0xff]
        %v5776 = vld [vmem:[%s5346 + $0x91] sm:$0xff]
        %v5777 = vld [vmem:[%s5346 + $0x99] sm:$0xff]
        %v5778 = vld [vmem:[%s5346 + $0xa9] sm:$0xff]
        %v5779 = vld [vmem:[%s5346 + $0xb1] sm:$0xff]
        %v5780 = vld [vmem:[%s5346 + $0xc1] sm:$0xff]
        %v5781 = vld [vmem:[%s5346 + $0xc9] sm:$0xff]
        %v5782 = vld [vmem:[%s5346 + $0xd9] sm:$0xff]
        %v5783 = vld [vmem:[%s5346 + $0xe1] sm:$0xff]
        %v5784 = vld [vmem:[%s5346 + $0xf1] sm:$0xff]
        %v5785 = vld [vmem:[%s5346 + $0xf9] sm:$0xff]
        %v5786 = vld [vmem:[%s5346 + $0x109] sm:$0xff]
        %v5787 = vld [vmem:[%s5346 + $0x111] sm:$0xff]
        %v5788 = vld [vmem:[%s5346 + $0x121] sm:$0xff]
        %v5789 = vld [vmem:[%s5346 + $0x129] sm:$0xff]
        %v5790 = vld [vmem:[%s5346 + $0x139] sm:$0xff]
        %v5791 = vld [vmem:[%s5346 + $0x141] sm:$0xff]
        %v5792 = vld [vmem:[%s5346 + $0x151] sm:$0xff]
        %v5793 = vld [vmem:[%s5346 + $0x159] sm:$0xff]
        %v5794 = vld [vmem:[%s5346 + $0x169] sm:$0xff]
        %v5795 = vld [vmem:[%s5346 + $0x171] sm:$0xff]
        %v5796 = vpack.c.bf16 %v5765, %v5764
        %v5797 = vpack.c.bf16 %v5767, %v5766
        %v5798 = vpack.c.bf16 %v5769, %v5768
        %v5799 = vpack.c.bf16 %v5771, %v5770
        %v5800 = vpack.c.bf16 %v5773, %v5772
        %v5801 = vpack.c.bf16 %v5775, %v5774
        %v5802 = vpack.c.bf16 %v5777, %v5776
        %v5803 = vpack.c.bf16 %v5779, %v5778
        %v5804 = vpack.c.bf16 %v5781, %v5780
        %v5805 = vpack.c.bf16 %v5783, %v5782
        %v5806 = vpack.c.bf16 %v5785, %v5784
        %v5807 = vpack.c.bf16 %v5787, %v5786
        %v5808 = vpack.c.bf16 %v5789, %v5788
        %v5809 = vpack.c.bf16 %v5791, %v5790
        %v5810 = vpack.c.bf16 %v5793, %v5792
        %v5811 = vpack.c.bf16 %v5795, %v5794
        %5812 = vst.msk [vmem:[#allocation5 + $0x10] sm:$0xff] %vm3666, %v5796
        %5813 = vst.msk [vmem:[#allocation5 + $0x38] sm:$0xff] %vm3666, %v5797
        %5814 = vst.msk [vmem:[#allocation5 + $0x60] sm:$0xff] %vm3666, %v5798
        %5815 = vst.msk [vmem:[#allocation5 + $0x88] sm:$0xff] %vm3666, %v5799
        %5816 = vst.msk [vmem:[#allocation5 + $0xb0] sm:$0xff] %vm3666, %v5800
        %5817 = vst.msk [vmem:[#allocation5 + $0xd8] sm:$0xff] %vm3666, %v5801
        %5818 = vst.msk [vmem:[#allocation5 + $0x100] sm:$0xff] %vm3666, %v5802
        %5819 = vst.msk [vmem:[#allocation5 + $0x128] sm:$0xff] %vm3666, %v5803
        %5820 = vst.msk [vmem:[#allocation5 + $0x150] sm:$0xff] %vm3666, %v5804
        %5821 = vst.msk [vmem:[#allocation5 + $0x178] sm:$0xff] %vm3666, %v5805
        %5822 = vst.msk [vmem:[#allocation5 + $0x1a0] sm:$0xff] %vm3666, %v5806
        %5823 = vst.msk [vmem:[#allocation5 + $0x1c8] sm:$0xff] %vm3666, %v5807
        %5824 = vst.msk [vmem:[#allocation5 + $0x1f0] sm:$0xff] %vm3666, %v5808
        %5825 = vst.msk [vmem:[#allocation5 + $0x218] sm:$0xff] %vm3666, %v5809
        %5826 = vst.msk [vmem:[#allocation5 + $0x240] sm:$0xff] %vm3666, %v5810
        %5827 = vst.msk [vmem:[#allocation5 + $0x268] sm:$0xff] %vm3666, %v5811
        %v5828 = vld [vmem:[%s5346 + $0x2] sm:$0xff]
        %v5829 = vld [vmem:[%s5346 + $0xa] sm:$0xff]
        %v5830 = vld [vmem:[%s5346 + $0x1a] sm:$0xff]
        %v5831 = vld [vmem:[%s5346 + $0x22] sm:$0xff]
        %v5832 = vld [vmem:[%s5346 + $0x32] sm:$0xff]
        %v5833 = vld [vmem:[%s5346 + $0x3a] sm:$0xff]
        %v5834 = vld [vmem:[%s5346 + $0x4a] sm:$0xff]
        %v5835 = vld [vmem:[%s5346 + $0x52] sm:$0xff]
        %v5836 = vld [vmem:[%s5346 + $0x62] sm:$0xff]
        %v5837 = vld [vmem:[%s5346 + $0x6a] sm:$0xff]
        %v5838 = vld [vmem:[%s5346 + $0x7a] sm:$0xff]
        %v5839 = vld [vmem:[%s5346 + $0x82] sm:$0xff]
        %v5840 = vld [vmem:[%s5346 + $0x92] sm:$0xff]
        %v5841 = vld [vmem:[%s5346 + $0x9a] sm:$0xff]
        %v5842 = vld [vmem:[%s5346 + $0xaa] sm:$0xff]
        %v5843 = vld [vmem:[%s5346 + $0xb2] sm:$0xff]
        %v5844 = vld [vmem:[%s5346 + $0xc2] sm:$0xff]
        %v5845 = vld [vmem:[%s5346 + $0xca] sm:$0xff]
        %v5846 = vld [vmem:[%s5346 + $0xda] sm:$0xff]
        %v5847 = vld [vmem:[%s5346 + $0xe2] sm:$0xff]
        %v5848 = vld [vmem:[%s5346 + $0xf2] sm:$0xff]
        %v5849 = vld [vmem:[%s5346 + $0xfa] sm:$0xff]
        %v5850 = vld [vmem:[%s5346 + $0x10a] sm:$0xff]
        %v5851 = vld [vmem:[%s5346 + $0x112] sm:$0xff]
        %v5852 = vld [vmem:[%s5346 + $0x122] sm:$0xff]
        %v5853 = vld [vmem:[%s5346 + $0x12a] sm:$0xff]
        %v5854 = vld [vmem:[%s5346 + $0x13a] sm:$0xff]
        %v5855 = vld [vmem:[%s5346 + $0x142] sm:$0xff]
        %v5856 = vld [vmem:[%s5346 + $0x152] sm:$0xff]
        %v5857 = vld [vmem:[%s5346 + $0x15a] sm:$0xff]
        %v5858 = vld [vmem:[%s5346 + $0x16a] sm:$0xff]
        %v5859 = vld [vmem:[%s5346 + $0x172] sm:$0xff]
        %v5860 = vpack.c.bf16 %v5829, %v5828
        %v5861 = vpack.c.bf16 %v5831, %v5830
        %v5862 = vpack.c.bf16 %v5833, %v5832
        %v5863 = vpack.c.bf16 %v5835, %v5834
        %v5864 = vpack.c.bf16 %v5837, %v5836
        %v5865 = vpack.c.bf16 %v5839, %v5838
        %v5866 = vpack.c.bf16 %v5841, %v5840
        %v5867 = vpack.c.bf16 %v5843, %v5842
        %v5868 = vpack.c.bf16 %v5845, %v5844
        %v5869 = vpack.c.bf16 %v5847, %v5846
        %v5870 = vpack.c.bf16 %v5849, %v5848
        %v5871 = vpack.c.bf16 %v5851, %v5850
        %v5872 = vpack.c.bf16 %v5853, %v5852
        %v5873 = vpack.c.bf16 %v5855, %v5854
        %v5874 = vpack.c.bf16 %v5857, %v5856
        %v5875 = vpack.c.bf16 %v5859, %v5858
        %5892 = vrot.lane.b32.xlu0 %v5860, 64
        %v5893 = vpop.permute.xlu0 %5892
        %5894 = vrot.lane.b32.xlu0 %v5861, 64
        %v5895 = vpop.permute.xlu0 %5894
        %5896 = vrot.lane.b32.xlu0 %v5862, 64
        %v5897 = vpop.permute.xlu0 %5896
        %5898 = vrot.lane.b32.xlu0 %v5863, 64
        %v5899 = vpop.permute.xlu0 %5898
        %5900 = vrot.lane.b32.xlu0 %v5864, 64
        %v5901 = vpop.permute.xlu0 %5900
        %5902 = vrot.lane.b32.xlu0 %v5865, 64
        %v5903 = vpop.permute.xlu0 %5902
        %5904 = vrot.lane.b32.xlu0 %v5866, 64
        %v5905 = vpop.permute.xlu0 %5904
        %5906 = vrot.lane.b32.xlu0 %v5867, 64
        %v5907 = vpop.permute.xlu0 %5906
        %5908 = vrot.lane.b32.xlu0 %v5868, 64
        %v5909 = vpop.permute.xlu0 %5908
        %5910 = vrot.lane.b32.xlu0 %v5869, 64
        %v5911 = vpop.permute.xlu0 %5910
        %5912 = vrot.lane.b32.xlu0 %v5870, 64
        %v5913 = vpop.permute.xlu0 %5912
        %5914 = vrot.lane.b32.xlu0 %v5871, 64
        %v5915 = vpop.permute.xlu0 %5914
        %5916 = vrot.lane.b32.xlu0 %v5872, 64
        %v5917 = vpop.permute.xlu0 %5916
        %5918 = vrot.lane.b32.xlu0 %v5873, 64
        %v5919 = vpop.permute.xlu0 %5918
        %5920 = vrot.lane.b32.xlu0 %v5874, 64
        %v5921 = vpop.permute.xlu0 %5920
        %5922 = vrot.lane.b32.xlu0 %v5875, 64
        %v5923 = vpop.permute.xlu0 %5922
        %5940 = vst.msk [vmem:[#allocation5 + $0x10] sm:$0xff] %vm5555, %v5893
        %5941 = vst.msk [vmem:[#allocation5 + $0x38] sm:$0xff] %vm5555, %v5895
        %5942 = vst.msk [vmem:[#allocation5 + $0x60] sm:$0xff] %vm5555, %v5897
        %5943 = vst.msk [vmem:[#allocation5 + $0x88] sm:$0xff] %vm5555, %v5899
        %5944 = vst.msk [vmem:[#allocation5 + $0xb0] sm:$0xff] %vm5555, %v5901
        %5945 = vst.msk [vmem:[#allocation5 + $0xd8] sm:$0xff] %vm5555, %v5903
        %5946 = vst.msk [vmem:[#allocation5 + $0x100] sm:$0xff] %vm5555, %v5905
        %5947 = vst.msk [vmem:[#allocation5 + $0x128] sm:$0xff] %vm5555, %v5907
        %5948 = vst.msk [vmem:[#allocation5 + $0x150] sm:$0xff] %vm5555, %v5909
        %5949 = vst.msk [vmem:[#allocation5 + $0x178] sm:$0xff] %vm5555, %v5911
        %5950 = vst.msk [vmem:[#allocation5 + $0x1a0] sm:$0xff] %vm5555, %v5913
        %5951 = vst.msk [vmem:[#allocation5 + $0x1c8] sm:$0xff] %vm5555, %v5915
        %5952 = vst.msk [vmem:[#allocation5 + $0x1f0] sm:$0xff] %vm5555, %v5917
        %5953 = vst.msk [vmem:[#allocation5 + $0x218] sm:$0xff] %vm5555, %v5919
        %5954 = vst.msk [vmem:[#allocation5 + $0x240] sm:$0xff] %vm5555, %v5921
        %5955 = vst.msk [vmem:[#allocation5 + $0x268] sm:$0xff] %vm5555, %v5923
        %s5956 = scalar_lea.vmem [#allocation4], 48
        %v5957 = vld [vmem:[%s5956] sm:$0xff]
        %v5958 = vld [vmem:[%s5956 + $0x8] sm:$0xff]
        %v5959 = vld [vmem:[%s5956 + $0x18] sm:$0xff]
        %v5960 = vld [vmem:[%s5956 + $0x20] sm:$0xff]
        %v5961 = vld [vmem:[%s5956 + $0x30] sm:$0xff]
        %v5962 = vld [vmem:[%s5956 + $0x38] sm:$0xff]
        %v5963 = vld [vmem:[%s5956 + $0x48] sm:$0xff]
        %v5964 = vld [vmem:[%s5956 + $0x50] sm:$0xff]
        %v5965 = vld [vmem:[%s5956 + $0x60] sm:$0xff]
        %v5966 = vld [vmem:[%s5956 + $0x68] sm:$0xff]
        %v5967 = vld [vmem:[%s5956 + $0x78] sm:$0xff]
        %v5968 = vld [vmem:[%s5956 + $0x80] sm:$0xff]
        %v5969 = vld [vmem:[%s5956 + $0x90] sm:$0xff]
        %v5970 = vld [vmem:[%s5956 + $0x98] sm:$0xff]
        %v5971 = vld [vmem:[%s5956 + $0xa8] sm:$0xff]
        %v5972 = vld [vmem:[%s5956 + $0xb0] sm:$0xff]
        %v5973 = vld [vmem:[%s5956 + $0xc0] sm:$0xff]
        %v5974 = vld [vmem:[%s5956 + $0xc8] sm:$0xff]
        %v5975 = vld [vmem:[%s5956 + $0xd8] sm:$0xff]
        %v5976 = vld [vmem:[%s5956 + $0xe0] sm:$0xff]
        %v5977 = vld [vmem:[%s5956 + $0xf0] sm:$0xff]
        %v5978 = vld [vmem:[%s5956 + $0xf8] sm:$0xff]
        %v5979 = vld [vmem:[%s5956 + $0x108] sm:$0xff]
        %v5980 = vld [vmem:[%s5956 + $0x110] sm:$0xff]
        %v5981 = vld [vmem:[%s5956 + $0x120] sm:$0xff]
        %v5982 = vld [vmem:[%s5956 + $0x128] sm:$0xff]
        %v5983 = vld [vmem:[%s5956 + $0x138] sm:$0xff]
        %v5984 = vld [vmem:[%s5956 + $0x140] sm:$0xff]
        %v5985 = vld [vmem:[%s5956 + $0x150] sm:$0xff]
        %v5986 = vld [vmem:[%s5956 + $0x158] sm:$0xff]
        %v5987 = vld [vmem:[%s5956 + $0x168] sm:$0xff]
        %v5988 = vld [vmem:[%s5956 + $0x170] sm:$0xff]
        %v5989 = vpack.c.bf16 %v5958, %v5957
        %v5990 = vpack.c.bf16 %v5960, %v5959
        %v5991 = vpack.c.bf16 %v5962, %v5961
        %v5992 = vpack.c.bf16 %v5964, %v5963
        %v5993 = vpack.c.bf16 %v5966, %v5965
        %v5994 = vpack.c.bf16 %v5968, %v5967
        %v5995 = vpack.c.bf16 %v5970, %v5969
        %v5996 = vpack.c.bf16 %v5972, %v5971
        %v5997 = vpack.c.bf16 %v5974, %v5973
        %v5998 = vpack.c.bf16 %v5976, %v5975
        %v5999 = vpack.c.bf16 %v5978, %v5977
        %v6000 = vpack.c.bf16 %v5980, %v5979
        %v6001 = vpack.c.bf16 %v5982, %v5981
        %v6002 = vpack.c.bf16 %v5984, %v5983
        %v6003 = vpack.c.bf16 %v5986, %v5985
        %v6004 = vpack.c.bf16 %v5988, %v5987
        %6005 = vst.msk [vmem:[#allocation5 + $0x18] sm:$0xff] %vm3666, %v5989
        %6006 = vst.msk [vmem:[#allocation5 + $0x40] sm:$0xff] %vm3666, %v5990
        %6007 = vst.msk [vmem:[#allocation5 + $0x68] sm:$0xff] %vm3666, %v5991
        %6008 = vst.msk [vmem:[#allocation5 + $0x90] sm:$0xff] %vm3666, %v5992
        %6009 = vst.msk [vmem:[#allocation5 + $0xb8] sm:$0xff] %vm3666, %v5993
        %6010 = vst.msk [vmem:[#allocation5 + $0xe0] sm:$0xff] %vm3666, %v5994
        %6011 = vst.msk [vmem:[#allocation5 + $0x108] sm:$0xff] %vm3666, %v5995
        %6012 = vst.msk [vmem:[#allocation5 + $0x130] sm:$0xff] %vm3666, %v5996
        %6013 = vst.msk [vmem:[#allocation5 + $0x158] sm:$0xff] %vm3666, %v5997
        %6014 = vst.msk [vmem:[#allocation5 + $0x180] sm:$0xff] %vm3666, %v5998
        %6015 = vst.msk [vmem:[#allocation5 + $0x1a8] sm:$0xff] %vm3666, %v5999
        %6016 = vst.msk [vmem:[#allocation5 + $0x1d0] sm:$0xff] %vm3666, %v6000
        %6017 = vst.msk [vmem:[#allocation5 + $0x1f8] sm:$0xff] %vm3666, %v6001
        %6018 = vst.msk [vmem:[#allocation5 + $0x220] sm:$0xff] %vm3666, %v6002
        %6019 = vst.msk [vmem:[#allocation5 + $0x248] sm:$0xff] %vm3666, %v6003
        %6020 = vst.msk [vmem:[#allocation5 + $0x270] sm:$0xff] %vm3666, %v6004
        %v6021 = vld [vmem:[%s5956 + $0x1] sm:$0xff]
        %v6022 = vld [vmem:[%s5956 + $0x9] sm:$0xff]
        %v6023 = vld [vmem:[%s5956 + $0x19] sm:$0xff]
        %v6024 = vld [vmem:[%s5956 + $0x21] sm:$0xff]
        %v6025 = vld [vmem:[%s5956 + $0x31] sm:$0xff]
        %v6026 = vld [vmem:[%s5956 + $0x39] sm:$0xff]
        %v6027 = vld [vmem:[%s5956 + $0x49] sm:$0xff]
        %v6028 = vld [vmem:[%s5956 + $0x51] sm:$0xff]
        %v6029 = vld [vmem:[%s5956 + $0x61] sm:$0xff]
        %v6030 = vld [vmem:[%s5956 + $0x69] sm:$0xff]
        %v6031 = vld [vmem:[%s5956 + $0x79] sm:$0xff]
        %v6032 = vld [vmem:[%s5956 + $0x81] sm:$0xff]
        %v6033 = vld [vmem:[%s5956 + $0x91] sm:$0xff]
        %v6034 = vld [vmem:[%s5956 + $0x99] sm:$0xff]
        %v6035 = vld [vmem:[%s5956 + $0xa9] sm:$0xff]
        %v6036 = vld [vmem:[%s5956 + $0xb1] sm:$0xff]
        %v6037 = vld [vmem:[%s5956 + $0xc1] sm:$0xff]
        %v6038 = vld [vmem:[%s5956 + $0xc9] sm:$0xff]
        %v6039 = vld [vmem:[%s5956 + $0xd9] sm:$0xff]
        %v6040 = vld [vmem:[%s5956 + $0xe1] sm:$0xff]
        %v6041 = vld [vmem:[%s5956 + $0xf1] sm:$0xff]
        %v6042 = vld [vmem:[%s5956 + $0xf9] sm:$0xff]
        %v6043 = vld [vmem:[%s5956 + $0x109] sm:$0xff]
        %v6044 = vld [vmem:[%s5956 + $0x111] sm:$0xff]
        %v6045 = vld [vmem:[%s5956 + $0x121] sm:$0xff]
        %v6046 = vld [vmem:[%s5956 + $0x129] sm:$0xff]
        %v6047 = vld [vmem:[%s5956 + $0x139] sm:$0xff]
        %v6048 = vld [vmem:[%s5956 + $0x141] sm:$0xff]
        %v6049 = vld [vmem:[%s5956 + $0x151] sm:$0xff]
        %v6050 = vld [vmem:[%s5956 + $0x159] sm:$0xff]
        %v6051 = vld [vmem:[%s5956 + $0x169] sm:$0xff]
        %v6052 = vld [vmem:[%s5956 + $0x171] sm:$0xff]
        %v6053 = vpack.c.bf16 %v6022, %v6021
        %v6054 = vpack.c.bf16 %v6024, %v6023
        %v6055 = vpack.c.bf16 %v6026, %v6025
        %v6056 = vpack.c.bf16 %v6028, %v6027
        %v6057 = vpack.c.bf16 %v6030, %v6029
        %v6058 = vpack.c.bf16 %v6032, %v6031
        %v6059 = vpack.c.bf16 %v6034, %v6033
        %v6060 = vpack.c.bf16 %v6036, %v6035
        %v6061 = vpack.c.bf16 %v6038, %v6037
        %v6062 = vpack.c.bf16 %v6040, %v6039
        %v6063 = vpack.c.bf16 %v6042, %v6041
        %v6064 = vpack.c.bf16 %v6044, %v6043
        %v6065 = vpack.c.bf16 %v6046, %v6045
        %v6066 = vpack.c.bf16 %v6048, %v6047
        %v6067 = vpack.c.bf16 %v6050, %v6049
        %v6068 = vpack.c.bf16 %v6052, %v6051
        %6085 = vrot.lane.b32.xlu0 %v6053, 64
        %v6086 = vpop.permute.xlu0 %6085
        %6087 = vrot.lane.b32.xlu0 %v6054, 64
        %v6088 = vpop.permute.xlu0 %6087
        %6089 = vrot.lane.b32.xlu0 %v6055, 64
        %v6090 = vpop.permute.xlu0 %6089
        %6091 = vrot.lane.b32.xlu0 %v6056, 64
        %v6092 = vpop.permute.xlu0 %6091
        %6093 = vrot.lane.b32.xlu0 %v6057, 64
        %v6094 = vpop.permute.xlu0 %6093
        %6095 = vrot.lane.b32.xlu0 %v6058, 64
        %v6096 = vpop.permute.xlu0 %6095
        %6097 = vrot.lane.b32.xlu0 %v6059, 64
        %v6098 = vpop.permute.xlu0 %6097
        %6099 = vrot.lane.b32.xlu0 %v6060, 64
        %v6100 = vpop.permute.xlu0 %6099
        %6101 = vrot.lane.b32.xlu0 %v6061, 64
        %v6102 = vpop.permute.xlu0 %6101
        %6103 = vrot.lane.b32.xlu0 %v6062, 64
        %v6104 = vpop.permute.xlu0 %6103
        %6105 = vrot.lane.b32.xlu0 %v6063, 64
        %v6106 = vpop.permute.xlu0 %6105
        %6107 = vrot.lane.b32.xlu0 %v6064, 64
        %v6108 = vpop.permute.xlu0 %6107
        %6109 = vrot.lane.b32.xlu0 %v6065, 64
        %v6110 = vpop.permute.xlu0 %6109
        %6111 = vrot.lane.b32.xlu0 %v6066, 64
        %v6112 = vpop.permute.xlu0 %6111
        %6113 = vrot.lane.b32.xlu0 %v6067, 64
        %v6114 = vpop.permute.xlu0 %6113
        %6115 = vrot.lane.b32.xlu0 %v6068, 64
        %v6116 = vpop.permute.xlu0 %6115
        %6133 = vst.msk [vmem:[#allocation5 + $0x18] sm:$0xff] %vm5555, %v6086
        %6134 = vst.msk [vmem:[#allocation5 + $0x40] sm:$0xff] %vm5555, %v6088
        %6135 = vst.msk [vmem:[#allocation5 + $0x68] sm:$0xff] %vm5555, %v6090
        %6136 = vst.msk [vmem:[#allocation5 + $0x90] sm:$0xff] %vm5555, %v6092
        %6137 = vst.msk [vmem:[#allocation5 + $0xb8] sm:$0xff] %vm5555, %v6094
        %6138 = vst.msk [vmem:[#allocation5 + $0xe0] sm:$0xff] %vm5555, %v6096
        %6139 = vst.msk [vmem:[#allocation5 + $0x108] sm:$0xff] %vm5555, %v6098
        %6140 = vst.msk [vmem:[#allocation5 + $0x130] sm:$0xff] %vm5555, %v6100
        %6141 = vst.msk [vmem:[#allocation5 + $0x158] sm:$0xff] %vm5555, %v6102
        %6142 = vst.msk [vmem:[#allocation5 + $0x180] sm:$0xff] %vm5555, %v6104
        %6143 = vst.msk [vmem:[#allocation5 + $0x1a8] sm:$0xff] %vm5555, %v6106
        %6144 = vst.msk [vmem:[#allocation5 + $0x1d0] sm:$0xff] %vm5555, %v6108
        %6145 = vst.msk [vmem:[#allocation5 + $0x1f8] sm:$0xff] %vm5555, %v6110
        %6146 = vst.msk [vmem:[#allocation5 + $0x220] sm:$0xff] %vm5555, %v6112
        %6147 = vst.msk [vmem:[#allocation5 + $0x248] sm:$0xff] %vm5555, %v6114
        %6148 = vst.msk [vmem:[#allocation5 + $0x270] sm:$0xff] %vm5555, %v6116
        %v6149 = vld [vmem:[%s5956 + $0x2] sm:$0xff]
        %v6150 = vld [vmem:[%s5956 + $0xa] sm:$0xff]
        %v6151 = vld [vmem:[%s5956 + $0x1a] sm:$0xff]
        %v6152 = vld [vmem:[%s5956 + $0x22] sm:$0xff]
        %v6153 = vld [vmem:[%s5956 + $0x32] sm:$0xff]
        %v6154 = vld [vmem:[%s5956 + $0x3a] sm:$0xff]
        %v6155 = vld [vmem:[%s5956 + $0x4a] sm:$0xff]
        %v6156 = vld [vmem:[%s5956 + $0x52] sm:$0xff]
        %v6157 = vld [vmem:[%s5956 + $0x62] sm:$0xff]
        %v6158 = vld [vmem:[%s5956 + $0x6a] sm:$0xff]
        %v6159 = vld [vmem:[%s5956 + $0x7a] sm:$0xff]
        %v6160 = vld [vmem:[%s5956 + $0x82] sm:$0xff]
        %v6161 = vld [vmem:[%s5956 + $0x92] sm:$0xff]
        %v6162 = vld [vmem:[%s5956 + $0x9a] sm:$0xff]
        %v6163 = vld [vmem:[%s5956 + $0xaa] sm:$0xff]
        %v6164 = vld [vmem:[%s5956 + $0xb2] sm:$0xff]
        %v6165 = vld [vmem:[%s5956 + $0xc2] sm:$0xff]
        %v6166 = vld [vmem:[%s5956 + $0xca] sm:$0xff]
        %v6167 = vld [vmem:[%s5956 + $0xda] sm:$0xff]
        %v6168 = vld [vmem:[%s5956 + $0xe2] sm:$0xff]
        %v6169 = vld [vmem:[%s5956 + $0xf2] sm:$0xff]
        %v6170 = vld [vmem:[%s5956 + $0xfa] sm:$0xff]
        %v6171 = vld [vmem:[%s5956 + $0x10a] sm:$0xff]
        %v6172 = vld [vmem:[%s5956 + $0x112] sm:$0xff]
        %v6173 = vld [vmem:[%s5956 + $0x122] sm:$0xff]
        %v6174 = vld [vmem:[%s5956 + $0x12a] sm:$0xff]
        %v6175 = vld [vmem:[%s5956 + $0x13a] sm:$0xff]
        %v6176 = vld [vmem:[%s5956 + $0x142] sm:$0xff]
        %v6177 = vld [vmem:[%s5956 + $0x152] sm:$0xff]
        %v6178 = vld [vmem:[%s5956 + $0x15a] sm:$0xff]
        %v6179 = vld [vmem:[%s5956 + $0x16a] sm:$0xff]
        %v6180 = vld [vmem:[%s5956 + $0x172] sm:$0xff]
        %v6181 = vpack.c.bf16 %v6150, %v6149
        %v6182 = vpack.c.bf16 %v6152, %v6151
        %v6183 = vpack.c.bf16 %v6154, %v6153
        %v6184 = vpack.c.bf16 %v6156, %v6155
        %v6185 = vpack.c.bf16 %v6158, %v6157
        %v6186 = vpack.c.bf16 %v6160, %v6159
        %v6187 = vpack.c.bf16 %v6162, %v6161
        %v6188 = vpack.c.bf16 %v6164, %v6163
        %v6189 = vpack.c.bf16 %v6166, %v6165
        %v6190 = vpack.c.bf16 %v6168, %v6167
        %v6191 = vpack.c.bf16 %v6170, %v6169
        %v6192 = vpack.c.bf16 %v6172, %v6171
        %v6193 = vpack.c.bf16 %v6174, %v6173
        %v6194 = vpack.c.bf16 %v6176, %v6175
        %v6195 = vpack.c.bf16 %v6178, %v6177
        %v6196 = vpack.c.bf16 %v6180, %v6179
        %6197 = vst.msk [vmem:[#allocation5 + $0x20] sm:$0xff] %vm3666, %v6181
        %6198 = vst.msk [vmem:[#allocation5 + $0x48] sm:$0xff] %vm3666, %v6182
        %6199 = vst.msk [vmem:[#allocation5 + $0x70] sm:$0xff] %vm3666, %v6183
        %6200 = vst.msk [vmem:[#allocation5 + $0x98] sm:$0xff] %vm3666, %v6184
        %6201 = vst.msk [vmem:[#allocation5 + $0xc0] sm:$0xff] %vm3666, %v6185
        %6202 = vst.msk [vmem:[#allocation5 + $0xe8] sm:$0xff] %vm3666, %v6186
        %6203 = vst.msk [vmem:[#allocation5 + $0x110] sm:$0xff] %vm3666, %v6187
        %6204 = vst.msk [vmem:[#allocation5 + $0x138] sm:$0xff] %vm3666, %v6188
        %6205 = vst.msk [vmem:[#allocation5 + $0x160] sm:$0xff] %vm3666, %v6189
        %6206 = vst.msk [vmem:[#allocation5 + $0x188] sm:$0xff] %vm3666, %v6190
        %6207 = vst.msk [vmem:[#allocation5 + $0x1b0] sm:$0xff] %vm3666, %v6191
        %6208 = vst.msk [vmem:[#allocation5 + $0x1d8] sm:$0xff] %vm3666, %v6192
        %6209 = vst.msk [vmem:[#allocation5 + $0x200] sm:$0xff] %vm3666, %v6193
        %6210 = vst.msk [vmem:[#allocation5 + $0x228] sm:$0xff] %vm3666, %v6194
        %6211 = vst.msk [vmem:[#allocation5 + $0x250] sm:$0xff] %vm3666, %v6195
        %6212 = vst.msk [vmem:[#allocation5 + $0x278] sm:$0xff] %vm3666, %v6196
        %v6213 = vld [vmem:[#allocation5] sm:$0xff]
        %v6214 = vld [vmem:[#allocation5 + $0x8] sm:$0xff]
        %v6215 = vld [vmem:[#allocation5 + $0x10] sm:$0xff]
        %v6216 = vld [vmem:[#allocation5 + $0x18] sm:$0xff]
        %v6217 = vld [vmem:[#allocation5 + $0x20] sm:$0xff]
        %v6218 = vld [vmem:[#allocation5 + $0x28] sm:$0xff]
        %v6219 = vld [vmem:[#allocation5 + $0x30] sm:$0xff]
        %v6220 = vld [vmem:[#allocation5 + $0x38] sm:$0xff]
        %v6221 = vld [vmem:[#allocation5 + $0x40] sm:$0xff]
        %v6222 = vld [vmem:[#allocation5 + $0x48] sm:$0xff]
        %v6223 = vld [vmem:[#allocation5 + $0x50] sm:$0xff]
        %v6224 = vld [vmem:[#allocation5 + $0x58] sm:$0xff]
        %v6225 = vld [vmem:[#allocation5 + $0x60] sm:$0xff]
        %v6226 = vld [vmem:[#allocation5 + $0x68] sm:$0xff]
        %v6227 = vld [vmem:[#allocation5 + $0x70] sm:$0xff]
        %v6228 = vld [vmem:[#allocation5 + $0x78] sm:$0xff]
        %v6229 = vld [vmem:[#allocation5 + $0x80] sm:$0xff]
        %v6230 = vld [vmem:[#allocation5 + $0x88] sm:$0xff]
        %v6231 = vld [vmem:[#allocation5 + $0x90] sm:$0xff]
        %v6232 = vld [vmem:[#allocation5 + $0x98] sm:$0xff]
        %v6233 = vld [vmem:[#allocation5 + $0xa0] sm:$0xff]
        %v6234 = vld [vmem:[#allocation5 + $0xa8] sm:$0xff]
        %v6235 = vld [vmem:[#allocation5 + $0xb0] sm:$0xff]
        %v6236 = vld [vmem:[#allocation5 + $0xb8] sm:$0xff]
        %v6237 = vld [vmem:[#allocation5 + $0xc0] sm:$0xff]
        %v6238 = vld [vmem:[#allocation5 + $0xc8] sm:$0xff]
        %v6239 = vld [vmem:[#allocation5 + $0xd0] sm:$0xff]
        %v6240 = vld [vmem:[#allocation5 + $0xd8] sm:$0xff]
        %v6241 = vld [vmem:[#allocation5 + $0xe0] sm:$0xff]
        %v6242 = vld [vmem:[#allocation5 + $0xe8] sm:$0xff]
        %v6243 = vld [vmem:[#allocation5 + $0xf0] sm:$0xff]
        %v6244 = vld [vmem:[#allocation5 + $0xf8] sm:$0xff]
        %v6245 = vld [vmem:[#allocation5 + $0x100] sm:$0xff]
        %v6246 = vld [vmem:[#allocation5 + $0x108] sm:$0xff]
        %v6247 = vld [vmem:[#allocation5 + $0x110] sm:$0xff]
        %v6248 = vld [vmem:[#allocation5 + $0x118] sm:$0xff]
        %v6249 = vld [vmem:[#allocation5 + $0x120] sm:$0xff]
        %v6250 = vld [vmem:[#allocation5 + $0x128] sm:$0xff]
        %v6251 = vld [vmem:[#allocation5 + $0x130] sm:$0xff]
        %v6252 = vld [vmem:[#allocation5 + $0x138] sm:$0xff]
        %v6253 = vld [vmem:[#allocation5 + $0x140] sm:$0xff]
        %v6254 = vld [vmem:[#allocation5 + $0x148] sm:$0xff]
        %v6255 = vld [vmem:[#allocation5 + $0x150] sm:$0xff]
        %v6256 = vld [vmem:[#allocation5 + $0x158] sm:$0xff]
        %v6257 = vld [vmem:[#allocation5 + $0x160] sm:$0xff]
        %v6258 = vld [vmem:[#allocation5 + $0x168] sm:$0xff]
        %v6259 = vld [vmem:[#allocation5 + $0x170] sm:$0xff]
        %v6260 = vld [vmem:[#allocation5 + $0x178] sm:$0xff]
        %v6261 = vld [vmem:[#allocation5 + $0x180] sm:$0xff]
        %v6262 = vld [vmem:[#allocation5 + $0x188] sm:$0xff]
        %v6263 = vld [vmem:[#allocation5 + $0x190] sm:$0xff]
        %v6264 = vld [vmem:[#allocation5 + $0x198] sm:$0xff]
        %v6265 = vld [vmem:[#allocation5 + $0x1a0] sm:$0xff]
        %v6266 = vld [vmem:[#allocation5 + $0x1a8] sm:$0xff]
        %v6267 = vld [vmem:[#allocation5 + $0x1b0] sm:$0xff]
        %v6268 = vld [vmem:[#allocation5 + $0x1b8] sm:$0xff]
        %v6269 = vld [vmem:[#allocation5 + $0x1c0] sm:$0xff]
        %v6270 = vld [vmem:[#allocation5 + $0x1c8] sm:$0xff]
        %v6271 = vld [vmem:[#allocation5 + $0x1d0] sm:$0xff]
        %v6272 = vld [vmem:[#allocation5 + $0x1d8] sm:$0xff]
        %v6273 = vld [vmem:[#allocation5 + $0x1e0] sm:$0xff]
        %v6274 = vld [vmem:[#allocation5 + $0x1e8] sm:$0xff]
        %v6275 = vld [vmem:[#allocation5 + $0x1f0] sm:$0xff]
        %v6276 = vld [vmem:[#allocation5 + $0x1f8] sm:$0xff]
        %v6277 = vld [vmem:[#allocation5 + $0x200] sm:$0xff]
        %v6278 = vld [vmem:[#allocation5 + $0x208] sm:$0xff]
        %v6279 = vld [vmem:[#allocation5 + $0x210] sm:$0xff]
        %v6280 = vld [vmem:[#allocation5 + $0x218] sm:$0xff]
        %v6281 = vld [vmem:[#allocation5 + $0x220] sm:$0xff]
        %v6282 = vld [vmem:[#allocation5 + $0x228] sm:$0xff]
        %v6283 = vld [vmem:[#allocation5 + $0x230] sm:$0xff]
        %v6284 = vld [vmem:[#allocation5 + $0x238] sm:$0xff]
        %v6285 = vld [vmem:[#allocation5 + $0x240] sm:$0xff]
        %v6286 = vld [vmem:[#allocation5 + $0x248] sm:$0xff]
        %v6287 = vld [vmem:[#allocation5 + $0x250] sm:$0xff]
        %v6288 = vld [vmem:[#allocation5 + $0x258] sm:$0xff]
        %v6289 = vld [vmem:[#allocation5 + $0x260] sm:$0xff]
        %v6290 = vld [vmem:[#allocation5 + $0x268] sm:$0xff]
        %v6291 = vld [vmem:[#allocation5 + $0x270] sm:$0xff]
        %v6292 = vld [vmem:[#allocation5 + $0x278] sm:$0xff]
        %v6293 = vld [vmem:[%s9] sm:$0xf]
        %v6294 = vld [vmem:[%s9 + $0x4] sm:$0xf]
        %v6295 = vld [vmem:[%s9 + $0x8] sm:$0xf]
        %v6296 = vld [vmem:[%s9 + $0xc] sm:$0xf]
        %v6297 = vld [vmem:[%s9 + $0x10] sm:$0xf]
        %v6298 = vld [vmem:[%s9 + $0x14] sm:$0xf]
        %v6299 = vld [vmem:[%s9 + $0x18] sm:$0xf]
        %v6300 = vld [vmem:[%s9 + $0x1c] sm:$0xf]
        %v6301 = vld [vmem:[%s9 + $0x20] sm:$0xf]
        %v6302 = vld [vmem:[%s9 + $0x24] sm:$0xf]
        %v6303 = vld [vmem:[%s9 + $0x28] sm:$0xf]
        %v6304 = vld [vmem:[%s9 + $0x2c] sm:$0xf]
        %v6305 = vld [vmem:[%s9 + $0x30] sm:$0xf]
        %v6306 = vld [vmem:[%s9 + $0x34] sm:$0xf]
        %v6307 = vld [vmem:[%s9 + $0x38] sm:$0xf]
        %v6308 = vld [vmem:[%s9 + $0x3c] sm:$0xf]
        %v6309 = vld [vmem:[%s9 + $0x40] sm:$0xf]
        %v6310 = vld [vmem:[%s9 + $0x44] sm:$0xf]
        %v6311 = vld [vmem:[%s9 + $0x48] sm:$0xf]
        %v6312 = vld [vmem:[%s9 + $0x4c] sm:$0xf]
        %v6313 = vld [vmem:[%s9 + $0x50] sm:$0xf]
        %v6314 = vld [vmem:[%s9 + $0x54] sm:$0xf]
        %v6315 = vld [vmem:[%s9 + $0x58] sm:$0xf]
        %v6316 = vld [vmem:[%s9 + $0x5c] sm:$0xf]
        %v6317 = vld [vmem:[%s9 + $0x60] sm:$0xf]
        %v6318 = vld [vmem:[%s9 + $0x64] sm:$0xf]
        %v6319 = vld [vmem:[%s9 + $0x68] sm:$0xf]
        %v6320 = vld [vmem:[%s9 + $0x6c] sm:$0xf]
        %v6321 = vld [vmem:[%s9 + $0x70] sm:$0xf]
        %v6322 = vld [vmem:[%s9 + $0x74] sm:$0xf]
        %v6323 = vld [vmem:[%s9 + $0x78] sm:$0xf]
        %v6324 = vld [vmem:[%s9 + $0x7c] sm:$0xf]
        %v6325 = vld [vmem:[%s9 + $0x80] sm:$0xf]
        %v6326 = vld [vmem:[%s9 + $0x84] sm:$0xf]
        %v6327 = vld [vmem:[%s9 + $0x88] sm:$0xf]
        %v6328 = vld [vmem:[%s9 + $0x8c] sm:$0xf]
        %v6329 = vld [vmem:[%s9 + $0x90] sm:$0xf]
        %v6330 = vld [vmem:[%s9 + $0x94] sm:$0xf]
        %v6331 = vld [vmem:[%s9 + $0x98] sm:$0xf]
        %v6332 = vld [vmem:[%s9 + $0x9c] sm:$0xf]
        %v6333 = vld [vmem:[%s9 + $0xa0] sm:$0xf]
        %v6334 = vld [vmem:[%s9 + $0xa4] sm:$0xf]
        %v6335 = vld [vmem:[%s9 + $0xa8] sm:$0xf]
        %v6336 = vld [vmem:[%s9 + $0xac] sm:$0xf]
        %v6337 = vld [vmem:[%s9 + $0xb0] sm:$0xf]
        %v6338 = vld [vmem:[%s9 + $0xb4] sm:$0xf]
        %v6339 = vld [vmem:[%s9 + $0xb8] sm:$0xf]
        %v6340 = vld [vmem:[%s9 + $0xbc] sm:$0xf]
        %v6341 = vld [vmem:[%s9 + $0xc0] sm:$0xf]
        %v6342 = vld [vmem:[%s9 + $0xc4] sm:$0xf]
        %v6343 = vld [vmem:[%s9 + $0xc8] sm:$0xf]
        %v6344 = vld [vmem:[%s9 + $0xcc] sm:$0xf]
        %v6345 = vld [vmem:[%s9 + $0xd0] sm:$0xf]
        %v6346 = vld [vmem:[%s9 + $0xd4] sm:$0xf]
        %v6347 = vld [vmem:[%s9 + $0xd8] sm:$0xf]
        %v6348 = vld [vmem:[%s9 + $0xdc] sm:$0xf]
        %v6349 = vld [vmem:[%s9 + $0xe0] sm:$0xf]
        %v6350 = vld [vmem:[%s9 + $0xe4] sm:$0xf]
        %v6351 = vld [vmem:[%s9 + $0xe8] sm:$0xf]
        %v6352 = vld [vmem:[%s9 + $0xec] sm:$0xf]
        %v6353 = vld [vmem:[%s9 + $0xf0] sm:$0xf]
        %v6354 = vld [vmem:[%s9 + $0xf4] sm:$0xf]
        %v6355 = vld [vmem:[%s9 + $0xf8] sm:$0xf]
        %v6356 = vld [vmem:[%s9 + $0xfc] sm:$0xf]
        %v6357 = vld [vmem:[%s9 + $0x100] sm:$0xf]
        %v6358 = vld [vmem:[%s9 + $0x104] sm:$0xf]
        %v6359 = vld [vmem:[%s9 + $0x108] sm:$0xf]
        %v6360 = vld [vmem:[%s9 + $0x10c] sm:$0xf]
        %v6361 = vld [vmem:[%s9 + $0x110] sm:$0xf]
        %v6362 = vld [vmem:[%s9 + $0x114] sm:$0xf]
        %v6363 = vld [vmem:[%s9 + $0x118] sm:$0xf]
        %v6364 = vld [vmem:[%s9 + $0x11c] sm:$0xf]
        %v6366 = vlaneseq
        %v6367 = vshrl.u32 %v6366, 7
        %v6368 = vsub.s32 0, %v6367
        %v6369 = vrot.slane %v5301, %v6368
        %v6443 = vunpack.c.l.b16 %v6293
        %v6444 = vunpack.c.l.b16 %v6294
        %v6445 = vunpack.c.l.b16 %v6295
        %v6446 = vunpack.c.l.b16 %v6296
        %v6447 = vunpack.c.l.b16 %v6297
        %v6448 = vunpack.c.l.b16 %v6298
        %v6449 = vunpack.c.l.b16 %v6299
        %v6450 = vunpack.c.l.b16 %v6300
        %v6451 = vunpack.c.l.b16 %v6301
        %v6452 = vunpack.c.l.b16 %v6302
        %v6453 = vunpack.c.l.b16 %v6303
        %v6454 = vunpack.c.l.b16 %v6304
        %v6455 = vunpack.c.l.b16 %v6305
        %v6456 = vunpack.c.l.b16 %v6306
        %v6457 = vunpack.c.l.b16 %v6307
        %v6458 = vunpack.c.l.b16 %v6308
        %v6459 = vunpack.c.l.b16 %v6309
        %v6460 = vunpack.c.l.b16 %v6310
        %v6461 = vunpack.c.l.b16 %v6311
        %v6462 = vunpack.c.l.b16 %v6312
        %v6463 = vunpack.c.l.b16 %v6313
        %v6464 = vunpack.c.l.b16 %v6314
        %v6465 = vunpack.c.l.b16 %v6315
        %v6466 = vunpack.c.l.b16 %v6316
        %v6467 = vunpack.c.l.b16 %v6317
        %v6468 = vunpack.c.l.b16 %v6318
        %v6469 = vunpack.c.l.b16 %v6319
        %v6470 = vunpack.c.l.b16 %v6320
        %v6471 = vunpack.c.l.b16 %v6321
        %v6472 = vunpack.c.l.b16 %v6322
        %v6473 = vunpack.c.l.b16 %v6323
        %v6474 = vunpack.c.l.b16 %v6324
        %v6475 = vunpack.c.l.b16 %v6325
        %v6476 = vunpack.c.l.b16 %v6326
        %v6477 = vunpack.c.l.b16 %v6327
        %v6478 = vunpack.c.l.b16 %v6328
        %v6479 = vunpack.c.l.b16 %v6329
        %v6480 = vunpack.c.l.b16 %v6330
        %v6481 = vunpack.c.l.b16 %v6331
        %v6482 = vunpack.c.l.b16 %v6332
        %v6483 = vunpack.c.l.b16 %v6333
        %v6484 = vunpack.c.l.b16 %v6334
        %v6485 = vunpack.c.l.b16 %v6335
        %v6486 = vunpack.c.l.b16 %v6336
        %v6487 = vunpack.c.l.b16 %v6337
        %v6488 = vunpack.c.l.b16 %v6338
        %v6489 = vunpack.c.l.b16 %v6339
        %v6490 = vunpack.c.l.b16 %v6340
        %v6491 = vunpack.c.l.b16 %v6341
        %v6492 = vunpack.c.l.b16 %v6342
        %v6493 = vunpack.c.l.b16 %v6343
        %v6494 = vunpack.c.l.b16 %v6344
        %v6495 = vunpack.c.l.b16 %v6345
        %v6496 = vunpack.c.l.b16 %v6346
        %v6497 = vunpack.c.l.b16 %v6347
        %v6498 = vunpack.c.l.b16 %v6348
        %v6499 = vunpack.c.l.b16 %v6349
        %v6500 = vunpack.c.l.b16 %v6350
        %v6501 = vunpack.c.l.b16 %v6351
        %v6502 = vunpack.c.l.b16 %v6352
        %v6503 = vunpack.c.l.b16 %v6353
        %v6504 = vunpack.c.l.b16 %v6354
        %v6505 = vunpack.c.l.b16 %v6355
        %v6506 = vunpack.c.l.b16 %v6356
        %v6507 = vunpack.c.l.b16 %v6357
        %v6508 = vunpack.c.l.b16 %v6358
        %v6509 = vunpack.c.l.b16 %v6359
        %v6510 = vunpack.c.l.b16 %v6360
        %v6511 = vunpack.c.l.b16 %v6361
        %v6512 = vunpack.c.l.b16 %v6362
        %v6513 = vunpack.c.l.b16 %v6363
        %v6514 = vunpack.c.l.b16 %v6364
        %v6515 = vpack.c.b16 %v6444, %v6443
        %v6516 = vpack.c.b16 %v6446, %v6445
        %v6517 = vpack.c.b16 %v6448, %v6447
        %v6518 = vpack.c.b16 %v6450, %v6449
        %v6519 = vpack.c.b16 %v6452, %v6451
        %v6520 = vpack.c.b16 %v6454, %v6453
        %v6521 = vpack.c.b16 %v6456, %v6455
        %v6522 = vpack.c.b16 %v6458, %v6457
        %v6523 = vpack.c.b16 %v6460, %v6459
        %v6524 = vpack.c.b16 %v6462, %v6461
        %v6525 = vpack.c.b16 %v6464, %v6463
        %v6526 = vpack.c.b16 %v6466, %v6465
        %v6527 = vpack.c.b16 %v6468, %v6467
        %v6528 = vpack.c.b16 %v6470, %v6469
        %v6529 = vpack.c.b16 %v6472, %v6471
        %v6530 = vpack.c.b16 %v6474, %v6473
        %v6531 = vpack.c.b16 %v6476, %v6475
        %v6532 = vpack.c.b16 %v6478, %v6477
        %v6533 = vpack.c.b16 %v6480, %v6479
        %v6534 = vpack.c.b16 %v6482, %v6481
        %v6535 = vpack.c.b16 %v6484, %v6483
        %v6536 = vpack.c.b16 %v6486, %v6485
        %v6537 = vpack.c.b16 %v6488, %v6487
        %v6538 = vpack.c.b16 %v6490, %v6489
        %v6539 = vpack.c.b16 %v6492, %v6491
        %v6540 = vpack.c.b16 %v6494, %v6493
        %v6541 = vpack.c.b16 %v6496, %v6495
        %v6542 = vpack.c.b16 %v6498, %v6497
        %v6543 = vpack.c.b16 %v6500, %v6499
        %v6544 = vpack.c.b16 %v6502, %v6501
        %v6545 = vpack.c.b16 %v6504, %v6503
        %v6546 = vpack.c.b16 %v6506, %v6505
        %v6547 = vpack.c.b16 %v6508, %v6507
        %v6548 = vpack.c.b16 %v6510, %v6509
        %v6549 = vpack.c.b16 %v6512, %v6511
        %v6550 = vpack.c.b16 %v6514, %v6513
        %v6588 = vsel %vm3666, %v6217, 0
        %v6591 = vsel %vm3666, %v6222, 0
        %v6594 = vsel %vm3666, %v6227, 0
        %v6597 = vsel %vm3666, %v6232, 0
        %v6600 = vsel %vm3666, %v6237, 0
        %v6603 = vsel %vm3666, %v6242, 0
        %v6606 = vsel %vm3666, %v6247, 0
        %v6609 = vsel %vm3666, %v6252, 0
        %v6612 = vsel %vm3666, %v6257, 0
        %v6615 = vsel %vm3666, %v6262, 0
        %v6618 = vsel %vm3666, %v6267, 0
        %v6621 = vsel %vm3666, %v6272, 0
        %v6624 = vsel %vm3666, %v6277, 0
        %v6627 = vsel %vm3666, %v6282, 0
        %v6630 = vsel %vm3666, %v6287, 0
        %v6633 = vsel %vm3666, %v6292, 0
        %6635 = vmatprep.subr.bf16.mxu0 0
        %6636 = vmatpush1.bf16.msra.mxu0 %v6515
        %6637 = vmatprep.subr.bf16.mxu0 0
        %6638 = vmatpush1.bf16.msra.mxu0 %v6516
        %6639 = vmatprep.subr.bf16.mxu0 0
        %6640 = vmatpush1.bf16.msra.mxu0 %v6517
        %6641 = vmatprep.subr.bf16.mxu0 0
        %6642 = vmatpush1.bf16.msra.mxu0 %v6518
        %6643 = vmatprep.subr.bf16.mxu0 0
        %6644 = vmatpush1.bf16.msra.mxu0 %v6519
        %6645 = vmatprep.subr.bf16.mxu0 0
        %6646 = vmatpush1.bf16.msra.mxu0 %v6520
        %6647 = vmatprep.subr.bf16.mxu0 0
        %6648 = vmatpush1.bf16.msra.mxu0 %v6521
        %6649 = vmatprep.subr.bf16.mxu0 0
        %6650 = vmatpush1.bf16.msra.mxu0 %v6522
        %6651 = vmatprep.subr.bf16.mxu0 0
        %6652 = vmatpush1.bf16.msra.mxu0 %v6523
        %6653 = vmatprep.subr.bf16.mxu0 0
        %6654 = vmatpush1.bf16.msra.mxu0 %v6524
        %6655 = vmatprep.subr.bf16.mxu0 0
        %6656 = vmatpush1.bf16.msra.mxu0 %v6525
        %6657 = vmatprep.subr.bf16.mxu0 0
        %6658 = vmatpush1.bf16.msra.mxu0 %v6526
        %6659 = vmatprep.subr.bf16.mxu0 0
        %6660 = vmatpush1.bf16.msra.mxu0 %v6527
        %6661 = vmatprep.subr.bf16.mxu0 0
        %6662 = vmatpush1.bf16.msra.mxu0 %v6528
        %6663 = vmatprep.subr.bf16.mxu0 0
        %6664 = vmatpush1.bf16.msra.mxu0 %v6529
        %6665 = vmatprep.subr.bf16.mxu0 0
        %6666 = vmatpush1.bf16.msra.mxu0 %v6530
        %6667 = vmatprep.mubr.bf16.mxu0 %v6214
        %6668 = vmatmul.mubr.bf16.gmra.mrb[0].mxu0 %v6213
        %v6669 = vpop.f32.mrb[0].mxu0
        %v6670 = vadd.f32 %v6369, %v6669
        %v6671 = vpop.f32.mrb[0].mxu0
        %v6672 = vpop.f32.mrb[0].mxu0
        %v6673 = vadd.f32 %v6369, %v6672
        %v6674 = vpop.f32.mrb[0].mxu0
        %6675 = vmatprep.mubr.bf16.mxu0 %v6219
        %6676 = vmatmul.mubr.bf16.gmra.mrb[0].mxu0 %v6218
        %v6677 = vpop.f32.mrb[0].mxu0
        %v6678 = vadd.f32 %v6369, %v6677
        %v6679 = vpop.f32.mrb[0].mxu0
        %v6680 = vpop.f32.mrb[0].mxu0
        %v6681 = vadd.f32 %v6369, %v6680
        %v6682 = vpop.f32.mrb[0].mxu0
        %6683 = vmatprep.mubr.bf16.mxu0 %v6224
        %6684 = vmatmul.mubr.bf16.gmra.mrb[0].mxu0 %v6223
        %v6685 = vpop.f32.mrb[0].mxu0
        %v6686 = vadd.f32 %v6369, %v6685
        %v6687 = vpop.f32.mrb[0].mxu0
        %v6688 = vpop.f32.mrb[0].mxu0
        %v6689 = vadd.f32 %v6369, %v6688
        %v6690 = vpop.f32.mrb[0].mxu0
        %6691 = vmatprep.mubr.bf16.mxu0 %v6229
        %6692 = vmatmul.mubr.bf16.gmra.mrb[0].mxu0 %v6228
        %v6693 = vpop.f32.mrb[0].mxu0
        %v6694 = vadd.f32 %v6369, %v6693
        %v6695 = vpop.f32.mrb[0].mxu0
        %v6696 = vpop.f32.mrb[0].mxu0
        %v6697 = vadd.f32 %v6369, %v6696
        %v6698 = vpop.f32.mrb[0].mxu0
        %6699 = vmatprep.mubr.bf16.mxu0 %v6234
        %6700 = vmatmul.mubr.bf16.gmra.mrb[0].mxu0 %v6233
        %v6701 = vpop.f32.mrb[0].mxu0
        %v6702 = vadd.f32 %v6369, %v6701
        %v6703 = vpop.f32.mrb[0].mxu0
        %v6704 = vpop.f32.mrb[0].mxu0
        %v6705 = vadd.f32 %v6369, %v6704
        %v6706 = vpop.f32.mrb[0].mxu0
        %6707 = vmatprep.mubr.bf16.mxu0 %v6239
        %6708 = vmatmul.mubr.bf16.gmra.mrb[0].mxu0 %v6238
        %v6709 = vpop.f32.mrb[0].mxu0
        %v6710 = vadd.f32 %v6369, %v6709
        %v6711 = vpop.f32.mrb[0].mxu0
        %v6712 = vpop.f32.mrb[0].mxu0
        %v6713 = vadd.f32 %v6369, %v6712
        %v6714 = vpop.f32.mrb[0].mxu0
        %6715 = vmatprep.mubr.bf16.mxu0 %v6244
        %6716 = vmatmul.mubr.bf16.gmra.mrb[0].mxu0 %v6243
        %v6717 = vpop.f32.mrb[0].mxu0
        %v6718 = vadd.f32 %v6369, %v6717
        %v6719 = vpop.f32.mrb[0].mxu0
        %v6720 = vpop.f32.mrb[0].mxu0
        %v6721 = vadd.f32 %v6369, %v6720
        %v6722 = vpop.f32.mrb[0].mxu0
        %6723 = vmatprep.mubr.bf16.mxu0 %v6249
        %6724 = vmatmul.mubr.bf16.gmra.mrb[0].mxu0 %v6248
        %v6725 = vpop.f32.mrb[0].mxu0
        %v6726 = vadd.f32 %v6369, %v6725
        %v6727 = vpop.f32.mrb[0].mxu0
        %v6728 = vpop.f32.mrb[0].mxu0
        %v6729 = vadd.f32 %v6369, %v6728
        %v6730 = vpop.f32.mrb[0].mxu0
        %6731 = vmatprep.mubr.bf16.mxu0 %v6254
        %6732 = vmatmul.mubr.bf16.gmra.mrb[0].mxu0 %v6253
        %v6733 = vpop.f32.mrb[0].mxu0
        %v6734 = vadd.f32 %v6369, %v6733
        %v6735 = vpop.f32.mrb[0].mxu0
        %v6736 = vpop.f32.mrb[0].mxu0
        %v6737 = vadd.f32 %v6369, %v6736
        %v6738 = vpop.f32.mrb[0].mxu0
        %6739 = vmatprep.mubr.bf16.mxu0 %v6259
        %6740 = vmatmul.mubr.bf16.gmra.mrb[0].mxu0 %v6258
        %v6741 = vpop.f32.mrb[0].mxu0
        %v6742 = vadd.f32 %v6369, %v6741
        %v6743 = vpop.f32.mrb[0].mxu0
        %v6744 = vpop.f32.mrb[0].mxu0
        %v6745 = vadd.f32 %v6369, %v6744
        %v6746 = vpop.f32.mrb[0].mxu0
        %6747 = vmatprep.mubr.bf16.mxu0 %v6264
        %6748 = vmatmul.mubr.bf16.gmra.mrb[0].mxu0 %v6263
        %v6749 = vpop.f32.mrb[0].mxu0
        %v6750 = vadd.f32 %v6369, %v6749
        %v6751 = vpop.f32.mrb[0].mxu0
        %v6752 = vpop.f32.mrb[0].mxu0
        %v6753 = vadd.f32 %v6369, %v6752
        %v6754 = vpop.f32.mrb[0].mxu0
        %6755 = vmatprep.mubr.bf16.mxu0 %v6269
        %6756 = vmatmul.mubr.bf16.gmra.mrb[0].mxu0 %v6268
        %v6757 = vpop.f32.mrb[0].mxu0
        %v6758 = vadd.f32 %v6369, %v6757
        %v6759 = vpop.f32.mrb[0].mxu0
        %v6760 = vpop.f32.mrb[0].mxu0
        %v6761 = vadd.f32 %v6369, %v6760
        %v6762 = vpop.f32.mrb[0].mxu0
        %6763 = vmatprep.mubr.bf16.mxu0 %v6274
        %6764 = vmatmul.mubr.bf16.gmra.mrb[0].mxu0 %v6273
        %v6765 = vpop.f32.mrb[0].mxu0
        %v6766 = vadd.f32 %v6369, %v6765
        %v6767 = vpop.f32.mrb[0].mxu0
        %v6768 = vpop.f32.mrb[0].mxu0
        %v6769 = vadd.f32 %v6369, %v6768
        %v6770 = vpop.f32.mrb[0].mxu0
        %6771 = vmatprep.mubr.bf16.mxu0 %v6279
        %6772 = vmatmul.mubr.bf16.gmra.mrb[0].mxu0 %v6278
        %v6773 = vpop.f32.mrb[0].mxu0
        %v6774 = vadd.f32 %v6369, %v6773
        %v6775 = vpop.f32.mrb[0].mxu0
        %v6776 = vpop.f32.mrb[0].mxu0
        %v6777 = vadd.f32 %v6369, %v6776
        %v6778 = vpop.f32.mrb[0].mxu0
        %6779 = vmatprep.mubr.bf16.mxu0 %v6284
        %6780 = vmatmul.mubr.bf16.gmra.mrb[0].mxu0 %v6283
        %v6781 = vpop.f32.mrb[0].mxu0
        %v6782 = vadd.f32 %v6369, %v6781
        %v6783 = vpop.f32.mrb[0].mxu0
        %v6784 = vpop.f32.mrb[0].mxu0
        %v6785 = vadd.f32 %v6369, %v6784
        %v6786 = vpop.f32.mrb[0].mxu0
        %6787 = vmatprep.mubr.bf16.mxu0 %v6289
        %6788 = vmatmul.mubr.bf16.gmra.mrb[0].mxu0 %v6288
        %v6789 = vpop.f32.mrb[0].mxu0
        %v6790 = vadd.f32 %v6369, %v6789
        %v6791 = vpop.f32.mrb[0].mxu0
        %v6792 = vpop.f32.mrb[0].mxu0
        %v6793 = vadd.f32 %v6369, %v6792
        %v6794 = vpop.f32.mrb[0].mxu0
        %6795 = vdwg.mxu0
        %6796 = vmatprep.subr.bf16.mxu0 0
        %6797 = vmatpush1.bf16.msra.mxu0 %v6531
        %6798 = vmatprep.subr.bf16.mxu0 0
        %6799 = vmatpush1.bf16.msra.mxu0 %v6532
        %6800 = vmatprep.subr.bf16.mxu0 0
        %6801 = vmatpush1.bf16.msra.mxu0 %v6533
        %6802 = vmatprep.subr.bf16.mxu0 0
        %6803 = vmatpush1.bf16.msra.mxu0 %v6534
        %6804 = vmatprep.subr.bf16.mxu0 0
        %6805 = vmatpush1.bf16.msra.mxu0 %v6535
        %6806 = vmatprep.subr.bf16.mxu0 0
        %6807 = vmatpush1.bf16.msra.mxu0 %v6536
        %6808 = vmatprep.subr.bf16.mxu0 0
        %6809 = vmatpush1.bf16.msra.mxu0 %v6537
        %6810 = vmatprep.subr.bf16.mxu0 0
        %6811 = vmatpush1.bf16.msra.mxu0 %v6538
        %6812 = vmatprep.subr.bf16.mxu0 0
        %6813 = vmatpush1.bf16.msra.mxu0 %v6539
        %6814 = vmatprep.subr.bf16.mxu0 0
        %6815 = vmatpush1.bf16.msra.mxu0 %v6540
        %6816 = vmatprep.subr.bf16.mxu0 0
        %6817 = vmatpush1.bf16.msra.mxu0 %v6541
        %6818 = vmatprep.subr.bf16.mxu0 0
        %6819 = vmatpush1.bf16.msra.mxu0 %v6542
        %6820 = vmatprep.subr.bf16.mxu0 0
        %6821 = vmatpush1.bf16.msra.mxu0 %v6543
        %6822 = vmatprep.subr.bf16.mxu0 0
        %6823 = vmatpush1.bf16.msra.mxu0 %v6544
        %6824 = vmatprep.subr.bf16.mxu0 0
        %6825 = vmatpush1.bf16.msra.mxu0 %v6545
        %6826 = vmatprep.subr.bf16.mxu0 0
        %6827 = vmatpush1.bf16.msra.mxu0 %v6546
        %6828 = vmatprep.mubr.bf16.mxu0 %v6216
        %6829 = vmatmul.mubr.bf16.gmra.mrb[0].mxu0 %v6215
        %v6830 = vpop.f32.mrb[0].mxu0
        %v6831 = vadd.f32 %v6670, %v6830
        %v6832 = vpop.f32.mrb[0].mxu0
        %v6833 = vpop.f32.mrb[0].mxu0
        %v6834 = vadd.f32 %v6673, %v6833
        %v6835 = vpop.f32.mrb[0].mxu0
        %6836 = vmatprep.mubr.bf16.mxu0 %v6221
        %6837 = vmatmul.mubr.bf16.gmra.mrb[0].mxu0 %v6220
        %v6838 = vpop.f32.mrb[0].mxu0
        %v6839 = vadd.f32 %v6678, %v6838
        %v6840 = vpop.f32.mrb[0].mxu0
        %v6841 = vpop.f32.mrb[0].mxu0
        %v6842 = vadd.f32 %v6681, %v6841
        %v6843 = vpop.f32.mrb[0].mxu0
        %6844 = vmatprep.mubr.bf16.mxu0 %v6226
        %6845 = vmatmul.mubr.bf16.gmra.mrb[0].mxu0 %v6225
        %v6846 = vpop.f32.mrb[0].mxu0
        %v6847 = vadd.f32 %v6686, %v6846
        %v6848 = vpop.f32.mrb[0].mxu0
        %v6849 = vpop.f32.mrb[0].mxu0
        %v6850 = vadd.f32 %v6689, %v6849
        %v6851 = vpop.f32.mrb[0].mxu0
        %6852 = vmatprep.mubr.bf16.mxu0 %v6231
        %6853 = vmatmul.mubr.bf16.gmra.mrb[0].mxu0 %v6230
        %v6854 = vpop.f32.mrb[0].mxu0
        %v6855 = vadd.f32 %v6694, %v6854
        %v6856 = vpop.f32.mrb[0].mxu0
        %v6857 = vpop.f32.mrb[0].mxu0
        %v6858 = vadd.f32 %v6697, %v6857
        %v6859 = vpop.f32.mrb[0].mxu0
        %6860 = vmatprep.mubr.bf16.mxu0 %v6236
        %6861 = vmatmul.mubr.bf16.gmra.mrb[0].mxu0 %v6235
        %v6862 = vpop.f32.mrb[0].mxu0
        %v6863 = vadd.f32 %v6702, %v6862
        %v6864 = vpop.f32.mrb[0].mxu0
        %v6865 = vpop.f32.mrb[0].mxu0
        %v6866 = vadd.f32 %v6705, %v6865
        %v6867 = vpop.f32.mrb[0].mxu0
        %6868 = vmatprep.mubr.bf16.mxu0 %v6241
        %6869 = vmatmul.mubr.bf16.gmra.mrb[0].mxu0 %v6240
        %v6870 = vpop.f32.mrb[0].mxu0
        %v6871 = vadd.f32 %v6710, %v6870
        %v6872 = vpop.f32.mrb[0].mxu0
        %v6873 = vpop.f32.mrb[0].mxu0
        %v6874 = vadd.f32 %v6713, %v6873
        %v6875 = vpop.f32.mrb[0].mxu0
        %6876 = vmatprep.mubr.bf16.mxu0 %v6246
        %6877 = vmatmul.mubr.bf16.gmra.mrb[0].mxu0 %v6245
        %v6878 = vpop.f32.mrb[0].mxu0
        %v6879 = vadd.f32 %v6718, %v6878
        %v6880 = vpop.f32.mrb[0].mxu0
        %v6881 = vpop.f32.mrb[0].mxu0
        %v6882 = vadd.f32 %v6721, %v6881
        %v6883 = vpop.f32.mrb[0].mxu0
        %6884 = vmatprep.mubr.bf16.mxu0 %v6251
        %6885 = vmatmul.mubr.bf16.gmra.mrb[0].mxu0 %v6250
        %v6886 = vpop.f32.mrb[0].mxu0
        %v6887 = vadd.f32 %v6726, %v6886
        %v6888 = vpop.f32.mrb[0].mxu0
        %v6889 = vpop.f32.mrb[0].mxu0
        %v6890 = vadd.f32 %v6729, %v6889
        %v6891 = vpop.f32.mrb[0].mxu0
        %6892 = vmatprep.mubr.bf16.mxu0 %v6256
        %6893 = vmatmul.mubr.bf16.gmra.mrb[0].mxu0 %v6255
        %v6894 = vpop.f32.mrb[0].mxu0
        %v6895 = vadd.f32 %v6734, %v6894
        %v6896 = vpop.f32.mrb[0].mxu0
        %v6897 = vpop.f32.mrb[0].mxu0
        %v6898 = vadd.f32 %v6737, %v6897
        %v6899 = vpop.f32.mrb[0].mxu0
        %6900 = vmatprep.mubr.bf16.mxu0 %v6261
        %6901 = vmatmul.mubr.bf16.gmra.mrb[0].mxu0 %v6260
        %v6902 = vpop.f32.mrb[0].mxu0
        %v6903 = vadd.f32 %v6742, %v6902
        %v6904 = vpop.f32.mrb[0].mxu0
        %v6905 = vpop.f32.mrb[0].mxu0
        %v6906 = vadd.f32 %v6745, %v6905
        %v6907 = vpop.f32.mrb[0].mxu0
        %6908 = vmatprep.mubr.bf16.mxu0 %v6266
        %6909 = vmatmul.mubr.bf16.gmra.mrb[0].mxu0 %v6265
        %v6910 = vpop.f32.mrb[0].mxu0
        %v6911 = vadd.f32 %v6750, %v6910
        %v6912 = vpop.f32.mrb[0].mxu0
        %v6913 = vpop.f32.mrb[0].mxu0
        %v6914 = vadd.f32 %v6753, %v6913
        %v6915 = vpop.f32.mrb[0].mxu0
        %6916 = vmatprep.mubr.bf16.mxu0 %v6271
        %6917 = vmatmul.mubr.bf16.gmra.mrb[0].mxu0 %v6270
        %v6918 = vpop.f32.mrb[0].mxu0
        %v6919 = vadd.f32 %v6758, %v6918
        %v6920 = vpop.f32.mrb[0].mxu0
        %v6921 = vpop.f32.mrb[0].mxu0
        %v6922 = vadd.f32 %v6761, %v6921
        %v6923 = vpop.f32.mrb[0].mxu0
        %6924 = vmatprep.mubr.bf16.mxu0 %v6276
        %6925 = vmatmul.mubr.bf16.gmra.mrb[0].mxu0 %v6275
        %v6926 = vpop.f32.mrb[0].mxu0
        %v6927 = vadd.f32 %v6766, %v6926
        %v6928 = vpop.f32.mrb[0].mxu0
        %v6929 = vpop.f32.mrb[0].mxu0
        %v6930 = vadd.f32 %v6769, %v6929
        %v6931 = vpop.f32.mrb[0].mxu0
        %6932 = vmatprep.mubr.bf16.mxu0 %v6281
        %6933 = vmatmul.mubr.bf16.gmra.mrb[0].mxu0 %v6280
        %v6934 = vpop.f32.mrb[0].mxu0
        %v6935 = vadd.f32 %v6774, %v6934
        %v6936 = vpop.f32.mrb[0].mxu0
        %v6937 = vpop.f32.mrb[0].mxu0
        %v6938 = vadd.f32 %v6777, %v6937
        %v6939 = vpop.f32.mrb[0].mxu0
        %6940 = vmatprep.mubr.bf16.mxu0 %v6286
        %6941 = vmatmul.mubr.bf16.gmra.mrb[0].mxu0 %v6285
        %v6942 = vpop.f32.mrb[0].mxu0
        %v6943 = vadd.f32 %v6782, %v6942
        %v6944 = vpop.f32.mrb[0].mxu0
        %v6945 = vpop.f32.mrb[0].mxu0
        %v6946 = vadd.f32 %v6785, %v6945
        %v6947 = vpop.f32.mrb[0].mxu0
        %6948 = vmatprep.mubr.bf16.mxu0 %v6291
        %6949 = vmatmul.mubr.bf16.gmra.mrb[0].mxu0 %v6290
        %v6950 = vpop.f32.mrb[0].mxu0
        %v6951 = vadd.f32 %v6790, %v6950
        %v6952 = vpop.f32.mrb[0].mxu0
        %v6953 = vpop.f32.mrb[0].mxu0
        %v6954 = vadd.f32 %v6793, %v6953
        %v6955 = vpop.f32.mrb[0].mxu0
        %6956 = vdwg.mxu0
        %6957 = vmatprep.subr.bf16.mxu0 0
        %6958 = vmatpush1.bf16.msra.mxu0 %v6547
        %6959 = vmatprep.subr.bf16.mxu0 0
        %6960 = vmatpush1.bf16.msra.mxu0 %v6548
        %6961 = vmatprep.subr.bf16.mxu0 0
        %6962 = vmatpush1.bf16.msra.mxu0 %v6549
        %6963 = vmatprep.subr.bf16.mxu0 0
        %6964 = vmatpush1.bf16.msra.mxu0 %v6550
        %6965 = vmatprep.subr.bf16.mxu0 0
        %6966 = vmatpush1.bf16.msra.mxu0 0
        %6967 = vmatprep.subr.bf16.mxu0 0
        %6968 = vmatpush1.bf16.msra.mxu0 0
        %6969 = vmatprep.subr.bf16.mxu0 0
        %6970 = vmatpush1.bf16.msra.mxu0 0
        %6971 = vmatprep.subr.bf16.mxu0 0
        %6972 = vmatpush1.bf16.msra.mxu0 0
        %6973 = vmatprep.subr.bf16.mxu0 0
        %6974 = vmatpush1.bf16.msra.mxu0 0
        %6975 = vmatprep.subr.bf16.mxu0 0
        %6976 = vmatpush1.bf16.msra.mxu0 0
        %6977 = vmatprep.subr.bf16.mxu0 0
        %6978 = vmatpush1.bf16.msra.mxu0 0
        %6979 = vmatprep.subr.bf16.mxu0 0
        %6980 = vmatpush1.bf16.msra.mxu0 0
        %6981 = vmatprep.subr.bf16.mxu0 0
        %6982 = vmatpush1.bf16.msra.mxu0 0
        %6983 = vmatprep.subr.bf16.mxu0 0
        %6984 = vmatpush1.bf16.msra.mxu0 0
        %6985 = vmatprep.subr.bf16.mxu0 0
        %6986 = vmatpush1.bf16.msra.mxu0 0
        %6987 = vmatprep.subr.bf16.mxu0 0
        %6988 = vmatpush1.bf16.msra.mxu0 0
        %6989 = vmatprep.mubr.bf16.mxu0 0
        %6990 = vmatmul.mubr.bf16.gmra.mrb[0].mxu0 %v6588
        %v6991 = vpop.f32.mrb[0].mxu0
        %v6992 = vadd.f32 %v6831, %v6991
        %v6993 = vpop.f32.mrb[0].mxu0
        %v6994 = vpop.f32.mrb[0].mxu0
        %v6995 = vadd.f32 %v6834, %v6994
        %v6996 = vpop.f32.mrb[0].mxu0
        %6997 = vmatprep.mubr.bf16.mxu0 0
        %6998 = vmatmul.mubr.bf16.gmra.mrb[0].mxu0 %v6591
        %v6999 = vpop.f32.mrb[0].mxu0
        %v7000 = vadd.f32 %v6839, %v6999
        %v7001 = vpop.f32.mrb[0].mxu0
        %v7002 = vpop.f32.mrb[0].mxu0
        %v7003 = vadd.f32 %v6842, %v7002
        %v7004 = vpop.f32.mrb[0].mxu0
        %7005 = vmatprep.mubr.bf16.mxu0 0
        %7006 = vmatmul.mubr.bf16.gmra.mrb[0].mxu0 %v6594
        %v7007 = vpop.f32.mrb[0].mxu0
        %v7008 = vadd.f32 %v6847, %v7007
        %v7009 = vpop.f32.mrb[0].mxu0
        %v7010 = vpop.f32.mrb[0].mxu0
        %v7011 = vadd.f32 %v6850, %v7010
        %v7012 = vpop.f32.mrb[0].mxu0
        %7013 = vmatprep.mubr.bf16.mxu0 0
        %7014 = vmatmul.mubr.bf16.gmra.mrb[0].mxu0 %v6597
        %v7015 = vpop.f32.mrb[0].mxu0
        %v7016 = vadd.f32 %v6855, %v7015
        %v7017 = vpop.f32.mrb[0].mxu0
        %v7018 = vpop.f32.mrb[0].mxu0
        %v7019 = vadd.f32 %v6858, %v7018
        %v7020 = vpop.f32.mrb[0].mxu0
        %7021 = vmatprep.mubr.bf16.mxu0 0
        %7022 = vmatmul.mubr.bf16.gmra.mrb[0].mxu0 %v6600
        %v7023 = vpop.f32.mrb[0].mxu0
        %v7024 = vadd.f32 %v6863, %v7023
        %v7025 = vpop.f32.mrb[0].mxu0
        %v7026 = vpop.f32.mrb[0].mxu0
        %v7027 = vadd.f32 %v6866, %v7026
        %v7028 = vpop.f32.mrb[0].mxu0
        %7029 = vmatprep.mubr.bf16.mxu0 0
        %7030 = vmatmul.mubr.bf16.gmra.mrb[0].mxu0 %v6603
        %v7031 = vpop.f32.mrb[0].mxu0
        %v7032 = vadd.f32 %v6871, %v7031
        %v7033 = vpop.f32.mrb[0].mxu0
        %v7034 = vpop.f32.mrb[0].mxu0
        %v7035 = vadd.f32 %v6874, %v7034
        %v7036 = vpop.f32.mrb[0].mxu0
        %7037 = vmatprep.mubr.bf16.mxu0 0
        %7038 = vmatmul.mubr.bf16.gmra.mrb[0].mxu0 %v6606
        %v7039 = vpop.f32.mrb[0].mxu0
        %v7040 = vadd.f32 %v6879, %v7039
        %v7041 = vpop.f32.mrb[0].mxu0
        %v7042 = vpop.f32.mrb[0].mxu0
        %v7043 = vadd.f32 %v6882, %v7042
        %v7044 = vpop.f32.mrb[0].mxu0
        %7045 = vmatprep.mubr.bf16.mxu0 0
        %7046 = vmatmul.mubr.bf16.gmra.mrb[0].mxu0 %v6609
        %v7047 = vpop.f32.mrb[0].mxu0
        %v7048 = vadd.f32 %v6887, %v7047
        %v7049 = vpop.f32.mrb[0].mxu0
        %v7050 = vpop.f32.mrb[0].mxu0
        %v7051 = vadd.f32 %v6890, %v7050
        %v7052 = vpop.f32.mrb[0].mxu0
        %7053 = vmatprep.mubr.bf16.mxu0 0
        %7054 = vmatmul.mubr.bf16.gmra.mrb[0].mxu0 %v6612
        %v7055 = vpop.f32.mrb[0].mxu0
        %v7056 = vadd.f32 %v6895, %v7055
        %v7057 = vpop.f32.mrb[0].mxu0
        %v7058 = vpop.f32.mrb[0].mxu0
        %v7059 = vadd.f32 %v6898, %v7058
        %v7060 = vpop.f32.mrb[0].mxu0
        %7061 = vmatprep.mubr.bf16.mxu0 0
        %7062 = vmatmul.mubr.bf16.gmra.mrb[0].mxu0 %v6615
        %v7063 = vpop.f32.mrb[0].mxu0
        %v7064 = vadd.f32 %v6903, %v7063
        %v7065 = vpop.f32.mrb[0].mxu0
        %v7066 = vpop.f32.mrb[0].mxu0
        %v7067 = vadd.f32 %v6906, %v7066
        %v7068 = vpop.f32.mrb[0].mxu0
        %7069 = vmatprep.mubr.bf16.mxu0 0
        %7070 = vmatmul.mubr.bf16.gmra.mrb[0].mxu0 %v6618
        %v7071 = vpop.f32.mrb[0].mxu0
        %v7072 = vadd.f32 %v6911, %v7071
        %v7073 = vpop.f32.mrb[0].mxu0
        %v7074 = vpop.f32.mrb[0].mxu0
        %v7075 = vadd.f32 %v6914, %v7074
        %v7076 = vpop.f32.mrb[0].mxu0
        %7077 = vmatprep.mubr.bf16.mxu0 0
        %7078 = vmatmul.mubr.bf16.gmra.mrb[0].mxu0 %v6621
        %v7079 = vpop.f32.mrb[0].mxu0
        %v7080 = vadd.f32 %v6919, %v7079
        %v7081 = vpop.f32.mrb[0].mxu0
        %v7082 = vpop.f32.mrb[0].mxu0
        %v7083 = vadd.f32 %v6922, %v7082
        %v7084 = vpop.f32.mrb[0].mxu0
        %7085 = vmatprep.mubr.bf16.mxu0 0
        %7086 = vmatmul.mubr.bf16.gmra.mrb[0].mxu0 %v6624
        %v7087 = vpop.f32.mrb[0].mxu0
        %v7088 = vadd.f32 %v6927, %v7087
        %v7089 = vpop.f32.mrb[0].mxu0
        %v7090 = vpop.f32.mrb[0].mxu0
        %v7091 = vadd.f32 %v6930, %v7090
        %v7092 = vpop.f32.mrb[0].mxu0
        %7093 = vmatprep.mubr.bf16.mxu0 0
        %7094 = vmatmul.mubr.bf16.gmra.mrb[0].mxu0 %v6627
        %v7095 = vpop.f32.mrb[0].mxu0
        %v7096 = vadd.f32 %v6935, %v7095
        %v7097 = vpop.f32.mrb[0].mxu0
        %v7098 = vpop.f32.mrb[0].mxu0
        %v7099 = vadd.f32 %v6938, %v7098
        %v7100 = vpop.f32.mrb[0].mxu0
        %7101 = vmatprep.mubr.bf16.mxu0 0
        %7102 = vmatmul.mubr.bf16.gmra.mrb[0].mxu0 %v6630
        %v7103 = vpop.f32.mrb[0].mxu0
        %v7104 = vadd.f32 %v6943, %v7103
        %v7105 = vpop.f32.mrb[0].mxu0
        %v7106 = vpop.f32.mrb[0].mxu0
        %v7107 = vadd.f32 %v6946, %v7106
        %v7108 = vpop.f32.mrb[0].mxu0
        %7109 = vmatprep.mubr.bf16.mxu0 0
        %7110 = vmatmul.mubr.bf16.gmra.mrb[0].mxu0 %v6633
        %v7111 = vpop.f32.mrb[0].mxu0
        %v7112 = vadd.f32 %v6951, %v7111
        %v7113 = vpop.f32.mrb[0].mxu0
        %v7114 = vpop.f32.mrb[0].mxu0
        %v7115 = vadd.f32 %v6954, %v7114
        %v7116 = vpop.f32.mrb[0].mxu0
        %7117 = vdwg.mxu0
        %v7118 = vpack.c.bf16 %v494, %v493
        %v7119 = vpack.c.bf16 %v496, %v495
        %v7120 = vpack.c.bf16 %v498, %v497
        %v7121 = vpack.c.bf16 %v500, %v499
        %v7122 = vpack.c.bf16 %v502, %v501
        %v7123 = vpack.c.bf16 %v504, %v503
        %v7124 = vpack.c.bf16 %v506, %v505
        %v7125 = vpack.c.bf16 %v508, %v507
        %v7126 = vpack.c.bf16 %v510, %v509
        %v7127 = vpack.c.bf16 %v512, %v511
        %v7128 = vpack.c.bf16 %v514, %v513
        %v7129 = vpack.c.bf16 %v516, %v515
        %v7130 = vpack.c.bf16 %v518, %v517
        %v7131 = vpack.c.bf16 %v520, %v519
        %v7132 = vpack.c.bf16 %v522, %v521
        %v7133 = vpack.c.bf16 %v524, %v523
        %v7134 = vld [vmem:[%s11] sm:$0xf]
        %v7135 = vld [vmem:[%s11 + $0x4] sm:$0xf]
        %v7136 = vld [vmem:[%s11 + $0x8] sm:$0xf]
        %v7137 = vld [vmem:[%s11 + $0xc] sm:$0xf]
        %v7138 = vld [vmem:[%s12] sm:$0x1]
        %v7140 = vlaneseq
        %v7141 = vshrl.u32 %v7140, 7
        %v7142 = vsub.s32 0, %v7141
        %v7143 = vrot.slane %v7138, %v7142
        %v7149 = vunpack.c.l.b16 %v7134
        %v7150 = vunpack.c.l.b16 %v7135
        %v7151 = vunpack.c.l.b16 %v7136
        %v7152 = vunpack.c.l.b16 %v7137
        %v7153 = vpack.c.b16 %v7150, %v7149
        %v7154 = vpack.c.b16 %v7152, %v7151
        %v7158 = vsel %vm527, %v7118, 0
        %v7161 = vsel %vm527, %v7119, 0
        %v7164 = vsel %vm527, %v7120, 0
        %v7167 = vsel %vm527, %v7121, 0
        %v7170 = vsel %vm527, %v7122, 0
        %v7173 = vsel %vm527, %v7123, 0
        %v7176 = vsel %vm527, %v7124, 0
        %v7179 = vsel %vm527, %v7125, 0
        %v7182 = vsel %vm527, %v7126, 0
        %v7185 = vsel %vm527, %v7127, 0
        %v7188 = vsel %vm527, %v7128, 0
        %v7191 = vsel %vm527, %v7129, 0
        %v7194 = vsel %vm527, %v7130, 0
        %v7197 = vsel %vm527, %v7131, 0
        %v7200 = vsel %vm527, %v7132, 0
        %v7203 = vsel %vm527, %v7133, 0
        %7205 = vmatprep.subr.bf16.mxu0 0
        %7206 = vmatpush1.bf16.msra.mxu0 %v7153
        %7207 = vmatprep.subr.bf16.mxu0 0
        %7208 = vmatpush1.bf16.msra.mxu0 %v7154
        %7209 = vmatprep.subr.bf16.mxu0 0
        %7210 = vmatpush1.bf16.msra.mxu0 0
        %7211 = vmatprep.subr.bf16.mxu0 0
        %7212 = vmatpush1.bf16.msra.mxu0 0
        %7213 = vmatprep.subr.bf16.mxu0 0
        %7214 = vmatpush1.bf16.msra.mxu0 0
        %7215 = vmatprep.subr.bf16.mxu0 0
        %7216 = vmatpush1.bf16.msra.mxu0 0
        %7217 = vmatprep.subr.bf16.mxu0 0
        %7218 = vmatpush1.bf16.msra.mxu0 0
        %7219 = vmatprep.subr.bf16.mxu0 0
        %7220 = vmatpush1.bf16.msra.mxu0 0
        %7221 = vmatprep.subr.bf16.mxu0 0
        %7222 = vmatpush1.bf16.msra.mxu0 0
        %7223 = vmatprep.subr.bf16.mxu0 0
        %7224 = vmatpush1.bf16.msra.mxu0 0
        %7225 = vmatprep.subr.bf16.mxu0 0
        %7226 = vmatpush1.bf16.msra.mxu0 0
        %7227 = vmatprep.subr.bf16.mxu0 0
        %7228 = vmatpush1.bf16.msra.mxu0 0
        %7229 = vmatprep.subr.bf16.mxu0 0
        %7230 = vmatpush1.bf16.msra.mxu0 0
        %7231 = vmatprep.subr.bf16.mxu0 0
        %7232 = vmatpush1.bf16.msra.mxu0 0
        %7233 = vmatprep.subr.bf16.mxu0 0
        %7234 = vmatpush1.bf16.msra.mxu0 0
        %7235 = vmatprep.subr.bf16.mxu0 0
        %7236 = vmatpush1.bf16.msra.mxu0 0
        %7237 = vmatprep.mubr.bf16.mxu0 0
        %7238 = vmatmul.mubr.bf16.gmra.mrb[0].mxu0 %v7158
        %v7239 = vpop.f32.mrb[0].mxu0
        %v7240 = vadd.f32 %v7143, %v7239
        %v7241 = vpop.f32.mrb[0].mxu0
        %v7242 = vpop.f32.mrb[0].mxu0
        %v7243 = vadd.f32 %v7143, %v7242
        %v7244 = vpop.f32.mrb[0].mxu0
        %7245 = vmatprep.mubr.bf16.mxu0 0
        %7246 = vmatmul.mubr.bf16.gmra.mrb[0].mxu0 %v7161
        %v7247 = vpop.f32.mrb[0].mxu0
        %v7248 = vadd.f32 %v7143, %v7247
        %v7249 = vpop.f32.mrb[0].mxu0
        %v7250 = vpop.f32.mrb[0].mxu0
        %v7251 = vadd.f32 %v7143, %v7250
        %v7252 = vpop.f32.mrb[0].mxu0
        %7253 = vmatprep.mubr.bf16.mxu0 0
        %7254 = vmatmul.mubr.bf16.gmra.mrb[0].mxu0 %v7164
        %v7255 = vpop.f32.mrb[0].mxu0
        %v7256 = vadd.f32 %v7143, %v7255
        %v7257 = vpop.f32.mrb[0].mxu0
        %v7258 = vpop.f32.mrb[0].mxu0
        %v7259 = vadd.f32 %v7143, %v7258
        %v7260 = vpop.f32.mrb[0].mxu0
        %7261 = vmatprep.mubr.bf16.mxu0 0
        %7262 = vmatmul.mubr.bf16.gmra.mrb[0].mxu0 %v7167
        %v7263 = vpop.f32.mrb[0].mxu0
        %v7264 = vadd.f32 %v7143, %v7263
        %v7265 = vpop.f32.mrb[0].mxu0
        %v7266 = vpop.f32.mrb[0].mxu0
        %v7267 = vadd.f32 %v7143, %v7266
        %v7268 = vpop.f32.mrb[0].mxu0
        %7269 = vmatprep.mubr.bf16.mxu0 0
        %7270 = vmatmul.mubr.bf16.gmra.mrb[0].mxu0 %v7170
        %v7271 = vpop.f32.mrb[0].mxu0
        %v7272 = vadd.f32 %v7143, %v7271
        %v7273 = vpop.f32.mrb[0].mxu0
        %v7274 = vpop.f32.mrb[0].mxu0
        %v7275 = vadd.f32 %v7143, %v7274
        %v7276 = vpop.f32.mrb[0].mxu0
        %7277 = vmatprep.mubr.bf16.mxu0 0
        %7278 = vmatmul.mubr.bf16.gmra.mrb[0].mxu0 %v7173
        %v7279 = vpop.f32.mrb[0].mxu0
        %v7280 = vadd.f32 %v7143, %v7279
        %v7281 = vpop.f32.mrb[0].mxu0
        %v7282 = vpop.f32.mrb[0].mxu0
        %v7283 = vadd.f32 %v7143, %v7282
        %v7284 = vpop.f32.mrb[0].mxu0
        %7285 = vmatprep.mubr.bf16.mxu0 0
        %7286 = vmatmul.mubr.bf16.gmra.mrb[0].mxu0 %v7176
        %v7287 = vpop.f32.mrb[0].mxu0
        %v7288 = vadd.f32 %v7143, %v7287
        %v7289 = vpop.f32.mrb[0].mxu0
        %v7290 = vpop.f32.mrb[0].mxu0
        %v7291 = vadd.f32 %v7143, %v7290
        %v7292 = vpop.f32.mrb[0].mxu0
        %7293 = vmatprep.mubr.bf16.mxu0 0
        %7294 = vmatmul.mubr.bf16.gmra.mrb[0].mxu0 %v7179
        %v7295 = vpop.f32.mrb[0].mxu0
        %v7296 = vadd.f32 %v7143, %v7295
        %v7297 = vpop.f32.mrb[0].mxu0
        %v7298 = vpop.f32.mrb[0].mxu0
        %v7299 = vadd.f32 %v7143, %v7298
        %v7300 = vpop.f32.mrb[0].mxu0
        %7301 = vmatprep.mubr.bf16.mxu0 0
        %7302 = vmatmul.mubr.bf16.gmra.mrb[0].mxu0 %v7182
        %v7303 = vpop.f32.mrb[0].mxu0
        %v7304 = vadd.f32 %v7143, %v7303
        %v7305 = vpop.f32.mrb[0].mxu0
        %v7306 = vpop.f32.mrb[0].mxu0
        %v7307 = vadd.f32 %v7143, %v7306
        %v7308 = vpop.f32.mrb[0].mxu0
        %7309 = vmatprep.mubr.bf16.mxu0 0
        %7310 = vmatmul.mubr.bf16.gmra.mrb[0].mxu0 %v7185
        %v7311 = vpop.f32.mrb[0].mxu0
        %v7312 = vadd.f32 %v7143, %v7311
        %v7313 = vpop.f32.mrb[0].mxu0
        %v7314 = vpop.f32.mrb[0].mxu0
        %v7315 = vadd.f32 %v7143, %v7314
        %v7316 = vpop.f32.mrb[0].mxu0
        %7317 = vmatprep.mubr.bf16.mxu0 0
        %7318 = vmatmul.mubr.bf16.gmra.mrb[0].mxu0 %v7188
        %v7319 = vpop.f32.mrb[0].mxu0
        %v7320 = vadd.f32 %v7143, %v7319
        %v7321 = vpop.f32.mrb[0].mxu0
        %v7322 = vpop.f32.mrb[0].mxu0
        %v7323 = vadd.f32 %v7143, %v7322
        %v7324 = vpop.f32.mrb[0].mxu0
        %7325 = vmatprep.mubr.bf16.mxu0 0
        %7326 = vmatmul.mubr.bf16.gmra.mrb[0].mxu0 %v7191
        %v7327 = vpop.f32.mrb[0].mxu0
        %v7328 = vadd.f32 %v7143, %v7327
        %v7329 = vpop.f32.mrb[0].mxu0
        %v7330 = vpop.f32.mrb[0].mxu0
        %v7331 = vadd.f32 %v7143, %v7330
        %v7332 = vpop.f32.mrb[0].mxu0
        %7333 = vmatprep.mubr.bf16.mxu0 0
        %7334 = vmatmul.mubr.bf16.gmra.mrb[0].mxu0 %v7194
        %v7335 = vpop.f32.mrb[0].mxu0
        %v7336 = vadd.f32 %v7143, %v7335
        %v7337 = vpop.f32.mrb[0].mxu0
        %v7338 = vpop.f32.mrb[0].mxu0
        %v7339 = vadd.f32 %v7143, %v7338
        %v7340 = vpop.f32.mrb[0].mxu0
        %7341 = vmatprep.mubr.bf16.mxu0 0
        %7342 = vmatmul.mubr.bf16.gmra.mrb[0].mxu0 %v7197
        %v7343 = vpop.f32.mrb[0].mxu0
        %v7344 = vadd.f32 %v7143, %v7343
        %v7345 = vpop.f32.mrb[0].mxu0
        %v7346 = vpop.f32.mrb[0].mxu0
        %v7347 = vadd.f32 %v7143, %v7346
        %v7348 = vpop.f32.mrb[0].mxu0
        %7349 = vmatprep.mubr.bf16.mxu0 0
        %7350 = vmatmul.mubr.bf16.gmra.mrb[0].mxu0 %v7200
        %v7351 = vpop.f32.mrb[0].mxu0
        %v7352 = vadd.f32 %v7143, %v7351
        %v7353 = vpop.f32.mrb[0].mxu0
        %v7354 = vpop.f32.mrb[0].mxu0
        %v7355 = vadd.f32 %v7143, %v7354
        %v7356 = vpop.f32.mrb[0].mxu0
        %7357 = vmatprep.mubr.bf16.mxu0 0
        %7358 = vmatmul.mubr.bf16.gmra.mrb[0].mxu0 %v7203
        %v7359 = vpop.f32.mrb[0].mxu0
        %v7360 = vadd.f32 %v7143, %v7359
        %v7361 = vpop.f32.mrb[0].mxu0
        %v7362 = vpop.f32.mrb[0].mxu0
        %v7363 = vadd.f32 %v7143, %v7362
        %v7364 = vpop.f32.mrb[0].mxu0
        %7365 = vdwg.mxu0
        %v7366 = vadd.f32 %v6992, %v7240
        %v7367 = vadd.f32 %v6995, %v7243
        %v7368 = vadd.f32 %v7000, %v7248
        %v7369 = vadd.f32 %v7003, %v7251
        %v7370 = vadd.f32 %v7008, %v7256
        %v7371 = vadd.f32 %v7011, %v7259
        %v7372 = vadd.f32 %v7016, %v7264
        %v7373 = vadd.f32 %v7019, %v7267
        %v7374 = vadd.f32 %v7024, %v7272
        %v7375 = vadd.f32 %v7027, %v7275
        %v7376 = vadd.f32 %v7032, %v7280
        %v7377 = vadd.f32 %v7035, %v7283
        %v7378 = vadd.f32 %v7040, %v7288
        %v7379 = vadd.f32 %v7043, %v7291
        %v7380 = vadd.f32 %v7048, %v7296
        %v7381 = vadd.f32 %v7051, %v7299
        %v7382 = vadd.f32 %v7056, %v7304
        %v7383 = vadd.f32 %v7059, %v7307
        %v7384 = vadd.f32 %v7064, %v7312
        %v7385 = vadd.f32 %v7067, %v7315
        %v7386 = vadd.f32 %v7072, %v7320
        %v7387 = vadd.f32 %v7075, %v7323
        %v7388 = vadd.f32 %v7080, %v7328
        %v7389 = vadd.f32 %v7083, %v7331
        %v7390 = vadd.f32 %v7088, %v7336
        %v7391 = vadd.f32 %v7091, %v7339
        %v7392 = vadd.f32 %v7096, %v7344
        %v7393 = vadd.f32 %v7099, %v7347
        %v7394 = vadd.f32 %v7104, %v7352
        %v7395 = vadd.f32 %v7107, %v7355
        %v7396 = vadd.f32 %v7112, %v7360
        %v7397 = vadd.f32 %v7115, %v7363
        %7398 = vst.msk [vmem:[%s486] sm:$0xff] %vm3666, %v7366
        %7399 = vst.msk [vmem:[%s486 + $0x8] sm:$0xff] %vm3666, %v7367
        %7400 = vst.msk [vmem:[%s486 + $0x10] sm:$0xff] %vm3666, %v7368
        %7401 = vst.msk [vmem:[%s486 + $0x18] sm:$0xff] %vm3666, %v7369
        %7402 = vst.msk [vmem:[%s486 + $0x20] sm:$0xff] %vm3666, %v7370
        %7403 = vst.msk [vmem:[%s486 + $0x28] sm:$0xff] %vm3666, %v7371
        %7404 = vst.msk [vmem:[%s486 + $0x30] sm:$0xff] %vm3666, %v7372
        %7405 = vst.msk [vmem:[%s486 + $0x38] sm:$0xff] %vm3666, %v7373
        %7406 = vst.msk [vmem:[%s486 + $0x40] sm:$0xff] %vm3666, %v7374
        %7407 = vst.msk [vmem:[%s486 + $0x48] sm:$0xff] %vm3666, %v7375
        %7408 = vst.msk [vmem:[%s486 + $0x50] sm:$0xff] %vm3666, %v7376
        %7409 = vst.msk [vmem:[%s486 + $0x58] sm:$0xff] %vm3666, %v7377
        %7410 = vst.msk [vmem:[%s486 + $0x60] sm:$0xff] %vm3666, %v7378
        %7411 = vst.msk [vmem:[%s486 + $0x68] sm:$0xff] %vm3666, %v7379
        %7412 = vst.msk [vmem:[%s486 + $0x70] sm:$0xff] %vm3666, %v7380
        %7413 = vst.msk [vmem:[%s486 + $0x78] sm:$0xff] %vm3666, %v7381
        %7414 = vst.msk [vmem:[%s486 + $0x80] sm:$0xff] %vm3666, %v7382
        %7415 = vst.msk [vmem:[%s486 + $0x88] sm:$0xff] %vm3666, %v7383
        %7416 = vst.msk [vmem:[%s486 + $0x90] sm:$0xff] %vm3666, %v7384
        %7417 = vst.msk [vmem:[%s486 + $0x98] sm:$0xff] %vm3666, %v7385
        %7418 = vst.msk [vmem:[%s486 + $0xa0] sm:$0xff] %vm3666, %v7386
        %7419 = vst.msk [vmem:[%s486 + $0xa8] sm:$0xff] %vm3666, %v7387
        %7420 = vst.msk [vmem:[%s486 + $0xb0] sm:$0xff] %vm3666, %v7388
        %7421 = vst.msk [vmem:[%s486 + $0xb8] sm:$0xff] %vm3666, %v7389
        %7422 = vst.msk [vmem:[%s486 + $0xc0] sm:$0xff] %vm3666, %v7390
        %7423 = vst.msk [vmem:[%s486 + $0xc8] sm:$0xff] %vm3666, %v7391
        %7424 = vst.msk [vmem:[%s486 + $0xd0] sm:$0xff] %vm3666, %v7392
        %7425 = vst.msk [vmem:[%s486 + $0xd8] sm:$0xff] %vm3666, %v7393
        %7426 = vst.msk [vmem:[%s486 + $0xe0] sm:$0xff] %vm3666, %v7394
        %7427 = vst.msk [vmem:[%s486 + $0xe8] sm:$0xff] %vm3666, %v7395
        %7428 = vst.msk [vmem:[%s486 + $0xf0] sm:$0xff] %vm3666, %v7396
        %7429 = vst.msk [vmem:[%s486 + $0xf8] sm:$0xff] %vm3666, %v7397
        %s7430 = sand.u32 %s316, 1
        %s7431 = scalar_lea.sflag [#allocation8], %s7430
        %s7432 = sand.u32 %s316, 1
        %s7433 = smul.addr %s7432, 256
        %s7434 = scalar_lea.vmem [#allocation14], %s7433
        // Predicated region
        $region89: #{tpu_custom_call.1} parent=71 // pred_check
          %p7435 = pneg %p326
        $region90: #{tpu_custom_call.1} parent=71 // pred_check_branch
          %7437 = sbr.rel (%p7435) target = $region92
        $region91: #{tpu_custom_call.1} parent=71 // pred_region
          %s7439 = ssub.s32 4096, 4096
          %7440 = vsyncadd %s7431, %s7439
          %s7441 = smul.addr %s30, 32
          %s7442 = smul.addr %s7441, 128
          %s7443 = scalar_lea.hbm %s13, %s7442
          %s7444 = sshll.u32 %s7434, 4
          %s7445 = int_to_ptr.vmem [resolvable:$true] %s7444
          %7450 = dma.vmem_to_hbm [thread:$0]  %s7445, 4096, %s7443, %s7431, 128, 128, 8
        $region92: #{tpu_custom_call.1} parent=71 // pred_fallthru
          _
      $region72: #{tpu_custom_call.1} parent=5 // pred_fallthru
        _
      %p7451 = scmp.le.s32.totalorder 2, %s25
      // Predicated region
      $region93: #{tpu_custom_call.1} parent=5 // pred_check
        %p7452 = pneg %p7451
      $region94: #{tpu_custom_call.1} parent=5 // pred_check_branch
        %7454 = sbr.rel (%p7452) target = $region96
      $region95: #{tpu_custom_call.1} parent=5 // pred_region
        %s7455 = ssub.s32 %s25, 2
        // Predicated region
        $region97: #{tpu_custom_call.1} parent=95 // pred_check
          %p7456 = pneg %p332
        $region98: #{tpu_custom_call.1} parent=95 // pred_check_branch
          %7458 = sbr.rel (%p7456) target = $region100
        $region99: #{tpu_custom_call.1} parent=95 // pred_region
          %s7459 = sand.u32 %s317, 1
          %s7460 = scalar_lea.sflag [#allocation8], %s7459
          %s7461 = sand.u32 %s317, 1
          %s7462 = smul.addr %s7461, 256
          %s7463 = scalar_lea.vmem [#allocation14], %s7462
          %7464 = dma.done %s7460, 4096
        $region100: #{tpu_custom_call.1} parent=95 // pred_fallthru
          _
      $region96: #{tpu_custom_call.1} parent=5 // pred_fallthru
        _
    $region6: #{tpu_custom_call.1} parent=1 // loop_footer
      %s29 = sadd.s32 1, %s25
    $region7: #{tpu_custom_call.1} parent=1 // loop_footer_branch
      %24 = sbr.rel target = $region3
    $region8: #{tpu_custom_call.1} parent=1 // loop_exit
      _
    %7465 = vsyncpa [#allocation7], 1
    %s7466 = scalar_lea.sflag [#allocation7], 1
    %7467 = vsyncpa %s7466, 1
    %7468 = vsyncpa [#allocation10], 1
    %7469 = vsyncpa [#allocation13], 1
    %7470 = vsyncpa [#allocation8], 1
    %s7471 = scalar_lea.sflag [#allocation8], 1
    %7472 = vsyncpa %s7471, 1

</llo_original>
